<compile_context>
chip_gen: v6e
topology: v6e:2x2x1
jax: 0.10.0
libtpu: 0.0.40
codegen_flags: <defaults>
</compile_context>

<pallas_src>
import jax
import jax.numpy as jnp
from jax import lax
from jax.experimental import pallas as pl
from jax.experimental.pallas import tpu as pltpu

_CDT = jnp.bfloat16        # MXU operand dtype; accumulation is always f32


# ------------------------- layout helper functions -------------------------- #

def _round_up(x, m):
    return (x + m - 1) // m * m


def _conv_base(W):
    # sublane-aligned start row of the "interior" inside the padded buffer
    return _round_up(W + 1, 8)


def _conv_scratch_rows(H, W):
    # aligned top pad + interior + (W+1) bottom pad
    return _conv_base(W) + H * W + W + 1


def _pool_scratch_rows(H, W):
    # interior + (W+1) zero tail rows read by the +1 / +W / +W+1 shifts
    return H * W + W + 1


def _pool_select_matrix(H, W):
    """(H*W/4, H*W) 0/1 matrix selecting the 2x2-window anchor rows."""
    Ho, Wo = H // 2, W // 2
    rows = jnp.arange(Ho * Wo)
    anchors = (rows // Wo) * (2 * W) + (rows % Wo) * 2
    cols = jnp.arange(H * W)
    return (cols[None, :] == anchors[:, None]).astype(jnp.float32)


# ------------------------------ in-kernel ops ------------------------------- #

def _conv3x3_relu(x_val, p_ref, w_ref, b_ref, H, W):
    """3x3 'same' conv + bias + ReLU on a flat (H*W, Cin) activation.

    p_ref: zero-padded VMEM scratch (rows = _conv_scratch_rows(H, W)); row
    base+r holds flat pixel r.  The 9 taps are plain static slices of p_ref;
    h-boundary taps land in the zero pad rows, w-boundary taps are masked.
    """
    HW = H * W
    Cin = p_ref.shape[-1]
    Cout = w_ref.shape[-1]
    base = _conv_base(W)

    p_ref[...] = jnp.zeros_like(p_ref)
    p_ref[base:base + HW, :] = x_val          # aligned interior store

    wpos = lax.broadcasted_iota(jnp.int32, (HW, Cin), 0) % W
    acc = jnp.zeros((HW, Cout), jnp.float32)
    for di in (-1, 0, 1):
        for dj in (-1, 0, 1):
            tap = (di + 1) * 3 + (dj + 1)
            start = base + di * W + dj
            sl = p_ref[start:start + HW, :]
            if dj == -1:                      # left neighbor invalid at w == 0
                sl = jnp.where(wpos >= 1, sl, 0.0)
            elif dj == 1:                     # right neighbor invalid at w == W-1
                sl = jnp.where(wpos < W - 1, sl, 0.0)
            acc = acc + jnp.dot(sl.astype(_CDT), w_ref[tap],
                                preferred_element_type=jnp.float32)
    return jnp.maximum(acc + b_ref[...], 0.0)


def _maxpool2x2(a_val, q_ref, s_ref, H, W):
    """2x2 / stride-2 max pool of a flat (H*W, C) activation -> (H*W/4, C)."""
    HW = H * W
    q_ref[...] = jnp.zeros_like(q_ref)        # keeps the shifted tail rows finite
    q_ref[0:HW, :] = a_val
    y = jnp.maximum(jnp.maximum(q_ref[0:HW, :], q_ref[1:HW + 1, :]),
                    jnp.maximum(q_ref[W:HW + W, :], q_ref[W + 1:HW + W + 1, :]))
    # s_ref is a 0/1 selection matrix; only the anchor rows of y are kept.
    return jnp.dot(s_ref[...], y, preferred_element_type=jnp.float32)


def _detector_kernel(x_ref, w1_ref, b1_ref, s1_ref, w2_ref, b2_ref, s2_ref,
                     w3_ref, b3_ref, wl_ref, bl_ref, o_ref,
                     p1, q1, p2, q2, p3):
    x0 = x_ref[0]                                          # (256, 4)  f32
    a1 = _conv3x3_relu(x0, p1, w1_ref, b1_ref, 16, 16)     # (256, 16)
    x1 = _maxpool2x2(a1, q1, s1_ref, 16, 16)               # (64, 16)
    a2 = _conv3x3_relu(x1, p2, w2_ref, b2_ref, 8, 8)       # (64, 32)
    x2 = _maxpool2x2(a2, q2, s2_ref, 8, 8)                 # (16, 32)
    a3 = _conv3x3_relu(x2, p3, w3_ref, b3_ref, 4, 4)       # (16, 64)
    feats = jnp.mean(a3, axis=0, keepdims=True)            # (1, 64)  global avg pool
    o_ref[0] = jnp.dot(feats, wl_ref[...],
                       preferred_element_type=jnp.float32) + bl_ref[...]


# --------------------------------- wrapper ---------------------------------- #

def detector_forward(x_nchw, params):
    N = x_nchw.shape[0]
    H, W, C0 = 16, 16, 4
    x = jnp.transpose(x_nchw, (0, 2, 3, 1)).astype(jnp.float32)   # NCHW -> NHWC
    x = x.reshape(N, H * W, C0)
    s1 = _pool_select_matrix(16, 16)          # (64, 256)
    s2 = _pool_select_matrix(8, 8)            # (16, 64)

    out = pl.pallas_call(
        _detector_kernel,
        out_shape=jax.ShapeDtypeStruct((N, 1, 2), jnp.float32),
        grid=(N,),
        in_specs=[
            pl.BlockSpec((1, H * W, C0), lambda n: (n, 0, 0)),   # x
            pl.BlockSpec((9, 4, 16), lambda n: (0, 0, 0)),       # w1
            pl.BlockSpec((1, 16), lambda n: (0, 0)),             # b1
            pl.BlockSpec((64, 256), lambda n: (0, 0)),           # pool1 select
            pl.BlockSpec((9, 16, 32), lambda n: (0, 0, 0)),      # w2
            pl.BlockSpec((1, 32), lambda n: (0, 0)),             # b2
            pl.BlockSpec((16, 64), lambda n: (0, 0)),            # pool2 select
            pl.BlockSpec((9, 32, 64), lambda n: (0, 0, 0)),      # w3
            pl.BlockSpec((1, 64), lambda n: (0, 0)),             # b3
            pl.BlockSpec((64, 2), lambda n: (0, 0)),             # linear weight
            pl.BlockSpec((1, 2), lambda n: (0, 0)),              # linear bias
        ],
        out_specs=pl.BlockSpec((1, 1, 2), lambda n: (n, 0, 0)),
        scratch_shapes=[
            pltpu.VMEM((_conv_scratch_rows(16, 16), 4), jnp.float32),   # conv1 pad
            pltpu.VMEM((_pool_scratch_rows(16, 16), 16), jnp.float32),  # pool1 shifts
            pltpu.VMEM((_conv_scratch_rows(8, 8), 16), jnp.float32),    # conv2 pad
            pltpu.VMEM((_pool_scratch_rows(8, 8), 32), jnp.float32),    # pool2 shifts
            pltpu.VMEM((_conv_scratch_rows(4, 4), 32), jnp.float32),    # conv3 pad
        ],
        compiler_params=pltpu.CompilerParams(
            dimension_semantics=("parallel",)),
    )(x, params["w1"], params["b1"], s1, params["w2"], params["b2"], s2,
      params["w3"], params["b3"], params["wl"], params["bl"])
    return out.reshape(N, 2)


# --------------------------- parameter creation ------------------------------ #

def init_params(key):
    ks = jax.random.split(key, 8)

    def u(k, shape, fan_in):
        bound = 1.0 / float(fan_in) ** 0.5
        return jax.random.uniform(k, shape, jnp.float32, -bound, bound)

    # PyTorch-shaped raw params (OIHW conv weights, (out,in) linear weight)
    w1 = u(ks[0], (16, 4, 3, 3), 4 * 9);   b1 = u(ks[1], (16,), 4 * 9)
    w2 = u(ks[2], (32, 16, 3, 3), 16 * 9); b2 = u(ks[3], (32,), 16 * 9)
    w3 = u(ks[4], (64, 32, 3, 3), 32 * 9); b3 = u(ks[5], (64,), 32 * 9)
    wl = u(ks[6], (2, 64), 64);            bl = u(ks[7], (2,), 64)
    raw = dict(w1=w1, b1=b1, w2=w2, b2=b2, w3=w3, b3=b3, wl=wl, bl=bl)

    def taps(w):
        # OIHW -> (9, Cin, Cout), tap = kh*3 + kw, bf16 MXU operands
        cout, cin = w.shape[0], w.shape[1]
        return (jnp.transpose(w, (2, 3, 1, 0))
                .reshape(9, cin, cout).astype(_CDT))

    params = dict(
        w1=taps(w1), b1=b1.reshape(1, -1),
        w2=taps(w2), b2=b2.reshape(1, -1),
        w3=taps(w3), b3=b3.reshape(1, -1),
        wl=wl.T,     bl=bl.reshape(1, -1),
    )
    return params, raw


# -------------------------------- reference ---------------------------------- #

def reference_forward(x_nchw, raw):
    def conv(x, w, b):
        y = lax.conv_general_dilated(
            x, w, (1, 1), ((1, 1), (1, 1)),
            dimension_numbers=("NCHW", "OIHW", "NCHW"))
        return jax.nn.relu(y + b[None, :, None, None])

    def pool(x):
        return lax.reduce_window(x, -jnp.inf, lax.max,
                                 (1, 1, 2, 2), (1, 1, 2, 2), "VALID")

    x = pool(conv(x_nchw, raw["w1"], raw["b1"]))
    x = pool(conv(x, raw["w2"], raw["b2"]))
    x = conv(x, raw["w3"], raw["b3"])
    feat = jnp.mean(x, axis=(2, 3))
    return feat @ raw["wl"].T + raw["bl"]


# ----------------------------------- main ------------------------------------ #

if __name__ == "__main__":
    key = jax.random.PRNGKey(0)
    kx, kp = jax.random.split(key)
    x = jax.random.normal(kx, (2, 4, 16, 16), jnp.float32)   # NCHW, like PyTorch

    params, raw = init_params(kp)

    out = detector_forward(x, params)
    out = jax.block_until_ready(out)

    ref = jax.block_until_ready(reference_forward(x, raw))
    assert out.shape == (2, 2), out.shape
    assert jnp.allclose(out, ref, atol=5e-2, rtol=5e-2), (out, ref)

    print("KERNEL_OK")
</pallas_src>

<mosaic_0001>
module attributes {stable_mosaic.version = 11 : i64} {
  func.func @_detector_kernel(%arg0: i32, %arg1: memref<1x256x4xf32, #tpu.memory_space<vmem>>, %arg2: memref<9x4x16xbf16, #tpu.memory_space<vmem>>, %arg3: memref<1x16xf32, #tpu.memory_space<vmem>>, %arg4: memref<64x256xf32, #tpu.memory_space<vmem>>, %arg5: memref<9x16x32xbf16, #tpu.memory_space<vmem>>, %arg6: memref<1x32xf32, #tpu.memory_space<vmem>>, %arg7: memref<16x64xf32, #tpu.memory_space<vmem>>, %arg8: memref<9x32x64xbf16, #tpu.memory_space<vmem>>, %arg9: memref<1x64xf32, #tpu.memory_space<vmem>>, %arg10: memref<64x2xf32, #tpu.memory_space<vmem>>, %arg11: memref<1x2xf32, #tpu.memory_space<vmem>>, %arg12: memref<1x1x2xf32, #tpu.memory_space<vmem>>, %arg13: memref<297x4xf32, #tpu.memory_space<vmem>>, %arg14: memref<273x16xf32, #tpu.memory_space<vmem>>, %arg15: memref<89x16xf32, #tpu.memory_space<vmem>>, %arg16: memref<73x32xf32, #tpu.memory_space<vmem>>, %arg17: memref<29x32xf32, #tpu.memory_space<vmem>>) attributes {dimension_semantics = [#tpu.dimension_semantics<parallel>], iteration_bounds = array<i64: 2>, scalar_prefetch = 0 : i64, scratch_operands = 5 : i64, tpu.core_type = #tpu.core_type<tc>, window_params = [{transform_indices = @transform_0, window_bounds = array<i64: 1, 256, 4>}, {pipeline_mode = #tpu.pipeline_mode<synchronous>, transform_indices = @transform_1, window_bounds = array<i64: 9, 4, 16>}, {pipeline_mode = #tpu.pipeline_mode<synchronous>, transform_indices = @transform_2, window_bounds = array<i64: 1, 16>}, {pipeline_mode = #tpu.pipeline_mode<synchronous>, transform_indices = @transform_3, window_bounds = array<i64: 64, 256>}, {pipeline_mode = #tpu.pipeline_mode<synchronous>, transform_indices = @transform_4, window_bounds = array<i64: 9, 16, 32>}, {pipeline_mode = #tpu.pipeline_mode<synchronous>, transform_indices = @transform_5, window_bounds = array<i64: 1, 32>}, {pipeline_mode = #tpu.pipeline_mode<synchronous>, transform_indices = @transform_6, window_bounds = array<i64: 16, 64>}, {pipeline_mode = #tpu.pipeline_mode<synchronous>, transform_indices = @transform_7, window_bounds = array<i64: 9, 32, 64>}, {pipeline_mode = #tpu.pipeline_mode<synchronous>, transform_indices = @transform_8, window_bounds = array<i64: 1, 64>}, {pipeline_mode = #tpu.pipeline_mode<synchronous>, transform_indices = @transform_9, window_bounds = array<i64: 64, 2>}, {pipeline_mode = #tpu.pipeline_mode<synchronous>, transform_indices = @transform_10, window_bounds = array<i64: 1, 2>}, {transform_indices = @transform_11, window_bounds = array<i64: 1, 1, 2>}]} {
    %c0 = arith.constant 0 : index
    %c0_0 = arith.constant 0 : index
    %c0_1 = arith.constant 0 : index
    %0 = vector.load %arg1[%c0, %c0_0, %c0_1] : memref<1x256x4xf32, #tpu.memory_space<vmem>>, vector<1x256x4xf32>
    %1 = vector.shape_cast %0 : vector<1x256x4xf32> to vector<256x4xf32>
    %cst = arith.constant 0.000000e+00 : f32
    %2 = vector.broadcast %cst : f32 to vector<297x4xf32>
    %c0_2 = arith.constant 0 : index
    %c0_3 = arith.constant 0 : index
    %3 = vector.load %arg13[%c0_2, %c0_3] : memref<297x4xf32, #tpu.memory_space<vmem>>, vector<297x4xf32>
    tpu.vector_store %arg13[%c0_2, %c0_3], %2 {strides = array<i32>} : memref<297x4xf32, #tpu.memory_space<vmem>>, vector<297x4xf32>,
    %c24 = arith.constant 24 : index
    %c0_4 = arith.constant 0 : index
    %4 = vector.load %arg13[%c24, %c0_4] : memref<297x4xf32, #tpu.memory_space<vmem>>, vector<256x4xf32>
    tpu.vector_store %arg13[%c24, %c0_4], %1 {strides = array<i32>} : memref<297x4xf32, #tpu.memory_space<vmem>>, vector<256x4xf32>,
    %5 = tpu.iota {dimensions = array<i32: 0>} : vector<256x4xi32>
    %c16_i32 = arith.constant 16 : i32
    %c0_i32 = arith.constant 0 : i32
    %6 = arith.cmpi eq, %c16_i32, %c0_i32 : i32
    %c1_i32 = arith.constant 1 : i32
    %7 = arith.select %6, %c1_i32, %c16_i32 : i32
    %8 = vector.broadcast %7 : i32 to vector<256x4xi32>
    %9 = arith.remsi %5, %8 : vector<256x4xi32>
    %c0_i32_5 = arith.constant 0 : i32
    %10 = vector.broadcast %c0_i32_5 : i32 to vector<256x4xi32>
    %11 = arith.cmpi ne, %9, %10 : vector<256x4xi32>
    %c0_i32_6 = arith.constant 0 : i32
    %12 = vector.broadcast %c0_i32_6 : i32 to vector<256x4xi32>
    %13 = arith.cmpi slt, %9, %12 : vector<256x4xi32>
    %c0_i32_7 = arith.constant 0 : i32
    %14 = arith.cmpi slt, %7, %c0_i32_7 : i32
    %15 = vector.broadcast %14 : i1 to vector<256x4xi1>
    %16 = vector.broadcast %15 : vector<256x4xi1> to vector<256x4xi1>
    %17 = arith.xori %13, %16 : vector<256x4xi1>
    %18 = arith.andi %17, %11 : vector<256x4xi1>
    %19 = vector.broadcast %7 : i32 to vector<256x4xi32>
    %20 = arith.addi %9, %19 : vector<256x4xi32>
    %21 = arith.select %18, %20, %9 : vector<256x4xi1>, vector<256x4xi32>
    %cst_8 = arith.constant 0.000000e+00 : f32
    %22 = vector.broadcast %cst_8 : f32 to vector<256x16xf32>
    %c7 = arith.constant 7 : index
    %c0_9 = arith.constant 0 : index
    %23 = vector.load %arg13[%c7, %c0_9] : memref<297x4xf32, #tpu.memory_space<vmem>>, vector<256x4xf32>
    %c1_i32_10 = arith.constant 1 : i32
    %24 = vector.broadcast %c1_i32_10 : i32 to vector<256x4xi32>
    %25 = arith.cmpi sge, %21, %24 : vector<256x4xi32>
    %cst_11 = arith.constant 0.000000e+00 : f32
    %26 = vector.broadcast %cst_11 : f32 to vector<256x4xf32>
    %27 = arith.select %25, %23, %26 : vector<256x4xi1>, vector<256x4xf32>
    %28 = arith.truncf %27 : vector<256x4xf32> to vector<256x4xbf16>
    %c0_12 = arith.constant 0 : index
    %c0_13 = arith.constant 0 : index
    %c0_14 = arith.constant 0 : index
    %29 = vector.load %arg2[%c0_12, %c0_13, %c0_14] : memref<9x4x16xbf16, #tpu.memory_space<vmem>>, vector<1x4x16xbf16>
    %30 = vector.shape_cast %29 : vector<1x4x16xbf16> to vector<4x16xbf16>
    %cst_15 = arith.constant dense<0.000000e+00> : vector<256x16xf32>
    %31 = tpu.matmul %28, %30, %cst_15 {dimension_numbers = #tpu.dot_dimension_numbers<[1], [0], [0], [1], [0, 0, 1, 1], [], []>} : vector<256x4xbf16>, vector<4x16xbf16>, vector<256x16xf32> -> vector<256x16xf32>
    %32 = arith.addf %22, %31 : vector<256x16xf32>
    %c8 = arith.constant 8 : index
    %c0_16 = arith.constant 0 : index
    %33 = vector.load %arg13[%c8, %c0_16] : memref<297x4xf32, #tpu.memory_space<vmem>>, vector<256x4xf32>
    %34 = arith.truncf %33 : vector<256x4xf32> to vector<256x4xbf16>
    %c1 = arith.constant 1 : index
    %c0_17 = arith.constant 0 : index
    %c0_18 = arith.constant 0 : index
    %35 = vector.load %arg2[%c1, %c0_17, %c0_18] : memref<9x4x16xbf16, #tpu.memory_space<vmem>>, vector<1x4x16xbf16>
    %36 = vector.shape_cast %35 : vector<1x4x16xbf16> to vector<4x16xbf16>
    %cst_19 = arith.constant dense<0.000000e+00> : vector<256x16xf32>
    %37 = tpu.matmul %34, %36, %cst_19 {dimension_numbers = #tpu.dot_dimension_numbers<[1], [0], [0], [1], [0, 0, 1, 1], [], []>} : vector<256x4xbf16>, vector<4x16xbf16>, vector<256x16xf32> -> vector<256x16xf32>
    %38 = arith.addf %32, %37 : vector<256x16xf32>
    %c9 = arith.constant 9 : index
    %c0_20 = arith.constant 0 : index
    %39 = vector.load %arg13[%c9, %c0_20] : memref<297x4xf32, #tpu.memory_space<vmem>>, vector<256x4xf32>
    %c15_i32 = arith.constant 15 : i32
    %40 = vector.broadcast %c15_i32 : i32 to vector<256x4xi32>
    %41 = arith.cmpi slt, %21, %40 : vector<256x4xi32>
    %cst_21 = arith.constant 0.000000e+00 : f32
    %42 = vector.broadcast %cst_21 : f32 to vector<256x4xf32>
    %43 = arith.select %41, %39, %42 : vector<256x4xi1>, vector<256x4xf32>
    %44 = arith.truncf %43 : vector<256x4xf32> to vector<256x4xbf16>
    %c2 = arith.constant 2 : index
    %c0_22 = arith.constant 0 : index
    %c0_23 = arith.constant 0 : index
    %45 = vector.load %arg2[%c2, %c0_22, %c0_23] : memref<9x4x16xbf16, #tpu.memory_space<vmem>>, vector<1x4x16xbf16>
    %46 = vector.shape_cast %45 : vector<1x4x16xbf16> to vector<4x16xbf16>
    %cst_24 = arith.constant dense<0.000000e+00> : vector<256x16xf32>
    %47 = tpu.matmul %44, %46, %cst_24 {dimension_numbers = #tpu.dot_dimension_numbers<[1], [0], [0], [1], [0, 0, 1, 1], [], []>} : vector<256x4xbf16>, vector<4x16xbf16>, vector<256x16xf32> -> vector<256x16xf32>
    %48 = arith.addf %38, %47 : vector<256x16xf32>
    %c23 = arith.constant 23 : index
    %c0_25 = arith.constant 0 : index
    %49 = vector.load %arg13[%c23, %c0_25] : memref<297x4xf32, #tpu.memory_space<vmem>>, vector<256x4xf32>
    %c1_i32_26 = arith.constant 1 : i32
    %50 = vector.broadcast %c1_i32_26 : i32 to vector<256x4xi32>
    %51 = arith.cmpi sge, %21, %50 : vector<256x4xi32>
    %cst_27 = arith.constant 0.000000e+00 : f32
    %52 = vector.broadcast %cst_27 : f32 to vector<256x4xf32>
    %53 = arith.select %51, %49, %52 : vector<256x4xi1>, vector<256x4xf32>
    %54 = arith.truncf %53 : vector<256x4xf32> to vector<256x4xbf16>
    %c3 = arith.constant 3 : index
    %c0_28 = arith.constant 0 : index
    %c0_29 = arith.constant 0 : index
    %55 = vector.load %arg2[%c3, %c0_28, %c0_29] : memref<9x4x16xbf16, #tpu.memory_space<vmem>>, vector<1x4x16xbf16>
    %56 = vector.shape_cast %55 : vector<1x4x16xbf16> to vector<4x16xbf16>
    %cst_30 = arith.constant dense<0.000000e+00> : vector<256x16xf32>
    %57 = tpu.matmul %54, %56, %cst_30 {dimension_numbers = #tpu.dot_dimension_numbers<[1], [0], [0], [1], [0, 0, 1, 1], [], []>} : vector<256x4xbf16>, vector<4x16xbf16>, vector<256x16xf32> -> vector<256x16xf32>
    %58 = arith.addf %48, %57 : vector<256x16xf32>
    %c24_31 = arith.constant 24 : index
    %c0_32 = arith.constant 0 : index
    %59 = vector.load %arg13[%c24_31, %c0_32] : memref<297x4xf32, #tpu.memory_space<vmem>>, vector<256x4xf32>
    %60 = arith.truncf %59 : vector<256x4xf32> to vector<256x4xbf16>
    %c4 = arith.constant 4 : index
    %c0_33 = arith.constant 0 : index
    %c0_34 = arith.constant 0 : index
    %61 = vector.load %arg2[%c4, %c0_33, %c0_34] : memref<9x4x16xbf16, #tpu.memory_space<vmem>>, vector<1x4x16xbf16>
    %62 = vector.shape_cast %61 : vector<1x4x16xbf16> to vector<4x16xbf16>
    %cst_35 = arith.constant dense<0.000000e+00> : vector<256x16xf32>
    %63 = tpu.matmul %60, %62, %cst_35 {dimension_numbers = #tpu.dot_dimension_numbers<[1], [0], [0], [1], [0, 0, 1, 1], [], []>} : vector<256x4xbf16>, vector<4x16xbf16>, vector<256x16xf32> -> vector<256x16xf32>
    %64 = arith.addf %58, %63 : vector<256x16xf32>
    %c25 = arith.constant 25 : index
    %c0_36 = arith.constant 0 : index
    %65 = vector.load %arg13[%c25, %c0_36] : memref<297x4xf32, #tpu.memory_space<vmem>>, vector<256x4xf32>
    %c15_i32_37 = arith.constant 15 : i32
    %66 = vector.broadcast %c15_i32_37 : i32 to vector<256x4xi32>
    %67 = arith.cmpi slt, %21, %66 : vector<256x4xi32>
    %cst_38 = arith.constant 0.000000e+00 : f32
    %68 = vector.broadcast %cst_38 : f32 to vector<256x4xf32>
    %69 = arith.select %67, %65, %68 : vector<256x4xi1>, vector<256x4xf32>
    %70 = arith.truncf %69 : vector<256x4xf32> to vector<256x4xbf16>
    %c5 = arith.constant 5 : index
    %c0_39 = arith.constant 0 : index
    %c0_40 = arith.constant 0 : index
    %71 = vector.load %arg2[%c5, %c0_39, %c0_40] : memref<9x4x16xbf16, #tpu.memory_space<vmem>>, vector<1x4x16xbf16>
    %72 = vector.shape_cast %71 : vector<1x4x16xbf16> to vector<4x16xbf16>
    %cst_41 = arith.constant dense<0.000000e+00> : vector<256x16xf32>
    %73 = tpu.matmul %70, %72, %cst_41 {dimension_numbers = #tpu.dot_dimension_numbers<[1], [0], [0], [1], [0, 0, 1, 1], [], []>} : vector<256x4xbf16>, vector<4x16xbf16>, vector<256x16xf32> -> vector<256x16xf32>
    %74 = arith.addf %64, %73 : vector<256x16xf32>
    %c39 = arith.constant 39 : index
    %c0_42 = arith.constant 0 : index
    %75 = vector.load %arg13[%c39, %c0_42] : memref<297x4xf32, #tpu.memory_space<vmem>>, vector<256x4xf32>
    %c1_i32_43 = arith.constant 1 : i32
    %76 = vector.broadcast %c1_i32_43 : i32 to vector<256x4xi32>
    %77 = arith.cmpi sge, %21, %76 : vector<256x4xi32>
    %cst_44 = arith.constant 0.000000e+00 : f32
    %78 = vector.broadcast %cst_44 : f32 to vector<256x4xf32>
    %79 = arith.select %77, %75, %78 : vector<256x4xi1>, vector<256x4xf32>
    %80 = arith.truncf %79 : vector<256x4xf32> to vector<256x4xbf16>
    %c6 = arith.constant 6 : index
    %c0_45 = arith.constant 0 : index
    %c0_46 = arith.constant 0 : index
    %81 = vector.load %arg2[%c6, %c0_45, %c0_46] : memref<9x4x16xbf16, #tpu.memory_space<vmem>>, vector<1x4x16xbf16>
    %82 = vector.shape_cast %81 : vector<1x4x16xbf16> to vector<4x16xbf16>
    %cst_47 = arith.constant dense<0.000000e+00> : vector<256x16xf32>
    %83 = tpu.matmul %80, %82, %cst_47 {dimension_numbers = #tpu.dot_dimension_numbers<[1], [0], [0], [1], [0, 0, 1, 1], [], []>} : vector<256x4xbf16>, vector<4x16xbf16>, vector<256x16xf32> -> vector<256x16xf32>
    %84 = arith.addf %74, %83 : vector<256x16xf32>
    %c40 = arith.constant 40 : index
    %c0_48 = arith.constant 0 : index
    %85 = vector.load %arg13[%c40, %c0_48] : memref<297x4xf32, #tpu.memory_space<vmem>>, vector<256x4xf32>
    %86 = arith.truncf %85 : vector<256x4xf32> to vector<256x4xbf16>
    %c7_49 = arith.constant 7 : index
    %c0_50 = arith.constant 0 : index
    %c0_51 = arith.constant 0 : index
    %87 = vector.load %arg2[%c7_49, %c0_50, %c0_51] : memref<9x4x16xbf16, #tpu.memory_space<vmem>>, vector<1x4x16xbf16>
    %88 = vector.shape_cast %87 : vector<1x4x16xbf16> to vector<4x16xbf16>
    %cst_52 = arith.constant dense<0.000000e+00> : vector<256x16xf32>
    %89 = tpu.matmul %86, %88, %cst_52 {dimension_numbers = #tpu.dot_dimension_numbers<[1], [0], [0], [1], [0, 0, 1, 1], [], []>} : vector<256x4xbf16>, vector<4x16xbf16>, vector<256x16xf32> -> vector<256x16xf32>
    %90 = arith.addf %84, %89 : vector<256x16xf32>
    %c41 = arith.constant 41 : index
    %c0_53 = arith.constant 0 : index
    %91 = vector.load %arg13[%c41, %c0_53] : memref<297x4xf32, #tpu.memory_space<vmem>>, vector<256x4xf32>
    %c15_i32_54 = arith.constant 15 : i32
    %92 = vector.broadcast %c15_i32_54 : i32 to vector<256x4xi32>
    %93 = arith.cmpi slt, %21, %92 : vector<256x4xi32>
    %cst_55 = arith.constant 0.000000e+00 : f32
    %94 = vector.broadcast %cst_55 : f32 to vector<256x4xf32>
    %95 = arith.select %93, %91, %94 : vector<256x4xi1>, vector<256x4xf32>
    %96 = arith.truncf %95 : vector<256x4xf32> to vector<256x4xbf16>
    %c8_56 = arith.constant 8 : index
    %c0_57 = arith.constant 0 : index
    %c0_58 = arith.constant 0 : index
    %97 = vector.load %arg2[%c8_56, %c0_57, %c0_58] : memref<9x4x16xbf16, #tpu.memory_space<vmem>>, vector<1x4x16xbf16>
    %98 = vector.shape_cast %97 : vector<1x4x16xbf16> to vector<4x16xbf16>
    %cst_59 = arith.constant dense<0.000000e+00> : vector<256x16xf32>
    %99 = tpu.matmul %96, %98, %cst_59 {dimension_numbers = #tpu.dot_dimension_numbers<[1], [0], [0], [1], [0, 0, 1, 1], [], []>} : vector<256x4xbf16>, vector<4x16xbf16>, vector<256x16xf32> -> vector<256x16xf32>
    %100 = arith.addf %90, %99 : vector<256x16xf32>
    %c0_60 = arith.constant 0 : index
    %c0_61 = arith.constant 0 : index
    %101 = vector.load %arg3[%c0_60, %c0_61] : memref<1x16xf32, #tpu.memory_space<vmem>>, vector<1x16xf32>
    %102 = vector.broadcast %101 : vector<1x16xf32> to vector<256x16xf32>
    %103 = arith.addf %100, %102 : vector<256x16xf32>
    %cst_62 = arith.constant 0.000000e+00 : f32
    %104 = vector.broadcast %cst_62 : f32 to vector<256x16xf32>
    %105 = arith.maximumf %103, %104 : vector<256x16xf32>
    %cst_63 = arith.constant 0.000000e+00 : f32
    %106 = vector.broadcast %cst_63 : f32 to vector<273x16xf32>
    %c0_64 = arith.constant 0 : index
    %c0_65 = arith.constant 0 : index
    %107 = vector.load %arg14[%c0_64, %c0_65] : memref<273x16xf32, #tpu.memory_space<vmem>>, vector<273x16xf32>
    tpu.vector_store %arg14[%c0_64, %c0_65], %106 {strides = array<i32>} : memref<273x16xf32, #tpu.memory_space<vmem>>, vector<273x16xf32>,
    %c0_66 = arith.constant 0 : index
    %c0_67 = arith.constant 0 : index
    %108 = vector.load %arg14[%c0_66, %c0_67] : memref<273x16xf32, #tpu.memory_space<vmem>>, vector<256x16xf32>
    tpu.vector_store %arg14[%c0_66, %c0_67], %105 {strides = array<i32>} : memref<273x16xf32, #tpu.memory_space<vmem>>, vector<256x16xf32>,
    %c0_68 = arith.constant 0 : index
    %c0_69 = arith.constant 0 : index
    %109 = vector.load %arg14[%c0_68, %c0_69] : memref<273x16xf32, #tpu.memory_space<vmem>>, vector<256x16xf32>
    %c1_70 = arith.constant 1 : index
    %c0_71 = arith.constant 0 : index
    %110 = vector.load %arg14[%c1_70, %c0_71] : memref<273x16xf32, #tpu.memory_space<vmem>>, vector<256x16xf32>
    %111 = arith.maximumf %109, %110 : vector<256x16xf32>
    %c16 = arith.constant 16 : index
    %c0_72 = arith.constant 0 : index
    %112 = vector.load %arg14[%c16, %c0_72] : memref<273x16xf32, #tpu.memory_space<vmem>>, vector<256x16xf32>
    %c17 = arith.constant 17 : index
    %c0_73 = arith.constant 0 : index
    %113 = vector.load %arg14[%c17, %c0_73] : memref<273x16xf32, #tpu.memory_space<vmem>>, vector<256x16xf32>
    %114 = arith.maximumf %112, %113 : vector<256x16xf32>
    %115 = arith.maximumf %111, %114 : vector<256x16xf32>
    %c0_74 = arith.constant 0 : index
    %c0_75 = arith.constant 0 : index
    %116 = vector.load %arg4[%c0_74, %c0_75] : memref<64x256xf32, #tpu.memory_space<vmem>>, vector<64x256xf32>
    %cst_76 = arith.constant dense<0.000000e+00> : vector<64x16xf32>
    %117 = tpu.matmul %116, %115, %cst_76 {dimension_numbers = #tpu.dot_dimension_numbers<[1], [0], [0], [1], [0, 0, 1, 1], [], []>} : vector<64x256xf32>, vector<256x16xf32>, vector<64x16xf32> -> vector<64x16xf32>
    %cst_77 = arith.constant 0.000000e+00 : f32
    %118 = vector.broadcast %cst_77 : f32 to vector<89x16xf32>
    %c0_78 = arith.constant 0 : index
    %c0_79 = arith.constant 0 : index
    %119 = vector.load %arg15[%c0_78, %c0_79] : memref<89x16xf32, #tpu.memory_space<vmem>>, vector<89x16xf32>
    tpu.vector_store %arg15[%c0_78, %c0_79], %118 {strides = array<i32>} : memref<89x16xf32, #tpu.memory_space<vmem>>, vector<89x16xf32>,
    %c16_80 = arith.constant 16 : index
    %c0_81 = arith.constant 0 : index
    %120 = vector.load %arg15[%c16_80, %c0_81] : memref<89x16xf32, #tpu.memory_space<vmem>>, vector<64x16xf32>
    tpu.vector_store %arg15[%c16_80, %c0_81], %117 {strides = array<i32>} : memref<89x16xf32, #tpu.memory_space<vmem>>, vector<64x16xf32>,
    %121 = tpu.iota {dimensions = array<i32: 0>} : vector<64x16xi32>
    %c8_i32 = arith.constant 8 : i32
    %c0_i32_82 = arith.constant 0 : i32
    %122 = arith.cmpi eq, %c8_i32, %c0_i32_82 : i32
    %c1_i32_83 = arith.constant 1 : i32
    %123 = arith.select %122, %c1_i32_83, %c8_i32 : i32
    %124 = vector.broadcast %123 : i32 to vector<64x16xi32>
    %125 = arith.remsi %121, %124 : vector<64x16xi32>
    %c0_i32_84 = arith.constant 0 : i32
    %126 = vector.broadcast %c0_i32_84 : i32 to vector<64x16xi32>
    %127 = arith.cmpi ne, %125, %126 : vector<64x16xi32>
    %c0_i32_85 = arith.constant 0 : i32
    %128 = vector.broadcast %c0_i32_85 : i32 to vector<64x16xi32>
    %129 = arith.cmpi slt, %125, %128 : vector<64x16xi32>
    %c0_i32_86 = arith.constant 0 : i32
    %130 = arith.cmpi slt, %123, %c0_i32_86 : i32
    %131 = vector.broadcast %130 : i1 to vector<64x16xi1>
    %132 = vector.broadcast %131 : vector<64x16xi1> to vector<64x16xi1>
    %133 = arith.xori %129, %132 : vector<64x16xi1>
    %134 = arith.andi %133, %127 : vector<64x16xi1>
    %135 = vector.broadcast %123 : i32 to vector<64x16xi32>
    %136 = arith.addi %125, %135 : vector<64x16xi32>
    %137 = arith.select %134, %136, %125 : vector<64x16xi1>, vector<64x16xi32>
    %cst_87 = arith.constant 0.000000e+00 : f32
    %138 = vector.broadcast %cst_87 : f32 to vector<64x32xf32>
    %c7_88 = arith.constant 7 : index
    %c0_89 = arith.constant 0 : index
    %139 = vector.load %arg15[%c7_88, %c0_89] : memref<89x16xf32, #tpu.memory_space<vmem>>, vector<64x16xf32>
    %c1_i32_90 = arith.constant 1 : i32
    %140 = vector.broadcast %c1_i32_90 : i32 to vector<64x16xi32>
    %141 = arith.cmpi sge, %137, %140 : vector<64x16xi32>
    %cst_91 = arith.constant 0.000000e+00 : f32
    %142 = vector.broadcast %cst_91 : f32 to vector<64x16xf32>
    %143 = arith.select %141, %139, %142 : vector<64x16xi1>, vector<64x16xf32>
    %144 = arith.truncf %143 : vector<64x16xf32> to vector<64x16xbf16>
    %c0_92 = arith.constant 0 : index
    %c0_93 = arith.constant 0 : index
    %c0_94 = arith.constant 0 : index
    %145 = vector.load %arg5[%c0_92, %c0_93, %c0_94] : memref<9x16x32xbf16, #tpu.memory_space<vmem>>, vector<1x16x32xbf16>
    %146 = vector.shape_cast %145 : vector<1x16x32xbf16> to vector<16x32xbf16>
    %cst_95 = arith.constant dense<0.000000e+00> : vector<64x32xf32>
    %147 = tpu.matmul %144, %146, %cst_95 {dimension_numbers = #tpu.dot_dimension_numbers<[1], [0], [0], [1], [0, 0, 1, 1], [], []>} : vector<64x16xbf16>, vector<16x32xbf16>, vector<64x32xf32> -> vector<64x32xf32>
    %148 = arith.addf %138, %147 : vector<64x32xf32>
    %c8_96 = arith.constant 8 : index
    %c0_97 = arith.constant 0 : index
    %149 = vector.load %arg15[%c8_96, %c0_97] : memref<89x16xf32, #tpu.memory_space<vmem>>, vector<64x16xf32>
    %150 = arith.truncf %149 : vector<64x16xf32> to vector<64x16xbf16>
    %c1_98 = arith.constant 1 : index
    %c0_99 = arith.constant 0 : index
    %c0_100 = arith.constant 0 : index
    %151 = vector.load %arg5[%c1_98, %c0_99, %c0_100] : memref<9x16x32xbf16, #tpu.memory_space<vmem>>, vector<1x16x32xbf16>
    %152 = vector.shape_cast %151 : vector<1x16x32xbf16> to vector<16x32xbf16>
    %cst_101 = arith.constant dense<0.000000e+00> : vector<64x32xf32>
    %153 = tpu.matmul %150, %152, %cst_101 {dimension_numbers = #tpu.dot_dimension_numbers<[1], [0], [0], [1], [0, 0, 1, 1], [], []>} : vector<64x16xbf16>, vector<16x32xbf16>, vector<64x32xf32> -> vector<64x32xf32>
    %154 = arith.addf %148, %153 : vector<64x32xf32>
    %c9_102 = arith.constant 9 : index
    %c0_103 = arith.constant 0 : index
    %155 = vector.load %arg15[%c9_102, %c0_103] : memref<89x16xf32, #tpu.memory_space<vmem>>, vector<64x16xf32>
    %c7_i32 = arith.constant 7 : i32
    %156 = vector.broadcast %c7_i32 : i32 to vector<64x16xi32>
    %157 = arith.cmpi slt, %137, %156 : vector<64x16xi32>
    %cst_104 = arith.constant 0.000000e+00 : f32
    %158 = vector.broadcast %cst_104 : f32 to vector<64x16xf32>
    %159 = arith.select %157, %155, %158 : vector<64x16xi1>, vector<64x16xf32>
    %160 = arith.truncf %159 : vector<64x16xf32> to vector<64x16xbf16>
    %c2_105 = arith.constant 2 : index
    %c0_106 = arith.constant 0 : index
    %c0_107 = arith.constant 0 : index
    %161 = vector.load %arg5[%c2_105, %c0_106, %c0_107] : memref<9x16x32xbf16, #tpu.memory_space<vmem>>, vector<1x16x32xbf16>
    %162 = vector.shape_cast %161 : vector<1x16x32xbf16> to vector<16x32xbf16>
    %cst_108 = arith.constant dense<0.000000e+00> : vector<64x32xf32>
    %163 = tpu.matmul %160, %162, %cst_108 {dimension_numbers = #tpu.dot_dimension_numbers<[1], [0], [0], [1], [0, 0, 1, 1], [], []>} : vector<64x16xbf16>, vector<16x32xbf16>, vector<64x32xf32> -> vector<64x32xf32>
    %164 = arith.addf %154, %163 : vector<64x32xf32>
    %c15 = arith.constant 15 : index
    %c0_109 = arith.constant 0 : index
    %165 = vector.load %arg15[%c15, %c0_109] : memref<89x16xf32, #tpu.memory_space<vmem>>, vector<64x16xf32>
    %c1_i32_110 = arith.constant 1 : i32
    %166 = vector.broadcast %c1_i32_110 : i32 to vector<64x16xi32>
    %167 = arith.cmpi sge, %137, %166 : vector<64x16xi32>
    %cst_111 = arith.constant 0.000000e+00 : f32
    %168 = vector.broadcast %cst_111 : f32 to vector<64x16xf32>
    %169 = arith.select %167, %165, %168 : vector<64x16xi1>, vector<64x16xf32>
    %170 = arith.truncf %169 : vector<64x16xf32> to vector<64x16xbf16>
    %c3_112 = arith.constant 3 : index
    %c0_113 = arith.constant 0 : index
    %c0_114 = arith.constant 0 : index
    %171 = vector.load %arg5[%c3_112, %c0_113, %c0_114] : memref<9x16x32xbf16, #tpu.memory_space<vmem>>, vector<1x16x32xbf16>
    %172 = vector.shape_cast %171 : vector<1x16x32xbf16> to vector<16x32xbf16>
    %cst_115 = arith.constant dense<0.000000e+00> : vector<64x32xf32>
    %173 = tpu.matmul %170, %172, %cst_115 {dimension_numbers = #tpu.dot_dimension_numbers<[1], [0], [0], [1], [0, 0, 1, 1], [], []>} : vector<64x16xbf16>, vector<16x32xbf16>, vector<64x32xf32> -> vector<64x32xf32>
    %174 = arith.addf %164, %173 : vector<64x32xf32>
    %c16_116 = arith.constant 16 : index
    %c0_117 = arith.constant 0 : index
    %175 = vector.load %arg15[%c16_116, %c0_117] : memref<89x16xf32, #tpu.memory_space<vmem>>, vector<64x16xf32>
    %176 = arith.truncf %175 : vector<64x16xf32> to vector<64x16xbf16>
    %c4_118 = arith.constant 4 : index
    %c0_119 = arith.constant 0 : index
    %c0_120 = arith.constant 0 : index
    %177 = vector.load %arg5[%c4_118, %c0_119, %c0_120] : memref<9x16x32xbf16, #tpu.memory_space<vmem>>, vector<1x16x32xbf16>
    %178 = vector.shape_cast %177 : vector<1x16x32xbf16> to vector<16x32xbf16>
    %cst_121 = arith.constant dense<0.000000e+00> : vector<64x32xf32>
    %179 = tpu.matmul %176, %178, %cst_121 {dimension_numbers = #tpu.dot_dimension_numbers<[1], [0], [0], [1], [0, 0, 1, 1], [], []>} : vector<64x16xbf16>, vector<16x32xbf16>, vector<64x32xf32> -> vector<64x32xf32>
    %180 = arith.addf %174, %179 : vector<64x32xf32>
    %c17_122 = arith.constant 17 : index
    %c0_123 = arith.constant 0 : index
    %181 = vector.load %arg15[%c17_122, %c0_123] : memref<89x16xf32, #tpu.memory_space<vmem>>, vector<64x16xf32>
    %c7_i32_124 = arith.constant 7 : i32
    %182 = vector.broadcast %c7_i32_124 : i32 to vector<64x16xi32>
    %183 = arith.cmpi slt, %137, %182 : vector<64x16xi32>
    %cst_125 = arith.constant 0.000000e+00 : f32
    %184 = vector.broadcast %cst_125 : f32 to vector<64x16xf32>
    %185 = arith.select %183, %181, %184 : vector<64x16xi1>, vector<64x16xf32>
    %186 = arith.truncf %185 : vector<64x16xf32> to vector<64x16xbf16>
    %c5_126 = arith.constant 5 : index
    %c0_127 = arith.constant 0 : index
    %c0_128 = arith.constant 0 : index
    %187 = vector.load %arg5[%c5_126, %c0_127, %c0_128] : memref<9x16x32xbf16, #tpu.memory_space<vmem>>, vector<1x16x32xbf16>
    %188 = vector.shape_cast %187 : vector<1x16x32xbf16> to vector<16x32xbf16>
    %cst_129 = arith.constant dense<0.000000e+00> : vector<64x32xf32>
    %189 = tpu.matmul %186, %188, %cst_129 {dimension_numbers = #tpu.dot_dimension_numbers<[1], [0], [0], [1], [0, 0, 1, 1], [], []>} : vector<64x16xbf16>, vector<16x32xbf16>, vector<64x32xf32> -> vector<64x32xf32>
    %190 = arith.addf %180, %189 : vector<64x32xf32>
    %c23_130 = arith.constant 23 : index
    %c0_131 = arith.constant 0 : index
    %191 = vector.load %arg15[%c23_130, %c0_131] : memref<89x16xf32, #tpu.memory_space<vmem>>, vector<64x16xf32>
    %c1_i32_132 = arith.constant 1 : i32
    %192 = vector.broadcast %c1_i32_132 : i32 to vector<64x16xi32>
    %193 = arith.cmpi sge, %137, %192 : vector<64x16xi32>
    %cst_133 = arith.constant 0.000000e+00 : f32
    %194 = vector.broadcast %cst_133 : f32 to vector<64x16xf32>
    %195 = arith.select %193, %191, %194 : vector<64x16xi1>, vector<64x16xf32>
    %196 = arith.truncf %195 : vector<64x16xf32> to vector<64x16xbf16>
    %c6_134 = arith.constant 6 : index
    %c0_135 = arith.constant 0 : index
    %c0_136 = arith.constant 0 : index
    %197 = vector.load %arg5[%c6_134, %c0_135, %c0_136] : memref<9x16x32xbf16, #tpu.memory_space<vmem>>, vector<1x16x32xbf16>
    %198 = vector.shape_cast %197 : vector<1x16x32xbf16> to vector<16x32xbf16>
    %cst_137 = arith.constant dense<0.000000e+00> : vector<64x32xf32>
    %199 = tpu.matmul %196, %198, %cst_137 {dimension_numbers = #tpu.dot_dimension_numbers<[1], [0], [0], [1], [0, 0, 1, 1], [], []>} : vector<64x16xbf16>, vector<16x32xbf16>, vector<64x32xf32> -> vector<64x32xf32>
    %200 = arith.addf %190, %199 : vector<64x32xf32>
    %c24_138 = arith.constant 24 : index
    %c0_139 = arith.constant 0 : index
    %201 = vector.load %arg15[%c24_138, %c0_139] : memref<89x16xf32, #tpu.memory_space<vmem>>, vector<64x16xf32>
    %202 = arith.truncf %201 : vector<64x16xf32> to vector<64x16xbf16>
    %c7_140 = arith.constant 7 : index
    %c0_141 = arith.constant 0 : index
    %c0_142 = arith.constant 0 : index
    %203 = vector.load %arg5[%c7_140, %c0_141, %c0_142] : memref<9x16x32xbf16, #tpu.memory_space<vmem>>, vector<1x16x32xbf16>
    %204 = vector.shape_cast %203 : vector<1x16x32xbf16> to vector<16x32xbf16>
    %cst_143 = arith.constant dense<0.000000e+00> : vector<64x32xf32>
    %205 = tpu.matmul %202, %204, %cst_143 {dimension_numbers = #tpu.dot_dimension_numbers<[1], [0], [0], [1], [0, 0, 1, 1], [], []>} : vector<64x16xbf16>, vector<16x32xbf16>, vector<64x32xf32> -> vector<64x32xf32>
    %206 = arith.addf %200, %205 : vector<64x32xf32>
    %c25_144 = arith.constant 25 : index
    %c0_145 = arith.constant 0 : index
    %207 = vector.load %arg15[%c25_144, %c0_145] : memref<89x16xf32, #tpu.memory_space<vmem>>, vector<64x16xf32>
    %c7_i32_146 = arith.constant 7 : i32
    %208 = vector.broadcast %c7_i32_146 : i32 to vector<64x16xi32>
    %209 = arith.cmpi slt, %137, %208 : vector<64x16xi32>
    %cst_147 = arith.constant 0.000000e+00 : f32
    %210 = vector.broadcast %cst_147 : f32 to vector<64x16xf32>
    %211 = arith.select %209, %207, %210 : vector<64x16xi1>, vector<64x16xf32>
    %212 = arith.truncf %211 : vector<64x16xf32> to vector<64x16xbf16>
    %c8_148 = arith.constant 8 : index
    %c0_149 = arith.constant 0 : index
    %c0_150 = arith.constant 0 : index
    %213 = vector.load %arg5[%c8_148, %c0_149, %c0_150] : memref<9x16x32xbf16, #tpu.memory_space<vmem>>, vector<1x16x32xbf16>
    %214 = vector.shape_cast %213 : vector<1x16x32xbf16> to vector<16x32xbf16>
    %cst_151 = arith.constant dense<0.000000e+00> : vector<64x32xf32>
    %215 = tpu.matmul %212, %214, %cst_151 {dimension_numbers = #tpu.dot_dimension_numbers<[1], [0], [0], [1], [0, 0, 1, 1], [], []>} : vector<64x16xbf16>, vector<16x32xbf16>, vector<64x32xf32> -> vector<64x32xf32>
    %216 = arith.addf %206, %215 : vector<64x32xf32>
    %c0_152 = arith.constant 0 : index
    %c0_153 = arith.constant 0 : index
    %217 = vector.load %arg6[%c0_152, %c0_153] : memref<1x32xf32, #tpu.memory_space<vmem>>, vector<1x32xf32>
    %218 = vector.broadcast %217 : vector<1x32xf32> to vector<64x32xf32>
    %219 = arith.addf %216, %218 : vector<64x32xf32>
    %cst_154 = arith.constant 0.000000e+00 : f32
    %220 = vector.broadcast %cst_154 : f32 to vector<64x32xf32>
    %221 = arith.maximumf %219, %220 : vector<64x32xf32>
    %cst_155 = arith.constant 0.000000e+00 : f32
    %222 = vector.broadcast %cst_155 : f32 to vector<73x32xf32>
    %c0_156 = arith.constant 0 : index
    %c0_157 = arith.constant 0 : index
    %223 = vector.load %arg16[%c0_156, %c0_157] : memref<73x32xf32, #tpu.memory_space<vmem>>, vector<73x32xf32>
    tpu.vector_store %arg16[%c0_156, %c0_157], %222 {strides = array<i32>} : memref<73x32xf32, #tpu.memory_space<vmem>>, vector<73x32xf32>,
    %c0_158 = arith.constant 0 : index
    %c0_159 = arith.constant 0 : index
    %224 = vector.load %arg16[%c0_158, %c0_159] : memref<73x32xf32, #tpu.memory_space<vmem>>, vector<64x32xf32>
    tpu.vector_store %arg16[%c0_158, %c0_159], %221 {strides = array<i32>} : memref<73x32xf32, #tpu.memory_space<vmem>>, vector<64x32xf32>,
    %c0_160 = arith.constant 0 : index
    %c0_161 = arith.constant 0 : index
    %225 = vector.load %arg16[%c0_160, %c0_161] : memref<73x32xf32, #tpu.memory_space<vmem>>, vector<64x32xf32>
    %c1_162 = arith.constant 1 : index
    %c0_163 = arith.constant 0 : index
    %226 = vector.load %arg16[%c1_162, %c0_163] : memref<73x32xf32, #tpu.memory_space<vmem>>, vector<64x32xf32>
    %227 = arith.maximumf %225, %226 : vector<64x32xf32>
    %c8_164 = arith.constant 8 : index
    %c0_165 = arith.constant 0 : index
    %228 = vector.load %arg16[%c8_164, %c0_165] : memref<73x32xf32, #tpu.memory_space<vmem>>, vector<64x32xf32>
    %c9_166 = arith.constant 9 : index
    %c0_167 = arith.constant 0 : index
    %229 = vector.load %arg16[%c9_166, %c0_167] : memref<73x32xf32, #tpu.memory_space<vmem>>, vector<64x32xf32>
    %230 = arith.maximumf %228, %229 : vector<64x32xf32>
    %231 = arith.maximumf %227, %230 : vector<64x32xf32>
    %c0_168 = arith.constant 0 : index
    %c0_169 = arith.constant 0 : index
    %232 = vector.load %arg7[%c0_168, %c0_169] : memref<16x64xf32, #tpu.memory_space<vmem>>, vector<16x64xf32>
    %cst_170 = arith.constant dense<0.000000e+00> : vector<16x32xf32>
    %233 = tpu.matmul %232, %231, %cst_170 {dimension_numbers = #tpu.dot_dimension_numbers<[1], [0], [0], [1], [0, 0, 1, 1], [], []>} : vector<16x64xf32>, vector<64x32xf32>, vector<16x32xf32> -> vector<16x32xf32>
    %cst_171 = arith.constant 0.000000e+00 : f32
    %234 = vector.broadcast %cst_171 : f32 to vector<29x32xf32>
    %c0_172 = arith.constant 0 : index
    %c0_173 = arith.constant 0 : index
    %235 = vector.load %arg17[%c0_172, %c0_173] : memref<29x32xf32, #tpu.memory_space<vmem>>, vector<29x32xf32>
    tpu.vector_store %arg17[%c0_172, %c0_173], %234 {strides = array<i32>} : memref<29x32xf32, #tpu.memory_space<vmem>>, vector<29x32xf32>,
    %c8_174 = arith.constant 8 : index
    %c0_175 = arith.constant 0 : index
    %236 = vector.load %arg17[%c8_174, %c0_175] : memref<29x32xf32, #tpu.memory_space<vmem>>, vector<16x32xf32>
    tpu.vector_store %arg17[%c8_174, %c0_175], %233 {strides = array<i32>} : memref<29x32xf32, #tpu.memory_space<vmem>>, vector<16x32xf32>,
    %237 = tpu.iota {dimensions = array<i32: 0>} : vector<16x32xi32>
    %c4_i32 = arith.constant 4 : i32
    %c0_i32_176 = arith.constant 0 : i32
    %238 = arith.cmpi eq, %c4_i32, %c0_i32_176 : i32
    %c1_i32_177 = arith.constant 1 : i32
    %239 = arith.select %238, %c1_i32_177, %c4_i32 : i32
    %240 = vector.broadcast %239 : i32 to vector<16x32xi32>
    %241 = arith.remsi %237, %240 : vector<16x32xi32>
    %c0_i32_178 = arith.constant 0 : i32
    %242 = vector.broadcast %c0_i32_178 : i32 to vector<16x32xi32>
    %243 = arith.cmpi ne, %241, %242 : vector<16x32xi32>
    %c0_i32_179 = arith.constant 0 : i32
    %244 = vector.broadcast %c0_i32_179 : i32 to vector<16x32xi32>
    %245 = arith.cmpi slt, %241, %244 : vector<16x32xi32>
    %c0_i32_180 = arith.constant 0 : i32
    %246 = arith.cmpi slt, %239, %c0_i32_180 : i32
    %247 = vector.broadcast %246 : i1 to vector<16x32xi1>
    %248 = vector.broadcast %247 : vector<16x32xi1> to vector<16x32xi1>
    %249 = arith.xori %245, %248 : vector<16x32xi1>
    %250 = arith.andi %249, %243 : vector<16x32xi1>
    %251 = vector.broadcast %239 : i32 to vector<16x32xi32>
    %252 = arith.addi %241, %251 : vector<16x32xi32>
    %253 = arith.select %250, %252, %241 : vector<16x32xi1>, vector<16x32xi32>
    %cst_181 = arith.constant 0.000000e+00 : f32
    %254 = vector.broadcast %cst_181 : f32 to vector<16x64xf32>
    %c3_182 = arith.constant 3 : index
    %c0_183 = arith.constant 0 : index
    %255 = vector.load %arg17[%c3_182, %c0_183] : memref<29x32xf32, #tpu.memory_space<vmem>>, vector<16x32xf32>
    %c1_i32_184 = arith.constant 1 : i32
    %256 = vector.broadcast %c1_i32_184 : i32 to vector<16x32xi32>
    %257 = arith.cmpi sge, %253, %256 : vector<16x32xi32>
    %cst_185 = arith.constant 0.000000e+00 : f32
    %258 = vector.broadcast %cst_185 : f32 to vector<16x32xf32>
    %259 = arith.select %257, %255, %258 : vector<16x32xi1>, vector<16x32xf32>
    %260 = arith.truncf %259 : vector<16x32xf32> to vector<16x32xbf16>
    %c0_186 = arith.constant 0 : index
    %c0_187 = arith.constant 0 : index
    %c0_188 = arith.constant 0 : index
    %261 = vector.load %arg8[%c0_186, %c0_187, %c0_188] : memref<9x32x64xbf16, #tpu.memory_space<vmem>>, vector<1x32x64xbf16>
    %262 = vector.shape_cast %261 : vector<1x32x64xbf16> to vector<32x64xbf16>
    %cst_189 = arith.constant dense<0.000000e+00> : vector<16x64xf32>
    %263 = tpu.matmul %260, %262, %cst_189 {dimension_numbers = #tpu.dot_dimension_numbers<[1], [0], [0], [1], [0, 0, 1, 1], [], []>} : vector<16x32xbf16>, vector<32x64xbf16>, vector<16x64xf32> -> vector<16x64xf32>
    %264 = arith.addf %254, %263 : vector<16x64xf32>
    %c4_190 = arith.constant 4 : index
    %c0_191 = arith.constant 0 : index
    %265 = vector.load %arg17[%c4_190, %c0_191] : memref<29x32xf32, #tpu.memory_space<vmem>>, vector<16x32xf32>
    %266 = arith.truncf %265 : vector<16x32xf32> to vector<16x32xbf16>
    %c1_192 = arith.constant 1 : index
    %c0_193 = arith.constant 0 : index
    %c0_194 = arith.constant 0 : index
    %267 = vector.load %arg8[%c1_192, %c0_193, %c0_194] : memref<9x32x64xbf16, #tpu.memory_space<vmem>>, vector<1x32x64xbf16>
    %268 = vector.shape_cast %267 : vector<1x32x64xbf16> to vector<32x64xbf16>
    %cst_195 = arith.constant dense<0.000000e+00> : vector<16x64xf32>
    %269 = tpu.matmul %266, %268, %cst_195 {dimension_numbers = #tpu.dot_dimension_numbers<[1], [0], [0], [1], [0, 0, 1, 1], [], []>} : vector<16x32xbf16>, vector<32x64xbf16>, vector<16x64xf32> -> vector<16x64xf32>
    %270 = arith.addf %264, %269 : vector<16x64xf32>
    %c5_196 = arith.constant 5 : index
    %c0_197 = arith.constant 0 : index
    %271 = vector.load %arg17[%c5_196, %c0_197] : memref<29x32xf32, #tpu.memory_space<vmem>>, vector<16x32xf32>
    %c3_i32 = arith.constant 3 : i32
    %272 = vector.broadcast %c3_i32 : i32 to vector<16x32xi32>
    %273 = arith.cmpi slt, %253, %272 : vector<16x32xi32>
    %cst_198 = arith.constant 0.000000e+00 : f32
    %274 = vector.broadcast %cst_198 : f32 to vector<16x32xf32>
    %275 = arith.select %273, %271, %274 : vector<16x32xi1>, vector<16x32xf32>
    %276 = arith.truncf %275 : vector<16x32xf32> to vector<16x32xbf16>
    %c2_199 = arith.constant 2 : index
    %c0_200 = arith.constant 0 : index
    %c0_201 = arith.constant 0 : index
    %277 = vector.load %arg8[%c2_199, %c0_200, %c0_201] : memref<9x32x64xbf16, #tpu.memory_space<vmem>>, vector<1x32x64xbf16>
    %278 = vector.shape_cast %277 : vector<1x32x64xbf16> to vector<32x64xbf16>
    %cst_202 = arith.constant dense<0.000000e+00> : vector<16x64xf32>
    %279 = tpu.matmul %276, %278, %cst_202 {dimension_numbers = #tpu.dot_dimension_numbers<[1], [0], [0], [1], [0, 0, 1, 1], [], []>} : vector<16x32xbf16>, vector<32x64xbf16>, vector<16x64xf32> -> vector<16x64xf32>
    %280 = arith.addf %270, %279 : vector<16x64xf32>
    %c7_203 = arith.constant 7 : index
    %c0_204 = arith.constant 0 : index
    %281 = vector.load %arg17[%c7_203, %c0_204] : memref<29x32xf32, #tpu.memory_space<vmem>>, vector<16x32xf32>
    %c1_i32_205 = arith.constant 1 : i32
    %282 = vector.broadcast %c1_i32_205 : i32 to vector<16x32xi32>
    %283 = arith.cmpi sge, %253, %282 : vector<16x32xi32>
    %cst_206 = arith.constant 0.000000e+00 : f32
    %284 = vector.broadcast %cst_206 : f32 to vector<16x32xf32>
    %285 = arith.select %283, %281, %284 : vector<16x32xi1>, vector<16x32xf32>
    %286 = arith.truncf %285 : vector<16x32xf32> to vector<16x32xbf16>
    %c3_207 = arith.constant 3 : index
    %c0_208 = arith.constant 0 : index
    %c0_209 = arith.constant 0 : index
    %287 = vector.load %arg8[%c3_207, %c0_208, %c0_209] : memref<9x32x64xbf16, #tpu.memory_space<vmem>>, vector<1x32x64xbf16>
    %288 = vector.shape_cast %287 : vector<1x32x64xbf16> to vector<32x64xbf16>
    %cst_210 = arith.constant dense<0.000000e+00> : vector<16x64xf32>
    %289 = tpu.matmul %286, %288, %cst_210 {dimension_numbers = #tpu.dot_dimension_numbers<[1], [0], [0], [1], [0, 0, 1, 1], [], []>} : vector<16x32xbf16>, vector<32x64xbf16>, vector<16x64xf32> -> vector<16x64xf32>
    %290 = arith.addf %280, %289 : vector<16x64xf32>
    %c8_211 = arith.constant 8 : index
    %c0_212 = arith.constant 0 : index
    %291 = vector.load %arg17[%c8_211, %c0_212] : memref<29x32xf32, #tpu.memory_space<vmem>>, vector<16x32xf32>
    %292 = arith.truncf %291 : vector<16x32xf32> to vector<16x32xbf16>
    %c4_213 = arith.constant 4 : index
    %c0_214 = arith.constant 0 : index
    %c0_215 = arith.constant 0 : index
    %293 = vector.load %arg8[%c4_213, %c0_214, %c0_215] : memref<9x32x64xbf16, #tpu.memory_space<vmem>>, vector<1x32x64xbf16>
    %294 = vector.shape_cast %293 : vector<1x32x64xbf16> to vector<32x64xbf16>
    %cst_216 = arith.constant dense<0.000000e+00> : vector<16x64xf32>
    %295 = tpu.matmul %292, %294, %cst_216 {dimension_numbers = #tpu.dot_dimension_numbers<[1], [0], [0], [1], [0, 0, 1, 1], [], []>} : vector<16x32xbf16>, vector<32x64xbf16>, vector<16x64xf32> -> vector<16x64xf32>
    %296 = arith.addf %290, %295 : vector<16x64xf32>
    %c9_217 = arith.constant 9 : index
    %c0_218 = arith.constant 0 : index
    %297 = vector.load %arg17[%c9_217, %c0_218] : memref<29x32xf32, #tpu.memory_space<vmem>>, vector<16x32xf32>
    %c3_i32_219 = arith.constant 3 : i32
    %298 = vector.broadcast %c3_i32_219 : i32 to vector<16x32xi32>
    %299 = arith.cmpi slt, %253, %298 : vector<16x32xi32>
    %cst_220 = arith.constant 0.000000e+00 : f32
    %300 = vector.broadcast %cst_220 : f32 to vector<16x32xf32>
    %301 = arith.select %299, %297, %300 : vector<16x32xi1>, vector<16x32xf32>
    %302 = arith.truncf %301 : vector<16x32xf32> to vector<16x32xbf16>
    %c5_221 = arith.constant 5 : index
    %c0_222 = arith.constant 0 : index
    %c0_223 = arith.constant 0 : index
    %303 = vector.load %arg8[%c5_221, %c0_222, %c0_223] : memref<9x32x64xbf16, #tpu.memory_space<vmem>>, vector<1x32x64xbf16>
    %304 = vector.shape_cast %303 : vector<1x32x64xbf16> to vector<32x64xbf16>
    %cst_224 = arith.constant dense<0.000000e+00> : vector<16x64xf32>
    %305 = tpu.matmul %302, %304, %cst_224 {dimension_numbers = #tpu.dot_dimension_numbers<[1], [0], [0], [1], [0, 0, 1, 1], [], []>} : vector<16x32xbf16>, vector<32x64xbf16>, vector<16x64xf32> -> vector<16x64xf32>
    %306 = arith.addf %296, %305 : vector<16x64xf32>
    %c11 = arith.constant 11 : index
    %c0_225 = arith.constant 0 : index
    %307 = vector.load %arg17[%c11, %c0_225] : memref<29x32xf32, #tpu.memory_space<vmem>>, vector<16x32xf32>
    %c1_i32_226 = arith.constant 1 : i32
    %308 = vector.broadcast %c1_i32_226 : i32 to vector<16x32xi32>
    %309 = arith.cmpi sge, %253, %308 : vector<16x32xi32>
    %cst_227 = arith.constant 0.000000e+00 : f32
    %310 = vector.broadcast %cst_227 : f32 to vector<16x32xf32>
    %311 = arith.select %309, %307, %310 : vector<16x32xi1>, vector<16x32xf32>
    %312 = arith.truncf %311 : vector<16x32xf32> to vector<16x32xbf16>
    %c6_228 = arith.constant 6 : index
    %c0_229 = arith.constant 0 : index
    %c0_230 = arith.constant 0 : index
    %313 = vector.load %arg8[%c6_228, %c0_229, %c0_230] : memref<9x32x64xbf16, #tpu.memory_space<vmem>>, vector<1x32x64xbf16>
    %314 = vector.shape_cast %313 : vector<1x32x64xbf16> to vector<32x64xbf16>
    %cst_231 = arith.constant dense<0.000000e+00> : vector<16x64xf32>
    %315 = tpu.matmul %312, %314, %cst_231 {dimension_numbers = #tpu.dot_dimension_numbers<[1], [0], [0], [1], [0, 0, 1, 1], [], []>} : vector<16x32xbf16>, vector<32x64xbf16>, vector<16x64xf32> -> vector<16x64xf32>
    %316 = arith.addf %306, %315 : vector<16x64xf32>
    %c12 = arith.constant 12 : index
    %c0_232 = arith.constant 0 : index
    %317 = vector.load %arg17[%c12, %c0_232] : memref<29x32xf32, #tpu.memory_space<vmem>>, vector<16x32xf32>
    %318 = arith.truncf %317 : vector<16x32xf32> to vector<16x32xbf16>
    %c7_233 = arith.constant 7 : index
    %c0_234 = arith.constant 0 : index
    %c0_235 = arith.constant 0 : index
    %319 = vector.load %arg8[%c7_233, %c0_234, %c0_235] : memref<9x32x64xbf16, #tpu.memory_space<vmem>>, vector<1x32x64xbf16>
    %320 = vector.shape_cast %319 : vector<1x32x64xbf16> to vector<32x64xbf16>
    %cst_236 = arith.constant dense<0.000000e+00> : vector<16x64xf32>
    %321 = tpu.matmul %318, %320, %cst_236 {dimension_numbers = #tpu.dot_dimension_numbers<[1], [0], [0], [1], [0, 0, 1, 1], [], []>} : vector<16x32xbf16>, vector<32x64xbf16>, vector<16x64xf32> -> vector<16x64xf32>
    %322 = arith.addf %316, %321 : vector<16x64xf32>
    %c13 = arith.constant 13 : index
    %c0_237 = arith.constant 0 : index
    %323 = vector.load %arg17[%c13, %c0_237] : memref<29x32xf32, #tpu.memory_space<vmem>>, vector<16x32xf32>
    %c3_i32_238 = arith.constant 3 : i32
    %324 = vector.broadcast %c3_i32_238 : i32 to vector<16x32xi32>
    %325 = arith.cmpi slt, %253, %324 : vector<16x32xi32>
    %cst_239 = arith.constant 0.000000e+00 : f32
    %326 = vector.broadcast %cst_239 : f32 to vector<16x32xf32>
    %327 = arith.select %325, %323, %326 : vector<16x32xi1>, vector<16x32xf32>
    %328 = arith.truncf %327 : vector<16x32xf32> to vector<16x32xbf16>
    %c8_240 = arith.constant 8 : index
    %c0_241 = arith.constant 0 : index
    %c0_242 = arith.constant 0 : index
    %329 = vector.load %arg8[%c8_240, %c0_241, %c0_242] : memref<9x32x64xbf16, #tpu.memory_space<vmem>>, vector<1x32x64xbf16>
    %330 = vector.shape_cast %329 : vector<1x32x64xbf16> to vector<32x64xbf16>
    %cst_243 = arith.constant dense<0.000000e+00> : vector<16x64xf32>
    %331 = tpu.matmul %328, %330, %cst_243 {dimension_numbers = #tpu.dot_dimension_numbers<[1], [0], [0], [1], [0, 0, 1, 1], [], []>} : vector<16x32xbf16>, vector<32x64xbf16>, vector<16x64xf32> -> vector<16x64xf32>
    %332 = arith.addf %322, %331 : vector<16x64xf32>
    %c0_244 = arith.constant 0 : index
    %c0_245 = arith.constant 0 : index
    %333 = vector.load %arg9[%c0_244, %c0_245] : memref<1x64xf32, #tpu.memory_space<vmem>>, vector<1x64xf32>
    %334 = vector.broadcast %333 : vector<1x64xf32> to vector<16x64xf32>
    %335 = arith.addf %332, %334 : vector<16x64xf32>
    %cst_246 = arith.constant 0.000000e+00 : f32
    %336 = vector.broadcast %cst_246 : f32 to vector<16x64xf32>
    %337 = arith.maximumf %335, %336 : vector<16x64xf32>
    %cst_247 = arith.constant dense<0.000000e+00> : vector<64xf32>
    %338 = vector.multi_reduction <add>, %337, %cst_247 [0] : vector<16x64xf32> to vector<64xf32>
    %339 = vector.shape_cast %338 : vector<64xf32> to vector<1x64xf32>
    %cst_248 = arith.constant 1.600000e+01 : f32
    %340 = vector.broadcast %cst_248 : f32 to vector<1x64xf32>
    %341 = arith.divf %339, %340 : vector<1x64xf32>
    %c0_249 = arith.constant 0 : index
    %c0_250 = arith.constant 0 : index
    %342 = vector.load %arg10[%c0_249, %c0_250] : memref<64x2xf32, #tpu.memory_space<vmem>>, vector<64x2xf32>
    %cst_251 = arith.constant dense<0.000000e+00> : vector<1x2xf32>
    %343 = tpu.matmul %341, %342, %cst_251 {dimension_numbers = #tpu.dot_dimension_numbers<[1], [0], [0], [1], [0, 0, 1, 1], [], []>} : vector<1x64xf32>, vector<64x2xf32>, vector<1x2xf32> -> vector<1x2xf32>
    %c0_252 = arith.constant 0 : index
    %c0_253 = arith.constant 0 : index
    %344 = vector.load %arg11[%c0_252, %c0_253] : memref<1x2xf32, #tpu.memory_space<vmem>>, vector<1x2xf32>
    %345 = arith.addf %343, %344 : vector<1x2xf32>
    %c0_254 = arith.constant 0 : index
    %c0_255 = arith.constant 0 : index
    %c0_256 = arith.constant 0 : index
    %346 = vector.load %arg12[%c0_254, %c0_255, %c0_256] : memref<1x1x2xf32, #tpu.memory_space<vmem>>, vector<1x1x2xf32>
    %347 = vector.shape_cast %346 : vector<1x1x2xf32> to vector<1x2xf32>
    %348 = vector.shape_cast %345 : vector<1x2xf32> to vector<1x1x2xf32>
    tpu.vector_store %arg12[%c0_254, %c0_255, %c0_256], %348 {strides = array<i32>} : memref<1x1x2xf32, #tpu.memory_space<vmem>>, vector<1x1x2xf32>,
    return
  }
  func.func @transform_0(%arg0: i32) -> (i32, i32, i32) {
    %c0_i32 = arith.constant 0 : i32
    %c0_i32_0 = arith.constant 0 : i32
    %c0_i32_1 = arith.constant 0 : i32
    return %arg0, %c0_i32, %c0_i32_0 : i32, i32, i32
  }
  func.func @transform_1(%arg0: i32) -> (i32, i32, i32) {
    %c0_i32 = arith.constant 0 : i32
    %c0_i32_0 = arith.constant 0 : i32
    %c0_i32_1 = arith.constant 0 : i32
    %c0_i32_2 = arith.constant 0 : i32
    return %c0_i32, %c0_i32_0, %c0_i32_1 : i32, i32, i32
  }
  func.func @transform_2(%arg0: i32) -> (i32, i32) {
    %c0_i32 = arith.constant 0 : i32
    %c0_i32_0 = arith.constant 0 : i32
    %c0_i32_1 = arith.constant 0 : i32
    return %c0_i32, %c0_i32_0 : i32, i32
  }
  func.func @transform_3(%arg0: i32) -> (i32, i32) {
    %c0_i32 = arith.constant 0 : i32
    %c0_i32_0 = arith.constant 0 : i32
    %c0_i32_1 = arith.constant 0 : i32
    return %c0_i32, %c0_i32_0 : i32, i32
  }
  func.func @transform_4(%arg0: i32) -> (i32, i32, i32) {
    %c0_i32 = arith.constant 0 : i32
    %c0_i32_0 = arith.constant 0 : i32
    %c0_i32_1 = arith.constant 0 : i32
    %c0_i32_2 = arith.constant 0 : i32
    return %c0_i32, %c0_i32_0, %c0_i32_1 : i32, i32, i32
  }
  func.func @transform_5(%arg0: i32) -> (i32, i32) {
    %c0_i32 = arith.constant 0 : i32
    %c0_i32_0 = arith.constant 0 : i32
    %c0_i32_1 = arith.constant 0 : i32
    return %c0_i32, %c0_i32_0 : i32, i32
  }
  func.func @transform_6(%arg0: i32) -> (i32, i32) {
    %c0_i32 = arith.constant 0 : i32
    %c0_i32_0 = arith.constant 0 : i32
    %c0_i32_1 = arith.constant 0 : i32
    return %c0_i32, %c0_i32_0 : i32, i32
  }
  func.func @transform_7(%arg0: i32) -> (i32, i32, i32) {
    %c0_i32 = arith.constant 0 : i32
    %c0_i32_0 = arith.constant 0 : i32
    %c0_i32_1 = arith.constant 0 : i32
    %c0_i32_2 = arith.constant 0 : i32
    return %c0_i32, %c0_i32_0, %c0_i32_1 : i32, i32, i32
  }
  func.func @transform_8(%arg0: i32) -> (i32, i32) {
    %c0_i32 = arith.constant 0 : i32
    %c0_i32_0 = arith.constant 0 : i32
    %c0_i32_1 = arith.constant 0 : i32
    return %c0_i32, %c0_i32_0 : i32, i32
  }
  func.func @transform_9(%arg0: i32) -> (i32, i32) {
    %c0_i32 = arith.constant 0 : i32
    %c0_i32_0 = arith.constant 0 : i32
    %c0_i32_1 = arith.constant 0 : i32
    return %c0_i32, %c0_i32_0 : i32, i32
  }
  func.func @transform_10(%arg0: i32) -> (i32, i32) {
    %c0_i32 = arith.constant 0 : i32
    %c0_i32_0 = arith.constant 0 : i32
    %c0_i32_1 = arith.constant 0 : i32
    return %c0_i32, %c0_i32_0 : i32, i32
  }
  func.func @transform_11(%arg0: i32) -> (i32, i32, i32) {
    %c0_i32 = arith.constant 0 : i32
    %c0_i32_0 = arith.constant 0 : i32
    %c0_i32_1 = arith.constant 0 : i32
    return %arg0, %c0_i32, %c0_i32_0 : i32, i32, i32
  }
}

</mosaic_0001>

<llo_original>
// kernel: tpu_custom_call.1
$region0: #{tpu_custom_call.1}
  #allocation0 [shape = 'u32[]', space=smem, size = 0x4, offset = 0x4, fixed_abs, tag = 'smem constant byte address 0x4 - core index']
  #allocation1 [shape = 'u32[144,128]{1,0:T(1,128)}', space=vmem, size = 0x12000, scoped, tag = 'internal scratch']
  #allocation2 [shape = 'f32[297,4]{1,0:T(8,128)}', space=vmem, size = 0x26000, scoped, tag = 'scratch operand']
  #allocation3 [shape = 'f32[273,16]{1,0:T(8,128)}', space=vmem, size = 0x23000, scoped, tag = 'scratch operand']
  #allocation4 [shape = 'f32[89,16]{1,0:T(8,128)}', space=vmem, size = 0xc000, scoped, tag = 'scratch operand']
  #allocation5 [shape = 'f32[73,32]{1,0:T(8,128)}', space=vmem, size = 0xa000, scoped, tag = 'scratch operand']
  #allocation6 [shape = 'f32[29,32]{1,0:T(8,128)}', space=vmem, size = 0x4000, scoped, tag = 'scratch operand']
  %s0 = inlined_call_operand.vmem [shape: f32[2,256,4], index: 0, kind: input, shape index: {}]
  %s1 = inlined_call_operand.vmem [shape: bf16[9,4,16], index: 1, kind: input, shape index: {}]
  %s2 = inlined_call_operand.vmem [shape: f32[1,16], index: 2, kind: input, shape index: {}]
  %s3 = inlined_call_operand.vmem [shape: f32[64,256], index: 3, kind: input, shape index: {}]
  %s4 = inlined_call_operand.vmem [shape: bf16[9,16,32], index: 4, kind: input, shape index: {}]
  %s5 = inlined_call_operand.vmem [shape: f32[1,32], index: 5, kind: input, shape index: {}]
  %s6 = inlined_call_operand.vmem [shape: f32[16,64], index: 6, kind: input, shape index: {}]
  %s7 = inlined_call_operand.vmem [shape: bf16[9,32,64], index: 7, kind: input, shape index: {}]
  %s8 = inlined_call_operand.vmem [shape: f32[1,64], index: 8, kind: input, shape index: {}]
  %s9 = inlined_call_operand.vmem [shape: f32[64,2], index: 9, kind: input, shape index: {}]
  %s10 = inlined_call_operand.vmem [shape: f32[1,2], index: 10, kind: input, shape index: {}]
  %s11 = inlined_call_operand.hbm [shape: f32[2,1,2], index: 11, kind: output, shape index: {}]
  %s12 = sld [smem:[#allocation0]]
  $region77: #{tpu_custom_call.1} parent=0
    _
  %s14 = ssub.s32 1, %s12
  %s15 = scalar_select 0, %s14, %s12
  $region1: #{tpu_custom_call.1} parent=0
    #allocation7 [shape = 'u8[1024]{0}', space=vmem, size = 0x400, scoped, tag = 'output window, operand 0']
    #allocation8 [shape = 's32[2]{0}', space=sflag, size = 0x8, scoped, tag = 'scoped memory for tpu_custom_call.1']
    %16 = vsyncpa [#allocation8], 0
    %s17 = scalar_lea.sflag [#allocation8], 1
    %18 = vsyncpa %s17, 0
    loop: start=0, step=1, limit=4
    $region2: #{tpu_custom_call.1} parent=1 // loop_pre_header
      _
    $region3: #{tpu_custom_call.1} parent=1 // loop_header
      %s20 = sphi 0, %s24
      %p21 = scmp.ge.s32.totalorder %s20, 4
      %s30 = sphi 0, %s32
      %s33 = sphi 0, %s30
      %s34 = sphi 0, %s33
      %s50 = sphi 0, %s34
      %s54 = sphi 0, %s54
      %s56 = sphi 0, %s54
      %s57 = sphi 0, %s56
      %s71 = sphi 0, %s57
      %s75 = sphi 0, %s75
      %s77 = sphi 0, %s75
      %s78 = sphi 0, %s77
      %s92 = sphi 0, %s78
      %s96 = sphi 0, %s96
      %s98 = sphi 0, %s96
      %s99 = sphi 0, %s98
      %s113 = sphi 0, %s99
      %s117 = sphi 0, %s117
      %s119 = sphi 0, %s117
      %s120 = sphi 0, %s119
      %s134 = sphi 0, %s120
      %s138 = sphi 0, %s138
      %s140 = sphi 0, %s138
      %s141 = sphi 0, %s140
      %s155 = sphi 0, %s141
      %s159 = sphi 0, %s159
      %s161 = sphi 0, %s159
      %s162 = sphi 0, %s161
      %s176 = sphi 0, %s162
      %s180 = sphi 0, %s180
      %s182 = sphi 0, %s180
      %s183 = sphi 0, %s182
      %s197 = sphi 0, %s183
      %s201 = sphi 0, %s201
      %s203 = sphi 0, %s201
      %s204 = sphi 0, %s203
      %s218 = sphi 0, %s204
      %s222 = sphi 0, %s222
      %s224 = sphi 0, %s222
      %s225 = sphi 0, %s224
      %s239 = sphi 0, %s225
      %s243 = sphi 0, %s243
      %s245 = sphi 0, %s243
      %s246 = sphi 0, %s245
      %s260 = sphi 0, %s246
      %s266 = sphi 0, %s268
      %s269 = sphi 0, %s266
      %s270 = sphi 0, %s269
      %s286 = sphi 0, %s270
    $region4: #{tpu_custom_call.1} parent=1 // loop_header_branch
      %23 = sbr.rel (%p21) target = $region8
    $region5: #{tpu_custom_call.1} parent=1 // loop_body
      %s25 = ssub.s32 %s20, 1
      %s26 = ssub.s32 %s20, 2
      %s27 = sadd.s32 %s20, 1
      %s28 = ssub.s32 %s20, %s27
      %p29 = scmp.eq.s32.totalorder %s28, 0
      %s31 = sadd.s32 %s30, 1
      %s32 = scalar_select %p29, %s30, %s31
      %p35 = pneg %p29
      %p36 = scmp.eq.s32.totalorder %s20, 1
      %p37 = por %p35, %p36
      %p38 = scmp.ne.s32.totalorder %s30, %s33
      %p39 = scmp.eq.s32.totalorder %s20, 0
      %p40 = por %p38, %p39
      %p41 = scmp.ne.s32.totalorder %s30, %s33
      %p42 = scmp.eq.s32.totalorder %s25, 1
      %p43 = por %p41, %p42
      %p44 = scmp.ne.s32.totalorder %s33, %s34
      %p45 = scmp.eq.s32.totalorder %s25, 0
      %p46 = por %p44, %p45
      %p47 = scmp.ne.s32.totalorder %s33, %s34
      %p48 = scmp.eq.s32.totalorder %s26, 1
      %p49 = por %p47, %p48
      %p51 = scmp.ne.s32.totalorder %s34, %s50
      %p52 = scmp.eq.s32.totalorder %s26, 0
      %p53 = por %p51, %p52
      %s55 = sadd.s32 %s54, 1
      %p58 = scmp.eq.s32.totalorder %s20, 1
      %p59 = scmp.ne.s32.totalorder %s54, %s56
      %p60 = scmp.eq.s32.totalorder %s20, 0
      %p61 = por %p59, %p60
      %p62 = scmp.ne.s32.totalorder %s54, %s56
      %p63 = scmp.eq.s32.totalorder %s25, 1
      %p64 = por %p62, %p63
      %p65 = scmp.ne.s32.totalorder %s56, %s57
      %p66 = scmp.eq.s32.totalorder %s25, 0
      %p67 = por %p65, %p66
      %p68 = scmp.ne.s32.totalorder %s56, %s57
      %p69 = scmp.eq.s32.totalorder %s26, 1
      %p70 = por %p68, %p69
      %p72 = scmp.ne.s32.totalorder %s57, %s71
      %p73 = scmp.eq.s32.totalorder %s26, 0
      %p74 = por %p72, %p73
      %s76 = sadd.s32 %s75, 1
      %p79 = scmp.eq.s32.totalorder %s20, 1
      %p80 = scmp.ne.s32.totalorder %s75, %s77
      %p81 = scmp.eq.s32.totalorder %s20, 0
      %p82 = por %p80, %p81
      %p83 = scmp.ne.s32.totalorder %s75, %s77
      %p84 = scmp.eq.s32.totalorder %s25, 1
      %p85 = por %p83, %p84
      %p86 = scmp.ne.s32.totalorder %s77, %s78
      %p87 = scmp.eq.s32.totalorder %s25, 0
      %p88 = por %p86, %p87
      %p89 = scmp.ne.s32.totalorder %s77, %s78
      %p90 = scmp.eq.s32.totalorder %s26, 1
      %p91 = por %p89, %p90
      %p93 = scmp.ne.s32.totalorder %s78, %s92
      %p94 = scmp.eq.s32.totalorder %s26, 0
      %p95 = por %p93, %p94
      %s97 = sadd.s32 %s96, 1
      %p100 = scmp.eq.s32.totalorder %s20, 1
      %p101 = scmp.ne.s32.totalorder %s96, %s98
      %p102 = scmp.eq.s32.totalorder %s20, 0
      %p103 = por %p101, %p102
      %p104 = scmp.ne.s32.totalorder %s96, %s98
      %p105 = scmp.eq.s32.totalorder %s25, 1
      %p106 = por %p104, %p105
      %p107 = scmp.ne.s32.totalorder %s98, %s99
      %p108 = scmp.eq.s32.totalorder %s25, 0
      %p109 = por %p107, %p108
      %p110 = scmp.ne.s32.totalorder %s98, %s99
      %p111 = scmp.eq.s32.totalorder %s26, 1
      %p112 = por %p110, %p111
      %p114 = scmp.ne.s32.totalorder %s99, %s113
      %p115 = scmp.eq.s32.totalorder %s26, 0
      %p116 = por %p114, %p115
      %s118 = sadd.s32 %s117, 1
      %p121 = scmp.eq.s32.totalorder %s20, 1
      %p122 = scmp.ne.s32.totalorder %s117, %s119
      %p123 = scmp.eq.s32.totalorder %s20, 0
      %p124 = por %p122, %p123
      %p125 = scmp.ne.s32.totalorder %s117, %s119
      %p126 = scmp.eq.s32.totalorder %s25, 1
      %p127 = por %p125, %p126
      %p128 = scmp.ne.s32.totalorder %s119, %s120
      %p129 = scmp.eq.s32.totalorder %s25, 0
      %p130 = por %p128, %p129
      %p131 = scmp.ne.s32.totalorder %s119, %s120
      %p132 = scmp.eq.s32.totalorder %s26, 1
      %p133 = por %p131, %p132
      %p135 = scmp.ne.s32.totalorder %s120, %s134
      %p136 = scmp.eq.s32.totalorder %s26, 0
      %p137 = por %p135, %p136
      %s139 = sadd.s32 %s138, 1
      %p142 = scmp.eq.s32.totalorder %s20, 1
      %p143 = scmp.ne.s32.totalorder %s138, %s140
      %p144 = scmp.eq.s32.totalorder %s20, 0
      %p145 = por %p143, %p144
      %p146 = scmp.ne.s32.totalorder %s138, %s140
      %p147 = scmp.eq.s32.totalorder %s25, 1
      %p148 = por %p146, %p147
      %p149 = scmp.ne.s32.totalorder %s140, %s141
      %p150 = scmp.eq.s32.totalorder %s25, 0
      %p151 = por %p149, %p150
      %p152 = scmp.ne.s32.totalorder %s140, %s141
      %p153 = scmp.eq.s32.totalorder %s26, 1
      %p154 = por %p152, %p153
      %p156 = scmp.ne.s32.totalorder %s141, %s155
      %p157 = scmp.eq.s32.totalorder %s26, 0
      %p158 = por %p156, %p157
      %s160 = sadd.s32 %s159, 1
      %p163 = scmp.eq.s32.totalorder %s20, 1
      %p164 = scmp.ne.s32.totalorder %s159, %s161
      %p165 = scmp.eq.s32.totalorder %s20, 0
      %p166 = por %p164, %p165
      %p167 = scmp.ne.s32.totalorder %s159, %s161
      %p168 = scmp.eq.s32.totalorder %s25, 1
      %p169 = por %p167, %p168
      %p170 = scmp.ne.s32.totalorder %s161, %s162
      %p171 = scmp.eq.s32.totalorder %s25, 0
      %p172 = por %p170, %p171
      %p173 = scmp.ne.s32.totalorder %s161, %s162
      %p174 = scmp.eq.s32.totalorder %s26, 1
      %p175 = por %p173, %p174
      %p177 = scmp.ne.s32.totalorder %s162, %s176
      %p178 = scmp.eq.s32.totalorder %s26, 0
      %p179 = por %p177, %p178
      %s181 = sadd.s32 %s180, 1
      %p184 = scmp.eq.s32.totalorder %s20, 1
      %p185 = scmp.ne.s32.totalorder %s180, %s182
      %p186 = scmp.eq.s32.totalorder %s20, 0
      %p187 = por %p185, %p186
      %p188 = scmp.ne.s32.totalorder %s180, %s182
      %p189 = scmp.eq.s32.totalorder %s25, 1
      %p190 = por %p188, %p189
      %p191 = scmp.ne.s32.totalorder %s182, %s183
      %p192 = scmp.eq.s32.totalorder %s25, 0
      %p193 = por %p191, %p192
      %p194 = scmp.ne.s32.totalorder %s182, %s183
      %p195 = scmp.eq.s32.totalorder %s26, 1
      %p196 = por %p194, %p195
      %p198 = scmp.ne.s32.totalorder %s183, %s197
      %p199 = scmp.eq.s32.totalorder %s26, 0
      %p200 = por %p198, %p199
      %s202 = sadd.s32 %s201, 1
      %p205 = scmp.eq.s32.totalorder %s20, 1
      %p206 = scmp.ne.s32.totalorder %s201, %s203
      %p207 = scmp.eq.s32.totalorder %s20, 0
      %p208 = por %p206, %p207
      %p209 = scmp.ne.s32.totalorder %s201, %s203
      %p210 = scmp.eq.s32.totalorder %s25, 1
      %p211 = por %p209, %p210
      %p212 = scmp.ne.s32.totalorder %s203, %s204
      %p213 = scmp.eq.s32.totalorder %s25, 0
      %p214 = por %p212, %p213
      %p215 = scmp.ne.s32.totalorder %s203, %s204
      %p216 = scmp.eq.s32.totalorder %s26, 1
      %p217 = por %p215, %p216
      %p219 = scmp.ne.s32.totalorder %s204, %s218
      %p220 = scmp.eq.s32.totalorder %s26, 0
      %p221 = por %p219, %p220
      %s223 = sadd.s32 %s222, 1
      %p226 = scmp.eq.s32.totalorder %s20, 1
      %p227 = scmp.ne.s32.totalorder %s222, %s224
      %p228 = scmp.eq.s32.totalorder %s20, 0
      %p229 = por %p227, %p228
      %p230 = scmp.ne.s32.totalorder %s222, %s224
      %p231 = scmp.eq.s32.totalorder %s25, 1
      %p232 = por %p230, %p231
      %p233 = scmp.ne.s32.totalorder %s224, %s225
      %p234 = scmp.eq.s32.totalorder %s25, 0
      %p235 = por %p233, %p234
      %p236 = scmp.ne.s32.totalorder %s224, %s225
      %p237 = scmp.eq.s32.totalorder %s26, 1
      %p238 = por %p236, %p237
      %p240 = scmp.ne.s32.totalorder %s225, %s239
      %p241 = scmp.eq.s32.totalorder %s26, 0
      %p242 = por %p240, %p241
      %s244 = sadd.s32 %s243, 1
      %p247 = scmp.eq.s32.totalorder %s20, 1
      %p248 = scmp.ne.s32.totalorder %s243, %s245
      %p249 = scmp.eq.s32.totalorder %s20, 0
      %p250 = por %p248, %p249
      %p251 = scmp.ne.s32.totalorder %s243, %s245
      %p252 = scmp.eq.s32.totalorder %s25, 1
      %p253 = por %p251, %p252
      %p254 = scmp.ne.s32.totalorder %s245, %s246
      %p255 = scmp.eq.s32.totalorder %s25, 0
      %p256 = por %p254, %p255
      %p257 = scmp.ne.s32.totalorder %s245, %s246
      %p258 = scmp.eq.s32.totalorder %s26, 1
      %p259 = por %p257, %p258
      %p261 = scmp.ne.s32.totalorder %s246, %s260
      %p262 = scmp.eq.s32.totalorder %s26, 0
      %p263 = por %p261, %p262
      %s264 = ssub.s32 %s20, %s27
      %p265 = scmp.eq.s32.totalorder %s264, 0
      %s267 = sadd.s32 %s266, 1
      %s268 = scalar_select %p265, %s266, %s267
      %p271 = pneg %p265
      %p272 = scmp.eq.s32.totalorder %s20, 1
      %p273 = por %p271, %p272
      %p274 = scmp.ne.s32.totalorder %s266, %s269
      %p275 = scmp.eq.s32.totalorder %s20, 0
      %p276 = por %p274, %p275
      %p277 = scmp.ne.s32.totalorder %s266, %s269
      %p278 = scmp.eq.s32.totalorder %s25, 1
      %p279 = por %p277, %p278
      %p280 = scmp.ne.s32.totalorder %s269, %s270
      %p281 = scmp.eq.s32.totalorder %s25, 0
      %p282 = por %p280, %p281
      %p283 = scmp.ne.s32.totalorder %s269, %s270
      %p284 = scmp.eq.s32.totalorder %s26, 1
      %p285 = por %p283, %p284
      %p287 = scmp.ne.s32.totalorder %s270, %s286
      %p288 = scmp.eq.s32.totalorder %s26, 0
      %p289 = por %p287, %p288
      %p290 = scmp.le.s32.totalorder 1, %s20
      %p291 = scmp.lt.s32.totalorder %s20, 3
      %p292 = pnand %p290, %p291
      %p293 = pneg %p292
      // Predicated region
      $region9: #{tpu_custom_call.1} parent=5 // pred_check
        _
      $region10: #{tpu_custom_call.1} parent=5 // pred_check_branch
        %295 = sbr.rel (%p292) target = $region12
      $region11: #{tpu_custom_call.1} parent=5 // pred_region
        %s296 = ssub.s32 %s20, 1
        // Predicated region
        $region13: #{tpu_custom_call.1} parent=11 // pred_check
          %p297 = pneg %p67
        $region14: #{tpu_custom_call.1} parent=11 // pred_check_branch
          %299 = sbr.rel (%p297) target = $region16
        $region15: #{tpu_custom_call.1} parent=11 // pred_region
          _
        $region16: #{tpu_custom_call.1} parent=11 // pred_fallthru
          _
        // Predicated region
        $region17: #{tpu_custom_call.1} parent=11 // pred_check
          %p300 = pneg %p88
        $region18: #{tpu_custom_call.1} parent=11 // pred_check_branch
          %302 = sbr.rel (%p300) target = $region20
        $region19: #{tpu_custom_call.1} parent=11 // pred_region
          _
        $region20: #{tpu_custom_call.1} parent=11 // pred_fallthru
          _
        // Predicated region
        $region21: #{tpu_custom_call.1} parent=11 // pred_check
          %p303 = pneg %p109
        $region22: #{tpu_custom_call.1} parent=11 // pred_check_branch
          %305 = sbr.rel (%p303) target = $region24
        $region23: #{tpu_custom_call.1} parent=11 // pred_region
          _
        $region24: #{tpu_custom_call.1} parent=11 // pred_fallthru
          _
        // Predicated region
        $region25: #{tpu_custom_call.1} parent=11 // pred_check
          %p306 = pneg %p130
        $region26: #{tpu_custom_call.1} parent=11 // pred_check_branch
          %308 = sbr.rel (%p306) target = $region28
        $region27: #{tpu_custom_call.1} parent=11 // pred_region
          _
        $region28: #{tpu_custom_call.1} parent=11 // pred_fallthru
          _
        // Predicated region
        $region29: #{tpu_custom_call.1} parent=11 // pred_check
          %p309 = pneg %p151
        $region30: #{tpu_custom_call.1} parent=11 // pred_check_branch
          %311 = sbr.rel (%p309) target = $region32
        $region31: #{tpu_custom_call.1} parent=11 // pred_region
          _
        $region32: #{tpu_custom_call.1} parent=11 // pred_fallthru
          _
        // Predicated region
        $region33: #{tpu_custom_call.1} parent=11 // pred_check
          %p312 = pneg %p172
        $region34: #{tpu_custom_call.1} parent=11 // pred_check_branch
          %314 = sbr.rel (%p312) target = $region36
        $region35: #{tpu_custom_call.1} parent=11 // pred_region
          _
        $region36: #{tpu_custom_call.1} parent=11 // pred_fallthru
          _
        // Predicated region
        $region37: #{tpu_custom_call.1} parent=11 // pred_check
          %p315 = pneg %p193
        $region38: #{tpu_custom_call.1} parent=11 // pred_check_branch
          %317 = sbr.rel (%p315) target = $region40
        $region39: #{tpu_custom_call.1} parent=11 // pred_region
          _
        $region40: #{tpu_custom_call.1} parent=11 // pred_fallthru
          _
        // Predicated region
        $region41: #{tpu_custom_call.1} parent=11 // pred_check
          %p318 = pneg %p214
        $region42: #{tpu_custom_call.1} parent=11 // pred_check_branch
          %320 = sbr.rel (%p318) target = $region44
        $region43: #{tpu_custom_call.1} parent=11 // pred_region
          _
        $region44: #{tpu_custom_call.1} parent=11 // pred_fallthru
          _
        // Predicated region
        $region45: #{tpu_custom_call.1} parent=11 // pred_check
          %p321 = pneg %p235
        $region46: #{tpu_custom_call.1} parent=11 // pred_check_branch
          %323 = sbr.rel (%p321) target = $region48
        $region47: #{tpu_custom_call.1} parent=11 // pred_region
          _
        $region48: #{tpu_custom_call.1} parent=11 // pred_fallthru
          _
        // Predicated region
        $region49: #{tpu_custom_call.1} parent=11 // pred_check
          %p324 = pneg %p256
        $region50: #{tpu_custom_call.1} parent=11 // pred_check_branch
          %326 = sbr.rel (%p324) target = $region52
        $region51: #{tpu_custom_call.1} parent=11 // pred_region
          _
        $region52: #{tpu_custom_call.1} parent=11 // pred_fallthru
          _
      $region12: #{tpu_custom_call.1} parent=5 // pred_fallthru
        _
      %p327 = scmp.lt.s32.totalorder %s20, 2
      // Predicated region
      $region53: #{tpu_custom_call.1} parent=5 // pred_check
        %p328 = pneg %p327
      $region54: #{tpu_custom_call.1} parent=5 // pred_check_branch
        %330 = sbr.rel (%p328) target = $region56
      $region55: #{tpu_custom_call.1} parent=5 // pred_region
        // Predicated region
        $region57: #{tpu_custom_call.1} parent=55 // pred_check
          %p331 = pneg %p40
        $region58: #{tpu_custom_call.1} parent=55 // pred_check_branch
          %333 = sbr.rel (%p331) target = $region60
        $region59: #{tpu_custom_call.1} parent=55 // pred_region
          %p334 = scmp.lt.s32.totalorder %s20, 1
          %s335 = scalar_select %p334, %s20, 1
          %s336 = smul.addr %s335, 32
          %s337 = smul.addr %s336, 8
          %s338 = scalar_lea.vmem %s0, %s337
        $region60: #{tpu_custom_call.1} parent=55 // pred_fallthru
          _
      $region56: #{tpu_custom_call.1} parent=5 // pred_fallthru
        _
      %p339 = scmp.le.s32.totalorder 1, %s20
      %p340 = scmp.lt.s32.totalorder %s20, 3
      %p341 = pnand %p339, %p340
      %p342 = pneg %p341
      // Predicated region
      $region61: #{tpu_custom_call.1} parent=5 // pred_check
        _
      $region62: #{tpu_custom_call.1} parent=5 // pred_check_branch
        %344 = sbr.rel (%p341) target = $region64
      $region63: #{tpu_custom_call.1} parent=5 // pred_region
        %s345 = ssub.s32 %s20, 1
        %p346 = scmp.lt.s32.totalorder %s25, 1
        %s347 = scalar_select %p346, %s25, 1
        %s348 = smul.addr %s347, 32
        %s349 = smul.addr %s348, 8
        %s350 = scalar_lea.vmem %s0, %s349
        %p351 = pneg %p46
        %p352 = pneg %p43
        %p353 = pneg %p67
        %p354 = pneg %p64
        %p355 = pneg %p88
        %p356 = pneg %p85
        %p357 = pneg %p109
        %p358 = pneg %p106
        %p359 = pneg %p130
        %p360 = pneg %p127
        %p361 = pneg %p151
        %p362 = pneg %p148
        %p363 = pneg %p172
        %p364 = pneg %p169
        %p365 = pneg %p193
        %p366 = pneg %p190
        %p367 = pneg %p214
        %p368 = pneg %p211
        %p369 = pneg %p235
        %p370 = pneg %p232
        %p371 = pneg %p256
        %p372 = pneg %p253
        %p373 = pneg %p282
        %p374 = pneg %p279
        %s375 = sand.u32 %s269, 1
        %s376 = scalar_lea.sflag [#allocation8], %s375
        %s377 = sand.u32 %s269, 1
        %s378 = scalar_lea.vmem [#allocation7], %s377
        %p379 = scmp.lt.s32.totalorder %s25, 1
        %s380 = scalar_select %p379, %s25, 1
        %s381 = smul.addr %s380, 32
        %s382 = smul.addr %s381, 8
        %s383 = scalar_lea.vmem %s0, %s382
        %v385 = vld [vmem:[%s383] sm:$0xff]
        %v386 = vld [vmem:[%s383 + $0x8] sm:$0xff]
        %v387 = vld [vmem:[%s383 + $0x10] sm:$0xff]
        %v388 = vld [vmem:[%s383 + $0x18] sm:$0xff]
        %v389 = vld [vmem:[%s383 + $0x20] sm:$0xff]
        %v390 = vld [vmem:[%s383 + $0x28] sm:$0xff]
        %v391 = vld [vmem:[%s383 + $0x30] sm:$0xff]
        %v392 = vld [vmem:[%s383 + $0x38] sm:$0xff]
        %v393 = vld [vmem:[%s383 + $0x40] sm:$0xff]
        %v394 = vld [vmem:[%s383 + $0x48] sm:$0xff]
        %v395 = vld [vmem:[%s383 + $0x50] sm:$0xff]
        %v396 = vld [vmem:[%s383 + $0x58] sm:$0xff]
        %v397 = vld [vmem:[%s383 + $0x60] sm:$0xff]
        %v398 = vld [vmem:[%s383 + $0x68] sm:$0xff]
        %v399 = vld [vmem:[%s383 + $0x70] sm:$0xff]
        %v400 = vld [vmem:[%s383 + $0x78] sm:$0xff]
        %v401 = vld [vmem:[%s383 + $0x80] sm:$0xff]
        %v402 = vld [vmem:[%s383 + $0x88] sm:$0xff]
        %v403 = vld [vmem:[%s383 + $0x90] sm:$0xff]
        %v404 = vld [vmem:[%s383 + $0x98] sm:$0xff]
        %v405 = vld [vmem:[%s383 + $0xa0] sm:$0xff]
        %v406 = vld [vmem:[%s383 + $0xa8] sm:$0xff]
        %v407 = vld [vmem:[%s383 + $0xb0] sm:$0xff]
        %v408 = vld [vmem:[%s383 + $0xb8] sm:$0xff]
        %v409 = vld [vmem:[%s383 + $0xc0] sm:$0xff]
        %v410 = vld [vmem:[%s383 + $0xc8] sm:$0xff]
        %v411 = vld [vmem:[%s383 + $0xd0] sm:$0xff]
        %v412 = vld [vmem:[%s383 + $0xd8] sm:$0xff]
        %v413 = vld [vmem:[%s383 + $0xe0] sm:$0xff]
        %v414 = vld [vmem:[%s383 + $0xe8] sm:$0xff]
        %v415 = vld [vmem:[%s383 + $0xf0] sm:$0xff]
        %v416 = vld [vmem:[%s383 + $0xf8] sm:$0xff]
        %vm417 = vcmask 31744
        %418 = vst.msk [vmem:[#allocation2] sm:$0xff] %vm417, 0.0
        %419 = vst.msk [vmem:[#allocation2 + $0x8] sm:$0xff] %vm417, 0.0
        %420 = vst.msk [vmem:[#allocation2 + $0x10] sm:$0xff] %vm417, 0.0
        %421 = vst.msk [vmem:[#allocation2 + $0x18] sm:$0xff] %vm417, 0.0
        %422 = vst.msk [vmem:[#allocation2 + $0x20] sm:$0xff] %vm417, 0.0
        %423 = vst.msk [vmem:[#allocation2 + $0x28] sm:$0xff] %vm417, 0.0
        %424 = vst.msk [vmem:[#allocation2 + $0x30] sm:$0xff] %vm417, 0.0
        %425 = vst.msk [vmem:[#allocation2 + $0x38] sm:$0xff] %vm417, 0.0
        %426 = vst.msk [vmem:[#allocation2 + $0x40] sm:$0xff] %vm417, 0.0
        %427 = vst.msk [vmem:[#allocation2 + $0x48] sm:$0xff] %vm417, 0.0
        %428 = vst.msk [vmem:[#allocation2 + $0x50] sm:$0xff] %vm417, 0.0
        %429 = vst.msk [vmem:[#allocation2 + $0x58] sm:$0xff] %vm417, 0.0
        %430 = vst.msk [vmem:[#allocation2 + $0x60] sm:$0xff] %vm417, 0.0
        %431 = vst.msk [vmem:[#allocation2 + $0x68] sm:$0xff] %vm417, 0.0
        %432 = vst.msk [vmem:[#allocation2 + $0x70] sm:$0xff] %vm417, 0.0
        %433 = vst.msk [vmem:[#allocation2 + $0x78] sm:$0xff] %vm417, 0.0
        %434 = vst.msk [vmem:[#allocation2 + $0x80] sm:$0xff] %vm417, 0.0
        %435 = vst.msk [vmem:[#allocation2 + $0x88] sm:$0xff] %vm417, 0.0
        %436 = vst.msk [vmem:[#allocation2 + $0x90] sm:$0xff] %vm417, 0.0
        %437 = vst.msk [vmem:[#allocation2 + $0x98] sm:$0xff] %vm417, 0.0
        %438 = vst.msk [vmem:[#allocation2 + $0xa0] sm:$0xff] %vm417, 0.0
        %439 = vst.msk [vmem:[#allocation2 + $0xa8] sm:$0xff] %vm417, 0.0
        %440 = vst.msk [vmem:[#allocation2 + $0xb0] sm:$0xff] %vm417, 0.0
        %441 = vst.msk [vmem:[#allocation2 + $0xb8] sm:$0xff] %vm417, 0.0
        %442 = vst.msk [vmem:[#allocation2 + $0xc0] sm:$0xff] %vm417, 0.0
        %443 = vst.msk [vmem:[#allocation2 + $0xc8] sm:$0xff] %vm417, 0.0
        %444 = vst.msk [vmem:[#allocation2 + $0xd0] sm:$0xff] %vm417, 0.0
        %445 = vst.msk [vmem:[#allocation2 + $0xd8] sm:$0xff] %vm417, 0.0
        %446 = vst.msk [vmem:[#allocation2 + $0xe0] sm:$0xff] %vm417, 0.0
        %447 = vst.msk [vmem:[#allocation2 + $0xe8] sm:$0xff] %vm417, 0.0
        %448 = vst.msk [vmem:[#allocation2 + $0xf0] sm:$0xff] %vm417, 0.0
        %449 = vst.msk [vmem:[#allocation2 + $0xf8] sm:$0xff] %vm417, 0.0
        %450 = vst.msk [vmem:[#allocation2 + $0x100] sm:$0xff] %vm417, 0.0
        %451 = vst.msk [vmem:[#allocation2 + $0x108] sm:$0xff] %vm417, 0.0
        %452 = vst.msk [vmem:[#allocation2 + $0x110] sm:$0xff] %vm417, 0.0
        %453 = vst.msk [vmem:[#allocation2 + $0x118] sm:$0xff] %vm417, 0.0
        %454 = vst.msk [vmem:[#allocation2 + $0x120] sm:$0xff] %vm417, 0.0
        %vm455 = vcmask 24576
        %456 = vst.msk [vmem:[#allocation2 + $0x128] sm:$0x1] %vm455, 0.0
        %457 = vst.msk [vmem:[#allocation2 + $0x18] sm:$0xff] %vm417, %v385
        %458 = vst.msk [vmem:[#allocation2 + $0x20] sm:$0xff] %vm417, %v386
        %459 = vst.msk [vmem:[#allocation2 + $0x28] sm:$0xff] %vm417, %v387
        %460 = vst.msk [vmem:[#allocation2 + $0x30] sm:$0xff] %vm417, %v388
        %461 = vst.msk [vmem:[#allocation2 + $0x38] sm:$0xff] %vm417, %v389
        %462 = vst.msk [vmem:[#allocation2 + $0x40] sm:$0xff] %vm417, %v390
        %463 = vst.msk [vmem:[#allocation2 + $0x48] sm:$0xff] %vm417, %v391
        %464 = vst.msk [vmem:[#allocation2 + $0x50] sm:$0xff] %vm417, %v392
        %465 = vst.msk [vmem:[#allocation2 + $0x58] sm:$0xff] %vm417, %v393
        %466 = vst.msk [vmem:[#allocation2 + $0x60] sm:$0xff] %vm417, %v394
        %467 = vst.msk [vmem:[#allocation2 + $0x68] sm:$0xff] %vm417, %v395
        %468 = vst.msk [vmem:[#allocation2 + $0x70] sm:$0xff] %vm417, %v396
        %469 = vst.msk [vmem:[#allocation2 + $0x78] sm:$0xff] %vm417, %v397
        %470 = vst.msk [vmem:[#allocation2 + $0x80] sm:$0xff] %vm417, %v398
        %471 = vst.msk [vmem:[#allocation2 + $0x88] sm:$0xff] %vm417, %v399
        %472 = vst.msk [vmem:[#allocation2 + $0x90] sm:$0xff] %vm417, %v400
        %473 = vst.msk [vmem:[#allocation2 + $0x98] sm:$0xff] %vm417, %v401
        %474 = vst.msk [vmem:[#allocation2 + $0xa0] sm:$0xff] %vm417, %v402
        %475 = vst.msk [vmem:[#allocation2 + $0xa8] sm:$0xff] %vm417, %v403
        %476 = vst.msk [vmem:[#allocation2 + $0xb0] sm:$0xff] %vm417, %v404
        %477 = vst.msk [vmem:[#allocation2 + $0xb8] sm:$0xff] %vm417, %v405
        %478 = vst.msk [vmem:[#allocation2 + $0xc0] sm:$0xff] %vm417, %v406
        %479 = vst.msk [vmem:[#allocation2 + $0xc8] sm:$0xff] %vm417, %v407
        %480 = vst.msk [vmem:[#allocation2 + $0xd0] sm:$0xff] %vm417, %v408
        %481 = vst.msk [vmem:[#allocation2 + $0xd8] sm:$0xff] %vm417, %v409
        %482 = vst.msk [vmem:[#allocation2 + $0xe0] sm:$0xff] %vm417, %v410
        %483 = vst.msk [vmem:[#allocation2 + $0xe8] sm:$0xff] %vm417, %v411
        %484 = vst.msk [vmem:[#allocation2 + $0xf0] sm:$0xff] %vm417, %v412
        %485 = vst.msk [vmem:[#allocation2 + $0xf8] sm:$0xff] %vm417, %v413
        %486 = vst.msk [vmem:[#allocation2 + $0x100] sm:$0xff] %vm417, %v414
        %487 = vst.msk [vmem:[#allocation2 + $0x108] sm:$0xff] %vm417, %v415
        %488 = vst.msk [vmem:[#allocation2 + $0x110] sm:$0xff] %vm417, %v416
        %v489 = vlaneseq
        %v490 = vshrl.u32 %v489, 7
        %v491 = vadd.s32 %v490, 8
        %v492 = vadd.s32 %v490, 16
        %v493 = vadd.s32 %v490, 24
        %v494 = vadd.s32 %v490, 32
        %v495 = vadd.s32 %v490, 40
        %v496 = vadd.s32 %v490, 48
        %v497 = vadd.s32 %v490, 56
        %v498 = vadd.s32 %v490, 64
        %v499 = vadd.s32 %v490, 72
        %v500 = vadd.s32 %v490, 80
        %v501 = vadd.s32 %v490, 88
        %v502 = vadd.s32 %v490, 96
        %v503 = vadd.s32 %v490, 104
        %v504 = vadd.s32 %v490, 112
        %v505 = vadd.s32 %v490, 120
        %v506 = vadd.s32 %v490, 128
        %v507 = vadd.s32 %v490, 136
        %v508 = vadd.s32 %v490, 144
        %v509 = vadd.s32 %v490, 152
        %v510 = vadd.s32 %v490, 160
        %v511 = vadd.s32 %v490, 168
        %v512 = vadd.s32 %v490, 176
        %v513 = vadd.s32 %v490, 184
        %v514 = vadd.s32 %v490, 192
        %v515 = vadd.s32 %v490, 200
        %v516 = vadd.s32 %v490, 208
        %v517 = vadd.s32 %v490, 216
        %v518 = vadd.s32 %v490, 224
        %v519 = vadd.s32 %v490, 232
        %v520 = vadd.s32 %v490, 240
        %v521 = vadd.s32 %v490, 248
        %vm522 = vcmp.lt.s32.totalorder %v490, 0
        %v523 = vsub.s32 0, %v490
        %v524 = vsel %vm522, %v523, %v490
        %v525 = vshrl.u32 %v524, 4
        %v526 = vand.u32 %v524, 15
        %v527 = vsub.s32 0, %v526
        %v528 = vsel %vm522, %v527, %v526
        %vm529 = vcmp.lt.s32.totalorder %v491, 0
        %v530 = vsub.s32 0, %v491
        %v531 = vsel %vm529, %v530, %v491
        %v532 = vshrl.u32 %v531, 4
        %v533 = vand.u32 %v531, 15
        %v534 = vsub.s32 0, %v533
        %v535 = vsel %vm529, %v534, %v533
        %vm536 = vcmp.lt.s32.totalorder %v492, 0
        %v537 = vsub.s32 0, %v492
        %v538 = vsel %vm536, %v537, %v492
        %v539 = vshrl.u32 %v538, 4
        %v540 = vand.u32 %v538, 15
        %v541 = vsub.s32 0, %v540
        %v542 = vsel %vm536, %v541, %v540
        %vm543 = vcmp.lt.s32.totalorder %v493, 0
        %v544 = vsub.s32 0, %v493
        %v545 = vsel %vm543, %v544, %v493
        %v546 = vshrl.u32 %v545, 4
        %v547 = vand.u32 %v545, 15
        %v548 = vsub.s32 0, %v547
        %v549 = vsel %vm543, %v548, %v547
        %vm550 = vcmp.lt.s32.totalorder %v494, 0
        %v551 = vsub.s32 0, %v494
        %v552 = vsel %vm550, %v551, %v494
        %v553 = vshrl.u32 %v552, 4
        %v554 = vand.u32 %v552, 15
        %v555 = vsub.s32 0, %v554
        %v556 = vsel %vm550, %v555, %v554
        %vm557 = vcmp.lt.s32.totalorder %v495, 0
        %v558 = vsub.s32 0, %v495
        %v559 = vsel %vm557, %v558, %v495
        %v560 = vshrl.u32 %v559, 4
        %v561 = vand.u32 %v559, 15
        %v562 = vsub.s32 0, %v561
        %v563 = vsel %vm557, %v562, %v561
        %vm564 = vcmp.lt.s32.totalorder %v496, 0
        %v565 = vsub.s32 0, %v496
        %v566 = vsel %vm564, %v565, %v496
        %v567 = vshrl.u32 %v566, 4
        %v568 = vand.u32 %v566, 15
        %v569 = vsub.s32 0, %v568
        %v570 = vsel %vm564, %v569, %v568
        %vm571 = vcmp.lt.s32.totalorder %v497, 0
        %v572 = vsub.s32 0, %v497
        %v573 = vsel %vm571, %v572, %v497
        %v574 = vshrl.u32 %v573, 4
        %v575 = vand.u32 %v573, 15
        %v576 = vsub.s32 0, %v575
        %v577 = vsel %vm571, %v576, %v575
        %vm578 = vcmp.lt.s32.totalorder %v498, 0
        %v579 = vsub.s32 0, %v498
        %v580 = vsel %vm578, %v579, %v498
        %v581 = vshrl.u32 %v580, 4
        %v582 = vand.u32 %v580, 15
        %v583 = vsub.s32 0, %v582
        %v584 = vsel %vm578, %v583, %v582
        %vm585 = vcmp.lt.s32.totalorder %v499, 0
        %v586 = vsub.s32 0, %v499
        %v587 = vsel %vm585, %v586, %v499
        %v588 = vshrl.u32 %v587, 4
        %v589 = vand.u32 %v587, 15
        %v590 = vsub.s32 0, %v589
        %v591 = vsel %vm585, %v590, %v589
        %vm592 = vcmp.lt.s32.totalorder %v500, 0
        %v593 = vsub.s32 0, %v500
        %v594 = vsel %vm592, %v593, %v500
        %v595 = vshrl.u32 %v594, 4
        %v596 = vand.u32 %v594, 15
        %v597 = vsub.s32 0, %v596
        %v598 = vsel %vm592, %v597, %v596
        %vm599 = vcmp.lt.s32.totalorder %v501, 0
        %v600 = vsub.s32 0, %v501
        %v601 = vsel %vm599, %v600, %v501
        %v602 = vshrl.u32 %v601, 4
        %v603 = vand.u32 %v601, 15
        %v604 = vsub.s32 0, %v603
        %v605 = vsel %vm599, %v604, %v603
        %vm606 = vcmp.lt.s32.totalorder %v502, 0
        %v607 = vsub.s32 0, %v502
        %v608 = vsel %vm606, %v607, %v502
        %v609 = vshrl.u32 %v608, 4
        %v610 = vand.u32 %v608, 15
        %v611 = vsub.s32 0, %v610
        %v612 = vsel %vm606, %v611, %v610
        %vm613 = vcmp.lt.s32.totalorder %v503, 0
        %v614 = vsub.s32 0, %v503
        %v615 = vsel %vm613, %v614, %v503
        %v616 = vshrl.u32 %v615, 4
        %v617 = vand.u32 %v615, 15
        %v618 = vsub.s32 0, %v617
        %v619 = vsel %vm613, %v618, %v617
        %vm620 = vcmp.lt.s32.totalorder %v504, 0
        %v621 = vsub.s32 0, %v504
        %v622 = vsel %vm620, %v621, %v504
        %v623 = vshrl.u32 %v622, 4
        %v624 = vand.u32 %v622, 15
        %v625 = vsub.s32 0, %v624
        %v626 = vsel %vm620, %v625, %v624
        %vm627 = vcmp.lt.s32.totalorder %v505, 0
        %v628 = vsub.s32 0, %v505
        %v629 = vsel %vm627, %v628, %v505
        %v630 = vshrl.u32 %v629, 4
        %v631 = vand.u32 %v629, 15
        %v632 = vsub.s32 0, %v631
        %v633 = vsel %vm627, %v632, %v631
        %vm634 = vcmp.lt.s32.totalorder %v506, 0
        %v635 = vsub.s32 0, %v506
        %v636 = vsel %vm634, %v635, %v506
        %v637 = vshrl.u32 %v636, 4
        %v638 = vand.u32 %v636, 15
        %v639 = vsub.s32 0, %v638
        %v640 = vsel %vm634, %v639, %v638
        %vm641 = vcmp.lt.s32.totalorder %v507, 0
        %v642 = vsub.s32 0, %v507
        %v643 = vsel %vm641, %v642, %v507
        %v644 = vshrl.u32 %v643, 4
        %v645 = vand.u32 %v643, 15
        %v646 = vsub.s32 0, %v645
        %v647 = vsel %vm641, %v646, %v645
        %vm648 = vcmp.lt.s32.totalorder %v508, 0
        %v649 = vsub.s32 0, %v508
        %v650 = vsel %vm648, %v649, %v508
        %v651 = vshrl.u32 %v650, 4
        %v652 = vand.u32 %v650, 15
        %v653 = vsub.s32 0, %v652
        %v654 = vsel %vm648, %v653, %v652
        %vm655 = vcmp.lt.s32.totalorder %v509, 0
        %v656 = vsub.s32 0, %v509
        %v657 = vsel %vm655, %v656, %v509
        %v658 = vshrl.u32 %v657, 4
        %v659 = vand.u32 %v657, 15
        %v660 = vsub.s32 0, %v659
        %v661 = vsel %vm655, %v660, %v659
        %vm662 = vcmp.lt.s32.totalorder %v510, 0
        %v663 = vsub.s32 0, %v510
        %v664 = vsel %vm662, %v663, %v510
        %v665 = vshrl.u32 %v664, 4
        %v666 = vand.u32 %v664, 15
        %v667 = vsub.s32 0, %v666
        %v668 = vsel %vm662, %v667, %v666
        %vm669 = vcmp.lt.s32.totalorder %v511, 0
        %v670 = vsub.s32 0, %v511
        %v671 = vsel %vm669, %v670, %v511
        %v672 = vshrl.u32 %v671, 4
        %v673 = vand.u32 %v671, 15
        %v674 = vsub.s32 0, %v673
        %v675 = vsel %vm669, %v674, %v673
        %vm676 = vcmp.lt.s32.totalorder %v512, 0
        %v677 = vsub.s32 0, %v512
        %v678 = vsel %vm676, %v677, %v512
        %v679 = vshrl.u32 %v678, 4
        %v680 = vand.u32 %v678, 15
        %v681 = vsub.s32 0, %v680
        %v682 = vsel %vm676, %v681, %v680
        %vm683 = vcmp.lt.s32.totalorder %v513, 0
        %v684 = vsub.s32 0, %v513
        %v685 = vsel %vm683, %v684, %v513
        %v686 = vshrl.u32 %v685, 4
        %v687 = vand.u32 %v685, 15
        %v688 = vsub.s32 0, %v687
        %v689 = vsel %vm683, %v688, %v687
        %vm690 = vcmp.lt.s32.totalorder %v514, 0
        %v691 = vsub.s32 0, %v514
        %v692 = vsel %vm690, %v691, %v514
        %v693 = vshrl.u32 %v692, 4
        %v694 = vand.u32 %v692, 15
        %v695 = vsub.s32 0, %v694
        %v696 = vsel %vm690, %v695, %v694
        %vm697 = vcmp.lt.s32.totalorder %v515, 0
        %v698 = vsub.s32 0, %v515
        %v699 = vsel %vm697, %v698, %v515
        %v700 = vshrl.u32 %v699, 4
        %v701 = vand.u32 %v699, 15
        %v702 = vsub.s32 0, %v701
        %v703 = vsel %vm697, %v702, %v701
        %vm704 = vcmp.lt.s32.totalorder %v516, 0
        %v705 = vsub.s32 0, %v516
        %v706 = vsel %vm704, %v705, %v516
        %v707 = vshrl.u32 %v706, 4
        %v708 = vand.u32 %v706, 15
        %v709 = vsub.s32 0, %v708
        %v710 = vsel %vm704, %v709, %v708
        %vm711 = vcmp.lt.s32.totalorder %v517, 0
        %v712 = vsub.s32 0, %v517
        %v713 = vsel %vm711, %v712, %v517
        %v714 = vshrl.u32 %v713, 4
        %v715 = vand.u32 %v713, 15
        %v716 = vsub.s32 0, %v715
        %v717 = vsel %vm711, %v716, %v715
        %vm718 = vcmp.lt.s32.totalorder %v518, 0
        %v719 = vsub.s32 0, %v518
        %v720 = vsel %vm718, %v719, %v518
        %v721 = vshrl.u32 %v720, 4
        %v722 = vand.u32 %v720, 15
        %v723 = vsub.s32 0, %v722
        %v724 = vsel %vm718, %v723, %v722
        %vm725 = vcmp.lt.s32.totalorder %v519, 0
        %v726 = vsub.s32 0, %v519
        %v727 = vsel %vm725, %v726, %v519
        %v728 = vshrl.u32 %v727, 4
        %v729 = vand.u32 %v727, 15
        %v730 = vsub.s32 0, %v729
        %v731 = vsel %vm725, %v730, %v729
        %vm732 = vcmp.lt.s32.totalorder %v520, 0
        %v733 = vsub.s32 0, %v520
        %v734 = vsel %vm732, %v733, %v520
        %v735 = vshrl.u32 %v734, 4
        %v736 = vand.u32 %v734, 15
        %v737 = vsub.s32 0, %v736
        %v738 = vsel %vm732, %v737, %v736
        %vm739 = vcmp.lt.s32.totalorder %v521, 0
        %v740 = vsub.s32 0, %v521
        %v741 = vsel %vm739, %v740, %v521
        %v742 = vshrl.u32 %v741, 4
        %v743 = vand.u32 %v741, 15
        %v744 = vsub.s32 0, %v743
        %v745 = vsel %vm739, %v744, %v743
        %vm746 = vcmp.ne.s32.totalorder %v528, 0
        %vm747 = vcmp.ne.s32.totalorder %v535, 0
        %vm748 = vcmp.ne.s32.totalorder %v542, 0
        %vm749 = vcmp.ne.s32.totalorder %v549, 0
        %vm750 = vcmp.ne.s32.totalorder %v556, 0
        %vm751 = vcmp.ne.s32.totalorder %v563, 0
        %vm752 = vcmp.ne.s32.totalorder %v570, 0
        %vm753 = vcmp.ne.s32.totalorder %v577, 0
        %vm754 = vcmp.ne.s32.totalorder %v584, 0
        %vm755 = vcmp.ne.s32.totalorder %v591, 0
        %vm756 = vcmp.ne.s32.totalorder %v598, 0
        %vm757 = vcmp.ne.s32.totalorder %v605, 0
        %vm758 = vcmp.ne.s32.totalorder %v612, 0
        %vm759 = vcmp.ne.s32.totalorder %v619, 0
        %vm760 = vcmp.ne.s32.totalorder %v626, 0
        %vm761 = vcmp.ne.s32.totalorder %v633, 0
        %vm762 = vcmp.ne.s32.totalorder %v640, 0
        %vm763 = vcmp.ne.s32.totalorder %v647, 0
        %vm764 = vcmp.ne.s32.totalorder %v654, 0
        %vm765 = vcmp.ne.s32.totalorder %v661, 0
        %vm766 = vcmp.ne.s32.totalorder %v668, 0
        %vm767 = vcmp.ne.s32.totalorder %v675, 0
        %vm768 = vcmp.ne.s32.totalorder %v682, 0
        %vm769 = vcmp.ne.s32.totalorder %v689, 0
        %vm770 = vcmp.ne.s32.totalorder %v696, 0
        %vm771 = vcmp.ne.s32.totalorder %v703, 0
        %vm772 = vcmp.ne.s32.totalorder %v710, 0
        %vm773 = vcmp.ne.s32.totalorder %v717, 0
        %vm774 = vcmp.ne.s32.totalorder %v724, 0
        %vm775 = vcmp.ne.s32.totalorder %v731, 0
        %vm776 = vcmp.ne.s32.totalorder %v738, 0
        %vm777 = vcmp.ne.s32.totalorder %v745, 0
        %vm778 = vcmp.lt.s32.totalorder %v528, 0
        %vm779 = vcmp.lt.s32.totalorder %v535, 0
        %vm780 = vcmp.lt.s32.totalorder %v542, 0
        %vm781 = vcmp.lt.s32.totalorder %v549, 0
        %vm782 = vcmp.lt.s32.totalorder %v556, 0
        %vm783 = vcmp.lt.s32.totalorder %v563, 0
        %vm784 = vcmp.lt.s32.totalorder %v570, 0
        %vm785 = vcmp.lt.s32.totalorder %v577, 0
        %vm786 = vcmp.lt.s32.totalorder %v584, 0
        %vm787 = vcmp.lt.s32.totalorder %v591, 0
        %vm788 = vcmp.lt.s32.totalorder %v598, 0
        %vm789 = vcmp.lt.s32.totalorder %v605, 0
        %vm790 = vcmp.lt.s32.totalorder %v612, 0
        %vm791 = vcmp.lt.s32.totalorder %v619, 0
        %vm792 = vcmp.lt.s32.totalorder %v626, 0
        %vm793 = vcmp.lt.s32.totalorder %v633, 0
        %vm794 = vcmp.lt.s32.totalorder %v640, 0
        %vm795 = vcmp.lt.s32.totalorder %v647, 0
        %vm796 = vcmp.lt.s32.totalorder %v654, 0
        %vm797 = vcmp.lt.s32.totalorder %v661, 0
        %vm798 = vcmp.lt.s32.totalorder %v668, 0
        %vm799 = vcmp.lt.s32.totalorder %v675, 0
        %vm800 = vcmp.lt.s32.totalorder %v682, 0
        %vm801 = vcmp.lt.s32.totalorder %v689, 0
        %vm802 = vcmp.lt.s32.totalorder %v696, 0
        %vm803 = vcmp.lt.s32.totalorder %v703, 0
        %vm804 = vcmp.lt.s32.totalorder %v710, 0
        %vm805 = vcmp.lt.s32.totalorder %v717, 0
        %vm806 = vcmp.lt.s32.totalorder %v724, 0
        %vm807 = vcmp.lt.s32.totalorder %v731, 0
        %vm808 = vcmp.lt.s32.totalorder %v738, 0
        %vm809 = vcmp.lt.s32.totalorder %v745, 0
        %vm810 = vmand %vm778, %vm746
        %vm811 = vmand %vm779, %vm747
        %vm812 = vmand %vm780, %vm748
        %vm813 = vmand %vm781, %vm749
        %vm814 = vmand %vm782, %vm750
        %vm815 = vmand %vm783, %vm751
        %vm816 = vmand %vm784, %vm752
        %vm817 = vmand %vm785, %vm753
        %vm818 = vmand %vm786, %vm754
        %vm819 = vmand %vm787, %vm755
        %vm820 = vmand %vm788, %vm756
        %vm821 = vmand %vm789, %vm757
        %vm822 = vmand %vm790, %vm758
        %vm823 = vmand %vm791, %vm759
        %vm824 = vmand %vm792, %vm760
        %vm825 = vmand %vm793, %vm761
        %vm826 = vmand %vm794, %vm762
        %vm827 = vmand %vm795, %vm763
        %vm828 = vmand %vm796, %vm764
        %vm829 = vmand %vm797, %vm765
        %vm830 = vmand %vm798, %vm766
        %vm831 = vmand %vm799, %vm767
        %vm832 = vmand %vm800, %vm768
        %vm833 = vmand %vm801, %vm769
        %vm834 = vmand %vm802, %vm770
        %vm835 = vmand %vm803, %vm771
        %vm836 = vmand %vm804, %vm772
        %vm837 = vmand %vm805, %vm773
        %vm838 = vmand %vm806, %vm774
        %vm839 = vmand %vm807, %vm775
        %vm840 = vmand %vm808, %vm776
        %vm841 = vmand %vm809, %vm777
        %v842 = vadd.s32 %v528, 16
        %v843 = vadd.s32 %v535, 16
        %v844 = vadd.s32 %v542, 16
        %v845 = vadd.s32 %v549, 16
        %v846 = vadd.s32 %v556, 16
        %v847 = vadd.s32 %v563, 16
        %v848 = vadd.s32 %v570, 16
        %v849 = vadd.s32 %v577, 16
        %v850 = vadd.s32 %v584, 16
        %v851 = vadd.s32 %v591, 16
        %v852 = vadd.s32 %v598, 16
        %v853 = vadd.s32 %v605, 16
        %v854 = vadd.s32 %v612, 16
        %v855 = vadd.s32 %v619, 16
        %v856 = vadd.s32 %v626, 16
        %v857 = vadd.s32 %v633, 16
        %v858 = vadd.s32 %v640, 16
        %v859 = vadd.s32 %v647, 16
        %v860 = vadd.s32 %v654, 16
        %v861 = vadd.s32 %v661, 16
        %v862 = vadd.s32 %v668, 16
        %v863 = vadd.s32 %v675, 16
        %v864 = vadd.s32 %v682, 16
        %v865 = vadd.s32 %v689, 16
        %v866 = vadd.s32 %v696, 16
        %v867 = vadd.s32 %v703, 16
        %v868 = vadd.s32 %v710, 16
        %v869 = vadd.s32 %v717, 16
        %v870 = vadd.s32 %v724, 16
        %v871 = vadd.s32 %v731, 16
        %v872 = vadd.s32 %v738, 16
        %v873 = vadd.s32 %v745, 16
        %v874 = vsel %vm810, %v842, %v528
        %v875 = vsel %vm811, %v843, %v535
        %v876 = vsel %vm812, %v844, %v542
        %v877 = vsel %vm813, %v845, %v549
        %v878 = vsel %vm814, %v846, %v556
        %v879 = vsel %vm815, %v847, %v563
        %v880 = vsel %vm816, %v848, %v570
        %v881 = vsel %vm817, %v849, %v577
        %v882 = vsel %vm818, %v850, %v584
        %v883 = vsel %vm819, %v851, %v591
        %v884 = vsel %vm820, %v852, %v598
        %v885 = vsel %vm821, %v853, %v605
        %v886 = vsel %vm822, %v854, %v612
        %v887 = vsel %vm823, %v855, %v619
        %v888 = vsel %vm824, %v856, %v626
        %v889 = vsel %vm825, %v857, %v633
        %v890 = vsel %vm826, %v858, %v640
        %v891 = vsel %vm827, %v859, %v647
        %v892 = vsel %vm828, %v860, %v654
        %v893 = vsel %vm829, %v861, %v661
        %v894 = vsel %vm830, %v862, %v668
        %v895 = vsel %vm831, %v863, %v675
        %v896 = vsel %vm832, %v864, %v682
        %v897 = vsel %vm833, %v865, %v689
        %v898 = vsel %vm834, %v866, %v696
        %v899 = vsel %vm835, %v867, %v703
        %v900 = vsel %vm836, %v868, %v710
        %v901 = vsel %vm837, %v869, %v717
        %v902 = vsel %vm838, %v870, %v724
        %v903 = vsel %vm839, %v871, %v731
        %v904 = vsel %vm840, %v872, %v738
        %v905 = vsel %vm841, %v873, %v745
        %v906 = vld [vmem:[#allocation2 + $0x7] sm:$0xff]
        %v907 = vld [vmem:[#allocation2 + $0xf] sm:$0xff]
        %v908 = vld [vmem:[#allocation2 + $0x17] sm:$0xff]
        %v909 = vld [vmem:[#allocation2 + $0x1f] sm:$0xff]
        %v910 = vld [vmem:[#allocation2 + $0x27] sm:$0xff]
        %v911 = vld [vmem:[#allocation2 + $0x2f] sm:$0xff]
        %v912 = vld [vmem:[#allocation2 + $0x37] sm:$0xff]
        %v913 = vld [vmem:[#allocation2 + $0x3f] sm:$0xff]
        %v914 = vld [vmem:[#allocation2 + $0x47] sm:$0xff]
        %v915 = vld [vmem:[#allocation2 + $0x4f] sm:$0xff]
        %v916 = vld [vmem:[#allocation2 + $0x57] sm:$0xff]
        %v917 = vld [vmem:[#allocation2 + $0x5f] sm:$0xff]
        %v918 = vld [vmem:[#allocation2 + $0x67] sm:$0xff]
        %v919 = vld [vmem:[#allocation2 + $0x6f] sm:$0xff]
        %v920 = vld [vmem:[#allocation2 + $0x77] sm:$0xff]
        %v921 = vld [vmem:[#allocation2 + $0x7f] sm:$0xff]
        %v922 = vld [vmem:[#allocation2 + $0x87] sm:$0xff]
        %v923 = vld [vmem:[#allocation2 + $0x8f] sm:$0xff]
        %v924 = vld [vmem:[#allocation2 + $0x97] sm:$0xff]
        %v925 = vld [vmem:[#allocation2 + $0x9f] sm:$0xff]
        %v926 = vld [vmem:[#allocation2 + $0xa7] sm:$0xff]
        %v927 = vld [vmem:[#allocation2 + $0xaf] sm:$0xff]
        %v928 = vld [vmem:[#allocation2 + $0xb7] sm:$0xff]
        %v929 = vld [vmem:[#allocation2 + $0xbf] sm:$0xff]
        %v930 = vld [vmem:[#allocation2 + $0xc7] sm:$0xff]
        %v931 = vld [vmem:[#allocation2 + $0xcf] sm:$0xff]
        %v932 = vld [vmem:[#allocation2 + $0xd7] sm:$0xff]
        %v933 = vld [vmem:[#allocation2 + $0xdf] sm:$0xff]
        %v934 = vld [vmem:[#allocation2 + $0xe7] sm:$0xff]
        %v935 = vld [vmem:[#allocation2 + $0xef] sm:$0xff]
        %v936 = vld [vmem:[#allocation2 + $0xf7] sm:$0xff]
        %v937 = vld [vmem:[#allocation2 + $0xff] sm:$0xff]
        %vm938 = vcmp.ge.s32.totalorder %v874, 1
        %vm939 = vcmp.ge.s32.totalorder %v875, 1
        %vm940 = vcmp.ge.s32.totalorder %v876, 1
        %vm941 = vcmp.ge.s32.totalorder %v877, 1
        %vm942 = vcmp.ge.s32.totalorder %v878, 1
        %vm943 = vcmp.ge.s32.totalorder %v879, 1
        %vm944 = vcmp.ge.s32.totalorder %v880, 1
        %vm945 = vcmp.ge.s32.totalorder %v881, 1
        %vm946 = vcmp.ge.s32.totalorder %v882, 1
        %vm947 = vcmp.ge.s32.totalorder %v883, 1
        %vm948 = vcmp.ge.s32.totalorder %v884, 1
        %vm949 = vcmp.ge.s32.totalorder %v885, 1
        %vm950 = vcmp.ge.s32.totalorder %v886, 1
        %vm951 = vcmp.ge.s32.totalorder %v887, 1
        %vm952 = vcmp.ge.s32.totalorder %v888, 1
        %vm953 = vcmp.ge.s32.totalorder %v889, 1
        %vm954 = vcmp.ge.s32.totalorder %v890, 1
        %vm955 = vcmp.ge.s32.totalorder %v891, 1
        %vm956 = vcmp.ge.s32.totalorder %v892, 1
        %vm957 = vcmp.ge.s32.totalorder %v893, 1
        %vm958 = vcmp.ge.s32.totalorder %v894, 1
        %vm959 = vcmp.ge.s32.totalorder %v895, 1
        %vm960 = vcmp.ge.s32.totalorder %v896, 1
        %vm961 = vcmp.ge.s32.totalorder %v897, 1
        %vm962 = vcmp.ge.s32.totalorder %v898, 1
        %vm963 = vcmp.ge.s32.totalorder %v899, 1
        %vm964 = vcmp.ge.s32.totalorder %v900, 1
        %vm965 = vcmp.ge.s32.totalorder %v901, 1
        %vm966 = vcmp.ge.s32.totalorder %v902, 1
        %vm967 = vcmp.ge.s32.totalorder %v903, 1
        %vm968 = vcmp.ge.s32.totalorder %v904, 1
        %vm969 = vcmp.ge.s32.totalorder %v905, 1
        %v970 = vsel %vm938, %v906, 0.0
        %v971 = vsel %vm939, %v907, 0.0
        %v972 = vsel %vm940, %v908, 0.0
        %v973 = vsel %vm941, %v909, 0.0
        %v974 = vsel %vm942, %v910, 0.0
        %v975 = vsel %vm943, %v911, 0.0
        %v976 = vsel %vm944, %v912, 0.0
        %v977 = vsel %vm945, %v913, 0.0
        %v978 = vsel %vm946, %v914, 0.0
        %v979 = vsel %vm947, %v915, 0.0
        %v980 = vsel %vm948, %v916, 0.0
        %v981 = vsel %vm949, %v917, 0.0
        %v982 = vsel %vm950, %v918, 0.0
        %v983 = vsel %vm951, %v919, 0.0
        %v984 = vsel %vm952, %v920, 0.0
        %v985 = vsel %vm953, %v921, 0.0
        %v986 = vsel %vm954, %v922, 0.0
        %v987 = vsel %vm955, %v923, 0.0
        %v988 = vsel %vm956, %v924, 0.0
        %v989 = vsel %vm957, %v925, 0.0
        %v990 = vsel %vm958, %v926, 0.0
        %v991 = vsel %vm959, %v927, 0.0
        %v992 = vsel %vm960, %v928, 0.0
        %v993 = vsel %vm961, %v929, 0.0
        %v994 = vsel %vm962, %v930, 0.0
        %v995 = vsel %vm963, %v931, 0.0
        %v996 = vsel %vm964, %v932, 0.0
        %v997 = vsel %vm965, %v933, 0.0
        %v998 = vsel %vm966, %v934, 0.0
        %v999 = vsel %vm967, %v935, 0.0
        %v1000 = vsel %vm968, %v936, 0.0
        %v1001 = vsel %vm969, %v937, 0.0
        %v1002 = vpack.c.bf16 %v971, %v970
        %v1003 = vpack.c.bf16 %v973, %v972
        %v1004 = vpack.c.bf16 %v975, %v974
        %v1005 = vpack.c.bf16 %v977, %v976
        %v1006 = vpack.c.bf16 %v979, %v978
        %v1007 = vpack.c.bf16 %v981, %v980
        %v1008 = vpack.c.bf16 %v983, %v982
        %v1009 = vpack.c.bf16 %v985, %v984
        %v1010 = vpack.c.bf16 %v987, %v986
        %v1011 = vpack.c.bf16 %v989, %v988
        %v1012 = vpack.c.bf16 %v991, %v990
        %v1013 = vpack.c.bf16 %v993, %v992
        %v1014 = vpack.c.bf16 %v995, %v994
        %v1015 = vpack.c.bf16 %v997, %v996
        %v1016 = vpack.c.bf16 %v999, %v998
        %v1017 = vpack.c.bf16 %v1001, %v1000
        %v1018 = vld [vmem:[%s1] sm:$0x3]
        %v1019 = vld [vmem:[#allocation2 + $0x8] sm:$0xff]
        %v1020 = vld [vmem:[#allocation2 + $0x10] sm:$0xff]
        %v1021 = vld [vmem:[#allocation2 + $0x18] sm:$0xff]
        %v1022 = vld [vmem:[#allocation2 + $0x20] sm:$0xff]
        %v1023 = vld [vmem:[#allocation2 + $0x28] sm:$0xff]
        %v1024 = vld [vmem:[#allocation2 + $0x30] sm:$0xff]
        %v1025 = vld [vmem:[#allocation2 + $0x38] sm:$0xff]
        %v1026 = vld [vmem:[#allocation2 + $0x40] sm:$0xff]
        %v1027 = vld [vmem:[#allocation2 + $0x48] sm:$0xff]
        %v1028 = vld [vmem:[#allocation2 + $0x50] sm:$0xff]
        %v1029 = vld [vmem:[#allocation2 + $0x58] sm:$0xff]
        %v1030 = vld [vmem:[#allocation2 + $0x60] sm:$0xff]
        %v1031 = vld [vmem:[#allocation2 + $0x68] sm:$0xff]
        %v1032 = vld [vmem:[#allocation2 + $0x70] sm:$0xff]
        %v1033 = vld [vmem:[#allocation2 + $0x78] sm:$0xff]
        %v1034 = vld [vmem:[#allocation2 + $0x80] sm:$0xff]
        %v1035 = vld [vmem:[#allocation2 + $0x88] sm:$0xff]
        %v1036 = vld [vmem:[#allocation2 + $0x90] sm:$0xff]
        %v1037 = vld [vmem:[#allocation2 + $0x98] sm:$0xff]
        %v1038 = vld [vmem:[#allocation2 + $0xa0] sm:$0xff]
        %v1039 = vld [vmem:[#allocation2 + $0xa8] sm:$0xff]
        %v1040 = vld [vmem:[#allocation2 + $0xb0] sm:$0xff]
        %v1041 = vld [vmem:[#allocation2 + $0xb8] sm:$0xff]
        %v1042 = vld [vmem:[#allocation2 + $0xc0] sm:$0xff]
        %v1043 = vld [vmem:[#allocation2 + $0xc8] sm:$0xff]
        %v1044 = vld [vmem:[#allocation2 + $0xd0] sm:$0xff]
        %v1045 = vld [vmem:[#allocation2 + $0xd8] sm:$0xff]
        %v1046 = vld [vmem:[#allocation2 + $0xe0] sm:$0xff]
        %v1047 = vld [vmem:[#allocation2 + $0xe8] sm:$0xff]
        %v1048 = vld [vmem:[#allocation2 + $0xf0] sm:$0xff]
        %v1049 = vld [vmem:[#allocation2 + $0xf8] sm:$0xff]
        %v1050 = vld [vmem:[#allocation2 + $0x100] sm:$0xff]
        %v1051 = vpack.c.bf16 %v1020, %v1019
        %v1052 = vpack.c.bf16 %v1022, %v1021
        %v1053 = vpack.c.bf16 %v1024, %v1023
        %v1054 = vpack.c.bf16 %v1026, %v1025
        %v1055 = vpack.c.bf16 %v1028, %v1027
        %v1056 = vpack.c.bf16 %v1030, %v1029
        %v1057 = vpack.c.bf16 %v1032, %v1031
        %v1058 = vpack.c.bf16 %v1034, %v1033
        %v1059 = vpack.c.bf16 %v1036, %v1035
        %v1060 = vpack.c.bf16 %v1038, %v1037
        %v1061 = vpack.c.bf16 %v1040, %v1039
        %v1062 = vpack.c.bf16 %v1042, %v1041
        %v1063 = vpack.c.bf16 %v1044, %v1043
        %v1064 = vpack.c.bf16 %v1046, %v1045
        %v1065 = vpack.c.bf16 %v1048, %v1047
        %v1066 = vpack.c.bf16 %v1050, %v1049
        %s1067 = scalar_lea.vmem %s1, 2
        %v1068 = vld [vmem:[%s1067] sm:$0x3]
        %v1070 = vsel %vm417, %v1051, 0
        %v1073 = vsel %vm417, %v1052, 0
        %v1076 = vsel %vm417, %v1053, 0
        %v1079 = vsel %vm417, %v1054, 0
        %v1082 = vsel %vm417, %v1055, 0
        %v1085 = vsel %vm417, %v1056, 0
        %v1088 = vsel %vm417, %v1057, 0
        %v1091 = vsel %vm417, %v1058, 0
        %v1094 = vsel %vm417, %v1059, 0
        %v1097 = vsel %vm417, %v1060, 0
        %v1100 = vsel %vm417, %v1061, 0
        %v1103 = vsel %vm417, %v1062, 0
        %v1106 = vsel %vm417, %v1063, 0
        %v1109 = vsel %vm417, %v1064, 0
        %v1112 = vsel %vm417, %v1065, 0
        %v1115 = vsel %vm417, %v1066, 0
        %vm1117 = vcmask 1041408
        %v1119 = vsel %vm1117, %v1068, 0
        %1121 = vmatprep.subr.bf16.mxu0 0
        %1122 = vmatpush1.bf16.msra.mxu0 0
        %1123 = vmatprep.subr.bf16.mxu0 0
        %1124 = vmatpush1.bf16.msra.mxu0 0
        %1125 = vmatprep.subr.bf16.mxu0 0
        %1126 = vmatpush1.bf16.msra.mxu0 0
        %1127 = vmatprep.subr.bf16.mxu0 0
        %1128 = vmatpush1.bf16.msra.mxu0 0
        %1129 = vmatprep.subr.bf16.mxu0 0
        %1130 = vmatpush1.bf16.msra.mxu0 0
        %1131 = vmatprep.subr.bf16.mxu0 0
        %1132 = vmatpush1.bf16.msra.mxu0 0
        %1133 = vmatprep.subr.bf16.mxu0 0
        %1134 = vmatpush1.bf16.msra.mxu0 0
        %1135 = vmatprep.subr.bf16.mxu0 0
        %1136 = vmatpush1.bf16.msra.mxu0 %v1119
        %1137 = vmatprep.subr.bf16.mxu0 0
        %1138 = vmatpush2.bf16.msra.mxu0 0
        %1139 = vmatprep.subr.bf16.mxu0 0
        %1140 = vmatpush2.bf16.msra.mxu0 0
        %1141 = vmatprep.subr.bf16.mxu0 0
        %1142 = vmatpush2.bf16.msra.mxu0 0
        %1143 = vmatprep.subr.bf16.mxu0 0
        %1144 = vmatpush2.bf16.msra.mxu0 0
        %1145 = vmatprep.subr.bf16.mxu0 0
        %1146 = vmatpush2.bf16.msra.mxu0 0
        %1147 = vmatprep.subr.bf16.mxu0 0
        %1148 = vmatpush2.bf16.msra.mxu0 0
        %1149 = vmatprep.subr.bf16.mxu0 0
        %1150 = vmatpush2.bf16.msra.mxu0 0
        %1151 = vmatprep.subr.bf16.mxu0 0
        %1152 = vmatpush2.bf16.msra.mxu0 0
        %1153 = vmatprep.mubr.bf16.mxu0 0
        %1154 = vmatmul.mubr.bf16.gmra.mxu0 %v1070
        %v1155 = vpop.f32.mrf.mxu0
        %v1156 = vadd.f32 0.0, %v1155
        %v1157 = vpop.f32.mrf.mxu0
        %v1158 = vpop.f32.mrf.mxu0
        %v1159 = vadd.f32 0.0, %v1158
        %v1160 = vpop.f32.mrf.mxu0
        %1161 = vmatprep.mubr.bf16.mxu0 0
        %1162 = vmatmul.mubr.bf16.gmra.mxu0 %v1073
        %v1163 = vpop.f32.mrf.mxu0
        %v1164 = vadd.f32 0.0, %v1163
        %v1165 = vpop.f32.mrf.mxu0
        %v1166 = vpop.f32.mrf.mxu0
        %v1167 = vadd.f32 0.0, %v1166
        %v1168 = vpop.f32.mrf.mxu0
        %1169 = vmatprep.mubr.bf16.mxu0 0
        %1170 = vmatmul.mubr.bf16.gmra.mxu0 %v1076
        %v1171 = vpop.f32.mrf.mxu0
        %v1172 = vadd.f32 0.0, %v1171
        %v1173 = vpop.f32.mrf.mxu0
        %v1174 = vpop.f32.mrf.mxu0
        %v1175 = vadd.f32 0.0, %v1174
        %v1176 = vpop.f32.mrf.mxu0
        %1177 = vmatprep.mubr.bf16.mxu0 0
        %1178 = vmatmul.mubr.bf16.gmra.mxu0 %v1079
        %v1179 = vpop.f32.mrf.mxu0
        %v1180 = vadd.f32 0.0, %v1179
        %v1181 = vpop.f32.mrf.mxu0
        %v1182 = vpop.f32.mrf.mxu0
        %v1183 = vadd.f32 0.0, %v1182
        %v1184 = vpop.f32.mrf.mxu0
        %1185 = vmatprep.mubr.bf16.mxu0 0
        %1186 = vmatmul.mubr.bf16.gmra.mxu0 %v1082
        %v1187 = vpop.f32.mrf.mxu0
        %v1188 = vadd.f32 0.0, %v1187
        %v1189 = vpop.f32.mrf.mxu0
        %v1190 = vpop.f32.mrf.mxu0
        %v1191 = vadd.f32 0.0, %v1190
        %v1192 = vpop.f32.mrf.mxu0
        %1193 = vmatprep.mubr.bf16.mxu0 0
        %1194 = vmatmul.mubr.bf16.gmra.mxu0 %v1085
        %v1195 = vpop.f32.mrf.mxu0
        %v1196 = vadd.f32 0.0, %v1195
        %v1197 = vpop.f32.mrf.mxu0
        %v1198 = vpop.f32.mrf.mxu0
        %v1199 = vadd.f32 0.0, %v1198
        %v1200 = vpop.f32.mrf.mxu0
        %1201 = vmatprep.mubr.bf16.mxu0 0
        %1202 = vmatmul.mubr.bf16.gmra.mxu0 %v1088
        %v1203 = vpop.f32.mrf.mxu0
        %v1204 = vadd.f32 0.0, %v1203
        %v1205 = vpop.f32.mrf.mxu0
        %v1206 = vpop.f32.mrf.mxu0
        %v1207 = vadd.f32 0.0, %v1206
        %v1208 = vpop.f32.mrf.mxu0
        %1209 = vmatprep.mubr.bf16.mxu0 0
        %1210 = vmatmul.mubr.bf16.gmra.mxu0 %v1091
        %v1211 = vpop.f32.mrf.mxu0
        %v1212 = vadd.f32 0.0, %v1211
        %v1213 = vpop.f32.mrf.mxu0
        %v1214 = vpop.f32.mrf.mxu0
        %v1215 = vadd.f32 0.0, %v1214
        %v1216 = vpop.f32.mrf.mxu0
        %1217 = vmatprep.mubr.bf16.mxu0 0
        %1218 = vmatmul.mubr.bf16.gmra.mxu0 %v1094
        %v1219 = vpop.f32.mrf.mxu0
        %v1220 = vadd.f32 0.0, %v1219
        %v1221 = vpop.f32.mrf.mxu0
        %v1222 = vpop.f32.mrf.mxu0
        %v1223 = vadd.f32 0.0, %v1222
        %v1224 = vpop.f32.mrf.mxu0
        %1225 = vmatprep.mubr.bf16.mxu0 0
        %1226 = vmatmul.mubr.bf16.gmra.mxu0 %v1097
        %v1227 = vpop.f32.mrf.mxu0
        %v1228 = vadd.f32 0.0, %v1227
        %v1229 = vpop.f32.mrf.mxu0
        %v1230 = vpop.f32.mrf.mxu0
        %v1231 = vadd.f32 0.0, %v1230
        %v1232 = vpop.f32.mrf.mxu0
        %1233 = vmatprep.mubr.bf16.mxu0 0
        %1234 = vmatmul.mubr.bf16.gmra.mxu0 %v1100
        %v1235 = vpop.f32.mrf.mxu0
        %v1236 = vadd.f32 0.0, %v1235
        %v1237 = vpop.f32.mrf.mxu0
        %v1238 = vpop.f32.mrf.mxu0
        %v1239 = vadd.f32 0.0, %v1238
        %v1240 = vpop.f32.mrf.mxu0
        %1241 = vmatprep.mubr.bf16.mxu0 0
        %1242 = vmatmul.mubr.bf16.gmra.mxu0 %v1103
        %v1243 = vpop.f32.mrf.mxu0
        %v1244 = vadd.f32 0.0, %v1243
        %v1245 = vpop.f32.mrf.mxu0
        %v1246 = vpop.f32.mrf.mxu0
        %v1247 = vadd.f32 0.0, %v1246
        %v1248 = vpop.f32.mrf.mxu0
        %1249 = vmatprep.mubr.bf16.mxu0 0
        %1250 = vmatmul.mubr.bf16.gmra.mxu0 %v1106
        %v1251 = vpop.f32.mrf.mxu0
        %v1252 = vadd.f32 0.0, %v1251
        %v1253 = vpop.f32.mrf.mxu0
        %v1254 = vpop.f32.mrf.mxu0
        %v1255 = vadd.f32 0.0, %v1254
        %v1256 = vpop.f32.mrf.mxu0
        %1257 = vmatprep.mubr.bf16.mxu0 0
        %1258 = vmatmul.mubr.bf16.gmra.mxu0 %v1109
        %v1259 = vpop.f32.mrf.mxu0
        %v1260 = vadd.f32 0.0, %v1259
        %v1261 = vpop.f32.mrf.mxu0
        %v1262 = vpop.f32.mrf.mxu0
        %v1263 = vadd.f32 0.0, %v1262
        %v1264 = vpop.f32.mrf.mxu0
        %1265 = vmatprep.mubr.bf16.mxu0 0
        %1266 = vmatmul.mubr.bf16.gmra.mxu0 %v1112
        %v1267 = vpop.f32.mrf.mxu0
        %v1268 = vadd.f32 0.0, %v1267
        %v1269 = vpop.f32.mrf.mxu0
        %v1270 = vpop.f32.mrf.mxu0
        %v1271 = vadd.f32 0.0, %v1270
        %v1272 = vpop.f32.mrf.mxu0
        %1273 = vmatprep.mubr.bf16.mxu0 0
        %1274 = vmatmul.mubr.bf16.gmra.mxu0 %v1115
        %v1275 = vpop.f32.mrf.mxu0
        %v1276 = vadd.f32 0.0, %v1275
        %v1277 = vpop.f32.mrf.mxu0
        %v1278 = vpop.f32.mrf.mxu0
        %v1279 = vadd.f32 0.0, %v1278
        %v1280 = vpop.f32.mrf.mxu0
        %1281 = vdwg.mxu0
        %v1283 = vsel %vm417, %v1002, 0
        %v1286 = vsel %vm417, %v1003, 0
        %v1289 = vsel %vm417, %v1004, 0
        %v1292 = vsel %vm417, %v1005, 0
        %v1295 = vsel %vm417, %v1006, 0
        %v1298 = vsel %vm417, %v1007, 0
        %v1301 = vsel %vm417, %v1008, 0
        %v1304 = vsel %vm417, %v1009, 0
        %v1307 = vsel %vm417, %v1010, 0
        %v1310 = vsel %vm417, %v1011, 0
        %v1313 = vsel %vm417, %v1012, 0
        %v1316 = vsel %vm417, %v1013, 0
        %v1319 = vsel %vm417, %v1014, 0
        %v1322 = vsel %vm417, %v1015, 0
        %v1325 = vsel %vm417, %v1016, 0
        %v1328 = vsel %vm417, %v1017, 0
        %v1331 = vsel %vm1117, %v1018, 0
        %1333 = vmatprep.subr.bf16.mxu0 0
        %1334 = vmatpush1.bf16.msra.mxu0 0
        %1335 = vmatprep.subr.bf16.mxu0 0
        %1336 = vmatpush1.bf16.msra.mxu0 0
        %1337 = vmatprep.subr.bf16.mxu0 0
        %1338 = vmatpush1.bf16.msra.mxu0 0
        %1339 = vmatprep.subr.bf16.mxu0 0
        %1340 = vmatpush1.bf16.msra.mxu0 0
        %1341 = vmatprep.subr.bf16.mxu0 0
        %1342 = vmatpush1.bf16.msra.mxu0 0
        %1343 = vmatprep.subr.bf16.mxu0 0
        %1344 = vmatpush1.bf16.msra.mxu0 0
        %1345 = vmatprep.subr.bf16.mxu0 0
        %1346 = vmatpush1.bf16.msra.mxu0 0
        %1347 = vmatprep.subr.bf16.mxu0 0
        %1348 = vmatpush1.bf16.msra.mxu0 %v1331
        %1349 = vmatprep.subr.bf16.mxu0 0
        %1350 = vmatpush2.bf16.msra.mxu0 0
        %1351 = vmatprep.subr.bf16.mxu0 0
        %1352 = vmatpush2.bf16.msra.mxu0 0
        %1353 = vmatprep.subr.bf16.mxu0 0
        %1354 = vmatpush2.bf16.msra.mxu0 0
        %1355 = vmatprep.subr.bf16.mxu0 0
        %1356 = vmatpush2.bf16.msra.mxu0 0
        %1357 = vmatprep.subr.bf16.mxu0 0
        %1358 = vmatpush2.bf16.msra.mxu0 0
        %1359 = vmatprep.subr.bf16.mxu0 0
        %1360 = vmatpush2.bf16.msra.mxu0 0
        %1361 = vmatprep.subr.bf16.mxu0 0
        %1362 = vmatpush2.bf16.msra.mxu0 0
        %1363 = vmatprep.subr.bf16.mxu0 0
        %1364 = vmatpush2.bf16.msra.mxu0 0
        %1365 = vmatprep.mubr.bf16.mxu0 0
        %1366 = vmatmul.mubr.bf16.gmra.mxu0 %v1283
        %v1367 = vpop.f32.mrf.mxu0
        %v1368 = vadd.f32 %v1156, %v1367
        %v1369 = vpop.f32.mrf.mxu0
        %v1370 = vpop.f32.mrf.mxu0
        %v1371 = vadd.f32 %v1159, %v1370
        %v1372 = vpop.f32.mrf.mxu0
        %1373 = vmatprep.mubr.bf16.mxu0 0
        %1374 = vmatmul.mubr.bf16.gmra.mxu0 %v1286
        %v1375 = vpop.f32.mrf.mxu0
        %v1376 = vadd.f32 %v1164, %v1375
        %v1377 = vpop.f32.mrf.mxu0
        %v1378 = vpop.f32.mrf.mxu0
        %v1379 = vadd.f32 %v1167, %v1378
        %v1380 = vpop.f32.mrf.mxu0
        %1381 = vmatprep.mubr.bf16.mxu0 0
        %1382 = vmatmul.mubr.bf16.gmra.mxu0 %v1289
        %v1383 = vpop.f32.mrf.mxu0
        %v1384 = vadd.f32 %v1172, %v1383
        %v1385 = vpop.f32.mrf.mxu0
        %v1386 = vpop.f32.mrf.mxu0
        %v1387 = vadd.f32 %v1175, %v1386
        %v1388 = vpop.f32.mrf.mxu0
        %1389 = vmatprep.mubr.bf16.mxu0 0
        %1390 = vmatmul.mubr.bf16.gmra.mxu0 %v1292
        %v1391 = vpop.f32.mrf.mxu0
        %v1392 = vadd.f32 %v1180, %v1391
        %v1393 = vpop.f32.mrf.mxu0
        %v1394 = vpop.f32.mrf.mxu0
        %v1395 = vadd.f32 %v1183, %v1394
        %v1396 = vpop.f32.mrf.mxu0
        %1397 = vmatprep.mubr.bf16.mxu0 0
        %1398 = vmatmul.mubr.bf16.gmra.mxu0 %v1295
        %v1399 = vpop.f32.mrf.mxu0
        %v1400 = vadd.f32 %v1188, %v1399
        %v1401 = vpop.f32.mrf.mxu0
        %v1402 = vpop.f32.mrf.mxu0
        %v1403 = vadd.f32 %v1191, %v1402
        %v1404 = vpop.f32.mrf.mxu0
        %1405 = vmatprep.mubr.bf16.mxu0 0
        %1406 = vmatmul.mubr.bf16.gmra.mxu0 %v1298
        %v1407 = vpop.f32.mrf.mxu0
        %v1408 = vadd.f32 %v1196, %v1407
        %v1409 = vpop.f32.mrf.mxu0
        %v1410 = vpop.f32.mrf.mxu0
        %v1411 = vadd.f32 %v1199, %v1410
        %v1412 = vpop.f32.mrf.mxu0
        %1413 = vmatprep.mubr.bf16.mxu0 0
        %1414 = vmatmul.mubr.bf16.gmra.mxu0 %v1301
        %v1415 = vpop.f32.mrf.mxu0
        %v1416 = vadd.f32 %v1204, %v1415
        %v1417 = vpop.f32.mrf.mxu0
        %v1418 = vpop.f32.mrf.mxu0
        %v1419 = vadd.f32 %v1207, %v1418
        %v1420 = vpop.f32.mrf.mxu0
        %1421 = vmatprep.mubr.bf16.mxu0 0
        %1422 = vmatmul.mubr.bf16.gmra.mxu0 %v1304
        %v1423 = vpop.f32.mrf.mxu0
        %v1424 = vadd.f32 %v1212, %v1423
        %v1425 = vpop.f32.mrf.mxu0
        %v1426 = vpop.f32.mrf.mxu0
        %v1427 = vadd.f32 %v1215, %v1426
        %v1428 = vpop.f32.mrf.mxu0
        %1429 = vmatprep.mubr.bf16.mxu0 0
        %1430 = vmatmul.mubr.bf16.gmra.mxu0 %v1307
        %v1431 = vpop.f32.mrf.mxu0
        %v1432 = vadd.f32 %v1220, %v1431
        %v1433 = vpop.f32.mrf.mxu0
        %v1434 = vpop.f32.mrf.mxu0
        %v1435 = vadd.f32 %v1223, %v1434
        %v1436 = vpop.f32.mrf.mxu0
        %1437 = vmatprep.mubr.bf16.mxu0 0
        %1438 = vmatmul.mubr.bf16.gmra.mxu0 %v1310
        %v1439 = vpop.f32.mrf.mxu0
        %v1440 = vadd.f32 %v1228, %v1439
        %v1441 = vpop.f32.mrf.mxu0
        %v1442 = vpop.f32.mrf.mxu0
        %v1443 = vadd.f32 %v1231, %v1442
        %v1444 = vpop.f32.mrf.mxu0
        %1445 = vmatprep.mubr.bf16.mxu0 0
        %1446 = vmatmul.mubr.bf16.gmra.mxu0 %v1313
        %v1447 = vpop.f32.mrf.mxu0
        %v1448 = vadd.f32 %v1236, %v1447
        %v1449 = vpop.f32.mrf.mxu0
        %v1450 = vpop.f32.mrf.mxu0
        %v1451 = vadd.f32 %v1239, %v1450
        %v1452 = vpop.f32.mrf.mxu0
        %1453 = vmatprep.mubr.bf16.mxu0 0
        %1454 = vmatmul.mubr.bf16.gmra.mxu0 %v1316
        %v1455 = vpop.f32.mrf.mxu0
        %v1456 = vadd.f32 %v1244, %v1455
        %v1457 = vpop.f32.mrf.mxu0
        %v1458 = vpop.f32.mrf.mxu0
        %v1459 = vadd.f32 %v1247, %v1458
        %v1460 = vpop.f32.mrf.mxu0
        %1461 = vmatprep.mubr.bf16.mxu0 0
        %1462 = vmatmul.mubr.bf16.gmra.mxu0 %v1319
        %v1463 = vpop.f32.mrf.mxu0
        %v1464 = vadd.f32 %v1252, %v1463
        %v1465 = vpop.f32.mrf.mxu0
        %v1466 = vpop.f32.mrf.mxu0
        %v1467 = vadd.f32 %v1255, %v1466
        %v1468 = vpop.f32.mrf.mxu0
        %1469 = vmatprep.mubr.bf16.mxu0 0
        %1470 = vmatmul.mubr.bf16.gmra.mxu0 %v1322
        %v1471 = vpop.f32.mrf.mxu0
        %v1472 = vadd.f32 %v1260, %v1471
        %v1473 = vpop.f32.mrf.mxu0
        %v1474 = vpop.f32.mrf.mxu0
        %v1475 = vadd.f32 %v1263, %v1474
        %v1476 = vpop.f32.mrf.mxu0
        %1477 = vmatprep.mubr.bf16.mxu0 0
        %1478 = vmatmul.mubr.bf16.gmra.mxu0 %v1325
        %v1479 = vpop.f32.mrf.mxu0
        %v1480 = vadd.f32 %v1268, %v1479
        %v1481 = vpop.f32.mrf.mxu0
        %v1482 = vpop.f32.mrf.mxu0
        %v1483 = vadd.f32 %v1271, %v1482
        %v1484 = vpop.f32.mrf.mxu0
        %1485 = vmatprep.mubr.bf16.mxu0 0
        %1486 = vmatmul.mubr.bf16.gmra.mxu0 %v1328
        %v1487 = vpop.f32.mrf.mxu0
        %v1488 = vadd.f32 %v1276, %v1487
        %v1489 = vpop.f32.mrf.mxu0
        %v1490 = vpop.f32.mrf.mxu0
        %v1491 = vadd.f32 %v1279, %v1490
        %v1492 = vpop.f32.mrf.mxu0
        %1493 = vdwg.mxu0
        %v1494 = vld [vmem:[#allocation2 + $0x9] sm:$0xff]
        %v1495 = vld [vmem:[#allocation2 + $0x11] sm:$0xff]
        %v1496 = vld [vmem:[#allocation2 + $0x19] sm:$0xff]
        %v1497 = vld [vmem:[#allocation2 + $0x21] sm:$0xff]
        %v1498 = vld [vmem:[#allocation2 + $0x29] sm:$0xff]
        %v1499 = vld [vmem:[#allocation2 + $0x31] sm:$0xff]
        %v1500 = vld [vmem:[#allocation2 + $0x39] sm:$0xff]
        %v1501 = vld [vmem:[#allocation2 + $0x41] sm:$0xff]
        %v1502 = vld [vmem:[#allocation2 + $0x49] sm:$0xff]
        %v1503 = vld [vmem:[#allocation2 + $0x51] sm:$0xff]
        %v1504 = vld [vmem:[#allocation2 + $0x59] sm:$0xff]
        %v1505 = vld [vmem:[#allocation2 + $0x61] sm:$0xff]
        %v1506 = vld [vmem:[#allocation2 + $0x69] sm:$0xff]
        %v1507 = vld [vmem:[#allocation2 + $0x71] sm:$0xff]
        %v1508 = vld [vmem:[#allocation2 + $0x79] sm:$0xff]
        %v1509 = vld [vmem:[#allocation2 + $0x81] sm:$0xff]
        %v1510 = vld [vmem:[#allocation2 + $0x89] sm:$0xff]
        %v1511 = vld [vmem:[#allocation2 + $0x91] sm:$0xff]
        %v1512 = vld [vmem:[#allocation2 + $0x99] sm:$0xff]
        %v1513 = vld [vmem:[#allocation2 + $0xa1] sm:$0xff]
        %v1514 = vld [vmem:[#allocation2 + $0xa9] sm:$0xff]
        %v1515 = vld [vmem:[#allocation2 + $0xb1] sm:$0xff]
        %v1516 = vld [vmem:[#allocation2 + $0xb9] sm:$0xff]
        %v1517 = vld [vmem:[#allocation2 + $0xc1] sm:$0xff]
        %v1518 = vld [vmem:[#allocation2 + $0xc9] sm:$0xff]
        %v1519 = vld [vmem:[#allocation2 + $0xd1] sm:$0xff]
        %v1520 = vld [vmem:[#allocation2 + $0xd9] sm:$0xff]
        %v1521 = vld [vmem:[#allocation2 + $0xe1] sm:$0xff]
        %v1522 = vld [vmem:[#allocation2 + $0xe9] sm:$0xff]
        %v1523 = vld [vmem:[#allocation2 + $0xf1] sm:$0xff]
        %v1524 = vld [vmem:[#allocation2 + $0xf9] sm:$0xff]
        %v1525 = vld [vmem:[#allocation2 + $0x101] sm:$0xff]
        %vm1526 = vcmp.lt.s32.totalorder %v874, 15
        %vm1527 = vcmp.lt.s32.totalorder %v875, 15
        %vm1528 = vcmp.lt.s32.totalorder %v876, 15
        %vm1529 = vcmp.lt.s32.totalorder %v877, 15
        %vm1530 = vcmp.lt.s32.totalorder %v878, 15
        %vm1531 = vcmp.lt.s32.totalorder %v879, 15
        %vm1532 = vcmp.lt.s32.totalorder %v880, 15
        %vm1533 = vcmp.lt.s32.totalorder %v881, 15
        %vm1534 = vcmp.lt.s32.totalorder %v882, 15
        %vm1535 = vcmp.lt.s32.totalorder %v883, 15
        %vm1536 = vcmp.lt.s32.totalorder %v884, 15
        %vm1537 = vcmp.lt.s32.totalorder %v885, 15
        %vm1538 = vcmp.lt.s32.totalorder %v886, 15
        %vm1539 = vcmp.lt.s32.totalorder %v887, 15
        %vm1540 = vcmp.lt.s32.totalorder %v888, 15
        %vm1541 = vcmp.lt.s32.totalorder %v889, 15
        %vm1542 = vcmp.lt.s32.totalorder %v890, 15
        %vm1543 = vcmp.lt.s32.totalorder %v891, 15
        %vm1544 = vcmp.lt.s32.totalorder %v892, 15
        %vm1545 = vcmp.lt.s32.totalorder %v893, 15
        %vm1546 = vcmp.lt.s32.totalorder %v894, 15
        %vm1547 = vcmp.lt.s32.totalorder %v895, 15
        %vm1548 = vcmp.lt.s32.totalorder %v896, 15
        %vm1549 = vcmp.lt.s32.totalorder %v897, 15
        %vm1550 = vcmp.lt.s32.totalorder %v898, 15
        %vm1551 = vcmp.lt.s32.totalorder %v899, 15
        %vm1552 = vcmp.lt.s32.totalorder %v900, 15
        %vm1553 = vcmp.lt.s32.totalorder %v901, 15
        %vm1554 = vcmp.lt.s32.totalorder %v902, 15
        %vm1555 = vcmp.lt.s32.totalorder %v903, 15
        %vm1556 = vcmp.lt.s32.totalorder %v904, 15
        %vm1557 = vcmp.lt.s32.totalorder %v905, 15
        %v1558 = vsel %vm1526, %v1494, 0.0
        %v1559 = vsel %vm1527, %v1495, 0.0
        %v1560 = vsel %vm1528, %v1496, 0.0
        %v1561 = vsel %vm1529, %v1497, 0.0
        %v1562 = vsel %vm1530, %v1498, 0.0
        %v1563 = vsel %vm1531, %v1499, 0.0
        %v1564 = vsel %vm1532, %v1500, 0.0
        %v1565 = vsel %vm1533, %v1501, 0.0
        %v1566 = vsel %vm1534, %v1502, 0.0
        %v1567 = vsel %vm1535, %v1503, 0.0
        %v1568 = vsel %vm1536, %v1504, 0.0
        %v1569 = vsel %vm1537, %v1505, 0.0
        %v1570 = vsel %vm1538, %v1506, 0.0
        %v1571 = vsel %vm1539, %v1507, 0.0
        %v1572 = vsel %vm1540, %v1508, 0.0
        %v1573 = vsel %vm1541, %v1509, 0.0
        %v1574 = vsel %vm1542, %v1510, 0.0
        %v1575 = vsel %vm1543, %v1511, 0.0
        %v1576 = vsel %vm1544, %v1512, 0.0
        %v1577 = vsel %vm1545, %v1513, 0.0
        %v1578 = vsel %vm1546, %v1514, 0.0
        %v1579 = vsel %vm1547, %v1515, 0.0
        %v1580 = vsel %vm1548, %v1516, 0.0
        %v1581 = vsel %vm1549, %v1517, 0.0
        %v1582 = vsel %vm1550, %v1518, 0.0
        %v1583 = vsel %vm1551, %v1519, 0.0
        %v1584 = vsel %vm1552, %v1520, 0.0
        %v1585 = vsel %vm1553, %v1521, 0.0
        %v1586 = vsel %vm1554, %v1522, 0.0
        %v1587 = vsel %vm1555, %v1523, 0.0
        %v1588 = vsel %vm1556, %v1524, 0.0
        %v1589 = vsel %vm1557, %v1525, 0.0
        %v1590 = vpack.c.bf16 %v1559, %v1558
        %v1591 = vpack.c.bf16 %v1561, %v1560
        %v1592 = vpack.c.bf16 %v1563, %v1562
        %v1593 = vpack.c.bf16 %v1565, %v1564
        %v1594 = vpack.c.bf16 %v1567, %v1566
        %v1595 = vpack.c.bf16 %v1569, %v1568
        %v1596 = vpack.c.bf16 %v1571, %v1570
        %v1597 = vpack.c.bf16 %v1573, %v1572
        %v1598 = vpack.c.bf16 %v1575, %v1574
        %v1599 = vpack.c.bf16 %v1577, %v1576
        %v1600 = vpack.c.bf16 %v1579, %v1578
        %v1601 = vpack.c.bf16 %v1581, %v1580
        %v1602 = vpack.c.bf16 %v1583, %v1582
        %v1603 = vpack.c.bf16 %v1585, %v1584
        %v1604 = vpack.c.bf16 %v1587, %v1586
        %v1605 = vpack.c.bf16 %v1589, %v1588
        %s1606 = scalar_lea.vmem %s1, 4
        %v1607 = vld [vmem:[%s1606] sm:$0x3]
        %v1609 = vsel %vm417, %v1590, 0
        %v1612 = vsel %vm417, %v1591, 0
        %v1615 = vsel %vm417, %v1592, 0
        %v1618 = vsel %vm417, %v1593, 0
        %v1621 = vsel %vm417, %v1594, 0
        %v1624 = vsel %vm417, %v1595, 0
        %v1627 = vsel %vm417, %v1596, 0
        %v1630 = vsel %vm417, %v1597, 0
        %v1633 = vsel %vm417, %v1598, 0
        %v1636 = vsel %vm417, %v1599, 0
        %v1639 = vsel %vm417, %v1600, 0
        %v1642 = vsel %vm417, %v1601, 0
        %v1645 = vsel %vm417, %v1602, 0
        %v1648 = vsel %vm417, %v1603, 0
        %v1651 = vsel %vm417, %v1604, 0
        %v1654 = vsel %vm417, %v1605, 0
        %v1657 = vsel %vm1117, %v1607, 0
        %1659 = vmatprep.subr.bf16.mxu0 0
        %1660 = vmatpush1.bf16.msra.mxu0 0
        %1661 = vmatprep.subr.bf16.mxu0 0
        %1662 = vmatpush1.bf16.msra.mxu0 0
        %1663 = vmatprep.subr.bf16.mxu0 0
        %1664 = vmatpush1.bf16.msra.mxu0 0
        %1665 = vmatprep.subr.bf16.mxu0 0
        %1666 = vmatpush1.bf16.msra.mxu0 0
        %1667 = vmatprep.subr.bf16.mxu0 0
        %1668 = vmatpush1.bf16.msra.mxu0 0
        %1669 = vmatprep.subr.bf16.mxu0 0
        %1670 = vmatpush1.bf16.msra.mxu0 0
        %1671 = vmatprep.subr.bf16.mxu0 0
        %1672 = vmatpush1.bf16.msra.mxu0 0
        %1673 = vmatprep.subr.bf16.mxu0 0
        %1674 = vmatpush1.bf16.msra.mxu0 %v1657
        %1675 = vmatprep.subr.bf16.mxu0 0
        %1676 = vmatpush2.bf16.msra.mxu0 0
        %1677 = vmatprep.subr.bf16.mxu0 0
        %1678 = vmatpush2.bf16.msra.mxu0 0
        %1679 = vmatprep.subr.bf16.mxu0 0
        %1680 = vmatpush2.bf16.msra.mxu0 0
        %1681 = vmatprep.subr.bf16.mxu0 0
        %1682 = vmatpush2.bf16.msra.mxu0 0
        %1683 = vmatprep.subr.bf16.mxu0 0
        %1684 = vmatpush2.bf16.msra.mxu0 0
        %1685 = vmatprep.subr.bf16.mxu0 0
        %1686 = vmatpush2.bf16.msra.mxu0 0
        %1687 = vmatprep.subr.bf16.mxu0 0
        %1688 = vmatpush2.bf16.msra.mxu0 0
        %1689 = vmatprep.subr.bf16.mxu0 0
        %1690 = vmatpush2.bf16.msra.mxu0 0
        %1691 = vmatprep.mubr.bf16.mxu0 0
        %1692 = vmatmul.mubr.bf16.gmra.mxu0 %v1609
        %v1693 = vpop.f32.mrf.mxu0
        %v1694 = vadd.f32 0.0, %v1693
        %v1695 = vpop.f32.mrf.mxu0
        %v1696 = vpop.f32.mrf.mxu0
        %v1697 = vadd.f32 0.0, %v1696
        %v1698 = vpop.f32.mrf.mxu0
        %1699 = vmatprep.mubr.bf16.mxu0 0
        %1700 = vmatmul.mubr.bf16.gmra.mxu0 %v1612
        %v1701 = vpop.f32.mrf.mxu0
        %v1702 = vadd.f32 0.0, %v1701
        %v1703 = vpop.f32.mrf.mxu0
        %v1704 = vpop.f32.mrf.mxu0
        %v1705 = vadd.f32 0.0, %v1704
        %v1706 = vpop.f32.mrf.mxu0
        %1707 = vmatprep.mubr.bf16.mxu0 0
        %1708 = vmatmul.mubr.bf16.gmra.mxu0 %v1615
        %v1709 = vpop.f32.mrf.mxu0
        %v1710 = vadd.f32 0.0, %v1709
        %v1711 = vpop.f32.mrf.mxu0
        %v1712 = vpop.f32.mrf.mxu0
        %v1713 = vadd.f32 0.0, %v1712
        %v1714 = vpop.f32.mrf.mxu0
        %1715 = vmatprep.mubr.bf16.mxu0 0
        %1716 = vmatmul.mubr.bf16.gmra.mxu0 %v1618
        %v1717 = vpop.f32.mrf.mxu0
        %v1718 = vadd.f32 0.0, %v1717
        %v1719 = vpop.f32.mrf.mxu0
        %v1720 = vpop.f32.mrf.mxu0
        %v1721 = vadd.f32 0.0, %v1720
        %v1722 = vpop.f32.mrf.mxu0
        %1723 = vmatprep.mubr.bf16.mxu0 0
        %1724 = vmatmul.mubr.bf16.gmra.mxu0 %v1621
        %v1725 = vpop.f32.mrf.mxu0
        %v1726 = vadd.f32 0.0, %v1725
        %v1727 = vpop.f32.mrf.mxu0
        %v1728 = vpop.f32.mrf.mxu0
        %v1729 = vadd.f32 0.0, %v1728
        %v1730 = vpop.f32.mrf.mxu0
        %1731 = vmatprep.mubr.bf16.mxu0 0
        %1732 = vmatmul.mubr.bf16.gmra.mxu0 %v1624
        %v1733 = vpop.f32.mrf.mxu0
        %v1734 = vadd.f32 0.0, %v1733
        %v1735 = vpop.f32.mrf.mxu0
        %v1736 = vpop.f32.mrf.mxu0
        %v1737 = vadd.f32 0.0, %v1736
        %v1738 = vpop.f32.mrf.mxu0
        %1739 = vmatprep.mubr.bf16.mxu0 0
        %1740 = vmatmul.mubr.bf16.gmra.mxu0 %v1627
        %v1741 = vpop.f32.mrf.mxu0
        %v1742 = vadd.f32 0.0, %v1741
        %v1743 = vpop.f32.mrf.mxu0
        %v1744 = vpop.f32.mrf.mxu0
        %v1745 = vadd.f32 0.0, %v1744
        %v1746 = vpop.f32.mrf.mxu0
        %1747 = vmatprep.mubr.bf16.mxu0 0
        %1748 = vmatmul.mubr.bf16.gmra.mxu0 %v1630
        %v1749 = vpop.f32.mrf.mxu0
        %v1750 = vadd.f32 0.0, %v1749
        %v1751 = vpop.f32.mrf.mxu0
        %v1752 = vpop.f32.mrf.mxu0
        %v1753 = vadd.f32 0.0, %v1752
        %v1754 = vpop.f32.mrf.mxu0
        %1755 = vmatprep.mubr.bf16.mxu0 0
        %1756 = vmatmul.mubr.bf16.gmra.mxu0 %v1633
        %v1757 = vpop.f32.mrf.mxu0
        %v1758 = vadd.f32 0.0, %v1757
        %v1759 = vpop.f32.mrf.mxu0
        %v1760 = vpop.f32.mrf.mxu0
        %v1761 = vadd.f32 0.0, %v1760
        %v1762 = vpop.f32.mrf.mxu0
        %1763 = vmatprep.mubr.bf16.mxu0 0
        %1764 = vmatmul.mubr.bf16.gmra.mxu0 %v1636
        %v1765 = vpop.f32.mrf.mxu0
        %v1766 = vadd.f32 0.0, %v1765
        %v1767 = vpop.f32.mrf.mxu0
        %v1768 = vpop.f32.mrf.mxu0
        %v1769 = vadd.f32 0.0, %v1768
        %v1770 = vpop.f32.mrf.mxu0
        %1771 = vmatprep.mubr.bf16.mxu0 0
        %1772 = vmatmul.mubr.bf16.gmra.mxu0 %v1639
        %v1773 = vpop.f32.mrf.mxu0
        %v1774 = vadd.f32 0.0, %v1773
        %v1775 = vpop.f32.mrf.mxu0
        %v1776 = vpop.f32.mrf.mxu0
        %v1777 = vadd.f32 0.0, %v1776
        %v1778 = vpop.f32.mrf.mxu0
        %1779 = vmatprep.mubr.bf16.mxu0 0
        %1780 = vmatmul.mubr.bf16.gmra.mxu0 %v1642
        %v1781 = vpop.f32.mrf.mxu0
        %v1782 = vadd.f32 0.0, %v1781
        %v1783 = vpop.f32.mrf.mxu0
        %v1784 = vpop.f32.mrf.mxu0
        %v1785 = vadd.f32 0.0, %v1784
        %v1786 = vpop.f32.mrf.mxu0
        %1787 = vmatprep.mubr.bf16.mxu0 0
        %1788 = vmatmul.mubr.bf16.gmra.mxu0 %v1645
        %v1789 = vpop.f32.mrf.mxu0
        %v1790 = vadd.f32 0.0, %v1789
        %v1791 = vpop.f32.mrf.mxu0
        %v1792 = vpop.f32.mrf.mxu0
        %v1793 = vadd.f32 0.0, %v1792
        %v1794 = vpop.f32.mrf.mxu0
        %1795 = vmatprep.mubr.bf16.mxu0 0
        %1796 = vmatmul.mubr.bf16.gmra.mxu0 %v1648
        %v1797 = vpop.f32.mrf.mxu0
        %v1798 = vadd.f32 0.0, %v1797
        %v1799 = vpop.f32.mrf.mxu0
        %v1800 = vpop.f32.mrf.mxu0
        %v1801 = vadd.f32 0.0, %v1800
        %v1802 = vpop.f32.mrf.mxu0
        %1803 = vmatprep.mubr.bf16.mxu0 0
        %1804 = vmatmul.mubr.bf16.gmra.mxu0 %v1651
        %v1805 = vpop.f32.mrf.mxu0
        %v1806 = vadd.f32 0.0, %v1805
        %v1807 = vpop.f32.mrf.mxu0
        %v1808 = vpop.f32.mrf.mxu0
        %v1809 = vadd.f32 0.0, %v1808
        %v1810 = vpop.f32.mrf.mxu0
        %1811 = vmatprep.mubr.bf16.mxu0 0
        %1812 = vmatmul.mubr.bf16.gmra.mxu0 %v1654
        %v1813 = vpop.f32.mrf.mxu0
        %v1814 = vadd.f32 0.0, %v1813
        %v1815 = vpop.f32.mrf.mxu0
        %v1816 = vpop.f32.mrf.mxu0
        %v1817 = vadd.f32 0.0, %v1816
        %v1818 = vpop.f32.mrf.mxu0
        %1819 = vdwg.mxu0
        %v1820 = vadd.f32 %v1368, %v1694
        %v1821 = vadd.f32 %v1371, %v1697
        %v1822 = vadd.f32 %v1376, %v1702
        %v1823 = vadd.f32 %v1379, %v1705
        %v1824 = vadd.f32 %v1384, %v1710
        %v1825 = vadd.f32 %v1387, %v1713
        %v1826 = vadd.f32 %v1392, %v1718
        %v1827 = vadd.f32 %v1395, %v1721
        %v1828 = vadd.f32 %v1400, %v1726
        %v1829 = vadd.f32 %v1403, %v1729
        %v1830 = vadd.f32 %v1408, %v1734
        %v1831 = vadd.f32 %v1411, %v1737
        %v1832 = vadd.f32 %v1416, %v1742
        %v1833 = vadd.f32 %v1419, %v1745
        %v1834 = vadd.f32 %v1424, %v1750
        %v1835 = vadd.f32 %v1427, %v1753
        %v1836 = vadd.f32 %v1432, %v1758
        %v1837 = vadd.f32 %v1435, %v1761
        %v1838 = vadd.f32 %v1440, %v1766
        %v1839 = vadd.f32 %v1443, %v1769
        %v1840 = vadd.f32 %v1448, %v1774
        %v1841 = vadd.f32 %v1451, %v1777
        %v1842 = vadd.f32 %v1456, %v1782
        %v1843 = vadd.f32 %v1459, %v1785
        %v1844 = vadd.f32 %v1464, %v1790
        %v1845 = vadd.f32 %v1467, %v1793
        %v1846 = vadd.f32 %v1472, %v1798
        %v1847 = vadd.f32 %v1475, %v1801
        %v1848 = vadd.f32 %v1480, %v1806
        %v1849 = vadd.f32 %v1483, %v1809
        %v1850 = vadd.f32 %v1488, %v1814
        %v1851 = vadd.f32 %v1491, %v1817
        %v1852 = vld [vmem:[#allocation2 + $0x17] sm:$0xff]
        %v1853 = vld [vmem:[#allocation2 + $0x1f] sm:$0xff]
        %v1854 = vld [vmem:[#allocation2 + $0x27] sm:$0xff]
        %v1855 = vld [vmem:[#allocation2 + $0x2f] sm:$0xff]
        %v1856 = vld [vmem:[#allocation2 + $0x37] sm:$0xff]
        %v1857 = vld [vmem:[#allocation2 + $0x3f] sm:$0xff]
        %v1858 = vld [vmem:[#allocation2 + $0x47] sm:$0xff]
        %v1859 = vld [vmem:[#allocation2 + $0x4f] sm:$0xff]
        %v1860 = vld [vmem:[#allocation2 + $0x57] sm:$0xff]
        %v1861 = vld [vmem:[#allocation2 + $0x5f] sm:$0xff]
        %v1862 = vld [vmem:[#allocation2 + $0x67] sm:$0xff]
        %v1863 = vld [vmem:[#allocation2 + $0x6f] sm:$0xff]
        %v1864 = vld [vmem:[#allocation2 + $0x77] sm:$0xff]
        %v1865 = vld [vmem:[#allocation2 + $0x7f] sm:$0xff]
        %v1866 = vld [vmem:[#allocation2 + $0x87] sm:$0xff]
        %v1867 = vld [vmem:[#allocation2 + $0x8f] sm:$0xff]
        %v1868 = vld [vmem:[#allocation2 + $0x97] sm:$0xff]
        %v1869 = vld [vmem:[#allocation2 + $0x9f] sm:$0xff]
        %v1870 = vld [vmem:[#allocation2 + $0xa7] sm:$0xff]
        %v1871 = vld [vmem:[#allocation2 + $0xaf] sm:$0xff]
        %v1872 = vld [vmem:[#allocation2 + $0xb7] sm:$0xff]
        %v1873 = vld [vmem:[#allocation2 + $0xbf] sm:$0xff]
        %v1874 = vld [vmem:[#allocation2 + $0xc7] sm:$0xff]
        %v1875 = vld [vmem:[#allocation2 + $0xcf] sm:$0xff]
        %v1876 = vld [vmem:[#allocation2 + $0xd7] sm:$0xff]
        %v1877 = vld [vmem:[#allocation2 + $0xdf] sm:$0xff]
        %v1878 = vld [vmem:[#allocation2 + $0xe7] sm:$0xff]
        %v1879 = vld [vmem:[#allocation2 + $0xef] sm:$0xff]
        %v1880 = vld [vmem:[#allocation2 + $0xf7] sm:$0xff]
        %v1881 = vld [vmem:[#allocation2 + $0xff] sm:$0xff]
        %v1882 = vld [vmem:[#allocation2 + $0x107] sm:$0xff]
        %v1883 = vld [vmem:[#allocation2 + $0x10f] sm:$0xff]
        %v1884 = vsel %vm938, %v1852, 0.0
        %v1885 = vsel %vm939, %v1853, 0.0
        %v1886 = vsel %vm940, %v1854, 0.0
        %v1887 = vsel %vm941, %v1855, 0.0
        %v1888 = vsel %vm942, %v1856, 0.0
        %v1889 = vsel %vm943, %v1857, 0.0
        %v1890 = vsel %vm944, %v1858, 0.0
        %v1891 = vsel %vm945, %v1859, 0.0
        %v1892 = vsel %vm946, %v1860, 0.0
        %v1893 = vsel %vm947, %v1861, 0.0
        %v1894 = vsel %vm948, %v1862, 0.0
        %v1895 = vsel %vm949, %v1863, 0.0
        %v1896 = vsel %vm950, %v1864, 0.0
        %v1897 = vsel %vm951, %v1865, 0.0
        %v1898 = vsel %vm952, %v1866, 0.0
        %v1899 = vsel %vm953, %v1867, 0.0
        %v1900 = vsel %vm954, %v1868, 0.0
        %v1901 = vsel %vm955, %v1869, 0.0
        %v1902 = vsel %vm956, %v1870, 0.0
        %v1903 = vsel %vm957, %v1871, 0.0
        %v1904 = vsel %vm958, %v1872, 0.0
        %v1905 = vsel %vm959, %v1873, 0.0
        %v1906 = vsel %vm960, %v1874, 0.0
        %v1907 = vsel %vm961, %v1875, 0.0
        %v1908 = vsel %vm962, %v1876, 0.0
        %v1909 = vsel %vm963, %v1877, 0.0
        %v1910 = vsel %vm964, %v1878, 0.0
        %v1911 = vsel %vm965, %v1879, 0.0
        %v1912 = vsel %vm966, %v1880, 0.0
        %v1913 = vsel %vm967, %v1881, 0.0
        %v1914 = vsel %vm968, %v1882, 0.0
        %v1915 = vsel %vm969, %v1883, 0.0
        %v1916 = vpack.c.bf16 %v1885, %v1884
        %v1917 = vpack.c.bf16 %v1887, %v1886
        %v1918 = vpack.c.bf16 %v1889, %v1888
        %v1919 = vpack.c.bf16 %v1891, %v1890
        %v1920 = vpack.c.bf16 %v1893, %v1892
        %v1921 = vpack.c.bf16 %v1895, %v1894
        %v1922 = vpack.c.bf16 %v1897, %v1896
        %v1923 = vpack.c.bf16 %v1899, %v1898
        %v1924 = vpack.c.bf16 %v1901, %v1900
        %v1925 = vpack.c.bf16 %v1903, %v1902
        %v1926 = vpack.c.bf16 %v1905, %v1904
        %v1927 = vpack.c.bf16 %v1907, %v1906
        %v1928 = vpack.c.bf16 %v1909, %v1908
        %v1929 = vpack.c.bf16 %v1911, %v1910
        %v1930 = vpack.c.bf16 %v1913, %v1912
        %v1931 = vpack.c.bf16 %v1915, %v1914
        %s1932 = scalar_lea.vmem %s1, 6
        %v1933 = vld [vmem:[%s1932] sm:$0x3]
        %v1935 = vsel %vm417, %v1916, 0
        %v1938 = vsel %vm417, %v1917, 0
        %v1941 = vsel %vm417, %v1918, 0
        %v1944 = vsel %vm417, %v1919, 0
        %v1947 = vsel %vm417, %v1920, 0
        %v1950 = vsel %vm417, %v1921, 0
        %v1953 = vsel %vm417, %v1922, 0
        %v1956 = vsel %vm417, %v1923, 0
        %v1959 = vsel %vm417, %v1924, 0
        %v1962 = vsel %vm417, %v1925, 0
        %v1965 = vsel %vm417, %v1926, 0
        %v1968 = vsel %vm417, %v1927, 0
        %v1971 = vsel %vm417, %v1928, 0
        %v1974 = vsel %vm417, %v1929, 0
        %v1977 = vsel %vm417, %v1930, 0
        %v1980 = vsel %vm417, %v1931, 0
        %v1983 = vsel %vm1117, %v1933, 0
        %1985 = vmatprep.subr.bf16.mxu0 0
        %1986 = vmatpush1.bf16.msra.mxu0 0
        %1987 = vmatprep.subr.bf16.mxu0 0
        %1988 = vmatpush1.bf16.msra.mxu0 0
        %1989 = vmatprep.subr.bf16.mxu0 0
        %1990 = vmatpush1.bf16.msra.mxu0 0
        %1991 = vmatprep.subr.bf16.mxu0 0
        %1992 = vmatpush1.bf16.msra.mxu0 0
        %1993 = vmatprep.subr.bf16.mxu0 0
        %1994 = vmatpush1.bf16.msra.mxu0 0
        %1995 = vmatprep.subr.bf16.mxu0 0
        %1996 = vmatpush1.bf16.msra.mxu0 0
        %1997 = vmatprep.subr.bf16.mxu0 0
        %1998 = vmatpush1.bf16.msra.mxu0 0
        %1999 = vmatprep.subr.bf16.mxu0 0
        %2000 = vmatpush1.bf16.msra.mxu0 %v1983
        %2001 = vmatprep.subr.bf16.mxu0 0
        %2002 = vmatpush2.bf16.msra.mxu0 0
        %2003 = vmatprep.subr.bf16.mxu0 0
        %2004 = vmatpush2.bf16.msra.mxu0 0
        %2005 = vmatprep.subr.bf16.mxu0 0
        %2006 = vmatpush2.bf16.msra.mxu0 0
        %2007 = vmatprep.subr.bf16.mxu0 0
        %2008 = vmatpush2.bf16.msra.mxu0 0
        %2009 = vmatprep.subr.bf16.mxu0 0
        %2010 = vmatpush2.bf16.msra.mxu0 0
        %2011 = vmatprep.subr.bf16.mxu0 0
        %2012 = vmatpush2.bf16.msra.mxu0 0
        %2013 = vmatprep.subr.bf16.mxu0 0
        %2014 = vmatpush2.bf16.msra.mxu0 0
        %2015 = vmatprep.subr.bf16.mxu0 0
        %2016 = vmatpush2.bf16.msra.mxu0 0
        %2017 = vmatprep.mubr.bf16.mxu0 0
        %2018 = vmatmul.mubr.bf16.gmra.mxu0 %v1935
        %v2019 = vpop.f32.mrf.mxu0
        %v2020 = vadd.f32 0.0, %v2019
        %v2021 = vpop.f32.mrf.mxu0
        %v2022 = vpop.f32.mrf.mxu0
        %v2023 = vadd.f32 0.0, %v2022
        %v2024 = vpop.f32.mrf.mxu0
        %2025 = vmatprep.mubr.bf16.mxu0 0
        %2026 = vmatmul.mubr.bf16.gmra.mxu0 %v1938
        %v2027 = vpop.f32.mrf.mxu0
        %v2028 = vadd.f32 0.0, %v2027
        %v2029 = vpop.f32.mrf.mxu0
        %v2030 = vpop.f32.mrf.mxu0
        %v2031 = vadd.f32 0.0, %v2030
        %v2032 = vpop.f32.mrf.mxu0
        %2033 = vmatprep.mubr.bf16.mxu0 0
        %2034 = vmatmul.mubr.bf16.gmra.mxu0 %v1941
        %v2035 = vpop.f32.mrf.mxu0
        %v2036 = vadd.f32 0.0, %v2035
        %v2037 = vpop.f32.mrf.mxu0
        %v2038 = vpop.f32.mrf.mxu0
        %v2039 = vadd.f32 0.0, %v2038
        %v2040 = vpop.f32.mrf.mxu0
        %2041 = vmatprep.mubr.bf16.mxu0 0
        %2042 = vmatmul.mubr.bf16.gmra.mxu0 %v1944
        %v2043 = vpop.f32.mrf.mxu0
        %v2044 = vadd.f32 0.0, %v2043
        %v2045 = vpop.f32.mrf.mxu0
        %v2046 = vpop.f32.mrf.mxu0
        %v2047 = vadd.f32 0.0, %v2046
        %v2048 = vpop.f32.mrf.mxu0
        %2049 = vmatprep.mubr.bf16.mxu0 0
        %2050 = vmatmul.mubr.bf16.gmra.mxu0 %v1947
        %v2051 = vpop.f32.mrf.mxu0
        %v2052 = vadd.f32 0.0, %v2051
        %v2053 = vpop.f32.mrf.mxu0
        %v2054 = vpop.f32.mrf.mxu0
        %v2055 = vadd.f32 0.0, %v2054
        %v2056 = vpop.f32.mrf.mxu0
        %2057 = vmatprep.mubr.bf16.mxu0 0
        %2058 = vmatmul.mubr.bf16.gmra.mxu0 %v1950
        %v2059 = vpop.f32.mrf.mxu0
        %v2060 = vadd.f32 0.0, %v2059
        %v2061 = vpop.f32.mrf.mxu0
        %v2062 = vpop.f32.mrf.mxu0
        %v2063 = vadd.f32 0.0, %v2062
        %v2064 = vpop.f32.mrf.mxu0
        %2065 = vmatprep.mubr.bf16.mxu0 0
        %2066 = vmatmul.mubr.bf16.gmra.mxu0 %v1953
        %v2067 = vpop.f32.mrf.mxu0
        %v2068 = vadd.f32 0.0, %v2067
        %v2069 = vpop.f32.mrf.mxu0
        %v2070 = vpop.f32.mrf.mxu0
        %v2071 = vadd.f32 0.0, %v2070
        %v2072 = vpop.f32.mrf.mxu0
        %2073 = vmatprep.mubr.bf16.mxu0 0
        %2074 = vmatmul.mubr.bf16.gmra.mxu0 %v1956
        %v2075 = vpop.f32.mrf.mxu0
        %v2076 = vadd.f32 0.0, %v2075
        %v2077 = vpop.f32.mrf.mxu0
        %v2078 = vpop.f32.mrf.mxu0
        %v2079 = vadd.f32 0.0, %v2078
        %v2080 = vpop.f32.mrf.mxu0
        %2081 = vmatprep.mubr.bf16.mxu0 0
        %2082 = vmatmul.mubr.bf16.gmra.mxu0 %v1959
        %v2083 = vpop.f32.mrf.mxu0
        %v2084 = vadd.f32 0.0, %v2083
        %v2085 = vpop.f32.mrf.mxu0
        %v2086 = vpop.f32.mrf.mxu0
        %v2087 = vadd.f32 0.0, %v2086
        %v2088 = vpop.f32.mrf.mxu0
        %2089 = vmatprep.mubr.bf16.mxu0 0
        %2090 = vmatmul.mubr.bf16.gmra.mxu0 %v1962
        %v2091 = vpop.f32.mrf.mxu0
        %v2092 = vadd.f32 0.0, %v2091
        %v2093 = vpop.f32.mrf.mxu0
        %v2094 = vpop.f32.mrf.mxu0
        %v2095 = vadd.f32 0.0, %v2094
        %v2096 = vpop.f32.mrf.mxu0
        %2097 = vmatprep.mubr.bf16.mxu0 0
        %2098 = vmatmul.mubr.bf16.gmra.mxu0 %v1965
        %v2099 = vpop.f32.mrf.mxu0
        %v2100 = vadd.f32 0.0, %v2099
        %v2101 = vpop.f32.mrf.mxu0
        %v2102 = vpop.f32.mrf.mxu0
        %v2103 = vadd.f32 0.0, %v2102
        %v2104 = vpop.f32.mrf.mxu0
        %2105 = vmatprep.mubr.bf16.mxu0 0
        %2106 = vmatmul.mubr.bf16.gmra.mxu0 %v1968
        %v2107 = vpop.f32.mrf.mxu0
        %v2108 = vadd.f32 0.0, %v2107
        %v2109 = vpop.f32.mrf.mxu0
        %v2110 = vpop.f32.mrf.mxu0
        %v2111 = vadd.f32 0.0, %v2110
        %v2112 = vpop.f32.mrf.mxu0
        %2113 = vmatprep.mubr.bf16.mxu0 0
        %2114 = vmatmul.mubr.bf16.gmra.mxu0 %v1971
        %v2115 = vpop.f32.mrf.mxu0
        %v2116 = vadd.f32 0.0, %v2115
        %v2117 = vpop.f32.mrf.mxu0
        %v2118 = vpop.f32.mrf.mxu0
        %v2119 = vadd.f32 0.0, %v2118
        %v2120 = vpop.f32.mrf.mxu0
        %2121 = vmatprep.mubr.bf16.mxu0 0
        %2122 = vmatmul.mubr.bf16.gmra.mxu0 %v1974
        %v2123 = vpop.f32.mrf.mxu0
        %v2124 = vadd.f32 0.0, %v2123
        %v2125 = vpop.f32.mrf.mxu0
        %v2126 = vpop.f32.mrf.mxu0
        %v2127 = vadd.f32 0.0, %v2126
        %v2128 = vpop.f32.mrf.mxu0
        %2129 = vmatprep.mubr.bf16.mxu0 0
        %2130 = vmatmul.mubr.bf16.gmra.mxu0 %v1977
        %v2131 = vpop.f32.mrf.mxu0
        %v2132 = vadd.f32 0.0, %v2131
        %v2133 = vpop.f32.mrf.mxu0
        %v2134 = vpop.f32.mrf.mxu0
        %v2135 = vadd.f32 0.0, %v2134
        %v2136 = vpop.f32.mrf.mxu0
        %2137 = vmatprep.mubr.bf16.mxu0 0
        %2138 = vmatmul.mubr.bf16.gmra.mxu0 %v1980
        %v2139 = vpop.f32.mrf.mxu0
        %v2140 = vadd.f32 0.0, %v2139
        %v2141 = vpop.f32.mrf.mxu0
        %v2142 = vpop.f32.mrf.mxu0
        %v2143 = vadd.f32 0.0, %v2142
        %v2144 = vpop.f32.mrf.mxu0
        %2145 = vdwg.mxu0
        %v2146 = vadd.f32 %v1820, %v2020
        %v2147 = vadd.f32 %v1821, %v2023
        %v2148 = vadd.f32 %v1822, %v2028
        %v2149 = vadd.f32 %v1823, %v2031
        %v2150 = vadd.f32 %v1824, %v2036
        %v2151 = vadd.f32 %v1825, %v2039
        %v2152 = vadd.f32 %v1826, %v2044
        %v2153 = vadd.f32 %v1827, %v2047
        %v2154 = vadd.f32 %v1828, %v2052
        %v2155 = vadd.f32 %v1829, %v2055
        %v2156 = vadd.f32 %v1830, %v2060
        %v2157 = vadd.f32 %v1831, %v2063
        %v2158 = vadd.f32 %v1832, %v2068
        %v2159 = vadd.f32 %v1833, %v2071
        %v2160 = vadd.f32 %v1834, %v2076
        %v2161 = vadd.f32 %v1835, %v2079
        %v2162 = vadd.f32 %v1836, %v2084
        %v2163 = vadd.f32 %v1837, %v2087
        %v2164 = vadd.f32 %v1838, %v2092
        %v2165 = vadd.f32 %v1839, %v2095
        %v2166 = vadd.f32 %v1840, %v2100
        %v2167 = vadd.f32 %v1841, %v2103
        %v2168 = vadd.f32 %v1842, %v2108
        %v2169 = vadd.f32 %v1843, %v2111
        %v2170 = vadd.f32 %v1844, %v2116
        %v2171 = vadd.f32 %v1845, %v2119
        %v2172 = vadd.f32 %v1846, %v2124
        %v2173 = vadd.f32 %v1847, %v2127
        %v2174 = vadd.f32 %v1848, %v2132
        %v2175 = vadd.f32 %v1849, %v2135
        %v2176 = vadd.f32 %v1850, %v2140
        %v2177 = vadd.f32 %v1851, %v2143
        %v2178 = vld [vmem:[#allocation2 + $0x18] sm:$0xff]
        %v2179 = vld [vmem:[#allocation2 + $0x20] sm:$0xff]
        %v2180 = vld [vmem:[#allocation2 + $0x28] sm:$0xff]
        %v2181 = vld [vmem:[#allocation2 + $0x30] sm:$0xff]
        %v2182 = vld [vmem:[#allocation2 + $0x38] sm:$0xff]
        %v2183 = vld [vmem:[#allocation2 + $0x40] sm:$0xff]
        %v2184 = vld [vmem:[#allocation2 + $0x48] sm:$0xff]
        %v2185 = vld [vmem:[#allocation2 + $0x50] sm:$0xff]
        %v2186 = vld [vmem:[#allocation2 + $0x58] sm:$0xff]
        %v2187 = vld [vmem:[#allocation2 + $0x60] sm:$0xff]
        %v2188 = vld [vmem:[#allocation2 + $0x68] sm:$0xff]
        %v2189 = vld [vmem:[#allocation2 + $0x70] sm:$0xff]
        %v2190 = vld [vmem:[#allocation2 + $0x78] sm:$0xff]
        %v2191 = vld [vmem:[#allocation2 + $0x80] sm:$0xff]
        %v2192 = vld [vmem:[#allocation2 + $0x88] sm:$0xff]
        %v2193 = vld [vmem:[#allocation2 + $0x90] sm:$0xff]
        %v2194 = vld [vmem:[#allocation2 + $0x98] sm:$0xff]
        %v2195 = vld [vmem:[#allocation2 + $0xa0] sm:$0xff]
        %v2196 = vld [vmem:[#allocation2 + $0xa8] sm:$0xff]
        %v2197 = vld [vmem:[#allocation2 + $0xb0] sm:$0xff]
        %v2198 = vld [vmem:[#allocation2 + $0xb8] sm:$0xff]
        %v2199 = vld [vmem:[#allocation2 + $0xc0] sm:$0xff]
        %v2200 = vld [vmem:[#allocation2 + $0xc8] sm:$0xff]
        %v2201 = vld [vmem:[#allocation2 + $0xd0] sm:$0xff]
        %v2202 = vld [vmem:[#allocation2 + $0xd8] sm:$0xff]
        %v2203 = vld [vmem:[#allocation2 + $0xe0] sm:$0xff]
        %v2204 = vld [vmem:[#allocation2 + $0xe8] sm:$0xff]
        %v2205 = vld [vmem:[#allocation2 + $0xf0] sm:$0xff]
        %v2206 = vld [vmem:[#allocation2 + $0xf8] sm:$0xff]
        %v2207 = vld [vmem:[#allocation2 + $0x100] sm:$0xff]
        %v2208 = vld [vmem:[#allocation2 + $0x108] sm:$0xff]
        %v2209 = vld [vmem:[#allocation2 + $0x110] sm:$0xff]
        %v2210 = vpack.c.bf16 %v2179, %v2178
        %v2211 = vpack.c.bf16 %v2181, %v2180
        %v2212 = vpack.c.bf16 %v2183, %v2182
        %v2213 = vpack.c.bf16 %v2185, %v2184
        %v2214 = vpack.c.bf16 %v2187, %v2186
        %v2215 = vpack.c.bf16 %v2189, %v2188
        %v2216 = vpack.c.bf16 %v2191, %v2190
        %v2217 = vpack.c.bf16 %v2193, %v2192
        %v2218 = vpack.c.bf16 %v2195, %v2194
        %v2219 = vpack.c.bf16 %v2197, %v2196
        %v2220 = vpack.c.bf16 %v2199, %v2198
        %v2221 = vpack.c.bf16 %v2201, %v2200
        %v2222 = vpack.c.bf16 %v2203, %v2202
        %v2223 = vpack.c.bf16 %v2205, %v2204
        %v2224 = vpack.c.bf16 %v2207, %v2206
        %v2225 = vpack.c.bf16 %v2209, %v2208
        %s2226 = scalar_lea.vmem %s1, 8
        %v2227 = vld [vmem:[%s2226] sm:$0x3]
        %v2229 = vsel %vm417, %v2210, 0
        %v2232 = vsel %vm417, %v2211, 0
        %v2235 = vsel %vm417, %v2212, 0
        %v2238 = vsel %vm417, %v2213, 0
        %v2241 = vsel %vm417, %v2214, 0
        %v2244 = vsel %vm417, %v2215, 0
        %v2247 = vsel %vm417, %v2216, 0
        %v2250 = vsel %vm417, %v2217, 0
        %v2253 = vsel %vm417, %v2218, 0
        %v2256 = vsel %vm417, %v2219, 0
        %v2259 = vsel %vm417, %v2220, 0
        %v2262 = vsel %vm417, %v2221, 0
        %v2265 = vsel %vm417, %v2222, 0
        %v2268 = vsel %vm417, %v2223, 0
        %v2271 = vsel %vm417, %v2224, 0
        %v2274 = vsel %vm417, %v2225, 0
        %v2277 = vsel %vm1117, %v2227, 0
        %2279 = vmatprep.subr.bf16.mxu0 0
        %2280 = vmatpush1.bf16.msra.mxu0 0
        %2281 = vmatprep.subr.bf16.mxu0 0
        %2282 = vmatpush1.bf16.msra.mxu0 0
        %2283 = vmatprep.subr.bf16.mxu0 0
        %2284 = vmatpush1.bf16.msra.mxu0 0
        %2285 = vmatprep.subr.bf16.mxu0 0
        %2286 = vmatpush1.bf16.msra.mxu0 0
        %2287 = vmatprep.subr.bf16.mxu0 0
        %2288 = vmatpush1.bf16.msra.mxu0 0
        %2289 = vmatprep.subr.bf16.mxu0 0
        %2290 = vmatpush1.bf16.msra.mxu0 0
        %2291 = vmatprep.subr.bf16.mxu0 0
        %2292 = vmatpush1.bf16.msra.mxu0 0
        %2293 = vmatprep.subr.bf16.mxu0 0
        %2294 = vmatpush1.bf16.msra.mxu0 %v2277
        %2295 = vmatprep.subr.bf16.mxu0 0
        %2296 = vmatpush2.bf16.msra.mxu0 0
        %2297 = vmatprep.subr.bf16.mxu0 0
        %2298 = vmatpush2.bf16.msra.mxu0 0
        %2299 = vmatprep.subr.bf16.mxu0 0
        %2300 = vmatpush2.bf16.msra.mxu0 0
        %2301 = vmatprep.subr.bf16.mxu0 0
        %2302 = vmatpush2.bf16.msra.mxu0 0
        %2303 = vmatprep.subr.bf16.mxu0 0
        %2304 = vmatpush2.bf16.msra.mxu0 0
        %2305 = vmatprep.subr.bf16.mxu0 0
        %2306 = vmatpush2.bf16.msra.mxu0 0
        %2307 = vmatprep.subr.bf16.mxu0 0
        %2308 = vmatpush2.bf16.msra.mxu0 0
        %2309 = vmatprep.subr.bf16.mxu0 0
        %2310 = vmatpush2.bf16.msra.mxu0 0
        %2311 = vmatprep.mubr.bf16.mxu0 0
        %2312 = vmatmul.mubr.bf16.gmra.mxu0 %v2229
        %v2313 = vpop.f32.mrf.mxu0
        %v2314 = vadd.f32 0.0, %v2313
        %v2315 = vpop.f32.mrf.mxu0
        %v2316 = vpop.f32.mrf.mxu0
        %v2317 = vadd.f32 0.0, %v2316
        %v2318 = vpop.f32.mrf.mxu0
        %2319 = vmatprep.mubr.bf16.mxu0 0
        %2320 = vmatmul.mubr.bf16.gmra.mxu0 %v2232
        %v2321 = vpop.f32.mrf.mxu0
        %v2322 = vadd.f32 0.0, %v2321
        %v2323 = vpop.f32.mrf.mxu0
        %v2324 = vpop.f32.mrf.mxu0
        %v2325 = vadd.f32 0.0, %v2324
        %v2326 = vpop.f32.mrf.mxu0
        %2327 = vmatprep.mubr.bf16.mxu0 0
        %2328 = vmatmul.mubr.bf16.gmra.mxu0 %v2235
        %v2329 = vpop.f32.mrf.mxu0
        %v2330 = vadd.f32 0.0, %v2329
        %v2331 = vpop.f32.mrf.mxu0
        %v2332 = vpop.f32.mrf.mxu0
        %v2333 = vadd.f32 0.0, %v2332
        %v2334 = vpop.f32.mrf.mxu0
        %2335 = vmatprep.mubr.bf16.mxu0 0
        %2336 = vmatmul.mubr.bf16.gmra.mxu0 %v2238
        %v2337 = vpop.f32.mrf.mxu0
        %v2338 = vadd.f32 0.0, %v2337
        %v2339 = vpop.f32.mrf.mxu0
        %v2340 = vpop.f32.mrf.mxu0
        %v2341 = vadd.f32 0.0, %v2340
        %v2342 = vpop.f32.mrf.mxu0
        %2343 = vmatprep.mubr.bf16.mxu0 0
        %2344 = vmatmul.mubr.bf16.gmra.mxu0 %v2241
        %v2345 = vpop.f32.mrf.mxu0
        %v2346 = vadd.f32 0.0, %v2345
        %v2347 = vpop.f32.mrf.mxu0
        %v2348 = vpop.f32.mrf.mxu0
        %v2349 = vadd.f32 0.0, %v2348
        %v2350 = vpop.f32.mrf.mxu0
        %2351 = vmatprep.mubr.bf16.mxu0 0
        %2352 = vmatmul.mubr.bf16.gmra.mxu0 %v2244
        %v2353 = vpop.f32.mrf.mxu0
        %v2354 = vadd.f32 0.0, %v2353
        %v2355 = vpop.f32.mrf.mxu0
        %v2356 = vpop.f32.mrf.mxu0
        %v2357 = vadd.f32 0.0, %v2356
        %v2358 = vpop.f32.mrf.mxu0
        %2359 = vmatprep.mubr.bf16.mxu0 0
        %2360 = vmatmul.mubr.bf16.gmra.mxu0 %v2247
        %v2361 = vpop.f32.mrf.mxu0
        %v2362 = vadd.f32 0.0, %v2361
        %v2363 = vpop.f32.mrf.mxu0
        %v2364 = vpop.f32.mrf.mxu0
        %v2365 = vadd.f32 0.0, %v2364
        %v2366 = vpop.f32.mrf.mxu0
        %2367 = vmatprep.mubr.bf16.mxu0 0
        %2368 = vmatmul.mubr.bf16.gmra.mxu0 %v2250
        %v2369 = vpop.f32.mrf.mxu0
        %v2370 = vadd.f32 0.0, %v2369
        %v2371 = vpop.f32.mrf.mxu0
        %v2372 = vpop.f32.mrf.mxu0
        %v2373 = vadd.f32 0.0, %v2372
        %v2374 = vpop.f32.mrf.mxu0
        %2375 = vmatprep.mubr.bf16.mxu0 0
        %2376 = vmatmul.mubr.bf16.gmra.mxu0 %v2253
        %v2377 = vpop.f32.mrf.mxu0
        %v2378 = vadd.f32 0.0, %v2377
        %v2379 = vpop.f32.mrf.mxu0
        %v2380 = vpop.f32.mrf.mxu0
        %v2381 = vadd.f32 0.0, %v2380
        %v2382 = vpop.f32.mrf.mxu0
        %2383 = vmatprep.mubr.bf16.mxu0 0
        %2384 = vmatmul.mubr.bf16.gmra.mxu0 %v2256
        %v2385 = vpop.f32.mrf.mxu0
        %v2386 = vadd.f32 0.0, %v2385
        %v2387 = vpop.f32.mrf.mxu0
        %v2388 = vpop.f32.mrf.mxu0
        %v2389 = vadd.f32 0.0, %v2388
        %v2390 = vpop.f32.mrf.mxu0
        %2391 = vmatprep.mubr.bf16.mxu0 0
        %2392 = vmatmul.mubr.bf16.gmra.mxu0 %v2259
        %v2393 = vpop.f32.mrf.mxu0
        %v2394 = vadd.f32 0.0, %v2393
        %v2395 = vpop.f32.mrf.mxu0
        %v2396 = vpop.f32.mrf.mxu0
        %v2397 = vadd.f32 0.0, %v2396
        %v2398 = vpop.f32.mrf.mxu0
        %2399 = vmatprep.mubr.bf16.mxu0 0
        %2400 = vmatmul.mubr.bf16.gmra.mxu0 %v2262
        %v2401 = vpop.f32.mrf.mxu0
        %v2402 = vadd.f32 0.0, %v2401
        %v2403 = vpop.f32.mrf.mxu0
        %v2404 = vpop.f32.mrf.mxu0
        %v2405 = vadd.f32 0.0, %v2404
        %v2406 = vpop.f32.mrf.mxu0
        %2407 = vmatprep.mubr.bf16.mxu0 0
        %2408 = vmatmul.mubr.bf16.gmra.mxu0 %v2265
        %v2409 = vpop.f32.mrf.mxu0
        %v2410 = vadd.f32 0.0, %v2409
        %v2411 = vpop.f32.mrf.mxu0
        %v2412 = vpop.f32.mrf.mxu0
        %v2413 = vadd.f32 0.0, %v2412
        %v2414 = vpop.f32.mrf.mxu0
        %2415 = vmatprep.mubr.bf16.mxu0 0
        %2416 = vmatmul.mubr.bf16.gmra.mxu0 %v2268
        %v2417 = vpop.f32.mrf.mxu0
        %v2418 = vadd.f32 0.0, %v2417
        %v2419 = vpop.f32.mrf.mxu0
        %v2420 = vpop.f32.mrf.mxu0
        %v2421 = vadd.f32 0.0, %v2420
        %v2422 = vpop.f32.mrf.mxu0
        %2423 = vmatprep.mubr.bf16.mxu0 0
        %2424 = vmatmul.mubr.bf16.gmra.mxu0 %v2271
        %v2425 = vpop.f32.mrf.mxu0
        %v2426 = vadd.f32 0.0, %v2425
        %v2427 = vpop.f32.mrf.mxu0
        %v2428 = vpop.f32.mrf.mxu0
        %v2429 = vadd.f32 0.0, %v2428
        %v2430 = vpop.f32.mrf.mxu0
        %2431 = vmatprep.mubr.bf16.mxu0 0
        %2432 = vmatmul.mubr.bf16.gmra.mxu0 %v2274
        %v2433 = vpop.f32.mrf.mxu0
        %v2434 = vadd.f32 0.0, %v2433
        %v2435 = vpop.f32.mrf.mxu0
        %v2436 = vpop.f32.mrf.mxu0
        %v2437 = vadd.f32 0.0, %v2436
        %v2438 = vpop.f32.mrf.mxu0
        %2439 = vdwg.mxu0
        %v2440 = vadd.f32 %v2146, %v2314
        %v2441 = vadd.f32 %v2147, %v2317
        %v2442 = vadd.f32 %v2148, %v2322
        %v2443 = vadd.f32 %v2149, %v2325
        %v2444 = vadd.f32 %v2150, %v2330
        %v2445 = vadd.f32 %v2151, %v2333
        %v2446 = vadd.f32 %v2152, %v2338
        %v2447 = vadd.f32 %v2153, %v2341
        %v2448 = vadd.f32 %v2154, %v2346
        %v2449 = vadd.f32 %v2155, %v2349
        %v2450 = vadd.f32 %v2156, %v2354
        %v2451 = vadd.f32 %v2157, %v2357
        %v2452 = vadd.f32 %v2158, %v2362
        %v2453 = vadd.f32 %v2159, %v2365
        %v2454 = vadd.f32 %v2160, %v2370
        %v2455 = vadd.f32 %v2161, %v2373
        %v2456 = vadd.f32 %v2162, %v2378
        %v2457 = vadd.f32 %v2163, %v2381
        %v2458 = vadd.f32 %v2164, %v2386
        %v2459 = vadd.f32 %v2165, %v2389
        %v2460 = vadd.f32 %v2166, %v2394
        %v2461 = vadd.f32 %v2167, %v2397
        %v2462 = vadd.f32 %v2168, %v2402
        %v2463 = vadd.f32 %v2169, %v2405
        %v2464 = vadd.f32 %v2170, %v2410
        %v2465 = vadd.f32 %v2171, %v2413
        %v2466 = vadd.f32 %v2172, %v2418
        %v2467 = vadd.f32 %v2173, %v2421
        %v2468 = vadd.f32 %v2174, %v2426
        %v2469 = vadd.f32 %v2175, %v2429
        %v2470 = vadd.f32 %v2176, %v2434
        %v2471 = vadd.f32 %v2177, %v2437
        %v2472 = vld [vmem:[#allocation2 + $0x19] sm:$0xff]
        %v2473 = vld [vmem:[#allocation2 + $0x21] sm:$0xff]
        %v2474 = vld [vmem:[#allocation2 + $0x29] sm:$0xff]
        %v2475 = vld [vmem:[#allocation2 + $0x31] sm:$0xff]
        %v2476 = vld [vmem:[#allocation2 + $0x39] sm:$0xff]
        %v2477 = vld [vmem:[#allocation2 + $0x41] sm:$0xff]
        %v2478 = vld [vmem:[#allocation2 + $0x49] sm:$0xff]
        %v2479 = vld [vmem:[#allocation2 + $0x51] sm:$0xff]
        %v2480 = vld [vmem:[#allocation2 + $0x59] sm:$0xff]
        %v2481 = vld [vmem:[#allocation2 + $0x61] sm:$0xff]
        %v2482 = vld [vmem:[#allocation2 + $0x69] sm:$0xff]
        %v2483 = vld [vmem:[#allocation2 + $0x71] sm:$0xff]
        %v2484 = vld [vmem:[#allocation2 + $0x79] sm:$0xff]
        %v2485 = vld [vmem:[#allocation2 + $0x81] sm:$0xff]
        %v2486 = vld [vmem:[#allocation2 + $0x89] sm:$0xff]
        %v2487 = vld [vmem:[#allocation2 + $0x91] sm:$0xff]
        %v2488 = vld [vmem:[#allocation2 + $0x99] sm:$0xff]
        %v2489 = vld [vmem:[#allocation2 + $0xa1] sm:$0xff]
        %v2490 = vld [vmem:[#allocation2 + $0xa9] sm:$0xff]
        %v2491 = vld [vmem:[#allocation2 + $0xb1] sm:$0xff]
        %v2492 = vld [vmem:[#allocation2 + $0xb9] sm:$0xff]
        %v2493 = vld [vmem:[#allocation2 + $0xc1] sm:$0xff]
        %v2494 = vld [vmem:[#allocation2 + $0xc9] sm:$0xff]
        %v2495 = vld [vmem:[#allocation2 + $0xd1] sm:$0xff]
        %v2496 = vld [vmem:[#allocation2 + $0xd9] sm:$0xff]
        %v2497 = vld [vmem:[#allocation2 + $0xe1] sm:$0xff]
        %v2498 = vld [vmem:[#allocation2 + $0xe9] sm:$0xff]
        %v2499 = vld [vmem:[#allocation2 + $0xf1] sm:$0xff]
        %v2500 = vld [vmem:[#allocation2 + $0xf9] sm:$0xff]
        %v2501 = vld [vmem:[#allocation2 + $0x101] sm:$0xff]
        %v2502 = vld [vmem:[#allocation2 + $0x109] sm:$0xff]
        %v2503 = vld [vmem:[#allocation2 + $0x111] sm:$0xff]
        %v2504 = vsel %vm1526, %v2472, 0.0
        %v2505 = vsel %vm1527, %v2473, 0.0
        %v2506 = vsel %vm1528, %v2474, 0.0
        %v2507 = vsel %vm1529, %v2475, 0.0
        %v2508 = vsel %vm1530, %v2476, 0.0
        %v2509 = vsel %vm1531, %v2477, 0.0
        %v2510 = vsel %vm1532, %v2478, 0.0
        %v2511 = vsel %vm1533, %v2479, 0.0
        %v2512 = vsel %vm1534, %v2480, 0.0
        %v2513 = vsel %vm1535, %v2481, 0.0
        %v2514 = vsel %vm1536, %v2482, 0.0
        %v2515 = vsel %vm1537, %v2483, 0.0
        %v2516 = vsel %vm1538, %v2484, 0.0
        %v2517 = vsel %vm1539, %v2485, 0.0
        %v2518 = vsel %vm1540, %v2486, 0.0
        %v2519 = vsel %vm1541, %v2487, 0.0
        %v2520 = vsel %vm1542, %v2488, 0.0
        %v2521 = vsel %vm1543, %v2489, 0.0
        %v2522 = vsel %vm1544, %v2490, 0.0
        %v2523 = vsel %vm1545, %v2491, 0.0
        %v2524 = vsel %vm1546, %v2492, 0.0
        %v2525 = vsel %vm1547, %v2493, 0.0
        %v2526 = vsel %vm1548, %v2494, 0.0
        %v2527 = vsel %vm1549, %v2495, 0.0
        %v2528 = vsel %vm1550, %v2496, 0.0
        %v2529 = vsel %vm1551, %v2497, 0.0
        %v2530 = vsel %vm1552, %v2498, 0.0
        %v2531 = vsel %vm1553, %v2499, 0.0
        %v2532 = vsel %vm1554, %v2500, 0.0
        %v2533 = vsel %vm1555, %v2501, 0.0
        %v2534 = vsel %vm1556, %v2502, 0.0
        %v2535 = vsel %vm1557, %v2503, 0.0
        %v2536 = vpack.c.bf16 %v2505, %v2504
        %v2537 = vpack.c.bf16 %v2507, %v2506
        %v2538 = vpack.c.bf16 %v2509, %v2508
        %v2539 = vpack.c.bf16 %v2511, %v2510
        %v2540 = vpack.c.bf16 %v2513, %v2512
        %v2541 = vpack.c.bf16 %v2515, %v2514
        %v2542 = vpack.c.bf16 %v2517, %v2516
        %v2543 = vpack.c.bf16 %v2519, %v2518
        %v2544 = vpack.c.bf16 %v2521, %v2520
        %v2545 = vpack.c.bf16 %v2523, %v2522
        %v2546 = vpack.c.bf16 %v2525, %v2524
        %v2547 = vpack.c.bf16 %v2527, %v2526
        %v2548 = vpack.c.bf16 %v2529, %v2528
        %v2549 = vpack.c.bf16 %v2531, %v2530
        %v2550 = vpack.c.bf16 %v2533, %v2532
        %v2551 = vpack.c.bf16 %v2535, %v2534
        %s2552 = scalar_lea.vmem %s1, 10
        %v2553 = vld [vmem:[%s2552] sm:$0x3]
        %v2555 = vsel %vm417, %v2536, 0
        %v2558 = vsel %vm417, %v2537, 0
        %v2561 = vsel %vm417, %v2538, 0
        %v2564 = vsel %vm417, %v2539, 0
        %v2567 = vsel %vm417, %v2540, 0
        %v2570 = vsel %vm417, %v2541, 0
        %v2573 = vsel %vm417, %v2542, 0
        %v2576 = vsel %vm417, %v2543, 0
        %v2579 = vsel %vm417, %v2544, 0
        %v2582 = vsel %vm417, %v2545, 0
        %v2585 = vsel %vm417, %v2546, 0
        %v2588 = vsel %vm417, %v2547, 0
        %v2591 = vsel %vm417, %v2548, 0
        %v2594 = vsel %vm417, %v2549, 0
        %v2597 = vsel %vm417, %v2550, 0
        %v2600 = vsel %vm417, %v2551, 0
        %v2603 = vsel %vm1117, %v2553, 0
        %2605 = vmatprep.subr.bf16.mxu0 0
        %2606 = vmatpush1.bf16.msra.mxu0 0
        %2607 = vmatprep.subr.bf16.mxu0 0
        %2608 = vmatpush1.bf16.msra.mxu0 0
        %2609 = vmatprep.subr.bf16.mxu0 0
        %2610 = vmatpush1.bf16.msra.mxu0 0
        %2611 = vmatprep.subr.bf16.mxu0 0
        %2612 = vmatpush1.bf16.msra.mxu0 0
        %2613 = vmatprep.subr.bf16.mxu0 0
        %2614 = vmatpush1.bf16.msra.mxu0 0
        %2615 = vmatprep.subr.bf16.mxu0 0
        %2616 = vmatpush1.bf16.msra.mxu0 0
        %2617 = vmatprep.subr.bf16.mxu0 0
        %2618 = vmatpush1.bf16.msra.mxu0 0
        %2619 = vmatprep.subr.bf16.mxu0 0
        %2620 = vmatpush1.bf16.msra.mxu0 %v2603
        %2621 = vmatprep.subr.bf16.mxu0 0
        %2622 = vmatpush2.bf16.msra.mxu0 0
        %2623 = vmatprep.subr.bf16.mxu0 0
        %2624 = vmatpush2.bf16.msra.mxu0 0
        %2625 = vmatprep.subr.bf16.mxu0 0
        %2626 = vmatpush2.bf16.msra.mxu0 0
        %2627 = vmatprep.subr.bf16.mxu0 0
        %2628 = vmatpush2.bf16.msra.mxu0 0
        %2629 = vmatprep.subr.bf16.mxu0 0
        %2630 = vmatpush2.bf16.msra.mxu0 0
        %2631 = vmatprep.subr.bf16.mxu0 0
        %2632 = vmatpush2.bf16.msra.mxu0 0
        %2633 = vmatprep.subr.bf16.mxu0 0
        %2634 = vmatpush2.bf16.msra.mxu0 0
        %2635 = vmatprep.subr.bf16.mxu0 0
        %2636 = vmatpush2.bf16.msra.mxu0 0
        %2637 = vmatprep.mubr.bf16.mxu0 0
        %2638 = vmatmul.mubr.bf16.gmra.mxu0 %v2555
        %v2639 = vpop.f32.mrf.mxu0
        %v2640 = vadd.f32 0.0, %v2639
        %v2641 = vpop.f32.mrf.mxu0
        %v2642 = vpop.f32.mrf.mxu0
        %v2643 = vadd.f32 0.0, %v2642
        %v2644 = vpop.f32.mrf.mxu0
        %2645 = vmatprep.mubr.bf16.mxu0 0
        %2646 = vmatmul.mubr.bf16.gmra.mxu0 %v2558
        %v2647 = vpop.f32.mrf.mxu0
        %v2648 = vadd.f32 0.0, %v2647
        %v2649 = vpop.f32.mrf.mxu0
        %v2650 = vpop.f32.mrf.mxu0
        %v2651 = vadd.f32 0.0, %v2650
        %v2652 = vpop.f32.mrf.mxu0
        %2653 = vmatprep.mubr.bf16.mxu0 0
        %2654 = vmatmul.mubr.bf16.gmra.mxu0 %v2561
        %v2655 = vpop.f32.mrf.mxu0
        %v2656 = vadd.f32 0.0, %v2655
        %v2657 = vpop.f32.mrf.mxu0
        %v2658 = vpop.f32.mrf.mxu0
        %v2659 = vadd.f32 0.0, %v2658
        %v2660 = vpop.f32.mrf.mxu0
        %2661 = vmatprep.mubr.bf16.mxu0 0
        %2662 = vmatmul.mubr.bf16.gmra.mxu0 %v2564
        %v2663 = vpop.f32.mrf.mxu0
        %v2664 = vadd.f32 0.0, %v2663
        %v2665 = vpop.f32.mrf.mxu0
        %v2666 = vpop.f32.mrf.mxu0
        %v2667 = vadd.f32 0.0, %v2666
        %v2668 = vpop.f32.mrf.mxu0
        %2669 = vmatprep.mubr.bf16.mxu0 0
        %2670 = vmatmul.mubr.bf16.gmra.mxu0 %v2567
        %v2671 = vpop.f32.mrf.mxu0
        %v2672 = vadd.f32 0.0, %v2671
        %v2673 = vpop.f32.mrf.mxu0
        %v2674 = vpop.f32.mrf.mxu0
        %v2675 = vadd.f32 0.0, %v2674
        %v2676 = vpop.f32.mrf.mxu0
        %2677 = vmatprep.mubr.bf16.mxu0 0
        %2678 = vmatmul.mubr.bf16.gmra.mxu0 %v2570
        %v2679 = vpop.f32.mrf.mxu0
        %v2680 = vadd.f32 0.0, %v2679
        %v2681 = vpop.f32.mrf.mxu0
        %v2682 = vpop.f32.mrf.mxu0
        %v2683 = vadd.f32 0.0, %v2682
        %v2684 = vpop.f32.mrf.mxu0
        %2685 = vmatprep.mubr.bf16.mxu0 0
        %2686 = vmatmul.mubr.bf16.gmra.mxu0 %v2573
        %v2687 = vpop.f32.mrf.mxu0
        %v2688 = vadd.f32 0.0, %v2687
        %v2689 = vpop.f32.mrf.mxu0
        %v2690 = vpop.f32.mrf.mxu0
        %v2691 = vadd.f32 0.0, %v2690
        %v2692 = vpop.f32.mrf.mxu0
        %2693 = vmatprep.mubr.bf16.mxu0 0
        %2694 = vmatmul.mubr.bf16.gmra.mxu0 %v2576
        %v2695 = vpop.f32.mrf.mxu0
        %v2696 = vadd.f32 0.0, %v2695
        %v2697 = vpop.f32.mrf.mxu0
        %v2698 = vpop.f32.mrf.mxu0
        %v2699 = vadd.f32 0.0, %v2698
        %v2700 = vpop.f32.mrf.mxu0
        %2701 = vmatprep.mubr.bf16.mxu0 0
        %2702 = vmatmul.mubr.bf16.gmra.mxu0 %v2579
        %v2703 = vpop.f32.mrf.mxu0
        %v2704 = vadd.f32 0.0, %v2703
        %v2705 = vpop.f32.mrf.mxu0
        %v2706 = vpop.f32.mrf.mxu0
        %v2707 = vadd.f32 0.0, %v2706
        %v2708 = vpop.f32.mrf.mxu0
        %2709 = vmatprep.mubr.bf16.mxu0 0
        %2710 = vmatmul.mubr.bf16.gmra.mxu0 %v2582
        %v2711 = vpop.f32.mrf.mxu0
        %v2712 = vadd.f32 0.0, %v2711
        %v2713 = vpop.f32.mrf.mxu0
        %v2714 = vpop.f32.mrf.mxu0
        %v2715 = vadd.f32 0.0, %v2714
        %v2716 = vpop.f32.mrf.mxu0
        %2717 = vmatprep.mubr.bf16.mxu0 0
        %2718 = vmatmul.mubr.bf16.gmra.mxu0 %v2585
        %v2719 = vpop.f32.mrf.mxu0
        %v2720 = vadd.f32 0.0, %v2719
        %v2721 = vpop.f32.mrf.mxu0
        %v2722 = vpop.f32.mrf.mxu0
        %v2723 = vadd.f32 0.0, %v2722
        %v2724 = vpop.f32.mrf.mxu0
        %2725 = vmatprep.mubr.bf16.mxu0 0
        %2726 = vmatmul.mubr.bf16.gmra.mxu0 %v2588
        %v2727 = vpop.f32.mrf.mxu0
        %v2728 = vadd.f32 0.0, %v2727
        %v2729 = vpop.f32.mrf.mxu0
        %v2730 = vpop.f32.mrf.mxu0
        %v2731 = vadd.f32 0.0, %v2730
        %v2732 = vpop.f32.mrf.mxu0
        %2733 = vmatprep.mubr.bf16.mxu0 0
        %2734 = vmatmul.mubr.bf16.gmra.mxu0 %v2591
        %v2735 = vpop.f32.mrf.mxu0
        %v2736 = vadd.f32 0.0, %v2735
        %v2737 = vpop.f32.mrf.mxu0
        %v2738 = vpop.f32.mrf.mxu0
        %v2739 = vadd.f32 0.0, %v2738
        %v2740 = vpop.f32.mrf.mxu0
        %2741 = vmatprep.mubr.bf16.mxu0 0
        %2742 = vmatmul.mubr.bf16.gmra.mxu0 %v2594
        %v2743 = vpop.f32.mrf.mxu0
        %v2744 = vadd.f32 0.0, %v2743
        %v2745 = vpop.f32.mrf.mxu0
        %v2746 = vpop.f32.mrf.mxu0
        %v2747 = vadd.f32 0.0, %v2746
        %v2748 = vpop.f32.mrf.mxu0
        %2749 = vmatprep.mubr.bf16.mxu0 0
        %2750 = vmatmul.mubr.bf16.gmra.mxu0 %v2597
        %v2751 = vpop.f32.mrf.mxu0
        %v2752 = vadd.f32 0.0, %v2751
        %v2753 = vpop.f32.mrf.mxu0
        %v2754 = vpop.f32.mrf.mxu0
        %v2755 = vadd.f32 0.0, %v2754
        %v2756 = vpop.f32.mrf.mxu0
        %2757 = vmatprep.mubr.bf16.mxu0 0
        %2758 = vmatmul.mubr.bf16.gmra.mxu0 %v2600
        %v2759 = vpop.f32.mrf.mxu0
        %v2760 = vadd.f32 0.0, %v2759
        %v2761 = vpop.f32.mrf.mxu0
        %v2762 = vpop.f32.mrf.mxu0
        %v2763 = vadd.f32 0.0, %v2762
        %v2764 = vpop.f32.mrf.mxu0
        %2765 = vdwg.mxu0
        %v2766 = vadd.f32 %v2440, %v2640
        %v2767 = vadd.f32 %v2441, %v2643
        %v2768 = vadd.f32 %v2442, %v2648
        %v2769 = vadd.f32 %v2443, %v2651
        %v2770 = vadd.f32 %v2444, %v2656
        %v2771 = vadd.f32 %v2445, %v2659
        %v2772 = vadd.f32 %v2446, %v2664
        %v2773 = vadd.f32 %v2447, %v2667
        %v2774 = vadd.f32 %v2448, %v2672
        %v2775 = vadd.f32 %v2449, %v2675
        %v2776 = vadd.f32 %v2450, %v2680
        %v2777 = vadd.f32 %v2451, %v2683
        %v2778 = vadd.f32 %v2452, %v2688
        %v2779 = vadd.f32 %v2453, %v2691
        %v2780 = vadd.f32 %v2454, %v2696
        %v2781 = vadd.f32 %v2455, %v2699
        %v2782 = vadd.f32 %v2456, %v2704
        %v2783 = vadd.f32 %v2457, %v2707
        %v2784 = vadd.f32 %v2458, %v2712
        %v2785 = vadd.f32 %v2459, %v2715
        %v2786 = vadd.f32 %v2460, %v2720
        %v2787 = vadd.f32 %v2461, %v2723
        %v2788 = vadd.f32 %v2462, %v2728
        %v2789 = vadd.f32 %v2463, %v2731
        %v2790 = vadd.f32 %v2464, %v2736
        %v2791 = vadd.f32 %v2465, %v2739
        %v2792 = vadd.f32 %v2466, %v2744
        %v2793 = vadd.f32 %v2467, %v2747
        %v2794 = vadd.f32 %v2468, %v2752
        %v2795 = vadd.f32 %v2469, %v2755
        %v2796 = vadd.f32 %v2470, %v2760
        %v2797 = vadd.f32 %v2471, %v2763
        %v2798 = vld [vmem:[#allocation2 + $0x27] sm:$0xff]
        %v2799 = vld [vmem:[#allocation2 + $0x2f] sm:$0xff]
        %v2800 = vld [vmem:[#allocation2 + $0x37] sm:$0xff]
        %v2801 = vld [vmem:[#allocation2 + $0x3f] sm:$0xff]
        %v2802 = vld [vmem:[#allocation2 + $0x47] sm:$0xff]
        %v2803 = vld [vmem:[#allocation2 + $0x4f] sm:$0xff]
        %v2804 = vld [vmem:[#allocation2 + $0x57] sm:$0xff]
        %v2805 = vld [vmem:[#allocation2 + $0x5f] sm:$0xff]
        %v2806 = vld [vmem:[#allocation2 + $0x67] sm:$0xff]
        %v2807 = vld [vmem:[#allocation2 + $0x6f] sm:$0xff]
        %v2808 = vld [vmem:[#allocation2 + $0x77] sm:$0xff]
        %v2809 = vld [vmem:[#allocation2 + $0x7f] sm:$0xff]
        %v2810 = vld [vmem:[#allocation2 + $0x87] sm:$0xff]
        %v2811 = vld [vmem:[#allocation2 + $0x8f] sm:$0xff]
        %v2812 = vld [vmem:[#allocation2 + $0x97] sm:$0xff]
        %v2813 = vld [vmem:[#allocation2 + $0x9f] sm:$0xff]
        %v2814 = vld [vmem:[#allocation2 + $0xa7] sm:$0xff]
        %v2815 = vld [vmem:[#allocation2 + $0xaf] sm:$0xff]
        %v2816 = vld [vmem:[#allocation2 + $0xb7] sm:$0xff]
        %v2817 = vld [vmem:[#allocation2 + $0xbf] sm:$0xff]
        %v2818 = vld [vmem:[#allocation2 + $0xc7] sm:$0xff]
        %v2819 = vld [vmem:[#allocation2 + $0xcf] sm:$0xff]
        %v2820 = vld [vmem:[#allocation2 + $0xd7] sm:$0xff]
        %v2821 = vld [vmem:[#allocation2 + $0xdf] sm:$0xff]
        %v2822 = vld [vmem:[#allocation2 + $0xe7] sm:$0xff]
        %v2823 = vld [vmem:[#allocation2 + $0xef] sm:$0xff]
        %v2824 = vld [vmem:[#allocation2 + $0xf7] sm:$0xff]
        %v2825 = vld [vmem:[#allocation2 + $0xff] sm:$0xff]
        %v2826 = vld [vmem:[#allocation2 + $0x107] sm:$0xff]
        %v2827 = vld [vmem:[#allocation2 + $0x10f] sm:$0xff]
        %v2828 = vld [vmem:[#allocation2 + $0x117] sm:$0xff]
        %v2829 = vld [vmem:[#allocation2 + $0x11f] sm:$0xff]
        %v2830 = vsel %vm938, %v2798, 0.0
        %v2831 = vsel %vm939, %v2799, 0.0
        %v2832 = vsel %vm940, %v2800, 0.0
        %v2833 = vsel %vm941, %v2801, 0.0
        %v2834 = vsel %vm942, %v2802, 0.0
        %v2835 = vsel %vm943, %v2803, 0.0
        %v2836 = vsel %vm944, %v2804, 0.0
        %v2837 = vsel %vm945, %v2805, 0.0
        %v2838 = vsel %vm946, %v2806, 0.0
        %v2839 = vsel %vm947, %v2807, 0.0
        %v2840 = vsel %vm948, %v2808, 0.0
        %v2841 = vsel %vm949, %v2809, 0.0
        %v2842 = vsel %vm950, %v2810, 0.0
        %v2843 = vsel %vm951, %v2811, 0.0
        %v2844 = vsel %vm952, %v2812, 0.0
        %v2845 = vsel %vm953, %v2813, 0.0
        %v2846 = vsel %vm954, %v2814, 0.0
        %v2847 = vsel %vm955, %v2815, 0.0
        %v2848 = vsel %vm956, %v2816, 0.0
        %v2849 = vsel %vm957, %v2817, 0.0
        %v2850 = vsel %vm958, %v2818, 0.0
        %v2851 = vsel %vm959, %v2819, 0.0
        %v2852 = vsel %vm960, %v2820, 0.0
        %v2853 = vsel %vm961, %v2821, 0.0
        %v2854 = vsel %vm962, %v2822, 0.0
        %v2855 = vsel %vm963, %v2823, 0.0
        %v2856 = vsel %vm964, %v2824, 0.0
        %v2857 = vsel %vm965, %v2825, 0.0
        %v2858 = vsel %vm966, %v2826, 0.0
        %v2859 = vsel %vm967, %v2827, 0.0
        %v2860 = vsel %vm968, %v2828, 0.0
        %v2861 = vsel %vm969, %v2829, 0.0
        %v2862 = vpack.c.bf16 %v2831, %v2830
        %v2863 = vpack.c.bf16 %v2833, %v2832
        %v2864 = vpack.c.bf16 %v2835, %v2834
        %v2865 = vpack.c.bf16 %v2837, %v2836
        %v2866 = vpack.c.bf16 %v2839, %v2838
        %v2867 = vpack.c.bf16 %v2841, %v2840
        %v2868 = vpack.c.bf16 %v2843, %v2842
        %v2869 = vpack.c.bf16 %v2845, %v2844
        %v2870 = vpack.c.bf16 %v2847, %v2846
        %v2871 = vpack.c.bf16 %v2849, %v2848
        %v2872 = vpack.c.bf16 %v2851, %v2850
        %v2873 = vpack.c.bf16 %v2853, %v2852
        %v2874 = vpack.c.bf16 %v2855, %v2854
        %v2875 = vpack.c.bf16 %v2857, %v2856
        %v2876 = vpack.c.bf16 %v2859, %v2858
        %v2877 = vpack.c.bf16 %v2861, %v2860
        %s2878 = scalar_lea.vmem %s1, 12
        %v2879 = vld [vmem:[%s2878] sm:$0x3]
        %v2881 = vsel %vm417, %v2862, 0
        %v2884 = vsel %vm417, %v2863, 0
        %v2887 = vsel %vm417, %v2864, 0
        %v2890 = vsel %vm417, %v2865, 0
        %v2893 = vsel %vm417, %v2866, 0
        %v2896 = vsel %vm417, %v2867, 0
        %v2899 = vsel %vm417, %v2868, 0
        %v2902 = vsel %vm417, %v2869, 0
        %v2905 = vsel %vm417, %v2870, 0
        %v2908 = vsel %vm417, %v2871, 0
        %v2911 = vsel %vm417, %v2872, 0
        %v2914 = vsel %vm417, %v2873, 0
        %v2917 = vsel %vm417, %v2874, 0
        %v2920 = vsel %vm417, %v2875, 0
        %v2923 = vsel %vm417, %v2876, 0
        %v2926 = vsel %vm417, %v2877, 0
        %v2929 = vsel %vm1117, %v2879, 0
        %2931 = vmatprep.subr.bf16.mxu0 0
        %2932 = vmatpush1.bf16.msra.mxu0 0
        %2933 = vmatprep.subr.bf16.mxu0 0
        %2934 = vmatpush1.bf16.msra.mxu0 0
        %2935 = vmatprep.subr.bf16.mxu0 0
        %2936 = vmatpush1.bf16.msra.mxu0 0
        %2937 = vmatprep.subr.bf16.mxu0 0
        %2938 = vmatpush1.bf16.msra.mxu0 0
        %2939 = vmatprep.subr.bf16.mxu0 0
        %2940 = vmatpush1.bf16.msra.mxu0 0
        %2941 = vmatprep.subr.bf16.mxu0 0
        %2942 = vmatpush1.bf16.msra.mxu0 0
        %2943 = vmatprep.subr.bf16.mxu0 0
        %2944 = vmatpush1.bf16.msra.mxu0 0
        %2945 = vmatprep.subr.bf16.mxu0 0
        %2946 = vmatpush1.bf16.msra.mxu0 %v2929
        %2947 = vmatprep.subr.bf16.mxu0 0
        %2948 = vmatpush2.bf16.msra.mxu0 0
        %2949 = vmatprep.subr.bf16.mxu0 0
        %2950 = vmatpush2.bf16.msra.mxu0 0
        %2951 = vmatprep.subr.bf16.mxu0 0
        %2952 = vmatpush2.bf16.msra.mxu0 0
        %2953 = vmatprep.subr.bf16.mxu0 0
        %2954 = vmatpush2.bf16.msra.mxu0 0
        %2955 = vmatprep.subr.bf16.mxu0 0
        %2956 = vmatpush2.bf16.msra.mxu0 0
        %2957 = vmatprep.subr.bf16.mxu0 0
        %2958 = vmatpush2.bf16.msra.mxu0 0
        %2959 = vmatprep.subr.bf16.mxu0 0
        %2960 = vmatpush2.bf16.msra.mxu0 0
        %2961 = vmatprep.subr.bf16.mxu0 0
        %2962 = vmatpush2.bf16.msra.mxu0 0
        %2963 = vmatprep.mubr.bf16.mxu0 0
        %2964 = vmatmul.mubr.bf16.gmra.mxu0 %v2881
        %v2965 = vpop.f32.mrf.mxu0
        %v2966 = vadd.f32 0.0, %v2965
        %v2967 = vpop.f32.mrf.mxu0
        %v2968 = vpop.f32.mrf.mxu0
        %v2969 = vadd.f32 0.0, %v2968
        %v2970 = vpop.f32.mrf.mxu0
        %2971 = vmatprep.mubr.bf16.mxu0 0
        %2972 = vmatmul.mubr.bf16.gmra.mxu0 %v2884
        %v2973 = vpop.f32.mrf.mxu0
        %v2974 = vadd.f32 0.0, %v2973
        %v2975 = vpop.f32.mrf.mxu0
        %v2976 = vpop.f32.mrf.mxu0
        %v2977 = vadd.f32 0.0, %v2976
        %v2978 = vpop.f32.mrf.mxu0
        %2979 = vmatprep.mubr.bf16.mxu0 0
        %2980 = vmatmul.mubr.bf16.gmra.mxu0 %v2887
        %v2981 = vpop.f32.mrf.mxu0
        %v2982 = vadd.f32 0.0, %v2981
        %v2983 = vpop.f32.mrf.mxu0
        %v2984 = vpop.f32.mrf.mxu0
        %v2985 = vadd.f32 0.0, %v2984
        %v2986 = vpop.f32.mrf.mxu0
        %2987 = vmatprep.mubr.bf16.mxu0 0
        %2988 = vmatmul.mubr.bf16.gmra.mxu0 %v2890
        %v2989 = vpop.f32.mrf.mxu0
        %v2990 = vadd.f32 0.0, %v2989
        %v2991 = vpop.f32.mrf.mxu0
        %v2992 = vpop.f32.mrf.mxu0
        %v2993 = vadd.f32 0.0, %v2992
        %v2994 = vpop.f32.mrf.mxu0
        %2995 = vmatprep.mubr.bf16.mxu0 0
        %2996 = vmatmul.mubr.bf16.gmra.mxu0 %v2893
        %v2997 = vpop.f32.mrf.mxu0
        %v2998 = vadd.f32 0.0, %v2997
        %v2999 = vpop.f32.mrf.mxu0
        %v3000 = vpop.f32.mrf.mxu0
        %v3001 = vadd.f32 0.0, %v3000
        %v3002 = vpop.f32.mrf.mxu0
        %3003 = vmatprep.mubr.bf16.mxu0 0
        %3004 = vmatmul.mubr.bf16.gmra.mxu0 %v2896
        %v3005 = vpop.f32.mrf.mxu0
        %v3006 = vadd.f32 0.0, %v3005
        %v3007 = vpop.f32.mrf.mxu0
        %v3008 = vpop.f32.mrf.mxu0
        %v3009 = vadd.f32 0.0, %v3008
        %v3010 = vpop.f32.mrf.mxu0
        %3011 = vmatprep.mubr.bf16.mxu0 0
        %3012 = vmatmul.mubr.bf16.gmra.mxu0 %v2899
        %v3013 = vpop.f32.mrf.mxu0
        %v3014 = vadd.f32 0.0, %v3013
        %v3015 = vpop.f32.mrf.mxu0
        %v3016 = vpop.f32.mrf.mxu0
        %v3017 = vadd.f32 0.0, %v3016
        %v3018 = vpop.f32.mrf.mxu0
        %3019 = vmatprep.mubr.bf16.mxu0 0
        %3020 = vmatmul.mubr.bf16.gmra.mxu0 %v2902
        %v3021 = vpop.f32.mrf.mxu0
        %v3022 = vadd.f32 0.0, %v3021
        %v3023 = vpop.f32.mrf.mxu0
        %v3024 = vpop.f32.mrf.mxu0
        %v3025 = vadd.f32 0.0, %v3024
        %v3026 = vpop.f32.mrf.mxu0
        %3027 = vmatprep.mubr.bf16.mxu0 0
        %3028 = vmatmul.mubr.bf16.gmra.mxu0 %v2905
        %v3029 = vpop.f32.mrf.mxu0
        %v3030 = vadd.f32 0.0, %v3029
        %v3031 = vpop.f32.mrf.mxu0
        %v3032 = vpop.f32.mrf.mxu0
        %v3033 = vadd.f32 0.0, %v3032
        %v3034 = vpop.f32.mrf.mxu0
        %3035 = vmatprep.mubr.bf16.mxu0 0
        %3036 = vmatmul.mubr.bf16.gmra.mxu0 %v2908
        %v3037 = vpop.f32.mrf.mxu0
        %v3038 = vadd.f32 0.0, %v3037
        %v3039 = vpop.f32.mrf.mxu0
        %v3040 = vpop.f32.mrf.mxu0
        %v3041 = vadd.f32 0.0, %v3040
        %v3042 = vpop.f32.mrf.mxu0
        %3043 = vmatprep.mubr.bf16.mxu0 0
        %3044 = vmatmul.mubr.bf16.gmra.mxu0 %v2911
        %v3045 = vpop.f32.mrf.mxu0
        %v3046 = vadd.f32 0.0, %v3045
        %v3047 = vpop.f32.mrf.mxu0
        %v3048 = vpop.f32.mrf.mxu0
        %v3049 = vadd.f32 0.0, %v3048
        %v3050 = vpop.f32.mrf.mxu0
        %3051 = vmatprep.mubr.bf16.mxu0 0
        %3052 = vmatmul.mubr.bf16.gmra.mxu0 %v2914
        %v3053 = vpop.f32.mrf.mxu0
        %v3054 = vadd.f32 0.0, %v3053
        %v3055 = vpop.f32.mrf.mxu0
        %v3056 = vpop.f32.mrf.mxu0
        %v3057 = vadd.f32 0.0, %v3056
        %v3058 = vpop.f32.mrf.mxu0
        %3059 = vmatprep.mubr.bf16.mxu0 0
        %3060 = vmatmul.mubr.bf16.gmra.mxu0 %v2917
        %v3061 = vpop.f32.mrf.mxu0
        %v3062 = vadd.f32 0.0, %v3061
        %v3063 = vpop.f32.mrf.mxu0
        %v3064 = vpop.f32.mrf.mxu0
        %v3065 = vadd.f32 0.0, %v3064
        %v3066 = vpop.f32.mrf.mxu0
        %3067 = vmatprep.mubr.bf16.mxu0 0
        %3068 = vmatmul.mubr.bf16.gmra.mxu0 %v2920
        %v3069 = vpop.f32.mrf.mxu0
        %v3070 = vadd.f32 0.0, %v3069
        %v3071 = vpop.f32.mrf.mxu0
        %v3072 = vpop.f32.mrf.mxu0
        %v3073 = vadd.f32 0.0, %v3072
        %v3074 = vpop.f32.mrf.mxu0
        %3075 = vmatprep.mubr.bf16.mxu0 0
        %3076 = vmatmul.mubr.bf16.gmra.mxu0 %v2923
        %v3077 = vpop.f32.mrf.mxu0
        %v3078 = vadd.f32 0.0, %v3077
        %v3079 = vpop.f32.mrf.mxu0
        %v3080 = vpop.f32.mrf.mxu0
        %v3081 = vadd.f32 0.0, %v3080
        %v3082 = vpop.f32.mrf.mxu0
        %3083 = vmatprep.mubr.bf16.mxu0 0
        %3084 = vmatmul.mubr.bf16.gmra.mxu0 %v2926
        %v3085 = vpop.f32.mrf.mxu0
        %v3086 = vadd.f32 0.0, %v3085
        %v3087 = vpop.f32.mrf.mxu0
        %v3088 = vpop.f32.mrf.mxu0
        %v3089 = vadd.f32 0.0, %v3088
        %v3090 = vpop.f32.mrf.mxu0
        %3091 = vdwg.mxu0
        %v3092 = vadd.f32 %v2766, %v2966
        %v3093 = vadd.f32 %v2767, %v2969
        %v3094 = vadd.f32 %v2768, %v2974
        %v3095 = vadd.f32 %v2769, %v2977
        %v3096 = vadd.f32 %v2770, %v2982
        %v3097 = vadd.f32 %v2771, %v2985
        %v3098 = vadd.f32 %v2772, %v2990
        %v3099 = vadd.f32 %v2773, %v2993
        %v3100 = vadd.f32 %v2774, %v2998
        %v3101 = vadd.f32 %v2775, %v3001
        %v3102 = vadd.f32 %v2776, %v3006
        %v3103 = vadd.f32 %v2777, %v3009
        %v3104 = vadd.f32 %v2778, %v3014
        %v3105 = vadd.f32 %v2779, %v3017
        %v3106 = vadd.f32 %v2780, %v3022
        %v3107 = vadd.f32 %v2781, %v3025
        %v3108 = vadd.f32 %v2782, %v3030
        %v3109 = vadd.f32 %v2783, %v3033
        %v3110 = vadd.f32 %v2784, %v3038
        %v3111 = vadd.f32 %v2785, %v3041
        %v3112 = vadd.f32 %v2786, %v3046
        %v3113 = vadd.f32 %v2787, %v3049
        %v3114 = vadd.f32 %v2788, %v3054
        %v3115 = vadd.f32 %v2789, %v3057
        %v3116 = vadd.f32 %v2790, %v3062
        %v3117 = vadd.f32 %v2791, %v3065
        %v3118 = vadd.f32 %v2792, %v3070
        %v3119 = vadd.f32 %v2793, %v3073
        %v3120 = vadd.f32 %v2794, %v3078
        %v3121 = vadd.f32 %v2795, %v3081
        %v3122 = vadd.f32 %v2796, %v3086
        %v3123 = vadd.f32 %v2797, %v3089
        %v3124 = vld [vmem:[#allocation2 + $0x28] sm:$0xff]
        %v3125 = vld [vmem:[#allocation2 + $0x30] sm:$0xff]
        %v3126 = vld [vmem:[#allocation2 + $0x38] sm:$0xff]
        %v3127 = vld [vmem:[#allocation2 + $0x40] sm:$0xff]
        %v3128 = vld [vmem:[#allocation2 + $0x48] sm:$0xff]
        %v3129 = vld [vmem:[#allocation2 + $0x50] sm:$0xff]
        %v3130 = vld [vmem:[#allocation2 + $0x58] sm:$0xff]
        %v3131 = vld [vmem:[#allocation2 + $0x60] sm:$0xff]
        %v3132 = vld [vmem:[#allocation2 + $0x68] sm:$0xff]
        %v3133 = vld [vmem:[#allocation2 + $0x70] sm:$0xff]
        %v3134 = vld [vmem:[#allocation2 + $0x78] sm:$0xff]
        %v3135 = vld [vmem:[#allocation2 + $0x80] sm:$0xff]
        %v3136 = vld [vmem:[#allocation2 + $0x88] sm:$0xff]
        %v3137 = vld [vmem:[#allocation2 + $0x90] sm:$0xff]
        %v3138 = vld [vmem:[#allocation2 + $0x98] sm:$0xff]
        %v3139 = vld [vmem:[#allocation2 + $0xa0] sm:$0xff]
        %v3140 = vld [vmem:[#allocation2 + $0xa8] sm:$0xff]
        %v3141 = vld [vmem:[#allocation2 + $0xb0] sm:$0xff]
        %v3142 = vld [vmem:[#allocation2 + $0xb8] sm:$0xff]
        %v3143 = vld [vmem:[#allocation2 + $0xc0] sm:$0xff]
        %v3144 = vld [vmem:[#allocation2 + $0xc8] sm:$0xff]
        %v3145 = vld [vmem:[#allocation2 + $0xd0] sm:$0xff]
        %v3146 = vld [vmem:[#allocation2 + $0xd8] sm:$0xff]
        %v3147 = vld [vmem:[#allocation2 + $0xe0] sm:$0xff]
        %v3148 = vld [vmem:[#allocation2 + $0xe8] sm:$0xff]
        %v3149 = vld [vmem:[#allocation2 + $0xf0] sm:$0xff]
        %v3150 = vld [vmem:[#allocation2 + $0xf8] sm:$0xff]
        %v3151 = vld [vmem:[#allocation2 + $0x100] sm:$0xff]
        %v3152 = vld [vmem:[#allocation2 + $0x108] sm:$0xff]
        %v3153 = vld [vmem:[#allocation2 + $0x110] sm:$0xff]
        %v3154 = vld [vmem:[#allocation2 + $0x118] sm:$0xff]
        %v3155 = vld [vmem:[#allocation2 + $0x120] sm:$0xff]
        %v3156 = vpack.c.bf16 %v3125, %v3124
        %v3157 = vpack.c.bf16 %v3127, %v3126
        %v3158 = vpack.c.bf16 %v3129, %v3128
        %v3159 = vpack.c.bf16 %v3131, %v3130
        %v3160 = vpack.c.bf16 %v3133, %v3132
        %v3161 = vpack.c.bf16 %v3135, %v3134
        %v3162 = vpack.c.bf16 %v3137, %v3136
        %v3163 = vpack.c.bf16 %v3139, %v3138
        %v3164 = vpack.c.bf16 %v3141, %v3140
        %v3165 = vpack.c.bf16 %v3143, %v3142
        %v3166 = vpack.c.bf16 %v3145, %v3144
        %v3167 = vpack.c.bf16 %v3147, %v3146
        %v3168 = vpack.c.bf16 %v3149, %v3148
        %v3169 = vpack.c.bf16 %v3151, %v3150
        %v3170 = vpack.c.bf16 %v3153, %v3152
        %v3171 = vpack.c.bf16 %v3155, %v3154
        %s3172 = scalar_lea.vmem %s1, 14
        %v3173 = vld [vmem:[%s3172] sm:$0x3]
        %v3175 = vsel %vm417, %v3156, 0
        %v3178 = vsel %vm417, %v3157, 0
        %v3181 = vsel %vm417, %v3158, 0
        %v3184 = vsel %vm417, %v3159, 0
        %v3187 = vsel %vm417, %v3160, 0
        %v3190 = vsel %vm417, %v3161, 0
        %v3193 = vsel %vm417, %v3162, 0
        %v3196 = vsel %vm417, %v3163, 0
        %v3199 = vsel %vm417, %v3164, 0
        %v3202 = vsel %vm417, %v3165, 0
        %v3205 = vsel %vm417, %v3166, 0
        %v3208 = vsel %vm417, %v3167, 0
        %v3211 = vsel %vm417, %v3168, 0
        %v3214 = vsel %vm417, %v3169, 0
        %v3217 = vsel %vm417, %v3170, 0
        %v3220 = vsel %vm417, %v3171, 0
        %v3223 = vsel %vm1117, %v3173, 0
        %3225 = vmatprep.subr.bf16.mxu0 0
        %3226 = vmatpush1.bf16.msra.mxu0 0
        %3227 = vmatprep.subr.bf16.mxu0 0
        %3228 = vmatpush1.bf16.msra.mxu0 0
        %3229 = vmatprep.subr.bf16.mxu0 0
        %3230 = vmatpush1.bf16.msra.mxu0 0
        %3231 = vmatprep.subr.bf16.mxu0 0
        %3232 = vmatpush1.bf16.msra.mxu0 0
        %3233 = vmatprep.subr.bf16.mxu0 0
        %3234 = vmatpush1.bf16.msra.mxu0 0
        %3235 = vmatprep.subr.bf16.mxu0 0
        %3236 = vmatpush1.bf16.msra.mxu0 0
        %3237 = vmatprep.subr.bf16.mxu0 0
        %3238 = vmatpush1.bf16.msra.mxu0 0
        %3239 = vmatprep.subr.bf16.mxu0 0
        %3240 = vmatpush1.bf16.msra.mxu0 %v3223
        %3241 = vmatprep.subr.bf16.mxu0 0
        %3242 = vmatpush2.bf16.msra.mxu0 0
        %3243 = vmatprep.subr.bf16.mxu0 0
        %3244 = vmatpush2.bf16.msra.mxu0 0
        %3245 = vmatprep.subr.bf16.mxu0 0
        %3246 = vmatpush2.bf16.msra.mxu0 0
        %3247 = vmatprep.subr.bf16.mxu0 0
        %3248 = vmatpush2.bf16.msra.mxu0 0
        %3249 = vmatprep.subr.bf16.mxu0 0
        %3250 = vmatpush2.bf16.msra.mxu0 0
        %3251 = vmatprep.subr.bf16.mxu0 0
        %3252 = vmatpush2.bf16.msra.mxu0 0
        %3253 = vmatprep.subr.bf16.mxu0 0
        %3254 = vmatpush2.bf16.msra.mxu0 0
        %3255 = vmatprep.subr.bf16.mxu0 0
        %3256 = vmatpush2.bf16.msra.mxu0 0
        %3257 = vmatprep.mubr.bf16.mxu0 0
        %3258 = vmatmul.mubr.bf16.gmra.mxu0 %v3175
        %v3259 = vpop.f32.mrf.mxu0
        %v3260 = vadd.f32 0.0, %v3259
        %v3261 = vpop.f32.mrf.mxu0
        %v3262 = vpop.f32.mrf.mxu0
        %v3263 = vadd.f32 0.0, %v3262
        %v3264 = vpop.f32.mrf.mxu0
        %3265 = vmatprep.mubr.bf16.mxu0 0
        %3266 = vmatmul.mubr.bf16.gmra.mxu0 %v3178
        %v3267 = vpop.f32.mrf.mxu0
        %v3268 = vadd.f32 0.0, %v3267
        %v3269 = vpop.f32.mrf.mxu0
        %v3270 = vpop.f32.mrf.mxu0
        %v3271 = vadd.f32 0.0, %v3270
        %v3272 = vpop.f32.mrf.mxu0
        %3273 = vmatprep.mubr.bf16.mxu0 0
        %3274 = vmatmul.mubr.bf16.gmra.mxu0 %v3181
        %v3275 = vpop.f32.mrf.mxu0
        %v3276 = vadd.f32 0.0, %v3275
        %v3277 = vpop.f32.mrf.mxu0
        %v3278 = vpop.f32.mrf.mxu0
        %v3279 = vadd.f32 0.0, %v3278
        %v3280 = vpop.f32.mrf.mxu0
        %3281 = vmatprep.mubr.bf16.mxu0 0
        %3282 = vmatmul.mubr.bf16.gmra.mxu0 %v3184
        %v3283 = vpop.f32.mrf.mxu0
        %v3284 = vadd.f32 0.0, %v3283
        %v3285 = vpop.f32.mrf.mxu0
        %v3286 = vpop.f32.mrf.mxu0
        %v3287 = vadd.f32 0.0, %v3286
        %v3288 = vpop.f32.mrf.mxu0
        %3289 = vmatprep.mubr.bf16.mxu0 0
        %3290 = vmatmul.mubr.bf16.gmra.mxu0 %v3187
        %v3291 = vpop.f32.mrf.mxu0
        %v3292 = vadd.f32 0.0, %v3291
        %v3293 = vpop.f32.mrf.mxu0
        %v3294 = vpop.f32.mrf.mxu0
        %v3295 = vadd.f32 0.0, %v3294
        %v3296 = vpop.f32.mrf.mxu0
        %3297 = vmatprep.mubr.bf16.mxu0 0
        %3298 = vmatmul.mubr.bf16.gmra.mxu0 %v3190
        %v3299 = vpop.f32.mrf.mxu0
        %v3300 = vadd.f32 0.0, %v3299
        %v3301 = vpop.f32.mrf.mxu0
        %v3302 = vpop.f32.mrf.mxu0
        %v3303 = vadd.f32 0.0, %v3302
        %v3304 = vpop.f32.mrf.mxu0
        %3305 = vmatprep.mubr.bf16.mxu0 0
        %3306 = vmatmul.mubr.bf16.gmra.mxu0 %v3193
        %v3307 = vpop.f32.mrf.mxu0
        %v3308 = vadd.f32 0.0, %v3307
        %v3309 = vpop.f32.mrf.mxu0
        %v3310 = vpop.f32.mrf.mxu0
        %v3311 = vadd.f32 0.0, %v3310
        %v3312 = vpop.f32.mrf.mxu0
        %3313 = vmatprep.mubr.bf16.mxu0 0
        %3314 = vmatmul.mubr.bf16.gmra.mxu0 %v3196
        %v3315 = vpop.f32.mrf.mxu0
        %v3316 = vadd.f32 0.0, %v3315
        %v3317 = vpop.f32.mrf.mxu0
        %v3318 = vpop.f32.mrf.mxu0
        %v3319 = vadd.f32 0.0, %v3318
        %v3320 = vpop.f32.mrf.mxu0
        %3321 = vmatprep.mubr.bf16.mxu0 0
        %3322 = vmatmul.mubr.bf16.gmra.mxu0 %v3199
        %v3323 = vpop.f32.mrf.mxu0
        %v3324 = vadd.f32 0.0, %v3323
        %v3325 = vpop.f32.mrf.mxu0
        %v3326 = vpop.f32.mrf.mxu0
        %v3327 = vadd.f32 0.0, %v3326
        %v3328 = vpop.f32.mrf.mxu0
        %3329 = vmatprep.mubr.bf16.mxu0 0
        %3330 = vmatmul.mubr.bf16.gmra.mxu0 %v3202
        %v3331 = vpop.f32.mrf.mxu0
        %v3332 = vadd.f32 0.0, %v3331
        %v3333 = vpop.f32.mrf.mxu0
        %v3334 = vpop.f32.mrf.mxu0
        %v3335 = vadd.f32 0.0, %v3334
        %v3336 = vpop.f32.mrf.mxu0
        %3337 = vmatprep.mubr.bf16.mxu0 0
        %3338 = vmatmul.mubr.bf16.gmra.mxu0 %v3205
        %v3339 = vpop.f32.mrf.mxu0
        %v3340 = vadd.f32 0.0, %v3339
        %v3341 = vpop.f32.mrf.mxu0
        %v3342 = vpop.f32.mrf.mxu0
        %v3343 = vadd.f32 0.0, %v3342
        %v3344 = vpop.f32.mrf.mxu0
        %3345 = vmatprep.mubr.bf16.mxu0 0
        %3346 = vmatmul.mubr.bf16.gmra.mxu0 %v3208
        %v3347 = vpop.f32.mrf.mxu0
        %v3348 = vadd.f32 0.0, %v3347
        %v3349 = vpop.f32.mrf.mxu0
        %v3350 = vpop.f32.mrf.mxu0
        %v3351 = vadd.f32 0.0, %v3350
        %v3352 = vpop.f32.mrf.mxu0
        %3353 = vmatprep.mubr.bf16.mxu0 0
        %3354 = vmatmul.mubr.bf16.gmra.mxu0 %v3211
        %v3355 = vpop.f32.mrf.mxu0
        %v3356 = vadd.f32 0.0, %v3355
        %v3357 = vpop.f32.mrf.mxu0
        %v3358 = vpop.f32.mrf.mxu0
        %v3359 = vadd.f32 0.0, %v3358
        %v3360 = vpop.f32.mrf.mxu0
        %3361 = vmatprep.mubr.bf16.mxu0 0
        %3362 = vmatmul.mubr.bf16.gmra.mxu0 %v3214
        %v3363 = vpop.f32.mrf.mxu0
        %v3364 = vadd.f32 0.0, %v3363
        %v3365 = vpop.f32.mrf.mxu0
        %v3366 = vpop.f32.mrf.mxu0
        %v3367 = vadd.f32 0.0, %v3366
        %v3368 = vpop.f32.mrf.mxu0
        %3369 = vmatprep.mubr.bf16.mxu0 0
        %3370 = vmatmul.mubr.bf16.gmra.mxu0 %v3217
        %v3371 = vpop.f32.mrf.mxu0
        %v3372 = vadd.f32 0.0, %v3371
        %v3373 = vpop.f32.mrf.mxu0
        %v3374 = vpop.f32.mrf.mxu0
        %v3375 = vadd.f32 0.0, %v3374
        %v3376 = vpop.f32.mrf.mxu0
        %3377 = vmatprep.mubr.bf16.mxu0 0
        %3378 = vmatmul.mubr.bf16.gmra.mxu0 %v3220
        %v3379 = vpop.f32.mrf.mxu0
        %v3380 = vadd.f32 0.0, %v3379
        %v3381 = vpop.f32.mrf.mxu0
        %v3382 = vpop.f32.mrf.mxu0
        %v3383 = vadd.f32 0.0, %v3382
        %v3384 = vpop.f32.mrf.mxu0
        %3385 = vdwg.mxu0
        %v3386 = vadd.f32 %v3092, %v3260
        %v3387 = vadd.f32 %v3093, %v3263
        %v3388 = vadd.f32 %v3094, %v3268
        %v3389 = vadd.f32 %v3095, %v3271
        %v3390 = vadd.f32 %v3096, %v3276
        %v3391 = vadd.f32 %v3097, %v3279
        %v3392 = vadd.f32 %v3098, %v3284
        %v3393 = vadd.f32 %v3099, %v3287
        %v3394 = vadd.f32 %v3100, %v3292
        %v3395 = vadd.f32 %v3101, %v3295
        %v3396 = vadd.f32 %v3102, %v3300
        %v3397 = vadd.f32 %v3103, %v3303
        %v3398 = vadd.f32 %v3104, %v3308
        %v3399 = vadd.f32 %v3105, %v3311
        %v3400 = vadd.f32 %v3106, %v3316
        %v3401 = vadd.f32 %v3107, %v3319
        %v3402 = vadd.f32 %v3108, %v3324
        %v3403 = vadd.f32 %v3109, %v3327
        %v3404 = vadd.f32 %v3110, %v3332
        %v3405 = vadd.f32 %v3111, %v3335
        %v3406 = vadd.f32 %v3112, %v3340
        %v3407 = vadd.f32 %v3113, %v3343
        %v3408 = vadd.f32 %v3114, %v3348
        %v3409 = vadd.f32 %v3115, %v3351
        %v3410 = vadd.f32 %v3116, %v3356
        %v3411 = vadd.f32 %v3117, %v3359
        %v3412 = vadd.f32 %v3118, %v3364
        %v3413 = vadd.f32 %v3119, %v3367
        %v3414 = vadd.f32 %v3120, %v3372
        %v3415 = vadd.f32 %v3121, %v3375
        %v3416 = vadd.f32 %v3122, %v3380
        %v3417 = vadd.f32 %v3123, %v3383
        %v3418 = vld [vmem:[#allocation2 + $0x29] sm:$0xff]
        %v3419 = vld [vmem:[#allocation2 + $0x31] sm:$0xff]
        %v3420 = vld [vmem:[#allocation2 + $0x39] sm:$0xff]
        %v3421 = vld [vmem:[#allocation2 + $0x41] sm:$0xff]
        %v3422 = vld [vmem:[#allocation2 + $0x49] sm:$0xff]
        %v3423 = vld [vmem:[#allocation2 + $0x51] sm:$0xff]
        %v3424 = vld [vmem:[#allocation2 + $0x59] sm:$0xff]
        %v3425 = vld [vmem:[#allocation2 + $0x61] sm:$0xff]
        %v3426 = vld [vmem:[#allocation2 + $0x69] sm:$0xff]
        %v3427 = vld [vmem:[#allocation2 + $0x71] sm:$0xff]
        %v3428 = vld [vmem:[#allocation2 + $0x79] sm:$0xff]
        %v3429 = vld [vmem:[#allocation2 + $0x81] sm:$0xff]
        %v3430 = vld [vmem:[#allocation2 + $0x89] sm:$0xff]
        %v3431 = vld [vmem:[#allocation2 + $0x91] sm:$0xff]
        %v3432 = vld [vmem:[#allocation2 + $0x99] sm:$0xff]
        %v3433 = vld [vmem:[#allocation2 + $0xa1] sm:$0xff]
        %v3434 = vld [vmem:[#allocation2 + $0xa9] sm:$0xff]
        %v3435 = vld [vmem:[#allocation2 + $0xb1] sm:$0xff]
        %v3436 = vld [vmem:[#allocation2 + $0xb9] sm:$0xff]
        %v3437 = vld [vmem:[#allocation2 + $0xc1] sm:$0xff]
        %v3438 = vld [vmem:[#allocation2 + $0xc9] sm:$0xff]
        %v3439 = vld [vmem:[#allocation2 + $0xd1] sm:$0xff]
        %v3440 = vld [vmem:[#allocation2 + $0xd9] sm:$0xff]
        %v3441 = vld [vmem:[#allocation2 + $0xe1] sm:$0xff]
        %v3442 = vld [vmem:[#allocation2 + $0xe9] sm:$0xff]
        %v3443 = vld [vmem:[#allocation2 + $0xf1] sm:$0xff]
        %v3444 = vld [vmem:[#allocation2 + $0xf9] sm:$0xff]
        %v3445 = vld [vmem:[#allocation2 + $0x101] sm:$0xff]
        %v3446 = vld [vmem:[#allocation2 + $0x109] sm:$0xff]
        %v3447 = vld [vmem:[#allocation2 + $0x111] sm:$0xff]
        %v3448 = vld [vmem:[#allocation2 + $0x119] sm:$0xff]
        %v3449 = vld [vmem:[#allocation2 + $0x121] sm:$0xff]
        %v3450 = vsel %vm1526, %v3418, 0.0
        %v3451 = vsel %vm1527, %v3419, 0.0
        %v3452 = vsel %vm1528, %v3420, 0.0
        %v3453 = vsel %vm1529, %v3421, 0.0
        %v3454 = vsel %vm1530, %v3422, 0.0
        %v3455 = vsel %vm1531, %v3423, 0.0
        %v3456 = vsel %vm1532, %v3424, 0.0
        %v3457 = vsel %vm1533, %v3425, 0.0
        %v3458 = vsel %vm1534, %v3426, 0.0
        %v3459 = vsel %vm1535, %v3427, 0.0
        %v3460 = vsel %vm1536, %v3428, 0.0
        %v3461 = vsel %vm1537, %v3429, 0.0
        %v3462 = vsel %vm1538, %v3430, 0.0
        %v3463 = vsel %vm1539, %v3431, 0.0
        %v3464 = vsel %vm1540, %v3432, 0.0
        %v3465 = vsel %vm1541, %v3433, 0.0
        %v3466 = vsel %vm1542, %v3434, 0.0
        %v3467 = vsel %vm1543, %v3435, 0.0
        %v3468 = vsel %vm1544, %v3436, 0.0
        %v3469 = vsel %vm1545, %v3437, 0.0
        %v3470 = vsel %vm1546, %v3438, 0.0
        %v3471 = vsel %vm1547, %v3439, 0.0
        %v3472 = vsel %vm1548, %v3440, 0.0
        %v3473 = vsel %vm1549, %v3441, 0.0
        %v3474 = vsel %vm1550, %v3442, 0.0
        %v3475 = vsel %vm1551, %v3443, 0.0
        %v3476 = vsel %vm1552, %v3444, 0.0
        %v3477 = vsel %vm1553, %v3445, 0.0
        %v3478 = vsel %vm1554, %v3446, 0.0
        %v3479 = vsel %vm1555, %v3447, 0.0
        %v3480 = vsel %vm1556, %v3448, 0.0
        %v3481 = vsel %vm1557, %v3449, 0.0
        %v3482 = vpack.c.bf16 %v3451, %v3450
        %v3483 = vpack.c.bf16 %v3453, %v3452
        %v3484 = vpack.c.bf16 %v3455, %v3454
        %v3485 = vpack.c.bf16 %v3457, %v3456
        %v3486 = vpack.c.bf16 %v3459, %v3458
        %v3487 = vpack.c.bf16 %v3461, %v3460
        %v3488 = vpack.c.bf16 %v3463, %v3462
        %v3489 = vpack.c.bf16 %v3465, %v3464
        %v3490 = vpack.c.bf16 %v3467, %v3466
        %v3491 = vpack.c.bf16 %v3469, %v3468
        %v3492 = vpack.c.bf16 %v3471, %v3470
        %v3493 = vpack.c.bf16 %v3473, %v3472
        %v3494 = vpack.c.bf16 %v3475, %v3474
        %v3495 = vpack.c.bf16 %v3477, %v3476
        %v3496 = vpack.c.bf16 %v3479, %v3478
        %v3497 = vpack.c.bf16 %v3481, %v3480
        %s3498 = scalar_lea.vmem %s1, 16
        %v3499 = vld [vmem:[%s3498] sm:$0x3]
        %v3501 = vsel %vm417, %v3482, 0
        %v3504 = vsel %vm417, %v3483, 0
        %v3507 = vsel %vm417, %v3484, 0
        %v3510 = vsel %vm417, %v3485, 0
        %v3513 = vsel %vm417, %v3486, 0
        %v3516 = vsel %vm417, %v3487, 0
        %v3519 = vsel %vm417, %v3488, 0
        %v3522 = vsel %vm417, %v3489, 0
        %v3525 = vsel %vm417, %v3490, 0
        %v3528 = vsel %vm417, %v3491, 0
        %v3531 = vsel %vm417, %v3492, 0
        %v3534 = vsel %vm417, %v3493, 0
        %v3537 = vsel %vm417, %v3494, 0
        %v3540 = vsel %vm417, %v3495, 0
        %v3543 = vsel %vm417, %v3496, 0
        %v3546 = vsel %vm417, %v3497, 0
        %v3549 = vsel %vm1117, %v3499, 0
        %3551 = vmatprep.subr.bf16.mxu0 0
        %3552 = vmatpush1.bf16.msra.mxu0 0
        %3553 = vmatprep.subr.bf16.mxu0 0
        %3554 = vmatpush1.bf16.msra.mxu0 0
        %3555 = vmatprep.subr.bf16.mxu0 0
        %3556 = vmatpush1.bf16.msra.mxu0 0
        %3557 = vmatprep.subr.bf16.mxu0 0
        %3558 = vmatpush1.bf16.msra.mxu0 0
        %3559 = vmatprep.subr.bf16.mxu0 0
        %3560 = vmatpush1.bf16.msra.mxu0 0
        %3561 = vmatprep.subr.bf16.mxu0 0
        %3562 = vmatpush1.bf16.msra.mxu0 0
        %3563 = vmatprep.subr.bf16.mxu0 0
        %3564 = vmatpush1.bf16.msra.mxu0 0
        %3565 = vmatprep.subr.bf16.mxu0 0
        %3566 = vmatpush1.bf16.msra.mxu0 %v3549
        %3567 = vmatprep.subr.bf16.mxu0 0
        %3568 = vmatpush2.bf16.msra.mxu0 0
        %3569 = vmatprep.subr.bf16.mxu0 0
        %3570 = vmatpush2.bf16.msra.mxu0 0
        %3571 = vmatprep.subr.bf16.mxu0 0
        %3572 = vmatpush2.bf16.msra.mxu0 0
        %3573 = vmatprep.subr.bf16.mxu0 0
        %3574 = vmatpush2.bf16.msra.mxu0 0
        %3575 = vmatprep.subr.bf16.mxu0 0
        %3576 = vmatpush2.bf16.msra.mxu0 0
        %3577 = vmatprep.subr.bf16.mxu0 0
        %3578 = vmatpush2.bf16.msra.mxu0 0
        %3579 = vmatprep.subr.bf16.mxu0 0
        %3580 = vmatpush2.bf16.msra.mxu0 0
        %3581 = vmatprep.subr.bf16.mxu0 0
        %3582 = vmatpush2.bf16.msra.mxu0 0
        %3583 = vmatprep.mubr.bf16.mxu0 0
        %3584 = vmatmul.mubr.bf16.gmra.mxu0 %v3501
        %v3585 = vpop.f32.mrf.mxu0
        %v3586 = vadd.f32 0.0, %v3585
        %v3587 = vpop.f32.mrf.mxu0
        %v3588 = vpop.f32.mrf.mxu0
        %v3589 = vadd.f32 0.0, %v3588
        %v3590 = vpop.f32.mrf.mxu0
        %3591 = vmatprep.mubr.bf16.mxu0 0
        %3592 = vmatmul.mubr.bf16.gmra.mxu0 %v3504
        %v3593 = vpop.f32.mrf.mxu0
        %v3594 = vadd.f32 0.0, %v3593
        %v3595 = vpop.f32.mrf.mxu0
        %v3596 = vpop.f32.mrf.mxu0
        %v3597 = vadd.f32 0.0, %v3596
        %v3598 = vpop.f32.mrf.mxu0
        %3599 = vmatprep.mubr.bf16.mxu0 0
        %3600 = vmatmul.mubr.bf16.gmra.mxu0 %v3507
        %v3601 = vpop.f32.mrf.mxu0
        %v3602 = vadd.f32 0.0, %v3601
        %v3603 = vpop.f32.mrf.mxu0
        %v3604 = vpop.f32.mrf.mxu0
        %v3605 = vadd.f32 0.0, %v3604
        %v3606 = vpop.f32.mrf.mxu0
        %3607 = vmatprep.mubr.bf16.mxu0 0
        %3608 = vmatmul.mubr.bf16.gmra.mxu0 %v3510
        %v3609 = vpop.f32.mrf.mxu0
        %v3610 = vadd.f32 0.0, %v3609
        %v3611 = vpop.f32.mrf.mxu0
        %v3612 = vpop.f32.mrf.mxu0
        %v3613 = vadd.f32 0.0, %v3612
        %v3614 = vpop.f32.mrf.mxu0
        %3615 = vmatprep.mubr.bf16.mxu0 0
        %3616 = vmatmul.mubr.bf16.gmra.mxu0 %v3513
        %v3617 = vpop.f32.mrf.mxu0
        %v3618 = vadd.f32 0.0, %v3617
        %v3619 = vpop.f32.mrf.mxu0
        %v3620 = vpop.f32.mrf.mxu0
        %v3621 = vadd.f32 0.0, %v3620
        %v3622 = vpop.f32.mrf.mxu0
        %3623 = vmatprep.mubr.bf16.mxu0 0
        %3624 = vmatmul.mubr.bf16.gmra.mxu0 %v3516
        %v3625 = vpop.f32.mrf.mxu0
        %v3626 = vadd.f32 0.0, %v3625
        %v3627 = vpop.f32.mrf.mxu0
        %v3628 = vpop.f32.mrf.mxu0
        %v3629 = vadd.f32 0.0, %v3628
        %v3630 = vpop.f32.mrf.mxu0
        %3631 = vmatprep.mubr.bf16.mxu0 0
        %3632 = vmatmul.mubr.bf16.gmra.mxu0 %v3519
        %v3633 = vpop.f32.mrf.mxu0
        %v3634 = vadd.f32 0.0, %v3633
        %v3635 = vpop.f32.mrf.mxu0
        %v3636 = vpop.f32.mrf.mxu0
        %v3637 = vadd.f32 0.0, %v3636
        %v3638 = vpop.f32.mrf.mxu0
        %3639 = vmatprep.mubr.bf16.mxu0 0
        %3640 = vmatmul.mubr.bf16.gmra.mxu0 %v3522
        %v3641 = vpop.f32.mrf.mxu0
        %v3642 = vadd.f32 0.0, %v3641
        %v3643 = vpop.f32.mrf.mxu0
        %v3644 = vpop.f32.mrf.mxu0
        %v3645 = vadd.f32 0.0, %v3644
        %v3646 = vpop.f32.mrf.mxu0
        %3647 = vmatprep.mubr.bf16.mxu0 0
        %3648 = vmatmul.mubr.bf16.gmra.mxu0 %v3525
        %v3649 = vpop.f32.mrf.mxu0
        %v3650 = vadd.f32 0.0, %v3649
        %v3651 = vpop.f32.mrf.mxu0
        %v3652 = vpop.f32.mrf.mxu0
        %v3653 = vadd.f32 0.0, %v3652
        %v3654 = vpop.f32.mrf.mxu0
        %3655 = vmatprep.mubr.bf16.mxu0 0
        %3656 = vmatmul.mubr.bf16.gmra.mxu0 %v3528
        %v3657 = vpop.f32.mrf.mxu0
        %v3658 = vadd.f32 0.0, %v3657
        %v3659 = vpop.f32.mrf.mxu0
        %v3660 = vpop.f32.mrf.mxu0
        %v3661 = vadd.f32 0.0, %v3660
        %v3662 = vpop.f32.mrf.mxu0
        %3663 = vmatprep.mubr.bf16.mxu0 0
        %3664 = vmatmul.mubr.bf16.gmra.mxu0 %v3531
        %v3665 = vpop.f32.mrf.mxu0
        %v3666 = vadd.f32 0.0, %v3665
        %v3667 = vpop.f32.mrf.mxu0
        %v3668 = vpop.f32.mrf.mxu0
        %v3669 = vadd.f32 0.0, %v3668
        %v3670 = vpop.f32.mrf.mxu0
        %3671 = vmatprep.mubr.bf16.mxu0 0
        %3672 = vmatmul.mubr.bf16.gmra.mxu0 %v3534
        %v3673 = vpop.f32.mrf.mxu0
        %v3674 = vadd.f32 0.0, %v3673
        %v3675 = vpop.f32.mrf.mxu0
        %v3676 = vpop.f32.mrf.mxu0
        %v3677 = vadd.f32 0.0, %v3676
        %v3678 = vpop.f32.mrf.mxu0
        %3679 = vmatprep.mubr.bf16.mxu0 0
        %3680 = vmatmul.mubr.bf16.gmra.mxu0 %v3537
        %v3681 = vpop.f32.mrf.mxu0
        %v3682 = vadd.f32 0.0, %v3681
        %v3683 = vpop.f32.mrf.mxu0
        %v3684 = vpop.f32.mrf.mxu0
        %v3685 = vadd.f32 0.0, %v3684
        %v3686 = vpop.f32.mrf.mxu0
        %3687 = vmatprep.mubr.bf16.mxu0 0
        %3688 = vmatmul.mubr.bf16.gmra.mxu0 %v3540
        %v3689 = vpop.f32.mrf.mxu0
        %v3690 = vadd.f32 0.0, %v3689
        %v3691 = vpop.f32.mrf.mxu0
        %v3692 = vpop.f32.mrf.mxu0
        %v3693 = vadd.f32 0.0, %v3692
        %v3694 = vpop.f32.mrf.mxu0
        %3695 = vmatprep.mubr.bf16.mxu0 0
        %3696 = vmatmul.mubr.bf16.gmra.mxu0 %v3543
        %v3697 = vpop.f32.mrf.mxu0
        %v3698 = vadd.f32 0.0, %v3697
        %v3699 = vpop.f32.mrf.mxu0
        %v3700 = vpop.f32.mrf.mxu0
        %v3701 = vadd.f32 0.0, %v3700
        %v3702 = vpop.f32.mrf.mxu0
        %3703 = vmatprep.mubr.bf16.mxu0 0
        %3704 = vmatmul.mubr.bf16.gmra.mxu0 %v3546
        %v3705 = vpop.f32.mrf.mxu0
        %v3706 = vadd.f32 0.0, %v3705
        %v3707 = vpop.f32.mrf.mxu0
        %v3708 = vpop.f32.mrf.mxu0
        %v3709 = vadd.f32 0.0, %v3708
        %v3710 = vpop.f32.mrf.mxu0
        %3711 = vdwg.mxu0
        %v3712 = vadd.f32 %v3386, %v3586
        %v3713 = vadd.f32 %v3387, %v3589
        %v3714 = vadd.f32 %v3388, %v3594
        %v3715 = vadd.f32 %v3389, %v3597
        %v3716 = vadd.f32 %v3390, %v3602
        %v3717 = vadd.f32 %v3391, %v3605
        %v3718 = vadd.f32 %v3392, %v3610
        %v3719 = vadd.f32 %v3393, %v3613
        %v3720 = vadd.f32 %v3394, %v3618
        %v3721 = vadd.f32 %v3395, %v3621
        %v3722 = vadd.f32 %v3396, %v3626
        %v3723 = vadd.f32 %v3397, %v3629
        %v3724 = vadd.f32 %v3398, %v3634
        %v3725 = vadd.f32 %v3399, %v3637
        %v3726 = vadd.f32 %v3400, %v3642
        %v3727 = vadd.f32 %v3401, %v3645
        %v3728 = vadd.f32 %v3402, %v3650
        %v3729 = vadd.f32 %v3403, %v3653
        %v3730 = vadd.f32 %v3404, %v3658
        %v3731 = vadd.f32 %v3405, %v3661
        %v3732 = vadd.f32 %v3406, %v3666
        %v3733 = vadd.f32 %v3407, %v3669
        %v3734 = vadd.f32 %v3408, %v3674
        %v3735 = vadd.f32 %v3409, %v3677
        %v3736 = vadd.f32 %v3410, %v3682
        %v3737 = vadd.f32 %v3411, %v3685
        %v3738 = vadd.f32 %v3412, %v3690
        %v3739 = vadd.f32 %v3413, %v3693
        %v3740 = vadd.f32 %v3414, %v3698
        %v3741 = vadd.f32 %v3415, %v3701
        %v3742 = vadd.f32 %v3416, %v3706
        %v3743 = vadd.f32 %v3417, %v3709
        %v3744 = vld [vmem:[%s2] sm:$0x1]
        %v3746 = vlaneseq
        %v3747 = vshrl.u32 %v3746, 7
        %v3748 = vsub.s32 0, %v3747
        %v3749 = vrot.slane %v3744, %v3748
        %v3751 = vadd.f32 %v3712, %v3749
        %v3752 = vadd.f32 %v3713, %v3749
        %v3753 = vadd.f32 %v3714, %v3749
        %v3754 = vadd.f32 %v3715, %v3749
        %v3755 = vadd.f32 %v3716, %v3749
        %v3756 = vadd.f32 %v3717, %v3749
        %v3757 = vadd.f32 %v3718, %v3749
        %v3758 = vadd.f32 %v3719, %v3749
        %v3759 = vadd.f32 %v3720, %v3749
        %v3760 = vadd.f32 %v3721, %v3749
        %v3761 = vadd.f32 %v3722, %v3749
        %v3762 = vadd.f32 %v3723, %v3749
        %v3763 = vadd.f32 %v3724, %v3749
        %v3764 = vadd.f32 %v3725, %v3749
        %v3765 = vadd.f32 %v3726, %v3749
        %v3766 = vadd.f32 %v3727, %v3749
        %v3767 = vadd.f32 %v3728, %v3749
        %v3768 = vadd.f32 %v3729, %v3749
        %v3769 = vadd.f32 %v3730, %v3749
        %v3770 = vadd.f32 %v3731, %v3749
        %v3771 = vadd.f32 %v3732, %v3749
        %v3772 = vadd.f32 %v3733, %v3749
        %v3773 = vadd.f32 %v3734, %v3749
        %v3774 = vadd.f32 %v3735, %v3749
        %v3775 = vadd.f32 %v3736, %v3749
        %v3776 = vadd.f32 %v3737, %v3749
        %v3777 = vadd.f32 %v3738, %v3749
        %v3778 = vadd.f32 %v3739, %v3749
        %v3779 = vadd.f32 %v3740, %v3749
        %v3780 = vadd.f32 %v3741, %v3749
        %v3781 = vadd.f32 %v3742, %v3749
        %v3782 = vadd.f32 %v3743, %v3749
        %v3783 = vmax.f32 %v3751, 0.0
        %v3784 = vmax.f32 %v3752, 0.0
        %v3785 = vmax.f32 %v3753, 0.0
        %v3786 = vmax.f32 %v3754, 0.0
        %v3787 = vmax.f32 %v3755, 0.0
        %v3788 = vmax.f32 %v3756, 0.0
        %v3789 = vmax.f32 %v3757, 0.0
        %v3790 = vmax.f32 %v3758, 0.0
        %v3791 = vmax.f32 %v3759, 0.0
        %v3792 = vmax.f32 %v3760, 0.0
        %v3793 = vmax.f32 %v3761, 0.0
        %v3794 = vmax.f32 %v3762, 0.0
        %v3795 = vmax.f32 %v3763, 0.0
        %v3796 = vmax.f32 %v3764, 0.0
        %v3797 = vmax.f32 %v3765, 0.0
        %v3798 = vmax.f32 %v3766, 0.0
        %v3799 = vmax.f32 %v3767, 0.0
        %v3800 = vmax.f32 %v3768, 0.0
        %v3801 = vmax.f32 %v3769, 0.0
        %v3802 = vmax.f32 %v3770, 0.0
        %v3803 = vmax.f32 %v3771, 0.0
        %v3804 = vmax.f32 %v3772, 0.0
        %v3805 = vmax.f32 %v3773, 0.0
        %v3806 = vmax.f32 %v3774, 0.0
        %v3807 = vmax.f32 %v3775, 0.0
        %v3808 = vmax.f32 %v3776, 0.0
        %v3809 = vmax.f32 %v3777, 0.0
        %v3810 = vmax.f32 %v3778, 0.0
        %v3811 = vmax.f32 %v3779, 0.0
        %v3812 = vmax.f32 %v3780, 0.0
        %v3813 = vmax.f32 %v3781, 0.0
        %v3814 = vmax.f32 %v3782, 0.0
        %vm3815 = vcmask 130048
        %3816 = vst.msk [vmem:[#allocation3] sm:$0xff] %vm3815, 0.0
        %3817 = vst.msk [vmem:[#allocation3 + $0x8] sm:$0xff] %vm3815, 0.0
        %3818 = vst.msk [vmem:[#allocation3 + $0x10] sm:$0xff] %vm3815, 0.0
        %3819 = vst.msk [vmem:[#allocation3 + $0x18] sm:$0xff] %vm3815, 0.0
        %3820 = vst.msk [vmem:[#allocation3 + $0x20] sm:$0xff] %vm3815, 0.0
        %3821 = vst.msk [vmem:[#allocation3 + $0x28] sm:$0xff] %vm3815, 0.0
        %3822 = vst.msk [vmem:[#allocation3 + $0x30] sm:$0xff] %vm3815, 0.0
        %3823 = vst.msk [vmem:[#allocation3 + $0x38] sm:$0xff] %vm3815, 0.0
        %3824 = vst.msk [vmem:[#allocation3 + $0x40] sm:$0xff] %vm3815, 0.0
        %3825 = vst.msk [vmem:[#allocation3 + $0x48] sm:$0xff] %vm3815, 0.0
        %3826 = vst.msk [vmem:[#allocation3 + $0x50] sm:$0xff] %vm3815, 0.0
        %3827 = vst.msk [vmem:[#allocation3 + $0x58] sm:$0xff] %vm3815, 0.0
        %3828 = vst.msk [vmem:[#allocation3 + $0x60] sm:$0xff] %vm3815, 0.0
        %3829 = vst.msk [vmem:[#allocation3 + $0x68] sm:$0xff] %vm3815, 0.0
        %3830 = vst.msk [vmem:[#allocation3 + $0x70] sm:$0xff] %vm3815, 0.0
        %3831 = vst.msk [vmem:[#allocation3 + $0x78] sm:$0xff] %vm3815, 0.0
        %3832 = vst.msk [vmem:[#allocation3 + $0x80] sm:$0xff] %vm3815, 0.0
        %3833 = vst.msk [vmem:[#allocation3 + $0x88] sm:$0xff] %vm3815, 0.0
        %3834 = vst.msk [vmem:[#allocation3 + $0x90] sm:$0xff] %vm3815, 0.0
        %3835 = vst.msk [vmem:[#allocation3 + $0x98] sm:$0xff] %vm3815, 0.0
        %3836 = vst.msk [vmem:[#allocation3 + $0xa0] sm:$0xff] %vm3815, 0.0
        %3837 = vst.msk [vmem:[#allocation3 + $0xa8] sm:$0xff] %vm3815, 0.0
        %3838 = vst.msk [vmem:[#allocation3 + $0xb0] sm:$0xff] %vm3815, 0.0
        %3839 = vst.msk [vmem:[#allocation3 + $0xb8] sm:$0xff] %vm3815, 0.0
        %3840 = vst.msk [vmem:[#allocation3 + $0xc0] sm:$0xff] %vm3815, 0.0
        %3841 = vst.msk [vmem:[#allocation3 + $0xc8] sm:$0xff] %vm3815, 0.0
        %3842 = vst.msk [vmem:[#allocation3 + $0xd0] sm:$0xff] %vm3815, 0.0
        %3843 = vst.msk [vmem:[#allocation3 + $0xd8] sm:$0xff] %vm3815, 0.0
        %3844 = vst.msk [vmem:[#allocation3 + $0xe0] sm:$0xff] %vm3815, 0.0
        %3845 = vst.msk [vmem:[#allocation3 + $0xe8] sm:$0xff] %vm3815, 0.0
        %3846 = vst.msk [vmem:[#allocation3 + $0xf0] sm:$0xff] %vm3815, 0.0
        %3847 = vst.msk [vmem:[#allocation3 + $0xf8] sm:$0xff] %vm3815, 0.0
        %3848 = vst.msk [vmem:[#allocation3 + $0x100] sm:$0xff] %vm3815, 0.0
        %3849 = vst.msk [vmem:[#allocation3 + $0x108] sm:$0xff] %vm3815, 0.0
        %vm3850 = vcmask 122880
        %3851 = vst.msk [vmem:[#allocation3 + $0x110] sm:$0x1] %vm3850, 0.0
        %3852 = vst.msk [vmem:[#allocation3] sm:$0xff] %vm3815, %v3783
        %3853 = vst.msk [vmem:[#allocation3 + $0x8] sm:$0xff] %vm3815, %v3784
        %3854 = vst.msk [vmem:[#allocation3 + $0x10] sm:$0xff] %vm3815, %v3785
        %3855 = vst.msk [vmem:[#allocation3 + $0x18] sm:$0xff] %vm3815, %v3786
        %3856 = vst.msk [vmem:[#allocation3 + $0x20] sm:$0xff] %vm3815, %v3787
        %3857 = vst.msk [vmem:[#allocation3 + $0x28] sm:$0xff] %vm3815, %v3788
        %3858 = vst.msk [vmem:[#allocation3 + $0x30] sm:$0xff] %vm3815, %v3789
        %3859 = vst.msk [vmem:[#allocation3 + $0x38] sm:$0xff] %vm3815, %v3790
        %3860 = vst.msk [vmem:[#allocation3 + $0x40] sm:$0xff] %vm3815, %v3791
        %3861 = vst.msk [vmem:[#allocation3 + $0x48] sm:$0xff] %vm3815, %v3792
        %3862 = vst.msk [vmem:[#allocation3 + $0x50] sm:$0xff] %vm3815, %v3793
        %3863 = vst.msk [vmem:[#allocation3 + $0x58] sm:$0xff] %vm3815, %v3794
        %3864 = vst.msk [vmem:[#allocation3 + $0x60] sm:$0xff] %vm3815, %v3795
        %3865 = vst.msk [vmem:[#allocation3 + $0x68] sm:$0xff] %vm3815, %v3796
        %3866 = vst.msk [vmem:[#allocation3 + $0x70] sm:$0xff] %vm3815, %v3797
        %3867 = vst.msk [vmem:[#allocation3 + $0x78] sm:$0xff] %vm3815, %v3798
        %3868 = vst.msk [vmem:[#allocation3 + $0x80] sm:$0xff] %vm3815, %v3799
        %3869 = vst.msk [vmem:[#allocation3 + $0x88] sm:$0xff] %vm3815, %v3800
        %3870 = vst.msk [vmem:[#allocation3 + $0x90] sm:$0xff] %vm3815, %v3801
        %3871 = vst.msk [vmem:[#allocation3 + $0x98] sm:$0xff] %vm3815, %v3802
        %3872 = vst.msk [vmem:[#allocation3 + $0xa0] sm:$0xff] %vm3815, %v3803
        %3873 = vst.msk [vmem:[#allocation3 + $0xa8] sm:$0xff] %vm3815, %v3804
        %3874 = vst.msk [vmem:[#allocation3 + $0xb0] sm:$0xff] %vm3815, %v3805
        %3875 = vst.msk [vmem:[#allocation3 + $0xb8] sm:$0xff] %vm3815, %v3806
        %3876 = vst.msk [vmem:[#allocation3 + $0xc0] sm:$0xff] %vm3815, %v3807
        %3877 = vst.msk [vmem:[#allocation3 + $0xc8] sm:$0xff] %vm3815, %v3808
        %3878 = vst.msk [vmem:[#allocation3 + $0xd0] sm:$0xff] %vm3815, %v3809
        %3879 = vst.msk [vmem:[#allocation3 + $0xd8] sm:$0xff] %vm3815, %v3810
        %3880 = vst.msk [vmem:[#allocation3 + $0xe0] sm:$0xff] %vm3815, %v3811
        %3881 = vst.msk [vmem:[#allocation3 + $0xe8] sm:$0xff] %vm3815, %v3812
        %3882 = vst.msk [vmem:[#allocation3 + $0xf0] sm:$0xff] %vm3815, %v3813
        %3883 = vst.msk [vmem:[#allocation3 + $0xf8] sm:$0xff] %vm3815, %v3814
        %v3884 = vld [vmem:[#allocation3] sm:$0xff]
        %v3885 = vld [vmem:[#allocation3 + $0x8] sm:$0xff]
        %v3886 = vld [vmem:[#allocation3 + $0x10] sm:$0xff]
        %v3887 = vld [vmem:[#allocation3 + $0x18] sm:$0xff]
        %v3888 = vld [vmem:[#allocation3 + $0x20] sm:$0xff]
        %v3889 = vld [vmem:[#allocation3 + $0x28] sm:$0xff]
        %v3890 = vld [vmem:[#allocation3 + $0x30] sm:$0xff]
        %v3891 = vld [vmem:[#allocation3 + $0x38] sm:$0xff]
        %v3892 = vld [vmem:[#allocation3 + $0x40] sm:$0xff]
        %v3893 = vld [vmem:[#allocation3 + $0x48] sm:$0xff]
        %v3894 = vld [vmem:[#allocation3 + $0x50] sm:$0xff]
        %v3895 = vld [vmem:[#allocation3 + $0x58] sm:$0xff]
        %v3896 = vld [vmem:[#allocation3 + $0x60] sm:$0xff]
        %v3897 = vld [vmem:[#allocation3 + $0x68] sm:$0xff]
        %v3898 = vld [vmem:[#allocation3 + $0x70] sm:$0xff]
        %v3899 = vld [vmem:[#allocation3 + $0x78] sm:$0xff]
        %v3900 = vld [vmem:[#allocation3 + $0x80] sm:$0xff]
        %v3901 = vld [vmem:[#allocation3 + $0x88] sm:$0xff]
        %v3902 = vld [vmem:[#allocation3 + $0x90] sm:$0xff]
        %v3903 = vld [vmem:[#allocation3 + $0x98] sm:$0xff]
        %v3904 = vld [vmem:[#allocation3 + $0xa0] sm:$0xff]
        %v3905 = vld [vmem:[#allocation3 + $0xa8] sm:$0xff]
        %v3906 = vld [vmem:[#allocation3 + $0xb0] sm:$0xff]
        %v3907 = vld [vmem:[#allocation3 + $0xb8] sm:$0xff]
        %v3908 = vld [vmem:[#allocation3 + $0xc0] sm:$0xff]
        %v3909 = vld [vmem:[#allocation3 + $0xc8] sm:$0xff]
        %v3910 = vld [vmem:[#allocation3 + $0xd0] sm:$0xff]
        %v3911 = vld [vmem:[#allocation3 + $0xd8] sm:$0xff]
        %v3912 = vld [vmem:[#allocation3 + $0xe0] sm:$0xff]
        %v3913 = vld [vmem:[#allocation3 + $0xe8] sm:$0xff]
        %v3914 = vld [vmem:[#allocation3 + $0xf0] sm:$0xff]
        %v3915 = vld [vmem:[#allocation3 + $0xf8] sm:$0xff]
        %v3916 = vld [vmem:[#allocation3 + $0x1] sm:$0xff]
        %v3917 = vld [vmem:[#allocation3 + $0x9] sm:$0xff]
        %v3918 = vld [vmem:[#allocation3 + $0x11] sm:$0xff]
        %v3919 = vld [vmem:[#allocation3 + $0x19] sm:$0xff]
        %v3920 = vld [vmem:[#allocation3 + $0x21] sm:$0xff]
        %v3921 = vld [vmem:[#allocation3 + $0x29] sm:$0xff]
        %v3922 = vld [vmem:[#allocation3 + $0x31] sm:$0xff]
        %v3923 = vld [vmem:[#allocation3 + $0x39] sm:$0xff]
        %v3924 = vld [vmem:[#allocation3 + $0x41] sm:$0xff]
        %v3925 = vld [vmem:[#allocation3 + $0x49] sm:$0xff]
        %v3926 = vld [vmem:[#allocation3 + $0x51] sm:$0xff]
        %v3927 = vld [vmem:[#allocation3 + $0x59] sm:$0xff]
        %v3928 = vld [vmem:[#allocation3 + $0x61] sm:$0xff]
        %v3929 = vld [vmem:[#allocation3 + $0x69] sm:$0xff]
        %v3930 = vld [vmem:[#allocation3 + $0x71] sm:$0xff]
        %v3931 = vld [vmem:[#allocation3 + $0x79] sm:$0xff]
        %v3932 = vld [vmem:[#allocation3 + $0x81] sm:$0xff]
        %v3933 = vld [vmem:[#allocation3 + $0x89] sm:$0xff]
        %v3934 = vld [vmem:[#allocation3 + $0x91] sm:$0xff]
        %v3935 = vld [vmem:[#allocation3 + $0x99] sm:$0xff]
        %v3936 = vld [vmem:[#allocation3 + $0xa1] sm:$0xff]
        %v3937 = vld [vmem:[#allocation3 + $0xa9] sm:$0xff]
        %v3938 = vld [vmem:[#allocation3 + $0xb1] sm:$0xff]
        %v3939 = vld [vmem:[#allocation3 + $0xb9] sm:$0xff]
        %v3940 = vld [vmem:[#allocation3 + $0xc1] sm:$0xff]
        %v3941 = vld [vmem:[#allocation3 + $0xc9] sm:$0xff]
        %v3942 = vld [vmem:[#allocation3 + $0xd1] sm:$0xff]
        %v3943 = vld [vmem:[#allocation3 + $0xd9] sm:$0xff]
        %v3944 = vld [vmem:[#allocation3 + $0xe1] sm:$0xff]
        %v3945 = vld [vmem:[#allocation3 + $0xe9] sm:$0xff]
        %v3946 = vld [vmem:[#allocation3 + $0xf1] sm:$0xff]
        %v3947 = vld [vmem:[#allocation3 + $0xf9] sm:$0xff]
        %v3948 = vmax.f32 %v3884, %v3916
        %v3949 = vmax.f32 %v3885, %v3917
        %v3950 = vmax.f32 %v3886, %v3918
        %v3951 = vmax.f32 %v3887, %v3919
        %v3952 = vmax.f32 %v3888, %v3920
        %v3953 = vmax.f32 %v3889, %v3921
        %v3954 = vmax.f32 %v3890, %v3922
        %v3955 = vmax.f32 %v3891, %v3923
        %v3956 = vmax.f32 %v3892, %v3924
        %v3957 = vmax.f32 %v3893, %v3925
        %v3958 = vmax.f32 %v3894, %v3926
        %v3959 = vmax.f32 %v3895, %v3927
        %v3960 = vmax.f32 %v3896, %v3928
        %v3961 = vmax.f32 %v3897, %v3929
        %v3962 = vmax.f32 %v3898, %v3930
        %v3963 = vmax.f32 %v3899, %v3931
        %v3964 = vmax.f32 %v3900, %v3932
        %v3965 = vmax.f32 %v3901, %v3933
        %v3966 = vmax.f32 %v3902, %v3934
        %v3967 = vmax.f32 %v3903, %v3935
        %v3968 = vmax.f32 %v3904, %v3936
        %v3969 = vmax.f32 %v3905, %v3937
        %v3970 = vmax.f32 %v3906, %v3938
        %v3971 = vmax.f32 %v3907, %v3939
        %v3972 = vmax.f32 %v3908, %v3940
        %v3973 = vmax.f32 %v3909, %v3941
        %v3974 = vmax.f32 %v3910, %v3942
        %v3975 = vmax.f32 %v3911, %v3943
        %v3976 = vmax.f32 %v3912, %v3944
        %v3977 = vmax.f32 %v3913, %v3945
        %v3978 = vmax.f32 %v3914, %v3946
        %v3979 = vmax.f32 %v3915, %v3947
        %v3980 = vld [vmem:[#allocation3 + $0x100] sm:$0xff]
        %v3981 = vld [vmem:[#allocation3 + $0x108] sm:$0xff]
        %v3982 = vld [vmem:[#allocation3 + $0x101] sm:$0xff]
        %v3983 = vld [vmem:[#allocation3 + $0x109] sm:$0xff]
        %v3984 = vmax.f32 %v3980, %v3982
        %v3985 = vmax.f32 %v3981, %v3983
        %v3986 = vmax.f32 %v3948, %v3950
        %v3987 = vmax.f32 %v3949, %v3951
        %v3988 = vmax.f32 %v3950, %v3952
        %v3989 = vmax.f32 %v3951, %v3953
        %v3990 = vmax.f32 %v3952, %v3954
        %v3991 = vmax.f32 %v3953, %v3955
        %v3992 = vmax.f32 %v3954, %v3956
        %v3993 = vmax.f32 %v3955, %v3957
        %v3994 = vmax.f32 %v3956, %v3958
        %v3995 = vmax.f32 %v3957, %v3959
        %v3996 = vmax.f32 %v3958, %v3960
        %v3997 = vmax.f32 %v3959, %v3961
        %v3998 = vmax.f32 %v3960, %v3962
        %v3999 = vmax.f32 %v3961, %v3963
        %v4000 = vmax.f32 %v3962, %v3964
        %v4001 = vmax.f32 %v3963, %v3965
        %v4002 = vmax.f32 %v3964, %v3966
        %v4003 = vmax.f32 %v3965, %v3967
        %v4004 = vmax.f32 %v3966, %v3968
        %v4005 = vmax.f32 %v3967, %v3969
        %v4006 = vmax.f32 %v3968, %v3970
        %v4007 = vmax.f32 %v3969, %v3971
        %v4008 = vmax.f32 %v3970, %v3972
        %v4009 = vmax.f32 %v3971, %v3973
        %v4010 = vmax.f32 %v3972, %v3974
        %v4011 = vmax.f32 %v3973, %v3975
        %v4012 = vmax.f32 %v3974, %v3976
        %v4013 = vmax.f32 %v3975, %v3977
        %v4014 = vmax.f32 %v3976, %v3978
        %v4015 = vmax.f32 %v3977, %v3979
        %v4016 = vmax.f32 %v3978, %v3984
        %v4017 = vmax.f32 %v3979, %v3985
        %v4018 = vld [vmem:[%s3] sm:$0xff]
        %v4019 = vld [vmem:[%s3 + $0x8] sm:$0xff]
        %v4020 = vld [vmem:[%s3 + $0x10] sm:$0xff]
        %v4021 = vld [vmem:[%s3 + $0x18] sm:$0xff]
        %v4022 = vld [vmem:[%s3 + $0x20] sm:$0xff]
        %v4023 = vld [vmem:[%s3 + $0x28] sm:$0xff]
        %v4024 = vld [vmem:[%s3 + $0x30] sm:$0xff]
        %v4025 = vld [vmem:[%s3 + $0x38] sm:$0xff]
        %v4026 = vld [vmem:[%s3 + $0x40] sm:$0xff]
        %v4027 = vld [vmem:[%s3 + $0x48] sm:$0xff]
        %v4028 = vld [vmem:[%s3 + $0x50] sm:$0xff]
        %v4029 = vld [vmem:[%s3 + $0x58] sm:$0xff]
        %v4030 = vld [vmem:[%s3 + $0x60] sm:$0xff]
        %v4031 = vld [vmem:[%s3 + $0x68] sm:$0xff]
        %v4032 = vld [vmem:[%s3 + $0x70] sm:$0xff]
        %v4033 = vld [vmem:[%s3 + $0x78] sm:$0xff]
        %4034 = vmatprep.subr.mxu0 0.0
        %4035 = vmatpush1.msra.mxu0 %v4001
        %4036 = vmatprep.subr.mxu0 0.0
        %4037 = vmatpush1.msra.mxu0 %v4000
        %4038 = vmatprep.subr.mxu0 0.0
        %4039 = vmatpush1.msra.mxu0 %v3999
        %4040 = vmatprep.subr.mxu0 0.0
        %4041 = vmatpush1.msra.mxu0 %v3998
        %4042 = vmatprep.subr.mxu0 0.0
        %4043 = vmatpush1.msra.mxu0 %v3997
        %4044 = vmatprep.subr.mxu0 0.0
        %4045 = vmatpush1.msra.mxu0 %v3996
        %4046 = vmatprep.subr.mxu0 0.0
        %4047 = vmatpush1.msra.mxu0 %v3995
        %4048 = vmatprep.subr.mxu0 0.0
        %4049 = vmatpush1.msra.mxu0 %v3994
        %4050 = vmatprep.subr.mxu0 0.0
        %4051 = vmatpush1.msra.mxu0 %v3993
        %4052 = vmatprep.subr.mxu0 0.0
        %4053 = vmatpush1.msra.mxu0 %v3992
        %4054 = vmatprep.subr.mxu0 0.0
        %4055 = vmatpush1.msra.mxu0 %v3991
        %4056 = vmatprep.subr.mxu0 0.0
        %4057 = vmatpush1.msra.mxu0 %v3990
        %4058 = vmatprep.subr.mxu0 0.0
        %4059 = vmatpush1.msra.mxu0 %v3989
        %4060 = vmatprep.subr.mxu0 0.0
        %4061 = vmatpush1.msra.mxu0 %v3988
        %4062 = vmatprep.subr.mxu0 0.0
        %4063 = vmatpush1.msra.mxu0 %v3987
        %4064 = vmatprep.subr.mxu0 0.0
        %4065 = vmatpush1.msra.mxu0 %v3986
        %4066 = vmatprep.subr.mxu0 0.0
        %4067 = vmatpush2.msra.mxu0 %v4017
        %4068 = vmatprep.subr.mxu0 0.0
        %4069 = vmatpush2.msra.mxu0 %v4016
        %4070 = vmatprep.subr.mxu0 0.0
        %4071 = vmatpush2.msra.mxu0 %v4015
        %4072 = vmatprep.subr.mxu0 0.0
        %4073 = vmatpush2.msra.mxu0 %v4014
        %4074 = vmatprep.subr.mxu0 0.0
        %4075 = vmatpush2.msra.mxu0 %v4013
        %4076 = vmatprep.subr.mxu0 0.0
        %4077 = vmatpush2.msra.mxu0 %v4012
        %4078 = vmatprep.subr.mxu0 0.0
        %4079 = vmatpush2.msra.mxu0 %v4011
        %4080 = vmatprep.subr.mxu0 0.0
        %4081 = vmatpush2.msra.mxu0 %v4010
        %4082 = vmatprep.subr.mxu0 0.0
        %4083 = vmatpush2.msra.mxu0 %v4009
        %4084 = vmatprep.subr.mxu0 0.0
        %4085 = vmatpush2.msra.mxu0 %v4008
        %4086 = vmatprep.subr.mxu0 0.0
        %4087 = vmatpush2.msra.mxu0 %v4007
        %4088 = vmatprep.subr.mxu0 0.0
        %4089 = vmatpush2.msra.mxu0 %v4006
        %4090 = vmatprep.subr.mxu0 0.0
        %4091 = vmatpush2.msra.mxu0 %v4005
        %4092 = vmatprep.subr.mxu0 0.0
        %4093 = vmatpush2.msra.mxu0 %v4004
        %4094 = vmatprep.subr.mxu0 0.0
        %4095 = vmatpush2.msra.mxu0 %v4003
        %4096 = vmatprep.subr.mxu0 0.0
        %4097 = vmatpush2.msra.mxu0 %v4002
        %4098 = vmatprep.mubr.f32.mxu0 %v4019
        %4099 = vmatmul.mubr.f32.gmra.mxu0 %v4018
        %v4100 = vpop.f32.mrf.mxu0
        %v4101 = vadd.f32 0.0, %v4100
        %v4102 = vpop.f32.mrf.mxu0
        %4103 = vmatprep.mubr.f32.mxu0 %v4021
        %4104 = vmatmul.mubr.f32.gmra.mxu0 %v4020
        %v4105 = vpop.f32.mrf.mxu0
        %v4106 = vadd.f32 0.0, %v4105
        %v4107 = vpop.f32.mrf.mxu0
        %4108 = vmatprep.mubr.f32.mxu0 %v4023
        %4109 = vmatmul.mubr.f32.gmra.mxu0 %v4022
        %v4110 = vpop.f32.mrf.mxu0
        %v4111 = vadd.f32 0.0, %v4110
        %v4112 = vpop.f32.mrf.mxu0
        %4113 = vmatprep.mubr.f32.mxu0 %v4025
        %4114 = vmatmul.mubr.f32.gmra.mxu0 %v4024
        %v4115 = vpop.f32.mrf.mxu0
        %v4116 = vadd.f32 0.0, %v4115
        %v4117 = vpop.f32.mrf.mxu0
        %4118 = vmatprep.mubr.f32.mxu0 %v4027
        %4119 = vmatmul.mubr.f32.gmra.mxu0 %v4026
        %v4120 = vpop.f32.mrf.mxu0
        %v4121 = vadd.f32 0.0, %v4120
        %v4122 = vpop.f32.mrf.mxu0
        %4123 = vmatprep.mubr.f32.mxu0 %v4029
        %4124 = vmatmul.mubr.f32.gmra.mxu0 %v4028
        %v4125 = vpop.f32.mrf.mxu0
        %v4126 = vadd.f32 0.0, %v4125
        %v4127 = vpop.f32.mrf.mxu0
        %4128 = vmatprep.mubr.f32.mxu0 %v4031
        %4129 = vmatmul.mubr.f32.gmra.mxu0 %v4030
        %v4130 = vpop.f32.mrf.mxu0
        %v4131 = vadd.f32 0.0, %v4130
        %v4132 = vpop.f32.mrf.mxu0
        %4133 = vmatprep.mubr.f32.mxu0 %v4033
        %4134 = vmatmul.mubr.f32.gmra.mxu0 %v4032
        %v4135 = vpop.f32.mrf.mxu0
        %v4136 = vadd.f32 0.0, %v4135
        %v4137 = vpop.f32.mrf.mxu0
        %4138 = vdwg.mxu0
        %4139 = vst.msk [vmem:[#allocation4] sm:$0xff] %vm3815, 0.0
        %4140 = vst.msk [vmem:[#allocation4 + $0x8] sm:$0xff] %vm3815, 0.0
        %4141 = vst.msk [vmem:[#allocation4 + $0x10] sm:$0xff] %vm3815, 0.0
        %4142 = vst.msk [vmem:[#allocation4 + $0x18] sm:$0xff] %vm3815, 0.0
        %4143 = vst.msk [vmem:[#allocation4 + $0x20] sm:$0xff] %vm3815, 0.0
        %4144 = vst.msk [vmem:[#allocation4 + $0x28] sm:$0xff] %vm3815, 0.0
        %4145 = vst.msk [vmem:[#allocation4 + $0x30] sm:$0xff] %vm3815, 0.0
        %4146 = vst.msk [vmem:[#allocation4 + $0x38] sm:$0xff] %vm3815, 0.0
        %4147 = vst.msk [vmem:[#allocation4 + $0x40] sm:$0xff] %vm3815, 0.0
        %4148 = vst.msk [vmem:[#allocation4 + $0x48] sm:$0xff] %vm3815, 0.0
        %4149 = vst.msk [vmem:[#allocation4 + $0x50] sm:$0xff] %vm3815, 0.0
        %4150 = vst.msk [vmem:[#allocation4 + $0x58] sm:$0x1] %vm3850, 0.0
        %4151 = vst.msk [vmem:[#allocation4 + $0x10] sm:$0xff] %vm3815, %v4101
        %4152 = vst.msk [vmem:[#allocation4 + $0x18] sm:$0xff] %vm3815, %v4106
        %4153 = vst.msk [vmem:[#allocation4 + $0x20] sm:$0xff] %vm3815, %v4111
        %4154 = vst.msk [vmem:[#allocation4 + $0x28] sm:$0xff] %vm3815, %v4116
        %4155 = vst.msk [vmem:[#allocation4 + $0x30] sm:$0xff] %vm3815, %v4121
        %4156 = vst.msk [vmem:[#allocation4 + $0x38] sm:$0xff] %vm3815, %v4126
        %4157 = vst.msk [vmem:[#allocation4 + $0x40] sm:$0xff] %vm3815, %v4131
        %4158 = vst.msk [vmem:[#allocation4 + $0x48] sm:$0xff] %vm3815, %v4136
        %vm4159 = vcmp.lt.s32.totalorder %v490, 0
        %v4160 = vsub.s32 0, %v490
        %v4161 = vsel %vm4159, %v4160, %v490
        %v4162 = vshrl.u32 %v4161, 3
        %v4163 = vand.u32 %v4161, 7
        %v4164 = vsub.s32 0, %v4163
        %v4165 = vsel %vm4159, %v4164, %v4163
        %vm4166 = vcmp.lt.s32.totalorder %v491, 0
        %v4167 = vsub.s32 0, %v491
        %v4168 = vsel %vm4166, %v4167, %v491
        %v4169 = vshrl.u32 %v4168, 3
        %v4170 = vand.u32 %v4168, 7
        %v4171 = vsub.s32 0, %v4170
        %v4172 = vsel %vm4166, %v4171, %v4170
        %vm4173 = vcmp.lt.s32.totalorder %v492, 0
        %v4174 = vsub.s32 0, %v492
        %v4175 = vsel %vm4173, %v4174, %v492
        %v4176 = vshrl.u32 %v4175, 3
        %v4177 = vand.u32 %v4175, 7
        %v4178 = vsub.s32 0, %v4177
        %v4179 = vsel %vm4173, %v4178, %v4177
        %vm4180 = vcmp.lt.s32.totalorder %v493, 0
        %v4181 = vsub.s32 0, %v493
        %v4182 = vsel %vm4180, %v4181, %v493
        %v4183 = vshrl.u32 %v4182, 3
        %v4184 = vand.u32 %v4182, 7
        %v4185 = vsub.s32 0, %v4184
        %v4186 = vsel %vm4180, %v4185, %v4184
        %vm4187 = vcmp.lt.s32.totalorder %v494, 0
        %v4188 = vsub.s32 0, %v494
        %v4189 = vsel %vm4187, %v4188, %v494
        %v4190 = vshrl.u32 %v4189, 3
        %v4191 = vand.u32 %v4189, 7
        %v4192 = vsub.s32 0, %v4191
        %v4193 = vsel %vm4187, %v4192, %v4191
        %vm4194 = vcmp.lt.s32.totalorder %v495, 0
        %v4195 = vsub.s32 0, %v495
        %v4196 = vsel %vm4194, %v4195, %v495
        %v4197 = vshrl.u32 %v4196, 3
        %v4198 = vand.u32 %v4196, 7
        %v4199 = vsub.s32 0, %v4198
        %v4200 = vsel %vm4194, %v4199, %v4198
        %vm4201 = vcmp.lt.s32.totalorder %v496, 0
        %v4202 = vsub.s32 0, %v496
        %v4203 = vsel %vm4201, %v4202, %v496
        %v4204 = vshrl.u32 %v4203, 3
        %v4205 = vand.u32 %v4203, 7
        %v4206 = vsub.s32 0, %v4205
        %v4207 = vsel %vm4201, %v4206, %v4205
        %vm4208 = vcmp.lt.s32.totalorder %v497, 0
        %v4209 = vsub.s32 0, %v497
        %v4210 = vsel %vm4208, %v4209, %v497
        %v4211 = vshrl.u32 %v4210, 3
        %v4212 = vand.u32 %v4210, 7
        %v4213 = vsub.s32 0, %v4212
        %v4214 = vsel %vm4208, %v4213, %v4212
        %vm4215 = vcmp.ne.s32.totalorder %v4165, 0
        %vm4216 = vcmp.ne.s32.totalorder %v4172, 0
        %vm4217 = vcmp.ne.s32.totalorder %v4179, 0
        %vm4218 = vcmp.ne.s32.totalorder %v4186, 0
        %vm4219 = vcmp.ne.s32.totalorder %v4193, 0
        %vm4220 = vcmp.ne.s32.totalorder %v4200, 0
        %vm4221 = vcmp.ne.s32.totalorder %v4207, 0
        %vm4222 = vcmp.ne.s32.totalorder %v4214, 0
        %vm4223 = vcmp.lt.s32.totalorder %v4165, 0
        %vm4224 = vcmp.lt.s32.totalorder %v4172, 0
        %vm4225 = vcmp.lt.s32.totalorder %v4179, 0
        %vm4226 = vcmp.lt.s32.totalorder %v4186, 0
        %vm4227 = vcmp.lt.s32.totalorder %v4193, 0
        %vm4228 = vcmp.lt.s32.totalorder %v4200, 0
        %vm4229 = vcmp.lt.s32.totalorder %v4207, 0
        %vm4230 = vcmp.lt.s32.totalorder %v4214, 0
        %vm4231 = vmand %vm4223, %vm4215
        %vm4232 = vmand %vm4224, %vm4216
        %vm4233 = vmand %vm4225, %vm4217
        %vm4234 = vmand %vm4226, %vm4218
        %vm4235 = vmand %vm4227, %vm4219
        %vm4236 = vmand %vm4228, %vm4220
        %vm4237 = vmand %vm4229, %vm4221
        %vm4238 = vmand %vm4230, %vm4222
        %v4239 = vadd.s32 %v4165, 8
        %v4240 = vadd.s32 %v4172, 8
        %v4241 = vadd.s32 %v4179, 8
        %v4242 = vadd.s32 %v4186, 8
        %v4243 = vadd.s32 %v4193, 8
        %v4244 = vadd.s32 %v4200, 8
        %v4245 = vadd.s32 %v4207, 8
        %v4246 = vadd.s32 %v4214, 8
        %v4247 = vsel %vm4231, %v4239, %v4165
        %v4248 = vsel %vm4232, %v4240, %v4172
        %v4249 = vsel %vm4233, %v4241, %v4179
        %v4250 = vsel %vm4234, %v4242, %v4186
        %v4251 = vsel %vm4235, %v4243, %v4193
        %v4252 = vsel %vm4236, %v4244, %v4200
        %v4253 = vsel %vm4237, %v4245, %v4207
        %v4254 = vsel %vm4238, %v4246, %v4214
        %v4255 = vld [vmem:[#allocation4 + $0x7] sm:$0xff]
        %v4256 = vld [vmem:[#allocation4 + $0xf] sm:$0xff]
        %v4257 = vld [vmem:[#allocation4 + $0x17] sm:$0xff]
        %v4258 = vld [vmem:[#allocation4 + $0x1f] sm:$0xff]
        %v4259 = vld [vmem:[#allocation4 + $0x27] sm:$0xff]
        %v4260 = vld [vmem:[#allocation4 + $0x2f] sm:$0xff]
        %v4261 = vld [vmem:[#allocation4 + $0x37] sm:$0xff]
        %v4262 = vld [vmem:[#allocation4 + $0x3f] sm:$0xff]
        %vm4263 = vcmp.ge.s32.totalorder %v4247, 1
        %vm4264 = vcmp.ge.s32.totalorder %v4248, 1
        %vm4265 = vcmp.ge.s32.totalorder %v4249, 1
        %vm4266 = vcmp.ge.s32.totalorder %v4250, 1
        %vm4267 = vcmp.ge.s32.totalorder %v4251, 1
        %vm4268 = vcmp.ge.s32.totalorder %v4252, 1
        %vm4269 = vcmp.ge.s32.totalorder %v4253, 1
        %vm4270 = vcmp.ge.s32.totalorder %v4254, 1
        %v4271 = vsel %vm4263, %v4255, 0.0
        %v4272 = vsel %vm4264, %v4256, 0.0
        %v4273 = vsel %vm4265, %v4257, 0.0
        %v4274 = vsel %vm4266, %v4258, 0.0
        %v4275 = vsel %vm4267, %v4259, 0.0
        %v4276 = vsel %vm4268, %v4260, 0.0
        %v4277 = vsel %vm4269, %v4261, 0.0
        %v4278 = vsel %vm4270, %v4262, 0.0
        %v4279 = vpack.c.bf16 %v4272, %v4271
        %v4280 = vpack.c.bf16 %v4274, %v4273
        %v4281 = vpack.c.bf16 %v4276, %v4275
        %v4282 = vpack.c.bf16 %v4278, %v4277
        %v4283 = vld [vmem:[%s4] sm:$0xf]
        %v4284 = vld [vmem:[%s4 + $0x4] sm:$0xf]
        %v4285 = vld [vmem:[#allocation4 + $0x8] sm:$0xff]
        %v4286 = vld [vmem:[#allocation4 + $0x10] sm:$0xff]
        %v4287 = vld [vmem:[#allocation4 + $0x18] sm:$0xff]
        %v4288 = vld [vmem:[#allocation4 + $0x20] sm:$0xff]
        %v4289 = vld [vmem:[#allocation4 + $0x28] sm:$0xff]
        %v4290 = vld [vmem:[#allocation4 + $0x30] sm:$0xff]
        %v4291 = vld [vmem:[#allocation4 + $0x38] sm:$0xff]
        %v4292 = vld [vmem:[#allocation4 + $0x40] sm:$0xff]
        %v4293 = vpack.c.bf16 %v4286, %v4285
        %v4294 = vpack.c.bf16 %v4288, %v4287
        %v4295 = vpack.c.bf16 %v4290, %v4289
        %v4296 = vpack.c.bf16 %v4292, %v4291
        %s4297 = scalar_lea.vmem %s4, 8
        %v4298 = vld [vmem:[%s4297] sm:$0xf]
        %v4299 = vld [vmem:[%s4297 + $0x4] sm:$0xf]
        %v4302 = vunpack.c.l.b16 %v4298
        %v4303 = vunpack.c.l.b16 %v4299
        %v4304 = vpack.c.b16 %v4303, %v4302
        %v4307 = vsel %vm3815, %v4293, 0
        %v4310 = vsel %vm3815, %v4294, 0
        %v4313 = vsel %vm3815, %v4295, 0
        %v4316 = vsel %vm3815, %v4296, 0
        %4318 = vmatprep.subr.bf16.mxu0 0
        %4319 = vmatpush1.bf16.msra.mxu0 0
        %4320 = vmatprep.subr.bf16.mxu0 0
        %4321 = vmatpush1.bf16.msra.mxu0 0
        %4322 = vmatprep.subr.bf16.mxu0 0
        %4323 = vmatpush1.bf16.msra.mxu0 0
        %4324 = vmatprep.subr.bf16.mxu0 0
        %4325 = vmatpush1.bf16.msra.mxu0 0
        %4326 = vmatprep.subr.bf16.mxu0 0
        %4327 = vmatpush1.bf16.msra.mxu0 0
        %4328 = vmatprep.subr.bf16.mxu0 0
        %4329 = vmatpush1.bf16.msra.mxu0 0
        %4330 = vmatprep.subr.bf16.mxu0 0
        %4331 = vmatpush1.bf16.msra.mxu0 0
        %4332 = vmatprep.subr.bf16.mxu0 0
        %4333 = vmatpush1.bf16.msra.mxu0 %v4304
        %4334 = vmatprep.subr.bf16.mxu0 0
        %4335 = vmatpush2.bf16.msra.mxu0 0
        %4336 = vmatprep.subr.bf16.mxu0 0
        %4337 = vmatpush2.bf16.msra.mxu0 0
        %4338 = vmatprep.subr.bf16.mxu0 0
        %4339 = vmatpush2.bf16.msra.mxu0 0
        %4340 = vmatprep.subr.bf16.mxu0 0
        %4341 = vmatpush2.bf16.msra.mxu0 0
        %4342 = vmatprep.subr.bf16.mxu0 0
        %4343 = vmatpush2.bf16.msra.mxu0 0
        %4344 = vmatprep.subr.bf16.mxu0 0
        %4345 = vmatpush2.bf16.msra.mxu0 0
        %4346 = vmatprep.subr.bf16.mxu0 0
        %4347 = vmatpush2.bf16.msra.mxu0 0
        %4348 = vmatprep.subr.bf16.mxu0 0
        %4349 = vmatpush2.bf16.msra.mxu0 0
        %4350 = vmatprep.mubr.bf16.mxu0 0
        %4351 = vmatmul.mubr.bf16.gmra.mxu0 %v4307
        %v4352 = vpop.f32.mrf.mxu0
        %v4353 = vadd.f32 0.0, %v4352
        %v4354 = vpop.f32.mrf.mxu0
        %v4355 = vpop.f32.mrf.mxu0
        %v4356 = vadd.f32 0.0, %v4355
        %v4357 = vpop.f32.mrf.mxu0
        %4358 = vmatprep.mubr.bf16.mxu0 0
        %4359 = vmatmul.mubr.bf16.gmra.mxu0 %v4310
        %v4360 = vpop.f32.mrf.mxu0
        %v4361 = vadd.f32 0.0, %v4360
        %v4362 = vpop.f32.mrf.mxu0
        %v4363 = vpop.f32.mrf.mxu0
        %v4364 = vadd.f32 0.0, %v4363
        %v4365 = vpop.f32.mrf.mxu0
        %4366 = vmatprep.mubr.bf16.mxu0 0
        %4367 = vmatmul.mubr.bf16.gmra.mxu0 %v4313
        %v4368 = vpop.f32.mrf.mxu0
        %v4369 = vadd.f32 0.0, %v4368
        %v4370 = vpop.f32.mrf.mxu0
        %v4371 = vpop.f32.mrf.mxu0
        %v4372 = vadd.f32 0.0, %v4371
        %v4373 = vpop.f32.mrf.mxu0
        %4374 = vmatprep.mubr.bf16.mxu0 0
        %4375 = vmatmul.mubr.bf16.gmra.mxu0 %v4316
        %v4376 = vpop.f32.mrf.mxu0
        %v4377 = vadd.f32 0.0, %v4376
        %v4378 = vpop.f32.mrf.mxu0
        %v4379 = vpop.f32.mrf.mxu0
        %v4380 = vadd.f32 0.0, %v4379
        %v4381 = vpop.f32.mrf.mxu0
        %4382 = vdwg.mxu0
        %v4385 = vunpack.c.l.b16 %v4283
        %v4386 = vunpack.c.l.b16 %v4284
        %v4387 = vpack.c.b16 %v4386, %v4385
        %v4390 = vsel %vm3815, %v4279, 0
        %v4393 = vsel %vm3815, %v4280, 0
        %v4396 = vsel %vm3815, %v4281, 0
        %v4399 = vsel %vm3815, %v4282, 0
        %4401 = vmatprep.subr.bf16.mxu0 0
        %4402 = vmatpush1.bf16.msra.mxu0 0
        %4403 = vmatprep.subr.bf16.mxu0 0
        %4404 = vmatpush1.bf16.msra.mxu0 0
        %4405 = vmatprep.subr.bf16.mxu0 0
        %4406 = vmatpush1.bf16.msra.mxu0 0
        %4407 = vmatprep.subr.bf16.mxu0 0
        %4408 = vmatpush1.bf16.msra.mxu0 0
        %4409 = vmatprep.subr.bf16.mxu0 0
        %4410 = vmatpush1.bf16.msra.mxu0 0
        %4411 = vmatprep.subr.bf16.mxu0 0
        %4412 = vmatpush1.bf16.msra.mxu0 0
        %4413 = vmatprep.subr.bf16.mxu0 0
        %4414 = vmatpush1.bf16.msra.mxu0 0
        %4415 = vmatprep.subr.bf16.mxu0 0
        %4416 = vmatpush1.bf16.msra.mxu0 %v4387
        %4417 = vmatprep.subr.bf16.mxu0 0
        %4418 = vmatpush2.bf16.msra.mxu0 0
        %4419 = vmatprep.subr.bf16.mxu0 0
        %4420 = vmatpush2.bf16.msra.mxu0 0
        %4421 = vmatprep.subr.bf16.mxu0 0
        %4422 = vmatpush2.bf16.msra.mxu0 0
        %4423 = vmatprep.subr.bf16.mxu0 0
        %4424 = vmatpush2.bf16.msra.mxu0 0
        %4425 = vmatprep.subr.bf16.mxu0 0
        %4426 = vmatpush2.bf16.msra.mxu0 0
        %4427 = vmatprep.subr.bf16.mxu0 0
        %4428 = vmatpush2.bf16.msra.mxu0 0
        %4429 = vmatprep.subr.bf16.mxu0 0
        %4430 = vmatpush2.bf16.msra.mxu0 0
        %4431 = vmatprep.subr.bf16.mxu0 0
        %4432 = vmatpush2.bf16.msra.mxu0 0
        %4433 = vmatprep.mubr.bf16.mxu0 0
        %4434 = vmatmul.mubr.bf16.gmra.mxu0 %v4390
        %v4435 = vpop.f32.mrf.mxu0
        %v4436 = vadd.f32 %v4353, %v4435
        %v4437 = vpop.f32.mrf.mxu0
        %v4438 = vpop.f32.mrf.mxu0
        %v4439 = vadd.f32 %v4356, %v4438
        %v4440 = vpop.f32.mrf.mxu0
        %4441 = vmatprep.mubr.bf16.mxu0 0
        %4442 = vmatmul.mubr.bf16.gmra.mxu0 %v4393
        %v4443 = vpop.f32.mrf.mxu0
        %v4444 = vadd.f32 %v4361, %v4443
        %v4445 = vpop.f32.mrf.mxu0
        %v4446 = vpop.f32.mrf.mxu0
        %v4447 = vadd.f32 %v4364, %v4446
        %v4448 = vpop.f32.mrf.mxu0
        %4449 = vmatprep.mubr.bf16.mxu0 0
        %4450 = vmatmul.mubr.bf16.gmra.mxu0 %v4396
        %v4451 = vpop.f32.mrf.mxu0
        %v4452 = vadd.f32 %v4369, %v4451
        %v4453 = vpop.f32.mrf.mxu0
        %v4454 = vpop.f32.mrf.mxu0
        %v4455 = vadd.f32 %v4372, %v4454
        %v4456 = vpop.f32.mrf.mxu0
        %4457 = vmatprep.mubr.bf16.mxu0 0
        %4458 = vmatmul.mubr.bf16.gmra.mxu0 %v4399
        %v4459 = vpop.f32.mrf.mxu0
        %v4460 = vadd.f32 %v4377, %v4459
        %v4461 = vpop.f32.mrf.mxu0
        %v4462 = vpop.f32.mrf.mxu0
        %v4463 = vadd.f32 %v4380, %v4462
        %v4464 = vpop.f32.mrf.mxu0
        %4465 = vdwg.mxu0
        %v4466 = vld [vmem:[#allocation4 + $0x9] sm:$0xff]
        %v4467 = vld [vmem:[#allocation4 + $0x11] sm:$0xff]
        %v4468 = vld [vmem:[#allocation4 + $0x19] sm:$0xff]
        %v4469 = vld [vmem:[#allocation4 + $0x21] sm:$0xff]
        %v4470 = vld [vmem:[#allocation4 + $0x29] sm:$0xff]
        %v4471 = vld [vmem:[#allocation4 + $0x31] sm:$0xff]
        %v4472 = vld [vmem:[#allocation4 + $0x39] sm:$0xff]
        %v4473 = vld [vmem:[#allocation4 + $0x41] sm:$0xff]
        %vm4474 = vcmp.lt.s32.totalorder %v4247, 7
        %vm4475 = vcmp.lt.s32.totalorder %v4248, 7
        %vm4476 = vcmp.lt.s32.totalorder %v4249, 7
        %vm4477 = vcmp.lt.s32.totalorder %v4250, 7
        %vm4478 = vcmp.lt.s32.totalorder %v4251, 7
        %vm4479 = vcmp.lt.s32.totalorder %v4252, 7
        %vm4480 = vcmp.lt.s32.totalorder %v4253, 7
        %vm4481 = vcmp.lt.s32.totalorder %v4254, 7
        %v4482 = vsel %vm4474, %v4466, 0.0
        %v4483 = vsel %vm4475, %v4467, 0.0
        %v4484 = vsel %vm4476, %v4468, 0.0
        %v4485 = vsel %vm4477, %v4469, 0.0
        %v4486 = vsel %vm4478, %v4470, 0.0
        %v4487 = vsel %vm4479, %v4471, 0.0
        %v4488 = vsel %vm4480, %v4472, 0.0
        %v4489 = vsel %vm4481, %v4473, 0.0
        %v4490 = vpack.c.bf16 %v4483, %v4482
        %v4491 = vpack.c.bf16 %v4485, %v4484
        %v4492 = vpack.c.bf16 %v4487, %v4486
        %v4493 = vpack.c.bf16 %v4489, %v4488
        %s4494 = scalar_lea.vmem %s4, 16
        %v4495 = vld [vmem:[%s4494] sm:$0xf]
        %v4496 = vld [vmem:[%s4494 + $0x4] sm:$0xf]
        %v4499 = vunpack.c.l.b16 %v4495
        %v4500 = vunpack.c.l.b16 %v4496
        %v4501 = vpack.c.b16 %v4500, %v4499
        %v4504 = vsel %vm3815, %v4490, 0
        %v4507 = vsel %vm3815, %v4491, 0
        %v4510 = vsel %vm3815, %v4492, 0
        %v4513 = vsel %vm3815, %v4493, 0
        %4515 = vmatprep.subr.bf16.mxu0 0
        %4516 = vmatpush1.bf16.msra.mxu0 0
        %4517 = vmatprep.subr.bf16.mxu0 0
        %4518 = vmatpush1.bf16.msra.mxu0 0
        %4519 = vmatprep.subr.bf16.mxu0 0
        %4520 = vmatpush1.bf16.msra.mxu0 0
        %4521 = vmatprep.subr.bf16.mxu0 0
        %4522 = vmatpush1.bf16.msra.mxu0 0
        %4523 = vmatprep.subr.bf16.mxu0 0
        %4524 = vmatpush1.bf16.msra.mxu0 0
        %4525 = vmatprep.subr.bf16.mxu0 0
        %4526 = vmatpush1.bf16.msra.mxu0 0
        %4527 = vmatprep.subr.bf16.mxu0 0
        %4528 = vmatpush1.bf16.msra.mxu0 0
        %4529 = vmatprep.subr.bf16.mxu0 0
        %4530 = vmatpush1.bf16.msra.mxu0 %v4501
        %4531 = vmatprep.subr.bf16.mxu0 0
        %4532 = vmatpush2.bf16.msra.mxu0 0
        %4533 = vmatprep.subr.bf16.mxu0 0
        %4534 = vmatpush2.bf16.msra.mxu0 0
        %4535 = vmatprep.subr.bf16.mxu0 0
        %4536 = vmatpush2.bf16.msra.mxu0 0
        %4537 = vmatprep.subr.bf16.mxu0 0
        %4538 = vmatpush2.bf16.msra.mxu0 0
        %4539 = vmatprep.subr.bf16.mxu0 0
        %4540 = vmatpush2.bf16.msra.mxu0 0
        %4541 = vmatprep.subr.bf16.mxu0 0
        %4542 = vmatpush2.bf16.msra.mxu0 0
        %4543 = vmatprep.subr.bf16.mxu0 0
        %4544 = vmatpush2.bf16.msra.mxu0 0
        %4545 = vmatprep.subr.bf16.mxu0 0
        %4546 = vmatpush2.bf16.msra.mxu0 0
        %4547 = vmatprep.mubr.bf16.mxu0 0
        %4548 = vmatmul.mubr.bf16.gmra.mxu0 %v4504
        %v4549 = vpop.f32.mrf.mxu0
        %v4550 = vadd.f32 0.0, %v4549
        %v4551 = vpop.f32.mrf.mxu0
        %v4552 = vpop.f32.mrf.mxu0
        %v4553 = vadd.f32 0.0, %v4552
        %v4554 = vpop.f32.mrf.mxu0
        %4555 = vmatprep.mubr.bf16.mxu0 0
        %4556 = vmatmul.mubr.bf16.gmra.mxu0 %v4507
        %v4557 = vpop.f32.mrf.mxu0
        %v4558 = vadd.f32 0.0, %v4557
        %v4559 = vpop.f32.mrf.mxu0
        %v4560 = vpop.f32.mrf.mxu0
        %v4561 = vadd.f32 0.0, %v4560
        %v4562 = vpop.f32.mrf.mxu0
        %4563 = vmatprep.mubr.bf16.mxu0 0
        %4564 = vmatmul.mubr.bf16.gmra.mxu0 %v4510
        %v4565 = vpop.f32.mrf.mxu0
        %v4566 = vadd.f32 0.0, %v4565
        %v4567 = vpop.f32.mrf.mxu0
        %v4568 = vpop.f32.mrf.mxu0
        %v4569 = vadd.f32 0.0, %v4568
        %v4570 = vpop.f32.mrf.mxu0
        %4571 = vmatprep.mubr.bf16.mxu0 0
        %4572 = vmatmul.mubr.bf16.gmra.mxu0 %v4513
        %v4573 = vpop.f32.mrf.mxu0
        %v4574 = vadd.f32 0.0, %v4573
        %v4575 = vpop.f32.mrf.mxu0
        %v4576 = vpop.f32.mrf.mxu0
        %v4577 = vadd.f32 0.0, %v4576
        %v4578 = vpop.f32.mrf.mxu0
        %4579 = vdwg.mxu0
        %v4580 = vadd.f32 %v4436, %v4550
        %v4581 = vadd.f32 %v4439, %v4553
        %v4582 = vadd.f32 %v4444, %v4558
        %v4583 = vadd.f32 %v4447, %v4561
        %v4584 = vadd.f32 %v4452, %v4566
        %v4585 = vadd.f32 %v4455, %v4569
        %v4586 = vadd.f32 %v4460, %v4574
        %v4587 = vadd.f32 %v4463, %v4577
        %v4588 = vld [vmem:[#allocation4 + $0xf] sm:$0xff]
        %v4589 = vld [vmem:[#allocation4 + $0x17] sm:$0xff]
        %v4590 = vld [vmem:[#allocation4 + $0x1f] sm:$0xff]
        %v4591 = vld [vmem:[#allocation4 + $0x27] sm:$0xff]
        %v4592 = vld [vmem:[#allocation4 + $0x2f] sm:$0xff]
        %v4593 = vld [vmem:[#allocation4 + $0x37] sm:$0xff]
        %v4594 = vld [vmem:[#allocation4 + $0x3f] sm:$0xff]
        %v4595 = vld [vmem:[#allocation4 + $0x47] sm:$0xff]
        %v4596 = vsel %vm4263, %v4588, 0.0
        %v4597 = vsel %vm4264, %v4589, 0.0
        %v4598 = vsel %vm4265, %v4590, 0.0
        %v4599 = vsel %vm4266, %v4591, 0.0
        %v4600 = vsel %vm4267, %v4592, 0.0
        %v4601 = vsel %vm4268, %v4593, 0.0
        %v4602 = vsel %vm4269, %v4594, 0.0
        %v4603 = vsel %vm4270, %v4595, 0.0
        %v4604 = vpack.c.bf16 %v4597, %v4596
        %v4605 = vpack.c.bf16 %v4599, %v4598
        %v4606 = vpack.c.bf16 %v4601, %v4600
        %v4607 = vpack.c.bf16 %v4603, %v4602
        %s4608 = scalar_lea.vmem %s4, 24
        %v4609 = vld [vmem:[%s4608] sm:$0xf]
        %v4610 = vld [vmem:[%s4608 + $0x4] sm:$0xf]
        %v4613 = vunpack.c.l.b16 %v4609
        %v4614 = vunpack.c.l.b16 %v4610
        %v4615 = vpack.c.b16 %v4614, %v4613
        %v4618 = vsel %vm3815, %v4604, 0
        %v4621 = vsel %vm3815, %v4605, 0
        %v4624 = vsel %vm3815, %v4606, 0
        %v4627 = vsel %vm3815, %v4607, 0
        %4629 = vmatprep.subr.bf16.mxu0 0
        %4630 = vmatpush1.bf16.msra.mxu0 0
        %4631 = vmatprep.subr.bf16.mxu0 0
        %4632 = vmatpush1.bf16.msra.mxu0 0
        %4633 = vmatprep.subr.bf16.mxu0 0
        %4634 = vmatpush1.bf16.msra.mxu0 0
        %4635 = vmatprep.subr.bf16.mxu0 0
        %4636 = vmatpush1.bf16.msra.mxu0 0
        %4637 = vmatprep.subr.bf16.mxu0 0
        %4638 = vmatpush1.bf16.msra.mxu0 0
        %4639 = vmatprep.subr.bf16.mxu0 0
        %4640 = vmatpush1.bf16.msra.mxu0 0
        %4641 = vmatprep.subr.bf16.mxu0 0
        %4642 = vmatpush1.bf16.msra.mxu0 0
        %4643 = vmatprep.subr.bf16.mxu0 0
        %4644 = vmatpush1.bf16.msra.mxu0 %v4615
        %4645 = vmatprep.subr.bf16.mxu0 0
        %4646 = vmatpush2.bf16.msra.mxu0 0
        %4647 = vmatprep.subr.bf16.mxu0 0
        %4648 = vmatpush2.bf16.msra.mxu0 0
        %4649 = vmatprep.subr.bf16.mxu0 0
        %4650 = vmatpush2.bf16.msra.mxu0 0
        %4651 = vmatprep.subr.bf16.mxu0 0
        %4652 = vmatpush2.bf16.msra.mxu0 0
        %4653 = vmatprep.subr.bf16.mxu0 0
        %4654 = vmatpush2.bf16.msra.mxu0 0
        %4655 = vmatprep.subr.bf16.mxu0 0
        %4656 = vmatpush2.bf16.msra.mxu0 0
        %4657 = vmatprep.subr.bf16.mxu0 0
        %4658 = vmatpush2.bf16.msra.mxu0 0
        %4659 = vmatprep.subr.bf16.mxu0 0
        %4660 = vmatpush2.bf16.msra.mxu0 0
        %4661 = vmatprep.mubr.bf16.mxu0 0
        %4662 = vmatmul.mubr.bf16.gmra.mxu0 %v4618
        %v4663 = vpop.f32.mrf.mxu0
        %v4664 = vadd.f32 0.0, %v4663
        %v4665 = vpop.f32.mrf.mxu0
        %v4666 = vpop.f32.mrf.mxu0
        %v4667 = vadd.f32 0.0, %v4666
        %v4668 = vpop.f32.mrf.mxu0
        %4669 = vmatprep.mubr.bf16.mxu0 0
        %4670 = vmatmul.mubr.bf16.gmra.mxu0 %v4621
        %v4671 = vpop.f32.mrf.mxu0
        %v4672 = vadd.f32 0.0, %v4671
        %v4673 = vpop.f32.mrf.mxu0
        %v4674 = vpop.f32.mrf.mxu0
        %v4675 = vadd.f32 0.0, %v4674
        %v4676 = vpop.f32.mrf.mxu0
        %4677 = vmatprep.mubr.bf16.mxu0 0
        %4678 = vmatmul.mubr.bf16.gmra.mxu0 %v4624
        %v4679 = vpop.f32.mrf.mxu0
        %v4680 = vadd.f32 0.0, %v4679
        %v4681 = vpop.f32.mrf.mxu0
        %v4682 = vpop.f32.mrf.mxu0
        %v4683 = vadd.f32 0.0, %v4682
        %v4684 = vpop.f32.mrf.mxu0
        %4685 = vmatprep.mubr.bf16.mxu0 0
        %4686 = vmatmul.mubr.bf16.gmra.mxu0 %v4627
        %v4687 = vpop.f32.mrf.mxu0
        %v4688 = vadd.f32 0.0, %v4687
        %v4689 = vpop.f32.mrf.mxu0
        %v4690 = vpop.f32.mrf.mxu0
        %v4691 = vadd.f32 0.0, %v4690
        %v4692 = vpop.f32.mrf.mxu0
        %4693 = vdwg.mxu0
        %v4694 = vadd.f32 %v4580, %v4664
        %v4695 = vadd.f32 %v4581, %v4667
        %v4696 = vadd.f32 %v4582, %v4672
        %v4697 = vadd.f32 %v4583, %v4675
        %v4698 = vadd.f32 %v4584, %v4680
        %v4699 = vadd.f32 %v4585, %v4683
        %v4700 = vadd.f32 %v4586, %v4688
        %v4701 = vadd.f32 %v4587, %v4691
        %v4702 = vld [vmem:[#allocation4 + $0x10] sm:$0xff]
        %v4703 = vld [vmem:[#allocation4 + $0x18] sm:$0xff]
        %v4704 = vld [vmem:[#allocation4 + $0x20] sm:$0xff]
        %v4705 = vld [vmem:[#allocation4 + $0x28] sm:$0xff]
        %v4706 = vld [vmem:[#allocation4 + $0x30] sm:$0xff]
        %v4707 = vld [vmem:[#allocation4 + $0x38] sm:$0xff]
        %v4708 = vld [vmem:[#allocation4 + $0x40] sm:$0xff]
        %v4709 = vld [vmem:[#allocation4 + $0x48] sm:$0xff]
        %v4710 = vpack.c.bf16 %v4703, %v4702
        %v4711 = vpack.c.bf16 %v4705, %v4704
        %v4712 = vpack.c.bf16 %v4707, %v4706
        %v4713 = vpack.c.bf16 %v4709, %v4708
        %s4714 = scalar_lea.vmem %s4, 32
        %v4715 = vld [vmem:[%s4714] sm:$0xf]
        %v4716 = vld [vmem:[%s4714 + $0x4] sm:$0xf]
        %v4719 = vunpack.c.l.b16 %v4715
        %v4720 = vunpack.c.l.b16 %v4716
        %v4721 = vpack.c.b16 %v4720, %v4719
        %v4724 = vsel %vm3815, %v4710, 0
        %v4727 = vsel %vm3815, %v4711, 0
        %v4730 = vsel %vm3815, %v4712, 0
        %v4733 = vsel %vm3815, %v4713, 0
        %4735 = vmatprep.subr.bf16.mxu0 0
        %4736 = vmatpush1.bf16.msra.mxu0 0
        %4737 = vmatprep.subr.bf16.mxu0 0
        %4738 = vmatpush1.bf16.msra.mxu0 0
        %4739 = vmatprep.subr.bf16.mxu0 0
        %4740 = vmatpush1.bf16.msra.mxu0 0
        %4741 = vmatprep.subr.bf16.mxu0 0
        %4742 = vmatpush1.bf16.msra.mxu0 0
        %4743 = vmatprep.subr.bf16.mxu0 0
        %4744 = vmatpush1.bf16.msra.mxu0 0
        %4745 = vmatprep.subr.bf16.mxu0 0
        %4746 = vmatpush1.bf16.msra.mxu0 0
        %4747 = vmatprep.subr.bf16.mxu0 0
        %4748 = vmatpush1.bf16.msra.mxu0 0
        %4749 = vmatprep.subr.bf16.mxu0 0
        %4750 = vmatpush1.bf16.msra.mxu0 %v4721
        %4751 = vmatprep.subr.bf16.mxu0 0
        %4752 = vmatpush2.bf16.msra.mxu0 0
        %4753 = vmatprep.subr.bf16.mxu0 0
        %4754 = vmatpush2.bf16.msra.mxu0 0
        %4755 = vmatprep.subr.bf16.mxu0 0
        %4756 = vmatpush2.bf16.msra.mxu0 0
        %4757 = vmatprep.subr.bf16.mxu0 0
        %4758 = vmatpush2.bf16.msra.mxu0 0
        %4759 = vmatprep.subr.bf16.mxu0 0
        %4760 = vmatpush2.bf16.msra.mxu0 0
        %4761 = vmatprep.subr.bf16.mxu0 0
        %4762 = vmatpush2.bf16.msra.mxu0 0
        %4763 = vmatprep.subr.bf16.mxu0 0
        %4764 = vmatpush2.bf16.msra.mxu0 0
        %4765 = vmatprep.subr.bf16.mxu0 0
        %4766 = vmatpush2.bf16.msra.mxu0 0
        %4767 = vmatprep.mubr.bf16.mxu0 0
        %4768 = vmatmul.mubr.bf16.gmra.mxu0 %v4724
        %v4769 = vpop.f32.mrf.mxu0
        %v4770 = vadd.f32 0.0, %v4769
        %v4771 = vpop.f32.mrf.mxu0
        %v4772 = vpop.f32.mrf.mxu0
        %v4773 = vadd.f32 0.0, %v4772
        %v4774 = vpop.f32.mrf.mxu0
        %4775 = vmatprep.mubr.bf16.mxu0 0
        %4776 = vmatmul.mubr.bf16.gmra.mxu0 %v4727
        %v4777 = vpop.f32.mrf.mxu0
        %v4778 = vadd.f32 0.0, %v4777
        %v4779 = vpop.f32.mrf.mxu0
        %v4780 = vpop.f32.mrf.mxu0
        %v4781 = vadd.f32 0.0, %v4780
        %v4782 = vpop.f32.mrf.mxu0
        %4783 = vmatprep.mubr.bf16.mxu0 0
        %4784 = vmatmul.mubr.bf16.gmra.mxu0 %v4730
        %v4785 = vpop.f32.mrf.mxu0
        %v4786 = vadd.f32 0.0, %v4785
        %v4787 = vpop.f32.mrf.mxu0
        %v4788 = vpop.f32.mrf.mxu0
        %v4789 = vadd.f32 0.0, %v4788
        %v4790 = vpop.f32.mrf.mxu0
        %4791 = vmatprep.mubr.bf16.mxu0 0
        %4792 = vmatmul.mubr.bf16.gmra.mxu0 %v4733
        %v4793 = vpop.f32.mrf.mxu0
        %v4794 = vadd.f32 0.0, %v4793
        %v4795 = vpop.f32.mrf.mxu0
        %v4796 = vpop.f32.mrf.mxu0
        %v4797 = vadd.f32 0.0, %v4796
        %v4798 = vpop.f32.mrf.mxu0
        %4799 = vdwg.mxu0
        %v4800 = vadd.f32 %v4694, %v4770
        %v4801 = vadd.f32 %v4695, %v4773
        %v4802 = vadd.f32 %v4696, %v4778
        %v4803 = vadd.f32 %v4697, %v4781
        %v4804 = vadd.f32 %v4698, %v4786
        %v4805 = vadd.f32 %v4699, %v4789
        %v4806 = vadd.f32 %v4700, %v4794
        %v4807 = vadd.f32 %v4701, %v4797
        %v4808 = vld [vmem:[#allocation4 + $0x11] sm:$0xff]
        %v4809 = vld [vmem:[#allocation4 + $0x19] sm:$0xff]
        %v4810 = vld [vmem:[#allocation4 + $0x21] sm:$0xff]
        %v4811 = vld [vmem:[#allocation4 + $0x29] sm:$0xff]
        %v4812 = vld [vmem:[#allocation4 + $0x31] sm:$0xff]
        %v4813 = vld [vmem:[#allocation4 + $0x39] sm:$0xff]
        %v4814 = vld [vmem:[#allocation4 + $0x41] sm:$0xff]
        %v4815 = vld [vmem:[#allocation4 + $0x49] sm:$0xff]
        %v4816 = vsel %vm4474, %v4808, 0.0
        %v4817 = vsel %vm4475, %v4809, 0.0
        %v4818 = vsel %vm4476, %v4810, 0.0
        %v4819 = vsel %vm4477, %v4811, 0.0
        %v4820 = vsel %vm4478, %v4812, 0.0
        %v4821 = vsel %vm4479, %v4813, 0.0
        %v4822 = vsel %vm4480, %v4814, 0.0
        %v4823 = vsel %vm4481, %v4815, 0.0
        %v4824 = vpack.c.bf16 %v4817, %v4816
        %v4825 = vpack.c.bf16 %v4819, %v4818
        %v4826 = vpack.c.bf16 %v4821, %v4820
        %v4827 = vpack.c.bf16 %v4823, %v4822
        %s4828 = scalar_lea.vmem %s4, 40
        %v4829 = vld [vmem:[%s4828] sm:$0xf]
        %v4830 = vld [vmem:[%s4828 + $0x4] sm:$0xf]
        %v4833 = vunpack.c.l.b16 %v4829
        %v4834 = vunpack.c.l.b16 %v4830
        %v4835 = vpack.c.b16 %v4834, %v4833
        %v4838 = vsel %vm3815, %v4824, 0
        %v4841 = vsel %vm3815, %v4825, 0
        %v4844 = vsel %vm3815, %v4826, 0
        %v4847 = vsel %vm3815, %v4827, 0
        %4849 = vmatprep.subr.bf16.mxu0 0
        %4850 = vmatpush1.bf16.msra.mxu0 0
        %4851 = vmatprep.subr.bf16.mxu0 0
        %4852 = vmatpush1.bf16.msra.mxu0 0
        %4853 = vmatprep.subr.bf16.mxu0 0
        %4854 = vmatpush1.bf16.msra.mxu0 0
        %4855 = vmatprep.subr.bf16.mxu0 0
        %4856 = vmatpush1.bf16.msra.mxu0 0
        %4857 = vmatprep.subr.bf16.mxu0 0
        %4858 = vmatpush1.bf16.msra.mxu0 0
        %4859 = vmatprep.subr.bf16.mxu0 0
        %4860 = vmatpush1.bf16.msra.mxu0 0
        %4861 = vmatprep.subr.bf16.mxu0 0
        %4862 = vmatpush1.bf16.msra.mxu0 0
        %4863 = vmatprep.subr.bf16.mxu0 0
        %4864 = vmatpush1.bf16.msra.mxu0 %v4835
        %4865 = vmatprep.subr.bf16.mxu0 0
        %4866 = vmatpush2.bf16.msra.mxu0 0
        %4867 = vmatprep.subr.bf16.mxu0 0
        %4868 = vmatpush2.bf16.msra.mxu0 0
        %4869 = vmatprep.subr.bf16.mxu0 0
        %4870 = vmatpush2.bf16.msra.mxu0 0
        %4871 = vmatprep.subr.bf16.mxu0 0
        %4872 = vmatpush2.bf16.msra.mxu0 0
        %4873 = vmatprep.subr.bf16.mxu0 0
        %4874 = vmatpush2.bf16.msra.mxu0 0
        %4875 = vmatprep.subr.bf16.mxu0 0
        %4876 = vmatpush2.bf16.msra.mxu0 0
        %4877 = vmatprep.subr.bf16.mxu0 0
        %4878 = vmatpush2.bf16.msra.mxu0 0
        %4879 = vmatprep.subr.bf16.mxu0 0
        %4880 = vmatpush2.bf16.msra.mxu0 0
        %4881 = vmatprep.mubr.bf16.mxu0 0
        %4882 = vmatmul.mubr.bf16.gmra.mxu0 %v4838
        %v4883 = vpop.f32.mrf.mxu0
        %v4884 = vadd.f32 0.0, %v4883
        %v4885 = vpop.f32.mrf.mxu0
        %v4886 = vpop.f32.mrf.mxu0
        %v4887 = vadd.f32 0.0, %v4886
        %v4888 = vpop.f32.mrf.mxu0
        %4889 = vmatprep.mubr.bf16.mxu0 0
        %4890 = vmatmul.mubr.bf16.gmra.mxu0 %v4841
        %v4891 = vpop.f32.mrf.mxu0
        %v4892 = vadd.f32 0.0, %v4891
        %v4893 = vpop.f32.mrf.mxu0
        %v4894 = vpop.f32.mrf.mxu0
        %v4895 = vadd.f32 0.0, %v4894
        %v4896 = vpop.f32.mrf.mxu0
        %4897 = vmatprep.mubr.bf16.mxu0 0
        %4898 = vmatmul.mubr.bf16.gmra.mxu0 %v4844
        %v4899 = vpop.f32.mrf.mxu0
        %v4900 = vadd.f32 0.0, %v4899
        %v4901 = vpop.f32.mrf.mxu0
        %v4902 = vpop.f32.mrf.mxu0
        %v4903 = vadd.f32 0.0, %v4902
        %v4904 = vpop.f32.mrf.mxu0
        %4905 = vmatprep.mubr.bf16.mxu0 0
        %4906 = vmatmul.mubr.bf16.gmra.mxu0 %v4847
        %v4907 = vpop.f32.mrf.mxu0
        %v4908 = vadd.f32 0.0, %v4907
        %v4909 = vpop.f32.mrf.mxu0
        %v4910 = vpop.f32.mrf.mxu0
        %v4911 = vadd.f32 0.0, %v4910
        %v4912 = vpop.f32.mrf.mxu0
        %4913 = vdwg.mxu0
        %v4914 = vadd.f32 %v4800, %v4884
        %v4915 = vadd.f32 %v4801, %v4887
        %v4916 = vadd.f32 %v4802, %v4892
        %v4917 = vadd.f32 %v4803, %v4895
        %v4918 = vadd.f32 %v4804, %v4900
        %v4919 = vadd.f32 %v4805, %v4903
        %v4920 = vadd.f32 %v4806, %v4908
        %v4921 = vadd.f32 %v4807, %v4911
        %v4922 = vld [vmem:[#allocation4 + $0x17] sm:$0xff]
        %v4923 = vld [vmem:[#allocation4 + $0x1f] sm:$0xff]
        %v4924 = vld [vmem:[#allocation4 + $0x27] sm:$0xff]
        %v4925 = vld [vmem:[#allocation4 + $0x2f] sm:$0xff]
        %v4926 = vld [vmem:[#allocation4 + $0x37] sm:$0xff]
        %v4927 = vld [vmem:[#allocation4 + $0x3f] sm:$0xff]
        %v4928 = vld [vmem:[#allocation4 + $0x47] sm:$0xff]
        %v4929 = vld [vmem:[#allocation4 + $0x4f] sm:$0xff]
        %v4930 = vsel %vm4263, %v4922, 0.0
        %v4931 = vsel %vm4264, %v4923, 0.0
        %v4932 = vsel %vm4265, %v4924, 0.0
        %v4933 = vsel %vm4266, %v4925, 0.0
        %v4934 = vsel %vm4267, %v4926, 0.0
        %v4935 = vsel %vm4268, %v4927, 0.0
        %v4936 = vsel %vm4269, %v4928, 0.0
        %v4937 = vsel %vm4270, %v4929, 0.0
        %v4938 = vpack.c.bf16 %v4931, %v4930
        %v4939 = vpack.c.bf16 %v4933, %v4932
        %v4940 = vpack.c.bf16 %v4935, %v4934
        %v4941 = vpack.c.bf16 %v4937, %v4936
        %s4942 = scalar_lea.vmem %s4, 48
        %v4943 = vld [vmem:[%s4942] sm:$0xf]
        %v4944 = vld [vmem:[%s4942 + $0x4] sm:$0xf]
        %v4947 = vunpack.c.l.b16 %v4943
        %v4948 = vunpack.c.l.b16 %v4944
        %v4949 = vpack.c.b16 %v4948, %v4947
        %v4952 = vsel %vm3815, %v4938, 0
        %v4955 = vsel %vm3815, %v4939, 0
        %v4958 = vsel %vm3815, %v4940, 0
        %v4961 = vsel %vm3815, %v4941, 0
        %4963 = vmatprep.subr.bf16.mxu0 0
        %4964 = vmatpush1.bf16.msra.mxu0 0
        %4965 = vmatprep.subr.bf16.mxu0 0
        %4966 = vmatpush1.bf16.msra.mxu0 0
        %4967 = vmatprep.subr.bf16.mxu0 0
        %4968 = vmatpush1.bf16.msra.mxu0 0
        %4969 = vmatprep.subr.bf16.mxu0 0
        %4970 = vmatpush1.bf16.msra.mxu0 0
        %4971 = vmatprep.subr.bf16.mxu0 0
        %4972 = vmatpush1.bf16.msra.mxu0 0
        %4973 = vmatprep.subr.bf16.mxu0 0
        %4974 = vmatpush1.bf16.msra.mxu0 0
        %4975 = vmatprep.subr.bf16.mxu0 0
        %4976 = vmatpush1.bf16.msra.mxu0 0
        %4977 = vmatprep.subr.bf16.mxu0 0
        %4978 = vmatpush1.bf16.msra.mxu0 %v4949
        %4979 = vmatprep.subr.bf16.mxu0 0
        %4980 = vmatpush2.bf16.msra.mxu0 0
        %4981 = vmatprep.subr.bf16.mxu0 0
        %4982 = vmatpush2.bf16.msra.mxu0 0
        %4983 = vmatprep.subr.bf16.mxu0 0
        %4984 = vmatpush2.bf16.msra.mxu0 0
        %4985 = vmatprep.subr.bf16.mxu0 0
        %4986 = vmatpush2.bf16.msra.mxu0 0
        %4987 = vmatprep.subr.bf16.mxu0 0
        %4988 = vmatpush2.bf16.msra.mxu0 0
        %4989 = vmatprep.subr.bf16.mxu0 0
        %4990 = vmatpush2.bf16.msra.mxu0 0
        %4991 = vmatprep.subr.bf16.mxu0 0
        %4992 = vmatpush2.bf16.msra.mxu0 0
        %4993 = vmatprep.subr.bf16.mxu0 0
        %4994 = vmatpush2.bf16.msra.mxu0 0
        %4995 = vmatprep.mubr.bf16.mxu0 0
        %4996 = vmatmul.mubr.bf16.gmra.mxu0 %v4952
        %v4997 = vpop.f32.mrf.mxu0
        %v4998 = vadd.f32 0.0, %v4997
        %v4999 = vpop.f32.mrf.mxu0
        %v5000 = vpop.f32.mrf.mxu0
        %v5001 = vadd.f32 0.0, %v5000
        %v5002 = vpop.f32.mrf.mxu0
        %5003 = vmatprep.mubr.bf16.mxu0 0
        %5004 = vmatmul.mubr.bf16.gmra.mxu0 %v4955
        %v5005 = vpop.f32.mrf.mxu0
        %v5006 = vadd.f32 0.0, %v5005
        %v5007 = vpop.f32.mrf.mxu0
        %v5008 = vpop.f32.mrf.mxu0
        %v5009 = vadd.f32 0.0, %v5008
        %v5010 = vpop.f32.mrf.mxu0
        %5011 = vmatprep.mubr.bf16.mxu0 0
        %5012 = vmatmul.mubr.bf16.gmra.mxu0 %v4958
        %v5013 = vpop.f32.mrf.mxu0
        %v5014 = vadd.f32 0.0, %v5013
        %v5015 = vpop.f32.mrf.mxu0
        %v5016 = vpop.f32.mrf.mxu0
        %v5017 = vadd.f32 0.0, %v5016
        %v5018 = vpop.f32.mrf.mxu0
        %5019 = vmatprep.mubr.bf16.mxu0 0
        %5020 = vmatmul.mubr.bf16.gmra.mxu0 %v4961
        %v5021 = vpop.f32.mrf.mxu0
        %v5022 = vadd.f32 0.0, %v5021
        %v5023 = vpop.f32.mrf.mxu0
        %v5024 = vpop.f32.mrf.mxu0
        %v5025 = vadd.f32 0.0, %v5024
        %v5026 = vpop.f32.mrf.mxu0
        %5027 = vdwg.mxu0
        %v5028 = vadd.f32 %v4914, %v4998
        %v5029 = vadd.f32 %v4915, %v5001
        %v5030 = vadd.f32 %v4916, %v5006
        %v5031 = vadd.f32 %v4917, %v5009
        %v5032 = vadd.f32 %v4918, %v5014
        %v5033 = vadd.f32 %v4919, %v5017
        %v5034 = vadd.f32 %v4920, %v5022
        %v5035 = vadd.f32 %v4921, %v5025
        %v5036 = vld [vmem:[#allocation4 + $0x18] sm:$0xff]
        %v5037 = vld [vmem:[#allocation4 + $0x20] sm:$0xff]
        %v5038 = vld [vmem:[#allocation4 + $0x28] sm:$0xff]
        %v5039 = vld [vmem:[#allocation4 + $0x30] sm:$0xff]
        %v5040 = vld [vmem:[#allocation4 + $0x38] sm:$0xff]
        %v5041 = vld [vmem:[#allocation4 + $0x40] sm:$0xff]
        %v5042 = vld [vmem:[#allocation4 + $0x48] sm:$0xff]
        %v5043 = vld [vmem:[#allocation4 + $0x50] sm:$0xff]
        %v5044 = vpack.c.bf16 %v5037, %v5036
        %v5045 = vpack.c.bf16 %v5039, %v5038
        %v5046 = vpack.c.bf16 %v5041, %v5040
        %v5047 = vpack.c.bf16 %v5043, %v5042
        %s5048 = scalar_lea.vmem %s4, 56
        %v5049 = vld [vmem:[%s5048] sm:$0xf]
        %v5050 = vld [vmem:[%s5048 + $0x4] sm:$0xf]
        %v5053 = vunpack.c.l.b16 %v5049
        %v5054 = vunpack.c.l.b16 %v5050
        %v5055 = vpack.c.b16 %v5054, %v5053
        %v5058 = vsel %vm3815, %v5044, 0
        %v5061 = vsel %vm3815, %v5045, 0
        %v5064 = vsel %vm3815, %v5046, 0
        %v5067 = vsel %vm3815, %v5047, 0
        %5069 = vmatprep.subr.bf16.mxu0 0
        %5070 = vmatpush1.bf16.msra.mxu0 0
        %5071 = vmatprep.subr.bf16.mxu0 0
        %5072 = vmatpush1.bf16.msra.mxu0 0
        %5073 = vmatprep.subr.bf16.mxu0 0
        %5074 = vmatpush1.bf16.msra.mxu0 0
        %5075 = vmatprep.subr.bf16.mxu0 0
        %5076 = vmatpush1.bf16.msra.mxu0 0
        %5077 = vmatprep.subr.bf16.mxu0 0
        %5078 = vmatpush1.bf16.msra.mxu0 0
        %5079 = vmatprep.subr.bf16.mxu0 0
        %5080 = vmatpush1.bf16.msra.mxu0 0
        %5081 = vmatprep.subr.bf16.mxu0 0
        %5082 = vmatpush1.bf16.msra.mxu0 0
        %5083 = vmatprep.subr.bf16.mxu0 0
        %5084 = vmatpush1.bf16.msra.mxu0 %v5055
        %5085 = vmatprep.subr.bf16.mxu0 0
        %5086 = vmatpush2.bf16.msra.mxu0 0
        %5087 = vmatprep.subr.bf16.mxu0 0
        %5088 = vmatpush2.bf16.msra.mxu0 0
        %5089 = vmatprep.subr.bf16.mxu0 0
        %5090 = vmatpush2.bf16.msra.mxu0 0
        %5091 = vmatprep.subr.bf16.mxu0 0
        %5092 = vmatpush2.bf16.msra.mxu0 0
        %5093 = vmatprep.subr.bf16.mxu0 0
        %5094 = vmatpush2.bf16.msra.mxu0 0
        %5095 = vmatprep.subr.bf16.mxu0 0
        %5096 = vmatpush2.bf16.msra.mxu0 0
        %5097 = vmatprep.subr.bf16.mxu0 0
        %5098 = vmatpush2.bf16.msra.mxu0 0
        %5099 = vmatprep.subr.bf16.mxu0 0
        %5100 = vmatpush2.bf16.msra.mxu0 0
        %5101 = vmatprep.mubr.bf16.mxu0 0
        %5102 = vmatmul.mubr.bf16.gmra.mxu0 %v5058
        %v5103 = vpop.f32.mrf.mxu0
        %v5104 = vadd.f32 0.0, %v5103
        %v5105 = vpop.f32.mrf.mxu0
        %v5106 = vpop.f32.mrf.mxu0
        %v5107 = vadd.f32 0.0, %v5106
        %v5108 = vpop.f32.mrf.mxu0
        %5109 = vmatprep.mubr.bf16.mxu0 0
        %5110 = vmatmul.mubr.bf16.gmra.mxu0 %v5061
        %v5111 = vpop.f32.mrf.mxu0
        %v5112 = vadd.f32 0.0, %v5111
        %v5113 = vpop.f32.mrf.mxu0
        %v5114 = vpop.f32.mrf.mxu0
        %v5115 = vadd.f32 0.0, %v5114
        %v5116 = vpop.f32.mrf.mxu0
        %5117 = vmatprep.mubr.bf16.mxu0 0
        %5118 = vmatmul.mubr.bf16.gmra.mxu0 %v5064
        %v5119 = vpop.f32.mrf.mxu0
        %v5120 = vadd.f32 0.0, %v5119
        %v5121 = vpop.f32.mrf.mxu0
        %v5122 = vpop.f32.mrf.mxu0
        %v5123 = vadd.f32 0.0, %v5122
        %v5124 = vpop.f32.mrf.mxu0
        %5125 = vmatprep.mubr.bf16.mxu0 0
        %5126 = vmatmul.mubr.bf16.gmra.mxu0 %v5067
        %v5127 = vpop.f32.mrf.mxu0
        %v5128 = vadd.f32 0.0, %v5127
        %v5129 = vpop.f32.mrf.mxu0
        %v5130 = vpop.f32.mrf.mxu0
        %v5131 = vadd.f32 0.0, %v5130
        %v5132 = vpop.f32.mrf.mxu0
        %5133 = vdwg.mxu0
        %v5134 = vadd.f32 %v5028, %v5104
        %v5135 = vadd.f32 %v5029, %v5107
        %v5136 = vadd.f32 %v5030, %v5112
        %v5137 = vadd.f32 %v5031, %v5115
        %v5138 = vadd.f32 %v5032, %v5120
        %v5139 = vadd.f32 %v5033, %v5123
        %v5140 = vadd.f32 %v5034, %v5128
        %v5141 = vadd.f32 %v5035, %v5131
        %v5142 = vld [vmem:[#allocation4 + $0x19] sm:$0xff]
        %v5143 = vld [vmem:[#allocation4 + $0x21] sm:$0xff]
        %v5144 = vld [vmem:[#allocation4 + $0x29] sm:$0xff]
        %v5145 = vld [vmem:[#allocation4 + $0x31] sm:$0xff]
        %v5146 = vld [vmem:[#allocation4 + $0x39] sm:$0xff]
        %v5147 = vld [vmem:[#allocation4 + $0x41] sm:$0xff]
        %v5148 = vld [vmem:[#allocation4 + $0x49] sm:$0xff]
        %v5149 = vld [vmem:[#allocation4 + $0x51] sm:$0xff]
        %v5150 = vsel %vm4474, %v5142, 0.0
        %v5151 = vsel %vm4475, %v5143, 0.0
        %v5152 = vsel %vm4476, %v5144, 0.0
        %v5153 = vsel %vm4477, %v5145, 0.0
        %v5154 = vsel %vm4478, %v5146, 0.0
        %v5155 = vsel %vm4479, %v5147, 0.0
        %v5156 = vsel %vm4480, %v5148, 0.0
        %v5157 = vsel %vm4481, %v5149, 0.0
        %v5158 = vpack.c.bf16 %v5151, %v5150
        %v5159 = vpack.c.bf16 %v5153, %v5152
        %v5160 = vpack.c.bf16 %v5155, %v5154
        %v5161 = vpack.c.bf16 %v5157, %v5156
        %s5162 = scalar_lea.vmem %s4, 64
        %v5163 = vld [vmem:[%s5162] sm:$0xf]
        %v5164 = vld [vmem:[%s5162 + $0x4] sm:$0xf]
        %v5167 = vunpack.c.l.b16 %v5163
        %v5168 = vunpack.c.l.b16 %v5164
        %v5169 = vpack.c.b16 %v5168, %v5167
        %v5172 = vsel %vm3815, %v5158, 0
        %v5175 = vsel %vm3815, %v5159, 0
        %v5178 = vsel %vm3815, %v5160, 0
        %v5181 = vsel %vm3815, %v5161, 0
        %5183 = vmatprep.subr.bf16.mxu0 0
        %5184 = vmatpush1.bf16.msra.mxu0 0
        %5185 = vmatprep.subr.bf16.mxu0 0
        %5186 = vmatpush1.bf16.msra.mxu0 0
        %5187 = vmatprep.subr.bf16.mxu0 0
        %5188 = vmatpush1.bf16.msra.mxu0 0
        %5189 = vmatprep.subr.bf16.mxu0 0
        %5190 = vmatpush1.bf16.msra.mxu0 0
        %5191 = vmatprep.subr.bf16.mxu0 0
        %5192 = vmatpush1.bf16.msra.mxu0 0
        %5193 = vmatprep.subr.bf16.mxu0 0
        %5194 = vmatpush1.bf16.msra.mxu0 0
        %5195 = vmatprep.subr.bf16.mxu0 0
        %5196 = vmatpush1.bf16.msra.mxu0 0
        %5197 = vmatprep.subr.bf16.mxu0 0
        %5198 = vmatpush1.bf16.msra.mxu0 %v5169
        %5199 = vmatprep.subr.bf16.mxu0 0
        %5200 = vmatpush2.bf16.msra.mxu0 0
        %5201 = vmatprep.subr.bf16.mxu0 0
        %5202 = vmatpush2.bf16.msra.mxu0 0
        %5203 = vmatprep.subr.bf16.mxu0 0
        %5204 = vmatpush2.bf16.msra.mxu0 0
        %5205 = vmatprep.subr.bf16.mxu0 0
        %5206 = vmatpush2.bf16.msra.mxu0 0
        %5207 = vmatprep.subr.bf16.mxu0 0
        %5208 = vmatpush2.bf16.msra.mxu0 0
        %5209 = vmatprep.subr.bf16.mxu0 0
        %5210 = vmatpush2.bf16.msra.mxu0 0
        %5211 = vmatprep.subr.bf16.mxu0 0
        %5212 = vmatpush2.bf16.msra.mxu0 0
        %5213 = vmatprep.subr.bf16.mxu0 0
        %5214 = vmatpush2.bf16.msra.mxu0 0
        %5215 = vmatprep.mubr.bf16.mxu0 0
        %5216 = vmatmul.mubr.bf16.gmra.mxu0 %v5172
        %v5217 = vpop.f32.mrf.mxu0
        %v5218 = vadd.f32 0.0, %v5217
        %v5219 = vpop.f32.mrf.mxu0
        %v5220 = vpop.f32.mrf.mxu0
        %v5221 = vadd.f32 0.0, %v5220
        %v5222 = vpop.f32.mrf.mxu0
        %5223 = vmatprep.mubr.bf16.mxu0 0
        %5224 = vmatmul.mubr.bf16.gmra.mxu0 %v5175
        %v5225 = vpop.f32.mrf.mxu0
        %v5226 = vadd.f32 0.0, %v5225
        %v5227 = vpop.f32.mrf.mxu0
        %v5228 = vpop.f32.mrf.mxu0
        %v5229 = vadd.f32 0.0, %v5228
        %v5230 = vpop.f32.mrf.mxu0
        %5231 = vmatprep.mubr.bf16.mxu0 0
        %5232 = vmatmul.mubr.bf16.gmra.mxu0 %v5178
        %v5233 = vpop.f32.mrf.mxu0
        %v5234 = vadd.f32 0.0, %v5233
        %v5235 = vpop.f32.mrf.mxu0
        %v5236 = vpop.f32.mrf.mxu0
        %v5237 = vadd.f32 0.0, %v5236
        %v5238 = vpop.f32.mrf.mxu0
        %5239 = vmatprep.mubr.bf16.mxu0 0
        %5240 = vmatmul.mubr.bf16.gmra.mxu0 %v5181
        %v5241 = vpop.f32.mrf.mxu0
        %v5242 = vadd.f32 0.0, %v5241
        %v5243 = vpop.f32.mrf.mxu0
        %v5244 = vpop.f32.mrf.mxu0
        %v5245 = vadd.f32 0.0, %v5244
        %v5246 = vpop.f32.mrf.mxu0
        %5247 = vdwg.mxu0
        %v5248 = vadd.f32 %v5134, %v5218
        %v5249 = vadd.f32 %v5135, %v5221
        %v5250 = vadd.f32 %v5136, %v5226
        %v5251 = vadd.f32 %v5137, %v5229
        %v5252 = vadd.f32 %v5138, %v5234
        %v5253 = vadd.f32 %v5139, %v5237
        %v5254 = vadd.f32 %v5140, %v5242
        %v5255 = vadd.f32 %v5141, %v5245
        %v5256 = vld [vmem:[%s5] sm:$0x1]
        %v5258 = vlaneseq
        %v5259 = vshrl.u32 %v5258, 7
        %v5260 = vsub.s32 0, %v5259
        %v5261 = vrot.slane %v5256, %v5260
        %v5263 = vadd.f32 %v5248, %v5261
        %v5264 = vadd.f32 %v5249, %v5261
        %v5265 = vadd.f32 %v5250, %v5261
        %v5266 = vadd.f32 %v5251, %v5261
        %v5267 = vadd.f32 %v5252, %v5261
        %v5268 = vadd.f32 %v5253, %v5261
        %v5269 = vadd.f32 %v5254, %v5261
        %v5270 = vadd.f32 %v5255, %v5261
        %v5271 = vmax.f32 %v5263, 0.0
        %v5272 = vmax.f32 %v5264, 0.0
        %v5273 = vmax.f32 %v5265, 0.0
        %v5274 = vmax.f32 %v5266, 0.0
        %v5275 = vmax.f32 %v5267, 0.0
        %v5276 = vmax.f32 %v5268, 0.0
        %v5277 = vmax.f32 %v5269, 0.0
        %v5278 = vmax.f32 %v5270, 0.0
        %vm5279 = vcmask 261120
        %5280 = vst.msk [vmem:[#allocation5] sm:$0xff] %vm5279, 0.0
        %5281 = vst.msk [vmem:[#allocation5 + $0x8] sm:$0xff] %vm5279, 0.0
        %5282 = vst.msk [vmem:[#allocation5 + $0x10] sm:$0xff] %vm5279, 0.0
        %5283 = vst.msk [vmem:[#allocation5 + $0x18] sm:$0xff] %vm5279, 0.0
        %5284 = vst.msk [vmem:[#allocation5 + $0x20] sm:$0xff] %vm5279, 0.0
        %5285 = vst.msk [vmem:[#allocation5 + $0x28] sm:$0xff] %vm5279, 0.0
        %5286 = vst.msk [vmem:[#allocation5 + $0x30] sm:$0xff] %vm5279, 0.0
        %5287 = vst.msk [vmem:[#allocation5 + $0x38] sm:$0xff] %vm5279, 0.0
        %5288 = vst.msk [vmem:[#allocation5 + $0x40] sm:$0xff] %vm5279, 0.0
        %vm5289 = vcmask 253952
        %5290 = vst.msk [vmem:[#allocation5 + $0x48] sm:$0x1] %vm5289, 0.0
        %5291 = vst.msk [vmem:[#allocation5] sm:$0xff] %vm5279, %v5271
        %5292 = vst.msk [vmem:[#allocation5 + $0x8] sm:$0xff] %vm5279, %v5272
        %5293 = vst.msk [vmem:[#allocation5 + $0x10] sm:$0xff] %vm5279, %v5273
        %5294 = vst.msk [vmem:[#allocation5 + $0x18] sm:$0xff] %vm5279, %v5274
        %5295 = vst.msk [vmem:[#allocation5 + $0x20] sm:$0xff] %vm5279, %v5275
        %5296 = vst.msk [vmem:[#allocation5 + $0x28] sm:$0xff] %vm5279, %v5276
        %5297 = vst.msk [vmem:[#allocation5 + $0x30] sm:$0xff] %vm5279, %v5277
        %5298 = vst.msk [vmem:[#allocation5 + $0x38] sm:$0xff] %vm5279, %v5278
        %v5299 = vld [vmem:[#allocation5] sm:$0xff]
        %v5300 = vld [vmem:[#allocation5 + $0x8] sm:$0xff]
        %v5301 = vld [vmem:[#allocation5 + $0x10] sm:$0xff]
        %v5302 = vld [vmem:[#allocation5 + $0x18] sm:$0xff]
        %v5303 = vld [vmem:[#allocation5 + $0x20] sm:$0xff]
        %v5304 = vld [vmem:[#allocation5 + $0x28] sm:$0xff]
        %v5305 = vld [vmem:[#allocation5 + $0x30] sm:$0xff]
        %v5306 = vld [vmem:[#allocation5 + $0x38] sm:$0xff]
        %v5307 = vld [vmem:[#allocation5 + $0x1] sm:$0xff]
        %v5308 = vld [vmem:[#allocation5 + $0x9] sm:$0xff]
        %v5309 = vld [vmem:[#allocation5 + $0x11] sm:$0xff]
        %v5310 = vld [vmem:[#allocation5 + $0x19] sm:$0xff]
        %v5311 = vld [vmem:[#allocation5 + $0x21] sm:$0xff]
        %v5312 = vld [vmem:[#allocation5 + $0x29] sm:$0xff]
        %v5313 = vld [vmem:[#allocation5 + $0x31] sm:$0xff]
        %v5314 = vld [vmem:[#allocation5 + $0x39] sm:$0xff]
        %v5315 = vmax.f32 %v5299, %v5307
        %v5316 = vmax.f32 %v5300, %v5308
        %v5317 = vmax.f32 %v5301, %v5309
        %v5318 = vmax.f32 %v5302, %v5310
        %v5319 = vmax.f32 %v5303, %v5311
        %v5320 = vmax.f32 %v5304, %v5312
        %v5321 = vmax.f32 %v5305, %v5313
        %v5322 = vmax.f32 %v5306, %v5314
        %v5323 = vld [vmem:[#allocation5 + $0x40] sm:$0xff]
        %v5324 = vld [vmem:[#allocation5 + $0x41] sm:$0xff]
        %v5325 = vmax.f32 %v5323, %v5324
        %v5326 = vmax.f32 %v5315, %v5316
        %v5327 = vmax.f32 %v5316, %v5317
        %v5328 = vmax.f32 %v5317, %v5318
        %v5329 = vmax.f32 %v5318, %v5319
        %v5330 = vmax.f32 %v5319, %v5320
        %v5331 = vmax.f32 %v5320, %v5321
        %v5332 = vmax.f32 %v5321, %v5322
        %v5333 = vmax.f32 %v5322, %v5325
        %v5334 = vld [vmem:[%s6] sm:$0xff]
        %v5335 = vld [vmem:[%s6 + $0x8] sm:$0xff]
        %vm5336 = vcmask 523264
        %v5338 = vsel %vm5336, %v5334, 0
        %v5341 = vsel %vm5336, %v5335, 0
        %5343 = vmatprep.subr.mxu0 0.0
        %5344 = vmatpush1.msra.mxu0 0.0
        %5345 = vmatprep.subr.mxu0 0.0
        %5346 = vmatpush1.msra.mxu0 0.0
        %5347 = vmatprep.subr.mxu0 0.0
        %5348 = vmatpush1.msra.mxu0 0.0
        %5349 = vmatprep.subr.mxu0 0.0
        %5350 = vmatpush1.msra.mxu0 0.0
        %5351 = vmatprep.subr.mxu0 0.0
        %5352 = vmatpush1.msra.mxu0 0.0
        %5353 = vmatprep.subr.mxu0 0.0
        %5354 = vmatpush1.msra.mxu0 0.0
        %5355 = vmatprep.subr.mxu0 0.0
        %5356 = vmatpush1.msra.mxu0 0.0
        %5357 = vmatprep.subr.mxu0 0.0
        %5358 = vmatpush1.msra.mxu0 0.0
        %5359 = vmatprep.subr.mxu0 0.0
        %5360 = vmatpush1.msra.mxu0 %v5333
        %5361 = vmatprep.subr.mxu0 0.0
        %5362 = vmatpush1.msra.mxu0 %v5332
        %5363 = vmatprep.subr.mxu0 0.0
        %5364 = vmatpush1.msra.mxu0 %v5331
        %5365 = vmatprep.subr.mxu0 0.0
        %5366 = vmatpush1.msra.mxu0 %v5330
        %5367 = vmatprep.subr.mxu0 0.0
        %5368 = vmatpush1.msra.mxu0 %v5329
        %5369 = vmatprep.subr.mxu0 0.0
        %5370 = vmatpush1.msra.mxu0 %v5328
        %5371 = vmatprep.subr.mxu0 0.0
        %5372 = vmatpush1.msra.mxu0 %v5327
        %5373 = vmatprep.subr.mxu0 0.0
        %5374 = vmatpush1.msra.mxu0 %v5326
        %5375 = vmatprep.subr.mxu0 0.0
        %5376 = vmatpush2.msra.mxu0 0.0
        %5377 = vmatprep.subr.mxu0 0.0
        %5378 = vmatpush2.msra.mxu0 0.0
        %5379 = vmatprep.subr.mxu0 0.0
        %5380 = vmatpush2.msra.mxu0 0.0
        %5381 = vmatprep.subr.mxu0 0.0
        %5382 = vmatpush2.msra.mxu0 0.0
        %5383 = vmatprep.subr.mxu0 0.0
        %5384 = vmatpush2.msra.mxu0 0.0
        %5385 = vmatprep.subr.mxu0 0.0
        %5386 = vmatpush2.msra.mxu0 0.0
        %5387 = vmatprep.subr.mxu0 0.0
        %5388 = vmatpush2.msra.mxu0 0.0
        %5389 = vmatprep.subr.mxu0 0.0
        %5390 = vmatpush2.msra.mxu0 0.0
        %5391 = vmatprep.subr.mxu0 0.0
        %5392 = vmatpush2.msra.mxu0 0.0
        %5393 = vmatprep.subr.mxu0 0.0
        %5394 = vmatpush2.msra.mxu0 0.0
        %5395 = vmatprep.subr.mxu0 0.0
        %5396 = vmatpush2.msra.mxu0 0.0
        %5397 = vmatprep.subr.mxu0 0.0
        %5398 = vmatpush2.msra.mxu0 0.0
        %5399 = vmatprep.subr.mxu0 0.0
        %5400 = vmatpush2.msra.mxu0 0.0
        %5401 = vmatprep.subr.mxu0 0.0
        %5402 = vmatpush2.msra.mxu0 0.0
        %5403 = vmatprep.subr.mxu0 0.0
        %5404 = vmatpush2.msra.mxu0 0.0
        %5405 = vmatprep.subr.mxu0 0.0
        %5406 = vmatpush2.msra.mxu0 0.0
        %5407 = vmatprep.mubr.f32.mxu0 0.0
        %5408 = vmatmul.mubr.f32.gmra.mxu0 %v5338
        %v5409 = vpop.f32.mrf.mxu0
        %v5410 = vadd.f32 0.0, %v5409
        %v5411 = vpop.f32.mrf.mxu0
        %5412 = vmatprep.mubr.f32.mxu0 0.0
        %5413 = vmatmul.mubr.f32.gmra.mxu0 %v5341
        %v5414 = vpop.f32.mrf.mxu0
        %v5415 = vadd.f32 0.0, %v5414
        %v5416 = vpop.f32.mrf.mxu0
        %5417 = vdwg.mxu0
        %5418 = vst.msk [vmem:[#allocation6] sm:$0xff] %vm5279, 0.0
        %5419 = vst.msk [vmem:[#allocation6 + $0x8] sm:$0xff] %vm5279, 0.0
        %5420 = vst.msk [vmem:[#allocation6 + $0x10] sm:$0xff] %vm5279, 0.0
        %vm5421 = vcmask 258048
        %5422 = vst.msk [vmem:[#allocation6 + $0x18] sm:$0x1f] %vm5421, 0.0
        %5423 = vst.msk [vmem:[#allocation6 + $0x8] sm:$0xff] %vm5279, %v5410
        %5424 = vst.msk [vmem:[#allocation6 + $0x10] sm:$0xff] %vm5279, %v5415
        %vm5425 = vcmp.lt.s32.totalorder %v490, 0
        %v5426 = vsub.s32 0, %v490
        %v5427 = vsel %vm5425, %v5426, %v490
        %v5428 = vshrl.u32 %v5427, 2
        %v5429 = vand.u32 %v5427, 3
        %v5430 = vsub.s32 0, %v5429
        %v5431 = vsel %vm5425, %v5430, %v5429
        %vm5432 = vcmp.lt.s32.totalorder %v491, 0
        %v5433 = vsub.s32 0, %v491
        %v5434 = vsel %vm5432, %v5433, %v491
        %v5435 = vshrl.u32 %v5434, 2
        %v5436 = vand.u32 %v5434, 3
        %v5437 = vsub.s32 0, %v5436
        %v5438 = vsel %vm5432, %v5437, %v5436
        %vm5439 = vcmp.ne.s32.totalorder %v5431, 0
        %vm5440 = vcmp.ne.s32.totalorder %v5438, 0
        %vm5441 = vcmp.lt.s32.totalorder %v5431, 0
        %vm5442 = vcmp.lt.s32.totalorder %v5438, 0
        %vm5443 = vmand %vm5441, %vm5439
        %vm5444 = vmand %vm5442, %vm5440
        %v5445 = vadd.s32 %v5431, 4
        %v5446 = vadd.s32 %v5438, 4
        %v5447 = vsel %vm5443, %v5445, %v5431
        %v5448 = vsel %vm5444, %v5446, %v5438
        %v5449 = vld [vmem:[#allocation6 + $0x3] sm:$0xff]
        %v5450 = vld [vmem:[#allocation6 + $0xb] sm:$0xff]
        %vm5451 = vcmp.ge.s32.totalorder %v5447, 1
        %vm5452 = vcmp.ge.s32.totalorder %v5448, 1
        %v5453 = vsel %vm5451, %v5449, 0.0
        %v5454 = vsel %vm5452, %v5450, 0.0
        %v5455 = vpack.c.bf16 %v5454, %v5453
        %v5456 = vld [vmem:[%s7] sm:$0xf]
        %v5457 = vld [vmem:[%s7 + $0x4] sm:$0xf]
        %v5458 = vld [vmem:[%s7 + $0x8] sm:$0xf]
        %v5459 = vld [vmem:[%s7 + $0xc] sm:$0xf]
        %v5460 = vld [vmem:[#allocation6 + $0x4] sm:$0xff]
        %v5461 = vld [vmem:[#allocation6 + $0xc] sm:$0xff]
        %v5462 = vpack.c.bf16 %v5461, %v5460
        %s5463 = scalar_lea.vmem %s7, 16
        %v5464 = vld [vmem:[%s5463] sm:$0xf]
        %v5465 = vld [vmem:[%s5463 + $0x4] sm:$0xf]
        %v5466 = vld [vmem:[%s5463 + $0x8] sm:$0xf]
        %v5467 = vld [vmem:[%s5463 + $0xc] sm:$0xf]
        %v5472 = vunpack.c.l.b16 %v5464
        %v5473 = vunpack.c.l.b16 %v5465
        %v5474 = vunpack.c.l.b16 %v5466
        %v5475 = vunpack.c.l.b16 %v5467
        %v5476 = vpack.c.b16 %v5473, %v5472
        %v5477 = vpack.c.b16 %v5475, %v5474
        %v5481 = vsel %vm5279, %v5462, 0
        %5483 = vmatprep.subr.bf16.mxu0 0
        %5484 = vmatpush1.bf16.msra.mxu0 0
        %5485 = vmatprep.subr.bf16.mxu0 0
        %5486 = vmatpush1.bf16.msra.mxu0 0
        %5487 = vmatprep.subr.bf16.mxu0 0
        %5488 = vmatpush1.bf16.msra.mxu0 0
        %5489 = vmatprep.subr.bf16.mxu0 0
        %5490 = vmatpush1.bf16.msra.mxu0 0
        %5491 = vmatprep.subr.bf16.mxu0 0
        %5492 = vmatpush1.bf16.msra.mxu0 0
        %5493 = vmatprep.subr.bf16.mxu0 0
        %5494 = vmatpush1.bf16.msra.mxu0 0
        %5495 = vmatprep.subr.bf16.mxu0 0
        %5496 = vmatpush1.bf16.msra.mxu0 %v5477
        %5497 = vmatprep.subr.bf16.mxu0 0
        %5498 = vmatpush1.bf16.msra.mxu0 %v5476
        %5499 = vmatprep.subr.bf16.mxu0 0
        %5500 = vmatpush2.bf16.msra.mxu0 0
        %5501 = vmatprep.subr.bf16.mxu0 0
        %5502 = vmatpush2.bf16.msra.mxu0 0
        %5503 = vmatprep.subr.bf16.mxu0 0
        %5504 = vmatpush2.bf16.msra.mxu0 0
        %5505 = vmatprep.subr.bf16.mxu0 0
        %5506 = vmatpush2.bf16.msra.mxu0 0
        %5507 = vmatprep.subr.bf16.mxu0 0
        %5508 = vmatpush2.bf16.msra.mxu0 0
        %5509 = vmatprep.subr.bf16.mxu0 0
        %5510 = vmatpush2.bf16.msra.mxu0 0
        %5511 = vmatprep.subr.bf16.mxu0 0
        %5512 = vmatpush2.bf16.msra.mxu0 0
        %5513 = vmatprep.subr.bf16.mxu0 0
        %5514 = vmatpush2.bf16.msra.mxu0 0
        %5515 = vmatprep.mubr.bf16.mxu0 0
        %5516 = vmatmul.mubr.bf16.gmra.mxu0 %v5481
        %v5517 = vpop.f32.mrf.mxu0
        %v5518 = vadd.f32 0.0, %v5517
        %v5519 = vpop.f32.mrf.mxu0
        %v5520 = vpop.f32.mrf.mxu0
        %v5521 = vadd.f32 0.0, %v5520
        %v5522 = vpop.f32.mrf.mxu0
        %5523 = vdwg.mxu0
        %v5528 = vunpack.c.l.b16 %v5456
        %v5529 = vunpack.c.l.b16 %v5457
        %v5530 = vunpack.c.l.b16 %v5458
        %v5531 = vunpack.c.l.b16 %v5459
        %v5532 = vpack.c.b16 %v5529, %v5528
        %v5533 = vpack.c.b16 %v5531, %v5530
        %v5537 = vsel %vm5279, %v5455, 0
        %5539 = vmatprep.subr.bf16.mxu0 0
        %5540 = vmatpush1.bf16.msra.mxu0 0
        %5541 = vmatprep.subr.bf16.mxu0 0
        %5542 = vmatpush1.bf16.msra.mxu0 0
        %5543 = vmatprep.subr.bf16.mxu0 0
        %5544 = vmatpush1.bf16.msra.mxu0 0
        %5545 = vmatprep.subr.bf16.mxu0 0
        %5546 = vmatpush1.bf16.msra.mxu0 0
        %5547 = vmatprep.subr.bf16.mxu0 0
        %5548 = vmatpush1.bf16.msra.mxu0 0
        %5549 = vmatprep.subr.bf16.mxu0 0
        %5550 = vmatpush1.bf16.msra.mxu0 0
        %5551 = vmatprep.subr.bf16.mxu0 0
        %5552 = vmatpush1.bf16.msra.mxu0 %v5533
        %5553 = vmatprep.subr.bf16.mxu0 0
        %5554 = vmatpush1.bf16.msra.mxu0 %v5532
        %5555 = vmatprep.subr.bf16.mxu0 0
        %5556 = vmatpush2.bf16.msra.mxu0 0
        %5557 = vmatprep.subr.bf16.mxu0 0
        %5558 = vmatpush2.bf16.msra.mxu0 0
        %5559 = vmatprep.subr.bf16.mxu0 0
        %5560 = vmatpush2.bf16.msra.mxu0 0
        %5561 = vmatprep.subr.bf16.mxu0 0
        %5562 = vmatpush2.bf16.msra.mxu0 0
        %5563 = vmatprep.subr.bf16.mxu0 0
        %5564 = vmatpush2.bf16.msra.mxu0 0
        %5565 = vmatprep.subr.bf16.mxu0 0
        %5566 = vmatpush2.bf16.msra.mxu0 0
        %5567 = vmatprep.subr.bf16.mxu0 0
        %5568 = vmatpush2.bf16.msra.mxu0 0
        %5569 = vmatprep.subr.bf16.mxu0 0
        %5570 = vmatpush2.bf16.msra.mxu0 0
        %5571 = vmatprep.mubr.bf16.mxu0 0
        %5572 = vmatmul.mubr.bf16.gmra.mxu0 %v5537
        %v5573 = vpop.f32.mrf.mxu0
        %v5574 = vadd.f32 %v5518, %v5573
        %v5575 = vpop.f32.mrf.mxu0
        %v5576 = vpop.f32.mrf.mxu0
        %v5577 = vadd.f32 %v5521, %v5576
        %v5578 = vpop.f32.mrf.mxu0
        %5579 = vdwg.mxu0
        %v5580 = vld [vmem:[#allocation6 + $0x5] sm:$0xff]
        %v5581 = vld [vmem:[#allocation6 + $0xd] sm:$0xff]
        %vm5582 = vcmp.lt.s32.totalorder %v5447, 3
        %vm5583 = vcmp.lt.s32.totalorder %v5448, 3
        %v5584 = vsel %vm5582, %v5580, 0.0
        %v5585 = vsel %vm5583, %v5581, 0.0
        %v5586 = vpack.c.bf16 %v5585, %v5584
        %s5587 = scalar_lea.vmem %s7, 32
        %v5588 = vld [vmem:[%s5587] sm:$0xf]
        %v5589 = vld [vmem:[%s5587 + $0x4] sm:$0xf]
        %v5590 = vld [vmem:[%s5587 + $0x8] sm:$0xf]
        %v5591 = vld [vmem:[%s5587 + $0xc] sm:$0xf]
        %v5596 = vunpack.c.l.b16 %v5588
        %v5597 = vunpack.c.l.b16 %v5589
        %v5598 = vunpack.c.l.b16 %v5590
        %v5599 = vunpack.c.l.b16 %v5591
        %v5600 = vpack.c.b16 %v5597, %v5596
        %v5601 = vpack.c.b16 %v5599, %v5598
        %v5605 = vsel %vm5279, %v5586, 0
        %5607 = vmatprep.subr.bf16.mxu0 0
        %5608 = vmatpush1.bf16.msra.mxu0 0
        %5609 = vmatprep.subr.bf16.mxu0 0
        %5610 = vmatpush1.bf16.msra.mxu0 0
        %5611 = vmatprep.subr.bf16.mxu0 0
        %5612 = vmatpush1.bf16.msra.mxu0 0
        %5613 = vmatprep.subr.bf16.mxu0 0
        %5614 = vmatpush1.bf16.msra.mxu0 0
        %5615 = vmatprep.subr.bf16.mxu0 0
        %5616 = vmatpush1.bf16.msra.mxu0 0
        %5617 = vmatprep.subr.bf16.mxu0 0
        %5618 = vmatpush1.bf16.msra.mxu0 0
        %5619 = vmatprep.subr.bf16.mxu0 0
        %5620 = vmatpush1.bf16.msra.mxu0 %v5601
        %5621 = vmatprep.subr.bf16.mxu0 0
        %5622 = vmatpush1.bf16.msra.mxu0 %v5600
        %5623 = vmatprep.subr.bf16.mxu0 0
        %5624 = vmatpush2.bf16.msra.mxu0 0
        %5625 = vmatprep.subr.bf16.mxu0 0
        %5626 = vmatpush2.bf16.msra.mxu0 0
        %5627 = vmatprep.subr.bf16.mxu0 0
        %5628 = vmatpush2.bf16.msra.mxu0 0
        %5629 = vmatprep.subr.bf16.mxu0 0
        %5630 = vmatpush2.bf16.msra.mxu0 0
        %5631 = vmatprep.subr.bf16.mxu0 0
        %5632 = vmatpush2.bf16.msra.mxu0 0
        %5633 = vmatprep.subr.bf16.mxu0 0
        %5634 = vmatpush2.bf16.msra.mxu0 0
        %5635 = vmatprep.subr.bf16.mxu0 0
        %5636 = vmatpush2.bf16.msra.mxu0 0
        %5637 = vmatprep.subr.bf16.mxu0 0
        %5638 = vmatpush2.bf16.msra.mxu0 0
        %5639 = vmatprep.mubr.bf16.mxu0 0
        %5640 = vmatmul.mubr.bf16.gmra.mxu0 %v5605
        %v5641 = vpop.f32.mrf.mxu0
        %v5642 = vadd.f32 0.0, %v5641
        %v5643 = vpop.f32.mrf.mxu0
        %v5644 = vpop.f32.mrf.mxu0
        %v5645 = vadd.f32 0.0, %v5644
        %v5646 = vpop.f32.mrf.mxu0
        %5647 = vdwg.mxu0
        %v5648 = vadd.f32 %v5574, %v5642
        %v5649 = vadd.f32 %v5577, %v5645
        %v5650 = vld [vmem:[#allocation6 + $0x7] sm:$0xff]
        %v5651 = vld [vmem:[#allocation6 + $0xf] sm:$0xff]
        %v5652 = vsel %vm5451, %v5650, 0.0
        %v5653 = vsel %vm5452, %v5651, 0.0
        %v5654 = vpack.c.bf16 %v5653, %v5652
        %s5655 = scalar_lea.vmem %s7, 48
        %v5656 = vld [vmem:[%s5655] sm:$0xf]
        %v5657 = vld [vmem:[%s5655 + $0x4] sm:$0xf]
        %v5658 = vld [vmem:[%s5655 + $0x8] sm:$0xf]
        %v5659 = vld [vmem:[%s5655 + $0xc] sm:$0xf]
        %v5664 = vunpack.c.l.b16 %v5656
        %v5665 = vunpack.c.l.b16 %v5657
        %v5666 = vunpack.c.l.b16 %v5658
        %v5667 = vunpack.c.l.b16 %v5659
        %v5668 = vpack.c.b16 %v5665, %v5664
        %v5669 = vpack.c.b16 %v5667, %v5666
        %v5673 = vsel %vm5279, %v5654, 0
        %5675 = vmatprep.subr.bf16.mxu0 0
        %5676 = vmatpush1.bf16.msra.mxu0 0
        %5677 = vmatprep.subr.bf16.mxu0 0
        %5678 = vmatpush1.bf16.msra.mxu0 0
        %5679 = vmatprep.subr.bf16.mxu0 0
        %5680 = vmatpush1.bf16.msra.mxu0 0
        %5681 = vmatprep.subr.bf16.mxu0 0
        %5682 = vmatpush1.bf16.msra.mxu0 0
        %5683 = vmatprep.subr.bf16.mxu0 0
        %5684 = vmatpush1.bf16.msra.mxu0 0
        %5685 = vmatprep.subr.bf16.mxu0 0
        %5686 = vmatpush1.bf16.msra.mxu0 0
        %5687 = vmatprep.subr.bf16.mxu0 0
        %5688 = vmatpush1.bf16.msra.mxu0 %v5669
        %5689 = vmatprep.subr.bf16.mxu0 0
        %5690 = vmatpush1.bf16.msra.mxu0 %v5668
        %5691 = vmatprep.subr.bf16.mxu0 0
        %5692 = vmatpush2.bf16.msra.mxu0 0
        %5693 = vmatprep.subr.bf16.mxu0 0
        %5694 = vmatpush2.bf16.msra.mxu0 0
        %5695 = vmatprep.subr.bf16.mxu0 0
        %5696 = vmatpush2.bf16.msra.mxu0 0
        %5697 = vmatprep.subr.bf16.mxu0 0
        %5698 = vmatpush2.bf16.msra.mxu0 0
        %5699 = vmatprep.subr.bf16.mxu0 0
        %5700 = vmatpush2.bf16.msra.mxu0 0
        %5701 = vmatprep.subr.bf16.mxu0 0
        %5702 = vmatpush2.bf16.msra.mxu0 0
        %5703 = vmatprep.subr.bf16.mxu0 0
        %5704 = vmatpush2.bf16.msra.mxu0 0
        %5705 = vmatprep.subr.bf16.mxu0 0
        %5706 = vmatpush2.bf16.msra.mxu0 0
        %5707 = vmatprep.mubr.bf16.mxu0 0
        %5708 = vmatmul.mubr.bf16.gmra.mxu0 %v5673
        %v5709 = vpop.f32.mrf.mxu0
        %v5710 = vadd.f32 0.0, %v5709
        %v5711 = vpop.f32.mrf.mxu0
        %v5712 = vpop.f32.mrf.mxu0
        %v5713 = vadd.f32 0.0, %v5712
        %v5714 = vpop.f32.mrf.mxu0
        %5715 = vdwg.mxu0
        %v5716 = vadd.f32 %v5648, %v5710
        %v5717 = vadd.f32 %v5649, %v5713
        %v5718 = vld [vmem:[#allocation6 + $0x8] sm:$0xff]
        %v5719 = vld [vmem:[#allocation6 + $0x10] sm:$0xff]
        %v5720 = vpack.c.bf16 %v5719, %v5718
        %s5721 = scalar_lea.vmem %s7, 64
        %v5722 = vld [vmem:[%s5721] sm:$0xf]
        %v5723 = vld [vmem:[%s5721 + $0x4] sm:$0xf]
        %v5724 = vld [vmem:[%s5721 + $0x8] sm:$0xf]
        %v5725 = vld [vmem:[%s5721 + $0xc] sm:$0xf]
        %v5730 = vunpack.c.l.b16 %v5722
        %v5731 = vunpack.c.l.b16 %v5723
        %v5732 = vunpack.c.l.b16 %v5724
        %v5733 = vunpack.c.l.b16 %v5725
        %v5734 = vpack.c.b16 %v5731, %v5730
        %v5735 = vpack.c.b16 %v5733, %v5732
        %v5739 = vsel %vm5279, %v5720, 0
        %5741 = vmatprep.subr.bf16.mxu0 0
        %5742 = vmatpush1.bf16.msra.mxu0 0
        %5743 = vmatprep.subr.bf16.mxu0 0
        %5744 = vmatpush1.bf16.msra.mxu0 0
        %5745 = vmatprep.subr.bf16.mxu0 0
        %5746 = vmatpush1.bf16.msra.mxu0 0
        %5747 = vmatprep.subr.bf16.mxu0 0
        %5748 = vmatpush1.bf16.msra.mxu0 0
        %5749 = vmatprep.subr.bf16.mxu0 0
        %5750 = vmatpush1.bf16.msra.mxu0 0
        %5751 = vmatprep.subr.bf16.mxu0 0
        %5752 = vmatpush1.bf16.msra.mxu0 0
        %5753 = vmatprep.subr.bf16.mxu0 0
        %5754 = vmatpush1.bf16.msra.mxu0 %v5735
        %5755 = vmatprep.subr.bf16.mxu0 0
        %5756 = vmatpush1.bf16.msra.mxu0 %v5734
        %5757 = vmatprep.subr.bf16.mxu0 0
        %5758 = vmatpush2.bf16.msra.mxu0 0
        %5759 = vmatprep.subr.bf16.mxu0 0
        %5760 = vmatpush2.bf16.msra.mxu0 0
        %5761 = vmatprep.subr.bf16.mxu0 0
        %5762 = vmatpush2.bf16.msra.mxu0 0
        %5763 = vmatprep.subr.bf16.mxu0 0
        %5764 = vmatpush2.bf16.msra.mxu0 0
        %5765 = vmatprep.subr.bf16.mxu0 0
        %5766 = vmatpush2.bf16.msra.mxu0 0
        %5767 = vmatprep.subr.bf16.mxu0 0
        %5768 = vmatpush2.bf16.msra.mxu0 0
        %5769 = vmatprep.subr.bf16.mxu0 0
        %5770 = vmatpush2.bf16.msra.mxu0 0
        %5771 = vmatprep.subr.bf16.mxu0 0
        %5772 = vmatpush2.bf16.msra.mxu0 0
        %5773 = vmatprep.mubr.bf16.mxu0 0
        %5774 = vmatmul.mubr.bf16.gmra.mxu0 %v5739
        %v5775 = vpop.f32.mrf.mxu0
        %v5776 = vadd.f32 0.0, %v5775
        %v5777 = vpop.f32.mrf.mxu0
        %v5778 = vpop.f32.mrf.mxu0
        %v5779 = vadd.f32 0.0, %v5778
        %v5780 = vpop.f32.mrf.mxu0
        %5781 = vdwg.mxu0
        %v5782 = vadd.f32 %v5716, %v5776
        %v5783 = vadd.f32 %v5717, %v5779
        %v5784 = vld [vmem:[#allocation6 + $0x9] sm:$0xff]
        %v5785 = vld [vmem:[#allocation6 + $0x11] sm:$0xff]
        %v5786 = vsel %vm5582, %v5784, 0.0
        %v5787 = vsel %vm5583, %v5785, 0.0
        %v5788 = vpack.c.bf16 %v5787, %v5786
        %s5789 = scalar_lea.vmem %s7, 80
        %v5790 = vld [vmem:[%s5789] sm:$0xf]
        %v5791 = vld [vmem:[%s5789 + $0x4] sm:$0xf]
        %v5792 = vld [vmem:[%s5789 + $0x8] sm:$0xf]
        %v5793 = vld [vmem:[%s5789 + $0xc] sm:$0xf]
        %v5798 = vunpack.c.l.b16 %v5790
        %v5799 = vunpack.c.l.b16 %v5791
        %v5800 = vunpack.c.l.b16 %v5792
        %v5801 = vunpack.c.l.b16 %v5793
        %v5802 = vpack.c.b16 %v5799, %v5798
        %v5803 = vpack.c.b16 %v5801, %v5800
        %v5807 = vsel %vm5279, %v5788, 0
        %5809 = vmatprep.subr.bf16.mxu0 0
        %5810 = vmatpush1.bf16.msra.mxu0 0
        %5811 = vmatprep.subr.bf16.mxu0 0
        %5812 = vmatpush1.bf16.msra.mxu0 0
        %5813 = vmatprep.subr.bf16.mxu0 0
        %5814 = vmatpush1.bf16.msra.mxu0 0
        %5815 = vmatprep.subr.bf16.mxu0 0
        %5816 = vmatpush1.bf16.msra.mxu0 0
        %5817 = vmatprep.subr.bf16.mxu0 0
        %5818 = vmatpush1.bf16.msra.mxu0 0
        %5819 = vmatprep.subr.bf16.mxu0 0
        %5820 = vmatpush1.bf16.msra.mxu0 0
        %5821 = vmatprep.subr.bf16.mxu0 0
        %5822 = vmatpush1.bf16.msra.mxu0 %v5803
        %5823 = vmatprep.subr.bf16.mxu0 0
        %5824 = vmatpush1.bf16.msra.mxu0 %v5802
        %5825 = vmatprep.subr.bf16.mxu0 0
        %5826 = vmatpush2.bf16.msra.mxu0 0
        %5827 = vmatprep.subr.bf16.mxu0 0
        %5828 = vmatpush2.bf16.msra.mxu0 0
        %5829 = vmatprep.subr.bf16.mxu0 0
        %5830 = vmatpush2.bf16.msra.mxu0 0
        %5831 = vmatprep.subr.bf16.mxu0 0
        %5832 = vmatpush2.bf16.msra.mxu0 0
        %5833 = vmatprep.subr.bf16.mxu0 0
        %5834 = vmatpush2.bf16.msra.mxu0 0
        %5835 = vmatprep.subr.bf16.mxu0 0
        %5836 = vmatpush2.bf16.msra.mxu0 0
        %5837 = vmatprep.subr.bf16.mxu0 0
        %5838 = vmatpush2.bf16.msra.mxu0 0
        %5839 = vmatprep.subr.bf16.mxu0 0
        %5840 = vmatpush2.bf16.msra.mxu0 0
        %5841 = vmatprep.mubr.bf16.mxu0 0
        %5842 = vmatmul.mubr.bf16.gmra.mxu0 %v5807
        %v5843 = vpop.f32.mrf.mxu0
        %v5844 = vadd.f32 0.0, %v5843
        %v5845 = vpop.f32.mrf.mxu0
        %v5846 = vpop.f32.mrf.mxu0
        %v5847 = vadd.f32 0.0, %v5846
        %v5848 = vpop.f32.mrf.mxu0
        %5849 = vdwg.mxu0
        %v5850 = vadd.f32 %v5782, %v5844
        %v5851 = vadd.f32 %v5783, %v5847
        %v5852 = vld [vmem:[#allocation6 + $0xb] sm:$0xff]
        %v5853 = vld [vmem:[#allocation6 + $0x13] sm:$0xff]
        %v5854 = vsel %vm5451, %v5852, 0.0
        %v5855 = vsel %vm5452, %v5853, 0.0
        %v5856 = vpack.c.bf16 %v5855, %v5854
        %s5857 = scalar_lea.vmem %s7, 96
        %v5858 = vld [vmem:[%s5857] sm:$0xf]
        %v5859 = vld [vmem:[%s5857 + $0x4] sm:$0xf]
        %v5860 = vld [vmem:[%s5857 + $0x8] sm:$0xf]
        %v5861 = vld [vmem:[%s5857 + $0xc] sm:$0xf]
        %v5866 = vunpack.c.l.b16 %v5858
        %v5867 = vunpack.c.l.b16 %v5859
        %v5868 = vunpack.c.l.b16 %v5860
        %v5869 = vunpack.c.l.b16 %v5861
        %v5870 = vpack.c.b16 %v5867, %v5866
        %v5871 = vpack.c.b16 %v5869, %v5868
        %v5875 = vsel %vm5279, %v5856, 0
        %5877 = vmatprep.subr.bf16.mxu0 0
        %5878 = vmatpush1.bf16.msra.mxu0 0
        %5879 = vmatprep.subr.bf16.mxu0 0
        %5880 = vmatpush1.bf16.msra.mxu0 0
        %5881 = vmatprep.subr.bf16.mxu0 0
        %5882 = vmatpush1.bf16.msra.mxu0 0
        %5883 = vmatprep.subr.bf16.mxu0 0
        %5884 = vmatpush1.bf16.msra.mxu0 0
        %5885 = vmatprep.subr.bf16.mxu0 0
        %5886 = vmatpush1.bf16.msra.mxu0 0
        %5887 = vmatprep.subr.bf16.mxu0 0
        %5888 = vmatpush1.bf16.msra.mxu0 0
        %5889 = vmatprep.subr.bf16.mxu0 0
        %5890 = vmatpush1.bf16.msra.mxu0 %v5871
        %5891 = vmatprep.subr.bf16.mxu0 0
        %5892 = vmatpush1.bf16.msra.mxu0 %v5870
        %5893 = vmatprep.subr.bf16.mxu0 0
        %5894 = vmatpush2.bf16.msra.mxu0 0
        %5895 = vmatprep.subr.bf16.mxu0 0
        %5896 = vmatpush2.bf16.msra.mxu0 0
        %5897 = vmatprep.subr.bf16.mxu0 0
        %5898 = vmatpush2.bf16.msra.mxu0 0
        %5899 = vmatprep.subr.bf16.mxu0 0
        %5900 = vmatpush2.bf16.msra.mxu0 0
        %5901 = vmatprep.subr.bf16.mxu0 0
        %5902 = vmatpush2.bf16.msra.mxu0 0
        %5903 = vmatprep.subr.bf16.mxu0 0
        %5904 = vmatpush2.bf16.msra.mxu0 0
        %5905 = vmatprep.subr.bf16.mxu0 0
        %5906 = vmatpush2.bf16.msra.mxu0 0
        %5907 = vmatprep.subr.bf16.mxu0 0
        %5908 = vmatpush2.bf16.msra.mxu0 0
        %5909 = vmatprep.mubr.bf16.mxu0 0
        %5910 = vmatmul.mubr.bf16.gmra.mxu0 %v5875
        %v5911 = vpop.f32.mrf.mxu0
        %v5912 = vadd.f32 0.0, %v5911
        %v5913 = vpop.f32.mrf.mxu0
        %v5914 = vpop.f32.mrf.mxu0
        %v5915 = vadd.f32 0.0, %v5914
        %v5916 = vpop.f32.mrf.mxu0
        %5917 = vdwg.mxu0
        %v5918 = vadd.f32 %v5850, %v5912
        %v5919 = vadd.f32 %v5851, %v5915
        %v5920 = vld [vmem:[#allocation6 + $0xc] sm:$0xff]
        %v5921 = vld [vmem:[#allocation6 + $0x14] sm:$0xff]
        %v5922 = vpack.c.bf16 %v5921, %v5920
        %s5923 = scalar_lea.vmem %s7, 112
        %v5924 = vld [vmem:[%s5923] sm:$0xf]
        %v5925 = vld [vmem:[%s5923 + $0x4] sm:$0xf]
        %v5926 = vld [vmem:[%s5923 + $0x8] sm:$0xf]
        %v5927 = vld [vmem:[%s5923 + $0xc] sm:$0xf]
        %v5932 = vunpack.c.l.b16 %v5924
        %v5933 = vunpack.c.l.b16 %v5925
        %v5934 = vunpack.c.l.b16 %v5926
        %v5935 = vunpack.c.l.b16 %v5927
        %v5936 = vpack.c.b16 %v5933, %v5932
        %v5937 = vpack.c.b16 %v5935, %v5934
        %v5941 = vsel %vm5279, %v5922, 0
        %5943 = vmatprep.subr.bf16.mxu0 0
        %5944 = vmatpush1.bf16.msra.mxu0 0
        %5945 = vmatprep.subr.bf16.mxu0 0
        %5946 = vmatpush1.bf16.msra.mxu0 0
        %5947 = vmatprep.subr.bf16.mxu0 0
        %5948 = vmatpush1.bf16.msra.mxu0 0
        %5949 = vmatprep.subr.bf16.mxu0 0
        %5950 = vmatpush1.bf16.msra.mxu0 0
        %5951 = vmatprep.subr.bf16.mxu0 0
        %5952 = vmatpush1.bf16.msra.mxu0 0
        %5953 = vmatprep.subr.bf16.mxu0 0
        %5954 = vmatpush1.bf16.msra.mxu0 0
        %5955 = vmatprep.subr.bf16.mxu0 0
        %5956 = vmatpush1.bf16.msra.mxu0 %v5937
        %5957 = vmatprep.subr.bf16.mxu0 0
        %5958 = vmatpush1.bf16.msra.mxu0 %v5936
        %5959 = vmatprep.subr.bf16.mxu0 0
        %5960 = vmatpush2.bf16.msra.mxu0 0
        %5961 = vmatprep.subr.bf16.mxu0 0
        %5962 = vmatpush2.bf16.msra.mxu0 0
        %5963 = vmatprep.subr.bf16.mxu0 0
        %5964 = vmatpush2.bf16.msra.mxu0 0
        %5965 = vmatprep.subr.bf16.mxu0 0
        %5966 = vmatpush2.bf16.msra.mxu0 0
        %5967 = vmatprep.subr.bf16.mxu0 0
        %5968 = vmatpush2.bf16.msra.mxu0 0
        %5969 = vmatprep.subr.bf16.mxu0 0
        %5970 = vmatpush2.bf16.msra.mxu0 0
        %5971 = vmatprep.subr.bf16.mxu0 0
        %5972 = vmatpush2.bf16.msra.mxu0 0
        %5973 = vmatprep.subr.bf16.mxu0 0
        %5974 = vmatpush2.bf16.msra.mxu0 0
        %5975 = vmatprep.mubr.bf16.mxu0 0
        %5976 = vmatmul.mubr.bf16.gmra.mxu0 %v5941
        %v5977 = vpop.f32.mrf.mxu0
        %v5978 = vadd.f32 0.0, %v5977
        %v5979 = vpop.f32.mrf.mxu0
        %v5980 = vpop.f32.mrf.mxu0
        %v5981 = vadd.f32 0.0, %v5980
        %v5982 = vpop.f32.mrf.mxu0
        %5983 = vdwg.mxu0
        %v5984 = vadd.f32 %v5918, %v5978
        %v5985 = vadd.f32 %v5919, %v5981
        %v5986 = vld [vmem:[#allocation6 + $0xd] sm:$0xff]
        %v5987 = vld [vmem:[#allocation6 + $0x15] sm:$0xff]
        %v5988 = vsel %vm5582, %v5986, 0.0
        %v5989 = vsel %vm5583, %v5987, 0.0
        %v5990 = vpack.c.bf16 %v5989, %v5988
        %s5991 = scalar_lea.vmem %s7, 128
        %v5992 = vld [vmem:[%s5991] sm:$0xf]
        %v5993 = vld [vmem:[%s5991 + $0x4] sm:$0xf]
        %v5994 = vld [vmem:[%s5991 + $0x8] sm:$0xf]
        %v5995 = vld [vmem:[%s5991 + $0xc] sm:$0xf]
        %v6000 = vunpack.c.l.b16 %v5992
        %v6001 = vunpack.c.l.b16 %v5993
        %v6002 = vunpack.c.l.b16 %v5994
        %v6003 = vunpack.c.l.b16 %v5995
        %v6004 = vpack.c.b16 %v6001, %v6000
        %v6005 = vpack.c.b16 %v6003, %v6002
        %v6009 = vsel %vm5279, %v5990, 0
        %6011 = vmatprep.subr.bf16.mxu0 0
        %6012 = vmatpush1.bf16.msra.mxu0 0
        %6013 = vmatprep.subr.bf16.mxu0 0
        %6014 = vmatpush1.bf16.msra.mxu0 0
        %6015 = vmatprep.subr.bf16.mxu0 0
        %6016 = vmatpush1.bf16.msra.mxu0 0
        %6017 = vmatprep.subr.bf16.mxu0 0
        %6018 = vmatpush1.bf16.msra.mxu0 0
        %6019 = vmatprep.subr.bf16.mxu0 0
        %6020 = vmatpush1.bf16.msra.mxu0 0
        %6021 = vmatprep.subr.bf16.mxu0 0
        %6022 = vmatpush1.bf16.msra.mxu0 0
        %6023 = vmatprep.subr.bf16.mxu0 0
        %6024 = vmatpush1.bf16.msra.mxu0 %v6005
        %6025 = vmatprep.subr.bf16.mxu0 0
        %6026 = vmatpush1.bf16.msra.mxu0 %v6004
        %6027 = vmatprep.subr.bf16.mxu0 0
        %6028 = vmatpush2.bf16.msra.mxu0 0
        %6029 = vmatprep.subr.bf16.mxu0 0
        %6030 = vmatpush2.bf16.msra.mxu0 0
        %6031 = vmatprep.subr.bf16.mxu0 0
        %6032 = vmatpush2.bf16.msra.mxu0 0
        %6033 = vmatprep.subr.bf16.mxu0 0
        %6034 = vmatpush2.bf16.msra.mxu0 0
        %6035 = vmatprep.subr.bf16.mxu0 0
        %6036 = vmatpush2.bf16.msra.mxu0 0
        %6037 = vmatprep.subr.bf16.mxu0 0
        %6038 = vmatpush2.bf16.msra.mxu0 0
        %6039 = vmatprep.subr.bf16.mxu0 0
        %6040 = vmatpush2.bf16.msra.mxu0 0
        %6041 = vmatprep.subr.bf16.mxu0 0
        %6042 = vmatpush2.bf16.msra.mxu0 0
        %6043 = vmatprep.mubr.bf16.mxu0 0
        %6044 = vmatmul.mubr.bf16.gmra.mxu0 %v6009
        %v6045 = vpop.f32.mrf.mxu0
        %v6046 = vadd.f32 0.0, %v6045
        %v6047 = vpop.f32.mrf.mxu0
        %v6048 = vpop.f32.mrf.mxu0
        %v6049 = vadd.f32 0.0, %v6048
        %v6050 = vpop.f32.mrf.mxu0
        %6051 = vdwg.mxu0
        %v6052 = vadd.f32 %v5984, %v6046
        %v6053 = vadd.f32 %v5985, %v6049
        %v6054 = vld [vmem:[%s8] sm:$0x1]
        %v6056 = vlaneseq
        %v6057 = vshrl.u32 %v6056, 7
        %v6058 = vsub.s32 0, %v6057
        %v6059 = vrot.slane %v6054, %v6058
        %v6061 = vadd.f32 %v6052, %v6059
        %v6062 = vadd.f32 %v6053, %v6059
        %v6063 = vmax.f32 %v6061, 0.0
        %v6064 = vmax.f32 %v6062, 0.0
        %v6065 = vsel %vm5336, %v6063, 0.0
        %v6066 = vsel %vm5336, %v6064, 0.0
        %v6067 = vadd.f32 %v6065, %v6066
        %v6068 = vrot.slane %v6067, 4
        %v6069 = vadd.f32 %v6067, %v6068
        %v6070 = vrot.slane %v6069, 2
        %v6071 = vadd.f32 %v6069, %v6070
        %v6072 = vrot.slane %v6071, 1
        %v6073 = vadd.f32 %v6071, %v6072
        %v6074 = vrcp.pop 16.0
        %v6075 = vmul.f32 %v6073, %v6074
        %v6076 = vld [vmem:[%s9] sm:$0xff]
        %v6077 = vld [vmem:[%s9 + $0x8] sm:$0xff]
        %v6078 = vld [vmem:[%s9 + $0x10] sm:$0xff]
        %v6079 = vld [vmem:[%s9 + $0x18] sm:$0xff]
        %v6080 = vld [vmem:[%s9 + $0x20] sm:$0xff]
        %v6081 = vld [vmem:[%s9 + $0x28] sm:$0xff]
        %v6082 = vld [vmem:[%s9 + $0x30] sm:$0xff]
        %v6083 = vld [vmem:[%s9 + $0x38] sm:$0xff]
        %v6084 = vld [vmem:[%s10] sm:$0x1]
        %v6086 = vsel %vm5336, %v6075, 0
        %6088 = vmatprep.subr.mxu0 0.0
        %6089 = vmatpush1.msra.mxu0 0.0
        %6090 = vmatprep.subr.mxu0 0.0
        %6091 = vmatpush1.msra.mxu0 0.0
        %6092 = vmatprep.subr.mxu0 0.0
        %6093 = vmatpush1.msra.mxu0 0.0
        %6094 = vmatprep.subr.mxu0 0.0
        %6095 = vmatpush1.msra.mxu0 0.0
        %6096 = vmatprep.subr.mxu0 0.0
        %6097 = vmatpush1.msra.mxu0 0.0
        %6098 = vmatprep.subr.mxu0 0.0
        %6099 = vmatpush1.msra.mxu0 0.0
        %6100 = vmatprep.subr.mxu0 0.0
        %6101 = vmatpush1.msra.mxu0 0.0
        %6102 = vmatprep.subr.mxu0 0.0
        %6103 = vmatpush1.msra.mxu0 0.0
        %6104 = vmatprep.subr.mxu0 0.0
        %6105 = vmatpush1.msra.mxu0 %v6083
        %6106 = vmatprep.subr.mxu0 0.0
        %6107 = vmatpush1.msra.mxu0 %v6082
        %6108 = vmatprep.subr.mxu0 0.0
        %6109 = vmatpush1.msra.mxu0 %v6081
        %6110 = vmatprep.subr.mxu0 0.0
        %6111 = vmatpush1.msra.mxu0 %v6080
        %6112 = vmatprep.subr.mxu0 0.0
        %6113 = vmatpush1.msra.mxu0 %v6079
        %6114 = vmatprep.subr.mxu0 0.0
        %6115 = vmatpush1.msra.mxu0 %v6078
        %6116 = vmatprep.subr.mxu0 0.0
        %6117 = vmatpush1.msra.mxu0 %v6077
        %6118 = vmatprep.subr.mxu0 0.0
        %6119 = vmatpush1.msra.mxu0 %v6076
        %6120 = vmatprep.subr.mxu0 0.0
        %6121 = vmatpush2.msra.mxu0 0.0
        %6122 = vmatprep.subr.mxu0 0.0
        %6123 = vmatpush2.msra.mxu0 0.0
        %6124 = vmatprep.subr.mxu0 0.0
        %6125 = vmatpush2.msra.mxu0 0.0
        %6126 = vmatprep.subr.mxu0 0.0
        %6127 = vmatpush2.msra.mxu0 0.0
        %6128 = vmatprep.subr.mxu0 0.0
        %6129 = vmatpush2.msra.mxu0 0.0
        %6130 = vmatprep.subr.mxu0 0.0
        %6131 = vmatpush2.msra.mxu0 0.0
        %6132 = vmatprep.subr.mxu0 0.0
        %6133 = vmatpush2.msra.mxu0 0.0
        %6134 = vmatprep.subr.mxu0 0.0
        %6135 = vmatpush2.msra.mxu0 0.0
        %6136 = vmatprep.subr.mxu0 0.0
        %6137 = vmatpush2.msra.mxu0 0.0
        %6138 = vmatprep.subr.mxu0 0.0
        %6139 = vmatpush2.msra.mxu0 0.0
        %6140 = vmatprep.subr.mxu0 0.0
        %6141 = vmatpush2.msra.mxu0 0.0
        %6142 = vmatprep.subr.mxu0 0.0
        %6143 = vmatpush2.msra.mxu0 0.0
        %6144 = vmatprep.subr.mxu0 0.0
        %6145 = vmatpush2.msra.mxu0 0.0
        %6146 = vmatprep.subr.mxu0 0.0
        %6147 = vmatpush2.msra.mxu0 0.0
        %6148 = vmatprep.subr.mxu0 0.0
        %6149 = vmatpush2.msra.mxu0 0.0
        %6150 = vmatprep.subr.mxu0 0.0
        %6151 = vmatpush2.msra.mxu0 0.0
        %6152 = vmatprep.mubr.f32.mxu0 0.0
        %6153 = vmatmul.mubr.f32.gmra.mxu0 %v6086
        %v6154 = vpop.f32.mrf.mxu0
        %v6155 = vadd.f32 %v6084, %v6154
        %v6156 = vpop.f32.mrf.mxu0
        %6157 = vdwg.mxu0
        %vm6158 = vcmask 8192
        %6159 = vst.msk [vmem:[%s378] sm:$0x1] %vm6158, %v6155
        %s6160 = sand.u32 %s269, 1
        %s6161 = scalar_lea.sflag [#allocation8], %s6160
        %s6162 = sand.u32 %s269, 1
        %s6163 = scalar_lea.vmem [#allocation7], %s6162
        // Predicated region
        $region65: #{tpu_custom_call.1} parent=63 // pred_check
          %p6164 = pneg %p279
        $region66: #{tpu_custom_call.1} parent=63 // pred_check_branch
          %6166 = sbr.rel (%p6164) target = $region68
        $region67: #{tpu_custom_call.1} parent=63 // pred_region
          %s6168 = ssub.s32 16, 16
          %6169 = vsyncadd %s6161, %s6168
          %s6170 = smul.addr %s25, 16
          %s6171 = scalar_lea.hbm %s11, %s6170
          %s6173 = sshll.u32 %s6163, 4
          %s6174 = int_to_ptr.vmem [resolvable:$true] %s6173
          %6176 = dma.vmem_to_hbm [thread:$0]  %s6174, 16, %s6171, %s6161
        $region68: #{tpu_custom_call.1} parent=63 // pred_fallthru
          _
      $region64: #{tpu_custom_call.1} parent=5 // pred_fallthru
        _
      %p6177 = scmp.le.s32.totalorder 2, %s20
      // Predicated region
      $region69: #{tpu_custom_call.1} parent=5 // pred_check
        %p6178 = pneg %p6177
      $region70: #{tpu_custom_call.1} parent=5 // pred_check_branch
        %6180 = sbr.rel (%p6178) target = $region72
      $region71: #{tpu_custom_call.1} parent=5 // pred_region
        %s6181 = ssub.s32 %s20, 2
        // Predicated region
        $region73: #{tpu_custom_call.1} parent=71 // pred_check
          %p6182 = pneg %p285
        $region74: #{tpu_custom_call.1} parent=71 // pred_check_branch
          %6184 = sbr.rel (%p6182) target = $region76
        $region75: #{tpu_custom_call.1} parent=71 // pred_region
          %s6185 = sand.u32 %s270, 1
          %s6186 = scalar_lea.sflag [#allocation8], %s6185
          %s6187 = sand.u32 %s270, 1
          %s6188 = scalar_lea.vmem [#allocation7], %s6187
          %6189 = dma.done %s6186, 16
        $region76: #{tpu_custom_call.1} parent=71 // pred_fallthru
          _
      $region72: #{tpu_custom_call.1} parent=5 // pred_fallthru
        _
    $region6: #{tpu_custom_call.1} parent=1 // loop_footer
      %s24 = sadd.s32 1, %s20
    $region7: #{tpu_custom_call.1} parent=1 // loop_footer_branch
      %19 = sbr.rel target = $region3
    $region8: #{tpu_custom_call.1} parent=1 // loop_exit
      _
    %6190 = vsyncpa [#allocation8], 1
    %s6191 = scalar_lea.sflag [#allocation8], 1
    %6192 = vsyncpa %s6191, 1

</llo_original>
